<compile_context>
chip_gen: v6e
topology: v6e:2x2x1
jax: 0.10.0
libtpu: 0.0.40
codegen_flags: <defaults>
</compile_context>

<pallas_src>
import jax
import jax.numpy as jnp
from jax.experimental import pallas as pl
from jax.experimental.pallas import tpu as pltpu

EPS = 1e-5  # torch BatchNorm default eps


# ----------------------------------------------------------------------------
# Fused kernel.  Shapes (N = batch, na = n_actions):
#   xs   : (N*49, 432) bf16  conv1 super-patches, lanes = (r12, c12, cin)
#   a    : (N, na)     bf16  raw actions (BN1d folded into w5a/b5)
#   w1s  : (432, 128)  bf16  BN-folded conv1 s2d GEMM weight, cols=(dy,dx,c)
#   w2g  : (512, 64)   bf16  conv2 GEMM weight, rows = (di,dj,dy,dx,cin)
#   w3g  : (576, 64)   bf16  conv3 GEMM weight, rows = (kh,kw,cin)
#   w4g  : (1024, 512) bf16  fc4 weight, rows permuted to (h, w, c)
#   w5h  : (512, 128)  bf16  fc5 weight (h part), zero-padded to 128 cols
#   w5a  : (na, 128)   bf16  fc5 weight (action part, BN1d-scaled), padded
#   b*   : (1, C)      f32   biases (b1 tiled to 128, b5 padded to 128)
#   out  : (N, 128)    f32   column 0 is the Critic value
# ----------------------------------------------------------------------------
def _critic_kernel(xs_ref, a_ref,
                   w1_ref, b1_ref, w2_ref, b2_ref, w3_ref, b3_ref,
                   w4_ref, b4_ref, w5h_ref, w5a_ref, b5_ref,
                   o_ref,
                   a1_ref, p2_ref, a2_ref, p3_ref, a3_ref):
    f32 = jnp.float32
    bf16 = jnp.bfloat16
    N = a_ref.shape[0]

    # ---- conv1 (+ folded BN2d + ReLU): one GEMM, output directly in s2d ----
    # a1 rows = (n, OH, OW) on the 7x7 s2d grid, 128 lanes = (dy, dx, c).
    h1 = jnp.dot(xs_ref[...], w1_ref[...], preferred_element_type=f32)
    a1_ref[...] = jnp.maximum(h1 + b1_ref[...], 0.0).astype(bf16)      # (N*49, 128)

    # ---- conv2 (+ ReLU): k=2 s=1 on the s2d grid, lane-aligned pieces ------
    for n in range(N):
        for oh in range(6):
            pieces = [a1_ref[pl.ds(n * 49 + (oh + di) * 7 + dj, 6), :]
                      for di in range(2) for dj in range(2)]
            p2_ref[pl.ds((n * 6 + oh) * 6, 6), :] = jnp.concatenate(pieces, axis=-1)
    h2 = jnp.dot(p2_ref[...], w2_ref[...], preferred_element_type=f32)
    a2_ref[...] = jnp.maximum(h2 + b2_ref[...], 0.0).astype(bf16)      # (N*36, 64)

    # ---- conv3 (+ ReLU): k=3 s=1, contiguous 4-row slices ------------------
    for n in range(N):
        for oh in range(4):
            pieces = [a2_ref[pl.ds(n * 36 + (oh + kh) * 6 + kw, 4), :]
                      for kh in range(3) for kw in range(3)]
            p3_ref[pl.ds((n * 4 + oh) * 4, 4), :] = jnp.concatenate(pieces, axis=-1)
    h3 = jnp.dot(p3_ref[...], w3_ref[...], preferred_element_type=f32)
    h3 = jnp.maximum(h3 + b3_ref[...], 0.0).astype(bf16)               # (N*16, 64)
    for n in range(N):
        a3_ref[n, :, :] = h3[n * 16:(n + 1) * 16, :]

    # ---- fc4 (+ ReLU): 16 accumulated partial GEMMs over w4 row-blocks -----
    acc4 = jnp.broadcast_to(b4_ref[...], (N, 512)).astype(f32)
    for p in range(16):
        acc4 = acc4 + jnp.dot(a3_ref[:, p, :], w4_ref[pl.ds(p * 64, 64), :],
                              preferred_element_type=f32)
    h4 = jnp.maximum(acc4, 0.0).astype(bf16)                           # (N, 512)

    # ---- fc5 (BN1d(a) already folded into w5a / b5); lane-dense output -----
    out = jnp.dot(h4, w5h_ref[...], preferred_element_type=f32)
    out = out + jnp.dot(a_ref[...], w5a_ref[...], preferred_element_type=f32)
    o_ref[...] = out + b5_ref[...]                                     # (N, 128)


# ----------------------------------------------------------------------------
# One-time static weight packing (layout only; no batch-stat dependence).
# ----------------------------------------------------------------------------
def prepare_params(params):
    p = dict(params)
    # conv2: rows ordered (di, dj, dy, dx, cin) for the s2d k=2 formulation,
    # where the original kernel position is (kh, kw) = (2*di + dy, 2*dj + dx).
    w2r = params["w2"].transpose(2, 3, 1, 0).reshape(2, 2, 2, 2, 32, 64)
    p["w2g"] = w2r.transpose(0, 2, 1, 3, 4, 5).reshape(512, 64).astype(jnp.bfloat16)
    p["b2r"] = params["b2"].reshape(1, 64).astype(jnp.float32)
    # conv3: rows ordered (kh, kw, cin)
    p["w3g"] = params["w3"].transpose(2, 3, 1, 0).reshape(576, 64).astype(jnp.bfloat16)
    p["b3r"] = params["b3"].reshape(1, 64).astype(jnp.float32)
    # fc4: rows from torch flatten order (c, h, w) -> (h, w, c)
    p["w4g"] = (params["w4"].reshape(64, 4, 4, 512).transpose(1, 2, 0, 3)
                .reshape(1024, 512).astype(jnp.bfloat16))
    p["b4r"] = params["b4"].reshape(1, 512).astype(jnp.float32)
    # fc5 h-part: zero-padded to 128 output lanes (lane-dense store)
    p["w5h"] = jnp.pad(params["w5"][:512], ((0, 0), (0, 127))).astype(jnp.bfloat16)
    return p


# ----------------------------------------------------------------------------
# Forward: tiny batch-stat reductions + BN folds + conv1 im2col in the
# wrapper, everything heavy in the single fused Pallas kernel.
# ----------------------------------------------------------------------------
def critic_forward(p, x, a):
    N = x.shape[0]
    na = a.shape[1]
    f32 = jnp.float32
    bf16 = jnp.bfloat16

    # BatchNorm2d(3), training-mode batch stats, folded into conv1 (exact).
    mean = x.mean(axis=(0, 2, 3))
    var = x.var(axis=(0, 2, 3))                       # biased, matches torch
    s = p["bn_g"] * jax.lax.rsqrt(var + EPS)
    t = p["bn_b"] - mean * s
    w1f = p["w1"] * s.reshape(1, 3, 1, 1)                              # (32,3,8,8)
    b1v = p["b1"] + jnp.einsum("ocij,c->o", p["w1"], t)                # (32,)

    # conv1 GEMM weight in "super-patch" space-to-depth form: (432, 128),
    # rows = (r12, c12, cin) of a 12x12x3 patch, cols = (dy, dx, cout) with
    # (dy, dx) the sub-position inside a 2x2 block of conv1 output pixels.
    wk = w1f.transpose(2, 3, 1, 0)                                     # (kh,kw,cin,cout)
    blocks = []
    for dy in range(2):
        for dx in range(2):
            blk = jnp.pad(wk, ((4 * dy, 4 - 4 * dy), (4 * dx, 4 - 4 * dx),
                               (0, 0), (0, 0)))                        # (12,12,3,32)
            blocks.append(blk.reshape(432, 32))
    w1s = jnp.concatenate(blocks, axis=1).astype(bf16)                 # (432, 128)
    b1s = jnp.tile(b1v, 4).reshape(1, 128).astype(f32)

    # conv1 im2col in the wrapper: 12x12x3 super-patches at stride 8.
    xh = x.transpose(0, 2, 3, 1)                                       # (N,60,60,3)
    r = (jnp.arange(7) * 8)[:, None] + jnp.arange(12)[None, :]         # (7,12)
    patches = xh[:, r[:, None, :, None], r[None, :, None, :], :]       # (N,7,7,12,12,3)
    xs = patches.reshape(N * 49, 432).astype(bf16)

    # BatchNorm1d(a), training-mode batch stats, folded into fc5 action part.
    am = a.mean(axis=0)
    av = a.var(axis=0)
    ra = jax.lax.rsqrt(av + EPS)
    sa = p["bna_g"] * ra                                               # (na,)
    ta = p["bna_b"] - am * sa                                          # (na,)
    w5_act = p["w5"][512:]                                             # (na, 1)
    w5a = jnp.pad(sa[:, None] * w5_act, ((0, 0), (0, 127))).astype(bf16)   # (na,128)
    b5p = jnp.pad(p["b5"] + ta @ w5_act, (0, 127)).reshape(1, 128).astype(f32)

    operands = (xs, a.astype(bf16), w1s, b1s,
                p["w2g"], p["b2r"], p["w3g"], p["b3r"],
                p["w4g"], p["b4r"], p["w5h"], w5a, b5p)

    flops = 2 * (N * 49 * 432 * 128 + N * 36 * 512 * 64 + N * 16 * 576 * 64
                 + N * 1024 * 512 + N * (512 + na) * 128)
    bytes_accessed = int(sum(o.size * o.dtype.itemsize for o in operands)
                         + N * 128 * 4)

    vmem = pl.BlockSpec(memory_space=pltpu.MemorySpace.VMEM)
    out = pl.pallas_call(
        _critic_kernel,
        out_shape=jax.ShapeDtypeStruct((N, 128), jnp.float32),
        in_specs=[vmem] * len(operands),
        out_specs=vmem,
        scratch_shapes=[
            pltpu.VMEM((N * 49, 128), bf16),   # conv1 activations (s2d layout)
            pltpu.VMEM((N * 36, 512), bf16),   # conv2 im2col patches
            pltpu.VMEM((N * 36, 64), bf16),    # conv2 activations
            pltpu.VMEM((N * 16, 576), bf16),   # conv3 im2col patches
            pltpu.VMEM((N, 16, 64), bf16),     # conv3 activations
        ],
        cost_estimate=pl.CostEstimate(flops=flops, transcendentals=0,
                                      bytes_accessed=bytes_accessed),
    )(*operands)

    return out[:, :1]


# ----------------------------------------------------------------------------
# Plain-JAX f32 reference (torch semantics) for the correctness check.
# ----------------------------------------------------------------------------
def reference_forward(params, x, a):
    mean = x.mean(axis=(0, 2, 3), keepdims=True)
    var = x.var(axis=(0, 2, 3), keepdims=True)
    xn = (x - mean) / jnp.sqrt(var + EPS)
    xn = xn * params["bn_g"].reshape(1, 3, 1, 1) + params["bn_b"].reshape(1, 3, 1, 1)

    def conv(h, w, b, s):
        y = jax.lax.conv_general_dilated(
            h, w, (s, s), "VALID", dimension_numbers=("NCHW", "OIHW", "NCHW"))
        return jax.nn.relu(y + b.reshape(1, -1, 1, 1))

    h = conv(xn, params["w1"], params["b1"], 4)
    h = conv(h, params["w2"], params["b2"], 2)
    h = conv(h, params["w3"], params["b3"], 1)
    h = h.reshape(h.shape[0], -1)
    h = jax.nn.relu(h @ params["w4"] + params["b4"])
    am = a.mean(axis=0, keepdims=True)
    av = a.var(axis=0, keepdims=True)
    an = (a - am) / jnp.sqrt(av + EPS) * params["bna_g"] + params["bna_b"]
    h = jnp.concatenate([h, an], axis=1)
    return h @ params["w5"] + params["b5"]


# ----------------------------------------------------------------------------
# Deterministic synthetic parameter init (shapes from Critic.__init__).
# ----------------------------------------------------------------------------
def init_params(key, n_actions):
    ks = jax.random.split(key, 12)

    def w(k, shape, fan_in):
        return jax.random.normal(k, shape, jnp.float32) / jnp.sqrt(fan_in)

    p = {}
    p["bn_g"] = 1.0 + 0.1 * jax.random.normal(ks[0], (3,), jnp.float32)
    p["bn_b"] = 0.1 * jax.random.normal(ks[1], (3,), jnp.float32)
    p["bna_g"] = 1.0 + 0.1 * jax.random.normal(ks[2], (n_actions,), jnp.float32)
    p["bna_b"] = 0.1 * jax.random.normal(ks[3], (n_actions,), jnp.float32)
    p["w1"] = w(ks[4], (32, 3, 8, 8), 3 * 8 * 8)        # Conv2d(3, 32, 8, 4)
    p["b1"] = 0.01 * jax.random.normal(ks[5], (32,), jnp.float32)
    p["w2"] = w(ks[6], (64, 32, 4, 4), 32 * 4 * 4)      # Conv2d(32, 64, 4, 2)
    p["b2"] = 0.01 * jax.random.normal(ks[7], (64,), jnp.float32)
    p["w3"] = w(ks[8], (64, 64, 3, 3), 64 * 3 * 3)      # Conv2d(64, 64, 3, 1)
    p["b3"] = 0.01 * jax.random.normal(ks[9], (64,), jnp.float32)
    p["w4"] = w(ks[10], (4 * 4 * 64, 512), 4 * 4 * 64)  # Linear(1024, 512), stored W.T
    p["b4"] = jnp.zeros((512,), jnp.float32)
    p["w5"] = w(ks[11], (512 + n_actions, 1), 512 + n_actions)  # Linear(512+na, 1)
    p["b5"] = jnp.zeros((1,), jnp.float32)
    return p


if __name__ == "__main__":
    n_actions = 4
    key = jax.random.PRNGKey(0)
    kx, ka, kp = jax.random.split(key, 3)

    # Input spatial size must be 60x60 so conv3 output is 4x4 (matches fc4).
    x = jax.random.normal(kx, (2, 3, 60, 60), jnp.float32)
    a = jax.random.normal(ka, (2, n_actions), jnp.float32)
    params = init_params(kp, n_actions)
    packed = prepare_params(params)     # one-time weight layout packing

    fwd = jax.jit(critic_forward)
    out = jax.block_until_ready(fwd(packed, x, a))

    ref = reference_forward(params, x, a)
    assert out.shape == (2, 1), out.shape
    assert bool(jnp.all(jnp.isfinite(out)))
    assert bool(jnp.allclose(out, ref, atol=5e-2, rtol=5e-2)), (out, ref)

    print("KERNEL_OK")
</pallas_src>

<mosaic_0001>
module attributes {stable_mosaic.version = 11 : i64} {
  func.func @_critic_kernel(%arg0: memref<98x432xbf16, #tpu.memory_space<vmem>>, %arg1: memref<2x4xbf16, #tpu.memory_space<vmem>>, %arg2: memref<432x128xbf16, #tpu.memory_space<vmem>>, %arg3: memref<1x128xf32, #tpu.memory_space<vmem>>, %arg4: memref<512x64xbf16, #tpu.memory_space<vmem>>, %arg5: memref<1x64xf32, #tpu.memory_space<vmem>>, %arg6: memref<576x64xbf16, #tpu.memory_space<vmem>>, %arg7: memref<1x64xf32, #tpu.memory_space<vmem>>, %arg8: memref<1024x512xbf16, #tpu.memory_space<vmem>>, %arg9: memref<1x512xf32, #tpu.memory_space<vmem>>, %arg10: memref<512x128xbf16, #tpu.memory_space<vmem>>, %arg11: memref<4x128xbf16, #tpu.memory_space<vmem>>, %arg12: memref<1x128xf32, #tpu.memory_space<vmem>>, %arg13: memref<2x128xf32, #tpu.memory_space<vmem>>, %arg14: memref<98x128xbf16, #tpu.memory_space<vmem>>, %arg15: memref<72x512xbf16, #tpu.memory_space<vmem>>, %arg16: memref<72x64xbf16, #tpu.memory_space<vmem>>, %arg17: memref<32x576xbf16, #tpu.memory_space<vmem>>, %arg18: memref<2x16x64xbf16, #tpu.memory_space<vmem>>) attributes {dimension_semantics = [], scalar_prefetch = 0 : i64, scratch_operands = 5 : i64, tpu.core_type = #tpu.core_type<tc>} {
    %c0 = arith.constant 0 : index
    %c0_0 = arith.constant 0 : index
    %0 = vector.load %arg0[%c0, %c0_0] : memref<98x432xbf16, #tpu.memory_space<vmem>>, vector<98x432xbf16>
    %c0_1 = arith.constant 0 : index
    %c0_2 = arith.constant 0 : index
    %1 = vector.load %arg2[%c0_1, %c0_2] : memref<432x128xbf16, #tpu.memory_space<vmem>>, vector<432x128xbf16>
    %cst = arith.constant dense<0.000000e+00> : vector<98x128xf32>
    %2 = tpu.matmul %0, %1, %cst {dimension_numbers = #tpu.dot_dimension_numbers<[1], [0], [0], [1], [0, 0, 1, 1], [], []>} : vector<98x432xbf16>, vector<432x128xbf16>, vector<98x128xf32> -> vector<98x128xf32>
    %c0_3 = arith.constant 0 : index
    %c0_4 = arith.constant 0 : index
    %3 = vector.load %arg3[%c0_3, %c0_4] : memref<1x128xf32, #tpu.memory_space<vmem>>, vector<1x128xf32>
    %4 = vector.broadcast %3 : vector<1x128xf32> to vector<98x128xf32>
    %5 = arith.addf %2, %4 : vector<98x128xf32>
    %cst_5 = arith.constant 0.000000e+00 : f32
    %6 = vector.broadcast %cst_5 : f32 to vector<98x128xf32>
    %7 = arith.maximumf %5, %6 : vector<98x128xf32>
    %8 = arith.truncf %7 : vector<98x128xf32> to vector<98x128xbf16>
    %c0_6 = arith.constant 0 : index
    %c0_7 = arith.constant 0 : index
    %9 = vector.load %arg14[%c0_6, %c0_7] : memref<98x128xbf16, #tpu.memory_space<vmem>>, vector<98x128xbf16>
    tpu.vector_store %arg14[%c0_6, %c0_7], %8 {strides = array<i32>} : memref<98x128xbf16, #tpu.memory_space<vmem>>, vector<98x128xbf16>,
    %c0_8 = arith.constant 0 : index
    %c0_9 = arith.constant 0 : index
    %10 = vector.load %arg14[%c0_8, %c0_9] : memref<98x128xbf16, #tpu.memory_space<vmem>>, vector<6x128xbf16>
    %c1 = arith.constant 1 : index
    %c0_10 = arith.constant 0 : index
    %11 = vector.load %arg14[%c1, %c0_10] : memref<98x128xbf16, #tpu.memory_space<vmem>>, vector<6x128xbf16>
    %c7 = arith.constant 7 : index
    %c0_11 = arith.constant 0 : index
    %12 = vector.load %arg14[%c7, %c0_11] : memref<98x128xbf16, #tpu.memory_space<vmem>>, vector<6x128xbf16>
    %c8 = arith.constant 8 : index
    %c0_12 = arith.constant 0 : index
    %13 = vector.load %arg14[%c8, %c0_12] : memref<98x128xbf16, #tpu.memory_space<vmem>>, vector<6x128xbf16>
    %14 = tpu.concatenate %10, %11, %12, %13 in 1 : vector<6x128xbf16>, vector<6x128xbf16>, vector<6x128xbf16>, vector<6x128xbf16> -> vector<6x512xbf16>
    %c0_13 = arith.constant 0 : index
    %c0_14 = arith.constant 0 : index
    %15 = vector.load %arg15[%c0_13, %c0_14] : memref<72x512xbf16, #tpu.memory_space<vmem>>, vector<6x512xbf16>
    tpu.vector_store %arg15[%c0_13, %c0_14], %14 {strides = array<i32>} : memref<72x512xbf16, #tpu.memory_space<vmem>>, vector<6x512xbf16>,
    %c7_15 = arith.constant 7 : index
    %c0_16 = arith.constant 0 : index
    %16 = vector.load %arg14[%c7_15, %c0_16] : memref<98x128xbf16, #tpu.memory_space<vmem>>, vector<6x128xbf16>
    %c8_17 = arith.constant 8 : index
    %c0_18 = arith.constant 0 : index
    %17 = vector.load %arg14[%c8_17, %c0_18] : memref<98x128xbf16, #tpu.memory_space<vmem>>, vector<6x128xbf16>
    %c14 = arith.constant 14 : index
    %c0_19 = arith.constant 0 : index
    %18 = vector.load %arg14[%c14, %c0_19] : memref<98x128xbf16, #tpu.memory_space<vmem>>, vector<6x128xbf16>
    %c15 = arith.constant 15 : index
    %c0_20 = arith.constant 0 : index
    %19 = vector.load %arg14[%c15, %c0_20] : memref<98x128xbf16, #tpu.memory_space<vmem>>, vector<6x128xbf16>
    %20 = tpu.concatenate %16, %17, %18, %19 in 1 : vector<6x128xbf16>, vector<6x128xbf16>, vector<6x128xbf16>, vector<6x128xbf16> -> vector<6x512xbf16>
    %c6 = arith.constant 6 : index
    %c0_21 = arith.constant 0 : index
    %21 = vector.load %arg15[%c6, %c0_21] : memref<72x512xbf16, #tpu.memory_space<vmem>>, vector<6x512xbf16>
    tpu.vector_store %arg15[%c6, %c0_21], %20 {strides = array<i32>} : memref<72x512xbf16, #tpu.memory_space<vmem>>, vector<6x512xbf16>,
    %c14_22 = arith.constant 14 : index
    %c0_23 = arith.constant 0 : index
    %22 = vector.load %arg14[%c14_22, %c0_23] : memref<98x128xbf16, #tpu.memory_space<vmem>>, vector<6x128xbf16>
    %c15_24 = arith.constant 15 : index
    %c0_25 = arith.constant 0 : index
    %23 = vector.load %arg14[%c15_24, %c0_25] : memref<98x128xbf16, #tpu.memory_space<vmem>>, vector<6x128xbf16>
    %c21 = arith.constant 21 : index
    %c0_26 = arith.constant 0 : index
    %24 = vector.load %arg14[%c21, %c0_26] : memref<98x128xbf16, #tpu.memory_space<vmem>>, vector<6x128xbf16>
    %c22 = arith.constant 22 : index
    %c0_27 = arith.constant 0 : index
    %25 = vector.load %arg14[%c22, %c0_27] : memref<98x128xbf16, #tpu.memory_space<vmem>>, vector<6x128xbf16>
    %26 = tpu.concatenate %22, %23, %24, %25 in 1 : vector<6x128xbf16>, vector<6x128xbf16>, vector<6x128xbf16>, vector<6x128xbf16> -> vector<6x512xbf16>
    %c12 = arith.constant 12 : index
    %c0_28 = arith.constant 0 : index
    %27 = vector.load %arg15[%c12, %c0_28] : memref<72x512xbf16, #tpu.memory_space<vmem>>, vector<6x512xbf16>
    tpu.vector_store %arg15[%c12, %c0_28], %26 {strides = array<i32>} : memref<72x512xbf16, #tpu.memory_space<vmem>>, vector<6x512xbf16>,
    %c21_29 = arith.constant 21 : index
    %c0_30 = arith.constant 0 : index
    %28 = vector.load %arg14[%c21_29, %c0_30] : memref<98x128xbf16, #tpu.memory_space<vmem>>, vector<6x128xbf16>
    %c22_31 = arith.constant 22 : index
    %c0_32 = arith.constant 0 : index
    %29 = vector.load %arg14[%c22_31, %c0_32] : memref<98x128xbf16, #tpu.memory_space<vmem>>, vector<6x128xbf16>
    %c28 = arith.constant 28 : index
    %c0_33 = arith.constant 0 : index
    %30 = vector.load %arg14[%c28, %c0_33] : memref<98x128xbf16, #tpu.memory_space<vmem>>, vector<6x128xbf16>
    %c29 = arith.constant 29 : index
    %c0_34 = arith.constant 0 : index
    %31 = vector.load %arg14[%c29, %c0_34] : memref<98x128xbf16, #tpu.memory_space<vmem>>, vector<6x128xbf16>
    %32 = tpu.concatenate %28, %29, %30, %31 in 1 : vector<6x128xbf16>, vector<6x128xbf16>, vector<6x128xbf16>, vector<6x128xbf16> -> vector<6x512xbf16>
    %c18 = arith.constant 18 : index
    %c0_35 = arith.constant 0 : index
    %33 = vector.load %arg15[%c18, %c0_35] : memref<72x512xbf16, #tpu.memory_space<vmem>>, vector<6x512xbf16>
    tpu.vector_store %arg15[%c18, %c0_35], %32 {strides = array<i32>} : memref<72x512xbf16, #tpu.memory_space<vmem>>, vector<6x512xbf16>,
    %c28_36 = arith.constant 28 : index
    %c0_37 = arith.constant 0 : index
    %34 = vector.load %arg14[%c28_36, %c0_37] : memref<98x128xbf16, #tpu.memory_space<vmem>>, vector<6x128xbf16>
    %c29_38 = arith.constant 29 : index
    %c0_39 = arith.constant 0 : index
    %35 = vector.load %arg14[%c29_38, %c0_39] : memref<98x128xbf16, #tpu.memory_space<vmem>>, vector<6x128xbf16>
    %c35 = arith.constant 35 : index
    %c0_40 = arith.constant 0 : index
    %36 = vector.load %arg14[%c35, %c0_40] : memref<98x128xbf16, #tpu.memory_space<vmem>>, vector<6x128xbf16>
    %c36 = arith.constant 36 : index
    %c0_41 = arith.constant 0 : index
    %37 = vector.load %arg14[%c36, %c0_41] : memref<98x128xbf16, #tpu.memory_space<vmem>>, vector<6x128xbf16>
    %38 = tpu.concatenate %34, %35, %36, %37 in 1 : vector<6x128xbf16>, vector<6x128xbf16>, vector<6x128xbf16>, vector<6x128xbf16> -> vector<6x512xbf16>
    %c24 = arith.constant 24 : index
    %c0_42 = arith.constant 0 : index
    %39 = vector.load %arg15[%c24, %c0_42] : memref<72x512xbf16, #tpu.memory_space<vmem>>, vector<6x512xbf16>
    tpu.vector_store %arg15[%c24, %c0_42], %38 {strides = array<i32>} : memref<72x512xbf16, #tpu.memory_space<vmem>>, vector<6x512xbf16>,
    %c35_43 = arith.constant 35 : index
    %c0_44 = arith.constant 0 : index
    %40 = vector.load %arg14[%c35_43, %c0_44] : memref<98x128xbf16, #tpu.memory_space<vmem>>, vector<6x128xbf16>
    %c36_45 = arith.constant 36 : index
    %c0_46 = arith.constant 0 : index
    %41 = vector.load %arg14[%c36_45, %c0_46] : memref<98x128xbf16, #tpu.memory_space<vmem>>, vector<6x128xbf16>
    %c42 = arith.constant 42 : index
    %c0_47 = arith.constant 0 : index
    %42 = vector.load %arg14[%c42, %c0_47] : memref<98x128xbf16, #tpu.memory_space<vmem>>, vector<6x128xbf16>
    %c43 = arith.constant 43 : index
    %c0_48 = arith.constant 0 : index
    %43 = vector.load %arg14[%c43, %c0_48] : memref<98x128xbf16, #tpu.memory_space<vmem>>, vector<6x128xbf16>
    %44 = tpu.concatenate %40, %41, %42, %43 in 1 : vector<6x128xbf16>, vector<6x128xbf16>, vector<6x128xbf16>, vector<6x128xbf16> -> vector<6x512xbf16>
    %c30 = arith.constant 30 : index
    %c0_49 = arith.constant 0 : index
    %45 = vector.load %arg15[%c30, %c0_49] : memref<72x512xbf16, #tpu.memory_space<vmem>>, vector<6x512xbf16>
    tpu.vector_store %arg15[%c30, %c0_49], %44 {strides = array<i32>} : memref<72x512xbf16, #tpu.memory_space<vmem>>, vector<6x512xbf16>,
    %c49 = arith.constant 49 : index
    %c0_50 = arith.constant 0 : index
    %46 = vector.load %arg14[%c49, %c0_50] : memref<98x128xbf16, #tpu.memory_space<vmem>>, vector<6x128xbf16>
    %c50 = arith.constant 50 : index
    %c0_51 = arith.constant 0 : index
    %47 = vector.load %arg14[%c50, %c0_51] : memref<98x128xbf16, #tpu.memory_space<vmem>>, vector<6x128xbf16>
    %c56 = arith.constant 56 : index
    %c0_52 = arith.constant 0 : index
    %48 = vector.load %arg14[%c56, %c0_52] : memref<98x128xbf16, #tpu.memory_space<vmem>>, vector<6x128xbf16>
    %c57 = arith.constant 57 : index
    %c0_53 = arith.constant 0 : index
    %49 = vector.load %arg14[%c57, %c0_53] : memref<98x128xbf16, #tpu.memory_space<vmem>>, vector<6x128xbf16>
    %50 = tpu.concatenate %46, %47, %48, %49 in 1 : vector<6x128xbf16>, vector<6x128xbf16>, vector<6x128xbf16>, vector<6x128xbf16> -> vector<6x512xbf16>
    %c36_54 = arith.constant 36 : index
    %c0_55 = arith.constant 0 : index
    %51 = vector.load %arg15[%c36_54, %c0_55] : memref<72x512xbf16, #tpu.memory_space<vmem>>, vector<6x512xbf16>
    tpu.vector_store %arg15[%c36_54, %c0_55], %50 {strides = array<i32>} : memref<72x512xbf16, #tpu.memory_space<vmem>>, vector<6x512xbf16>,
    %c56_56 = arith.constant 56 : index
    %c0_57 = arith.constant 0 : index
    %52 = vector.load %arg14[%c56_56, %c0_57] : memref<98x128xbf16, #tpu.memory_space<vmem>>, vector<6x128xbf16>
    %c57_58 = arith.constant 57 : index
    %c0_59 = arith.constant 0 : index
    %53 = vector.load %arg14[%c57_58, %c0_59] : memref<98x128xbf16, #tpu.memory_space<vmem>>, vector<6x128xbf16>
    %c63 = arith.constant 63 : index
    %c0_60 = arith.constant 0 : index
    %54 = vector.load %arg14[%c63, %c0_60] : memref<98x128xbf16, #tpu.memory_space<vmem>>, vector<6x128xbf16>
    %c64 = arith.constant 64 : index
    %c0_61 = arith.constant 0 : index
    %55 = vector.load %arg14[%c64, %c0_61] : memref<98x128xbf16, #tpu.memory_space<vmem>>, vector<6x128xbf16>
    %56 = tpu.concatenate %52, %53, %54, %55 in 1 : vector<6x128xbf16>, vector<6x128xbf16>, vector<6x128xbf16>, vector<6x128xbf16> -> vector<6x512xbf16>
    %c42_62 = arith.constant 42 : index
    %c0_63 = arith.constant 0 : index
    %57 = vector.load %arg15[%c42_62, %c0_63] : memref<72x512xbf16, #tpu.memory_space<vmem>>, vector<6x512xbf16>
    tpu.vector_store %arg15[%c42_62, %c0_63], %56 {strides = array<i32>} : memref<72x512xbf16, #tpu.memory_space<vmem>>, vector<6x512xbf16>,
    %c63_64 = arith.constant 63 : index
    %c0_65 = arith.constant 0 : index
    %58 = vector.load %arg14[%c63_64, %c0_65] : memref<98x128xbf16, #tpu.memory_space<vmem>>, vector<6x128xbf16>
    %c64_66 = arith.constant 64 : index
    %c0_67 = arith.constant 0 : index
    %59 = vector.load %arg14[%c64_66, %c0_67] : memref<98x128xbf16, #tpu.memory_space<vmem>>, vector<6x128xbf16>
    %c70 = arith.constant 70 : index
    %c0_68 = arith.constant 0 : index
    %60 = vector.load %arg14[%c70, %c0_68] : memref<98x128xbf16, #tpu.memory_space<vmem>>, vector<6x128xbf16>
    %c71 = arith.constant 71 : index
    %c0_69 = arith.constant 0 : index
    %61 = vector.load %arg14[%c71, %c0_69] : memref<98x128xbf16, #tpu.memory_space<vmem>>, vector<6x128xbf16>
    %62 = tpu.concatenate %58, %59, %60, %61 in 1 : vector<6x128xbf16>, vector<6x128xbf16>, vector<6x128xbf16>, vector<6x128xbf16> -> vector<6x512xbf16>
    %c48 = arith.constant 48 : index
    %c0_70 = arith.constant 0 : index
    %63 = vector.load %arg15[%c48, %c0_70] : memref<72x512xbf16, #tpu.memory_space<vmem>>, vector<6x512xbf16>
    tpu.vector_store %arg15[%c48, %c0_70], %62 {strides = array<i32>} : memref<72x512xbf16, #tpu.memory_space<vmem>>, vector<6x512xbf16>,
    %c70_71 = arith.constant 70 : index
    %c0_72 = arith.constant 0 : index
    %64 = vector.load %arg14[%c70_71, %c0_72] : memref<98x128xbf16, #tpu.memory_space<vmem>>, vector<6x128xbf16>
    %c71_73 = arith.constant 71 : index
    %c0_74 = arith.constant 0 : index
    %65 = vector.load %arg14[%c71_73, %c0_74] : memref<98x128xbf16, #tpu.memory_space<vmem>>, vector<6x128xbf16>
    %c77 = arith.constant 77 : index
    %c0_75 = arith.constant 0 : index
    %66 = vector.load %arg14[%c77, %c0_75] : memref<98x128xbf16, #tpu.memory_space<vmem>>, vector<6x128xbf16>
    %c78 = arith.constant 78 : index
    %c0_76 = arith.constant 0 : index
    %67 = vector.load %arg14[%c78, %c0_76] : memref<98x128xbf16, #tpu.memory_space<vmem>>, vector<6x128xbf16>
    %68 = tpu.concatenate %64, %65, %66, %67 in 1 : vector<6x128xbf16>, vector<6x128xbf16>, vector<6x128xbf16>, vector<6x128xbf16> -> vector<6x512xbf16>
    %c54 = arith.constant 54 : index
    %c0_77 = arith.constant 0 : index
    %69 = vector.load %arg15[%c54, %c0_77] : memref<72x512xbf16, #tpu.memory_space<vmem>>, vector<6x512xbf16>
    tpu.vector_store %arg15[%c54, %c0_77], %68 {strides = array<i32>} : memref<72x512xbf16, #tpu.memory_space<vmem>>, vector<6x512xbf16>,
    %c77_78 = arith.constant 77 : index
    %c0_79 = arith.constant 0 : index
    %70 = vector.load %arg14[%c77_78, %c0_79] : memref<98x128xbf16, #tpu.memory_space<vmem>>, vector<6x128xbf16>
    %c78_80 = arith.constant 78 : index
    %c0_81 = arith.constant 0 : index
    %71 = vector.load %arg14[%c78_80, %c0_81] : memref<98x128xbf16, #tpu.memory_space<vmem>>, vector<6x128xbf16>
    %c84 = arith.constant 84 : index
    %c0_82 = arith.constant 0 : index
    %72 = vector.load %arg14[%c84, %c0_82] : memref<98x128xbf16, #tpu.memory_space<vmem>>, vector<6x128xbf16>
    %c85 = arith.constant 85 : index
    %c0_83 = arith.constant 0 : index
    %73 = vector.load %arg14[%c85, %c0_83] : memref<98x128xbf16, #tpu.memory_space<vmem>>, vector<6x128xbf16>
    %74 = tpu.concatenate %70, %71, %72, %73 in 1 : vector<6x128xbf16>, vector<6x128xbf16>, vector<6x128xbf16>, vector<6x128xbf16> -> vector<6x512xbf16>
    %c60 = arith.constant 60 : index
    %c0_84 = arith.constant 0 : index
    %75 = vector.load %arg15[%c60, %c0_84] : memref<72x512xbf16, #tpu.memory_space<vmem>>, vector<6x512xbf16>
    tpu.vector_store %arg15[%c60, %c0_84], %74 {strides = array<i32>} : memref<72x512xbf16, #tpu.memory_space<vmem>>, vector<6x512xbf16>,
    %c84_85 = arith.constant 84 : index
    %c0_86 = arith.constant 0 : index
    %76 = vector.load %arg14[%c84_85, %c0_86] : memref<98x128xbf16, #tpu.memory_space<vmem>>, vector<6x128xbf16>
    %c85_87 = arith.constant 85 : index
    %c0_88 = arith.constant 0 : index
    %77 = vector.load %arg14[%c85_87, %c0_88] : memref<98x128xbf16, #tpu.memory_space<vmem>>, vector<6x128xbf16>
    %c91 = arith.constant 91 : index
    %c0_89 = arith.constant 0 : index
    %78 = vector.load %arg14[%c91, %c0_89] : memref<98x128xbf16, #tpu.memory_space<vmem>>, vector<6x128xbf16>
    %c92 = arith.constant 92 : index
    %c0_90 = arith.constant 0 : index
    %79 = vector.load %arg14[%c92, %c0_90] : memref<98x128xbf16, #tpu.memory_space<vmem>>, vector<6x128xbf16>
    %80 = tpu.concatenate %76, %77, %78, %79 in 1 : vector<6x128xbf16>, vector<6x128xbf16>, vector<6x128xbf16>, vector<6x128xbf16> -> vector<6x512xbf16>
    %c66 = arith.constant 66 : index
    %c0_91 = arith.constant 0 : index
    %81 = vector.load %arg15[%c66, %c0_91] : memref<72x512xbf16, #tpu.memory_space<vmem>>, vector<6x512xbf16>
    tpu.vector_store %arg15[%c66, %c0_91], %80 {strides = array<i32>} : memref<72x512xbf16, #tpu.memory_space<vmem>>, vector<6x512xbf16>,
    %c0_92 = arith.constant 0 : index
    %c0_93 = arith.constant 0 : index
    %82 = vector.load %arg15[%c0_92, %c0_93] : memref<72x512xbf16, #tpu.memory_space<vmem>>, vector<72x512xbf16>
    %c0_94 = arith.constant 0 : index
    %c0_95 = arith.constant 0 : index
    %83 = vector.load %arg4[%c0_94, %c0_95] : memref<512x64xbf16, #tpu.memory_space<vmem>>, vector<512x64xbf16>
    %cst_96 = arith.constant dense<0.000000e+00> : vector<72x64xf32>
    %84 = tpu.matmul %82, %83, %cst_96 {dimension_numbers = #tpu.dot_dimension_numbers<[1], [0], [0], [1], [0, 0, 1, 1], [], []>} : vector<72x512xbf16>, vector<512x64xbf16>, vector<72x64xf32> -> vector<72x64xf32>
    %c0_97 = arith.constant 0 : index
    %c0_98 = arith.constant 0 : index
    %85 = vector.load %arg5[%c0_97, %c0_98] : memref<1x64xf32, #tpu.memory_space<vmem>>, vector<1x64xf32>
    %86 = vector.broadcast %85 : vector<1x64xf32> to vector<72x64xf32>
    %87 = arith.addf %84, %86 : vector<72x64xf32>
    %cst_99 = arith.constant 0.000000e+00 : f32
    %88 = vector.broadcast %cst_99 : f32 to vector<72x64xf32>
    %89 = arith.maximumf %87, %88 : vector<72x64xf32>
    %90 = arith.truncf %89 : vector<72x64xf32> to vector<72x64xbf16>
    %c0_100 = arith.constant 0 : index
    %c0_101 = arith.constant 0 : index
    %91 = vector.load %arg16[%c0_100, %c0_101] : memref<72x64xbf16, #tpu.memory_space<vmem>>, vector<72x64xbf16>
    tpu.vector_store %arg16[%c0_100, %c0_101], %90 {strides = array<i32>} : memref<72x64xbf16, #tpu.memory_space<vmem>>, vector<72x64xbf16>,
    %c0_102 = arith.constant 0 : index
    %c0_103 = arith.constant 0 : index
    %92 = vector.load %arg16[%c0_102, %c0_103] : memref<72x64xbf16, #tpu.memory_space<vmem>>, vector<4x64xbf16>
    %c1_104 = arith.constant 1 : index
    %c0_105 = arith.constant 0 : index
    %93 = vector.load %arg16[%c1_104, %c0_105] : memref<72x64xbf16, #tpu.memory_space<vmem>>, vector<4x64xbf16>
    %c2 = arith.constant 2 : index
    %c0_106 = arith.constant 0 : index
    %94 = vector.load %arg16[%c2, %c0_106] : memref<72x64xbf16, #tpu.memory_space<vmem>>, vector<4x64xbf16>
    %c6_107 = arith.constant 6 : index
    %c0_108 = arith.constant 0 : index
    %95 = vector.load %arg16[%c6_107, %c0_108] : memref<72x64xbf16, #tpu.memory_space<vmem>>, vector<4x64xbf16>
    %c7_109 = arith.constant 7 : index
    %c0_110 = arith.constant 0 : index
    %96 = vector.load %arg16[%c7_109, %c0_110] : memref<72x64xbf16, #tpu.memory_space<vmem>>, vector<4x64xbf16>
    %c8_111 = arith.constant 8 : index
    %c0_112 = arith.constant 0 : index
    %97 = vector.load %arg16[%c8_111, %c0_112] : memref<72x64xbf16, #tpu.memory_space<vmem>>, vector<4x64xbf16>
    %c12_113 = arith.constant 12 : index
    %c0_114 = arith.constant 0 : index
    %98 = vector.load %arg16[%c12_113, %c0_114] : memref<72x64xbf16, #tpu.memory_space<vmem>>, vector<4x64xbf16>
    %c13 = arith.constant 13 : index
    %c0_115 = arith.constant 0 : index
    %99 = vector.load %arg16[%c13, %c0_115] : memref<72x64xbf16, #tpu.memory_space<vmem>>, vector<4x64xbf16>
    %c14_116 = arith.constant 14 : index
    %c0_117 = arith.constant 0 : index
    %100 = vector.load %arg16[%c14_116, %c0_117] : memref<72x64xbf16, #tpu.memory_space<vmem>>, vector<4x64xbf16>
    %101 = tpu.concatenate %92, %93, %94, %95, %96, %97, %98, %99, %100 in 1 : vector<4x64xbf16>, vector<4x64xbf16>, vector<4x64xbf16>, vector<4x64xbf16>, vector<4x64xbf16>, vector<4x64xbf16>, vector<4x64xbf16>, vector<4x64xbf16>, vector<4x64xbf16> -> vector<4x576xbf16>
    %c0_118 = arith.constant 0 : index
    %c0_119 = arith.constant 0 : index
    %102 = vector.load %arg17[%c0_118, %c0_119] : memref<32x576xbf16, #tpu.memory_space<vmem>>, vector<4x576xbf16>
    tpu.vector_store %arg17[%c0_118, %c0_119], %101 {strides = array<i32>} : memref<32x576xbf16, #tpu.memory_space<vmem>>, vector<4x576xbf16>,
    %c6_120 = arith.constant 6 : index
    %c0_121 = arith.constant 0 : index
    %103 = vector.load %arg16[%c6_120, %c0_121] : memref<72x64xbf16, #tpu.memory_space<vmem>>, vector<4x64xbf16>
    %c7_122 = arith.constant 7 : index
    %c0_123 = arith.constant 0 : index
    %104 = vector.load %arg16[%c7_122, %c0_123] : memref<72x64xbf16, #tpu.memory_space<vmem>>, vector<4x64xbf16>
    %c8_124 = arith.constant 8 : index
    %c0_125 = arith.constant 0 : index
    %105 = vector.load %arg16[%c8_124, %c0_125] : memref<72x64xbf16, #tpu.memory_space<vmem>>, vector<4x64xbf16>
    %c12_126 = arith.constant 12 : index
    %c0_127 = arith.constant 0 : index
    %106 = vector.load %arg16[%c12_126, %c0_127] : memref<72x64xbf16, #tpu.memory_space<vmem>>, vector<4x64xbf16>
    %c13_128 = arith.constant 13 : index
    %c0_129 = arith.constant 0 : index
    %107 = vector.load %arg16[%c13_128, %c0_129] : memref<72x64xbf16, #tpu.memory_space<vmem>>, vector<4x64xbf16>
    %c14_130 = arith.constant 14 : index
    %c0_131 = arith.constant 0 : index
    %108 = vector.load %arg16[%c14_130, %c0_131] : memref<72x64xbf16, #tpu.memory_space<vmem>>, vector<4x64xbf16>
    %c18_132 = arith.constant 18 : index
    %c0_133 = arith.constant 0 : index
    %109 = vector.load %arg16[%c18_132, %c0_133] : memref<72x64xbf16, #tpu.memory_space<vmem>>, vector<4x64xbf16>
    %c19 = arith.constant 19 : index
    %c0_134 = arith.constant 0 : index
    %110 = vector.load %arg16[%c19, %c0_134] : memref<72x64xbf16, #tpu.memory_space<vmem>>, vector<4x64xbf16>
    %c20 = arith.constant 20 : index
    %c0_135 = arith.constant 0 : index
    %111 = vector.load %arg16[%c20, %c0_135] : memref<72x64xbf16, #tpu.memory_space<vmem>>, vector<4x64xbf16>
    %112 = tpu.concatenate %103, %104, %105, %106, %107, %108, %109, %110, %111 in 1 : vector<4x64xbf16>, vector<4x64xbf16>, vector<4x64xbf16>, vector<4x64xbf16>, vector<4x64xbf16>, vector<4x64xbf16>, vector<4x64xbf16>, vector<4x64xbf16>, vector<4x64xbf16> -> vector<4x576xbf16>
    %c4 = arith.constant 4 : index
    %c0_136 = arith.constant 0 : index
    %113 = vector.load %arg17[%c4, %c0_136] : memref<32x576xbf16, #tpu.memory_space<vmem>>, vector<4x576xbf16>
    tpu.vector_store %arg17[%c4, %c0_136], %112 {strides = array<i32>} : memref<32x576xbf16, #tpu.memory_space<vmem>>, vector<4x576xbf16>,
    %c12_137 = arith.constant 12 : index
    %c0_138 = arith.constant 0 : index
    %114 = vector.load %arg16[%c12_137, %c0_138] : memref<72x64xbf16, #tpu.memory_space<vmem>>, vector<4x64xbf16>
    %c13_139 = arith.constant 13 : index
    %c0_140 = arith.constant 0 : index
    %115 = vector.load %arg16[%c13_139, %c0_140] : memref<72x64xbf16, #tpu.memory_space<vmem>>, vector<4x64xbf16>
    %c14_141 = arith.constant 14 : index
    %c0_142 = arith.constant 0 : index
    %116 = vector.load %arg16[%c14_141, %c0_142] : memref<72x64xbf16, #tpu.memory_space<vmem>>, vector<4x64xbf16>
    %c18_143 = arith.constant 18 : index
    %c0_144 = arith.constant 0 : index
    %117 = vector.load %arg16[%c18_143, %c0_144] : memref<72x64xbf16, #tpu.memory_space<vmem>>, vector<4x64xbf16>
    %c19_145 = arith.constant 19 : index
    %c0_146 = arith.constant 0 : index
    %118 = vector.load %arg16[%c19_145, %c0_146] : memref<72x64xbf16, #tpu.memory_space<vmem>>, vector<4x64xbf16>
    %c20_147 = arith.constant 20 : index
    %c0_148 = arith.constant 0 : index
    %119 = vector.load %arg16[%c20_147, %c0_148] : memref<72x64xbf16, #tpu.memory_space<vmem>>, vector<4x64xbf16>
    %c24_149 = arith.constant 24 : index
    %c0_150 = arith.constant 0 : index
    %120 = vector.load %arg16[%c24_149, %c0_150] : memref<72x64xbf16, #tpu.memory_space<vmem>>, vector<4x64xbf16>
    %c25 = arith.constant 25 : index
    %c0_151 = arith.constant 0 : index
    %121 = vector.load %arg16[%c25, %c0_151] : memref<72x64xbf16, #tpu.memory_space<vmem>>, vector<4x64xbf16>
    %c26 = arith.constant 26 : index
    %c0_152 = arith.constant 0 : index
    %122 = vector.load %arg16[%c26, %c0_152] : memref<72x64xbf16, #tpu.memory_space<vmem>>, vector<4x64xbf16>
    %123 = tpu.concatenate %114, %115, %116, %117, %118, %119, %120, %121, %122 in 1 : vector<4x64xbf16>, vector<4x64xbf16>, vector<4x64xbf16>, vector<4x64xbf16>, vector<4x64xbf16>, vector<4x64xbf16>, vector<4x64xbf16>, vector<4x64xbf16>, vector<4x64xbf16> -> vector<4x576xbf16>
    %c8_153 = arith.constant 8 : index
    %c0_154 = arith.constant 0 : index
    %124 = vector.load %arg17[%c8_153, %c0_154] : memref<32x576xbf16, #tpu.memory_space<vmem>>, vector<4x576xbf16>
    tpu.vector_store %arg17[%c8_153, %c0_154], %123 {strides = array<i32>} : memref<32x576xbf16, #tpu.memory_space<vmem>>, vector<4x576xbf16>,
    %c18_155 = arith.constant 18 : index
    %c0_156 = arith.constant 0 : index
    %125 = vector.load %arg16[%c18_155, %c0_156] : memref<72x64xbf16, #tpu.memory_space<vmem>>, vector<4x64xbf16>
    %c19_157 = arith.constant 19 : index
    %c0_158 = arith.constant 0 : index
    %126 = vector.load %arg16[%c19_157, %c0_158] : memref<72x64xbf16, #tpu.memory_space<vmem>>, vector<4x64xbf16>
    %c20_159 = arith.constant 20 : index
    %c0_160 = arith.constant 0 : index
    %127 = vector.load %arg16[%c20_159, %c0_160] : memref<72x64xbf16, #tpu.memory_space<vmem>>, vector<4x64xbf16>
    %c24_161 = arith.constant 24 : index
    %c0_162 = arith.constant 0 : index
    %128 = vector.load %arg16[%c24_161, %c0_162] : memref<72x64xbf16, #tpu.memory_space<vmem>>, vector<4x64xbf16>
    %c25_163 = arith.constant 25 : index
    %c0_164 = arith.constant 0 : index
    %129 = vector.load %arg16[%c25_163, %c0_164] : memref<72x64xbf16, #tpu.memory_space<vmem>>, vector<4x64xbf16>
    %c26_165 = arith.constant 26 : index
    %c0_166 = arith.constant 0 : index
    %130 = vector.load %arg16[%c26_165, %c0_166] : memref<72x64xbf16, #tpu.memory_space<vmem>>, vector<4x64xbf16>
    %c30_167 = arith.constant 30 : index
    %c0_168 = arith.constant 0 : index
    %131 = vector.load %arg16[%c30_167, %c0_168] : memref<72x64xbf16, #tpu.memory_space<vmem>>, vector<4x64xbf16>
    %c31 = arith.constant 31 : index
    %c0_169 = arith.constant 0 : index
    %132 = vector.load %arg16[%c31, %c0_169] : memref<72x64xbf16, #tpu.memory_space<vmem>>, vector<4x64xbf16>
    %c32 = arith.constant 32 : index
    %c0_170 = arith.constant 0 : index
    %133 = vector.load %arg16[%c32, %c0_170] : memref<72x64xbf16, #tpu.memory_space<vmem>>, vector<4x64xbf16>
    %134 = tpu.concatenate %125, %126, %127, %128, %129, %130, %131, %132, %133 in 1 : vector<4x64xbf16>, vector<4x64xbf16>, vector<4x64xbf16>, vector<4x64xbf16>, vector<4x64xbf16>, vector<4x64xbf16>, vector<4x64xbf16>, vector<4x64xbf16>, vector<4x64xbf16> -> vector<4x576xbf16>
    %c12_171 = arith.constant 12 : index
    %c0_172 = arith.constant 0 : index
    %135 = vector.load %arg17[%c12_171, %c0_172] : memref<32x576xbf16, #tpu.memory_space<vmem>>, vector<4x576xbf16>
    tpu.vector_store %arg17[%c12_171, %c0_172], %134 {strides = array<i32>} : memref<32x576xbf16, #tpu.memory_space<vmem>>, vector<4x576xbf16>,
    %c36_173 = arith.constant 36 : index
    %c0_174 = arith.constant 0 : index
    %136 = vector.load %arg16[%c36_173, %c0_174] : memref<72x64xbf16, #tpu.memory_space<vmem>>, vector<4x64xbf16>
    %c37 = arith.constant 37 : index
    %c0_175 = arith.constant 0 : index
    %137 = vector.load %arg16[%c37, %c0_175] : memref<72x64xbf16, #tpu.memory_space<vmem>>, vector<4x64xbf16>
    %c38 = arith.constant 38 : index
    %c0_176 = arith.constant 0 : index
    %138 = vector.load %arg16[%c38, %c0_176] : memref<72x64xbf16, #tpu.memory_space<vmem>>, vector<4x64xbf16>
    %c42_177 = arith.constant 42 : index
    %c0_178 = arith.constant 0 : index
    %139 = vector.load %arg16[%c42_177, %c0_178] : memref<72x64xbf16, #tpu.memory_space<vmem>>, vector<4x64xbf16>
    %c43_179 = arith.constant 43 : index
    %c0_180 = arith.constant 0 : index
    %140 = vector.load %arg16[%c43_179, %c0_180] : memref<72x64xbf16, #tpu.memory_space<vmem>>, vector<4x64xbf16>
    %c44 = arith.constant 44 : index
    %c0_181 = arith.constant 0 : index
    %141 = vector.load %arg16[%c44, %c0_181] : memref<72x64xbf16, #tpu.memory_space<vmem>>, vector<4x64xbf16>
    %c48_182 = arith.constant 48 : index
    %c0_183 = arith.constant 0 : index
    %142 = vector.load %arg16[%c48_182, %c0_183] : memref<72x64xbf16, #tpu.memory_space<vmem>>, vector<4x64xbf16>
    %c49_184 = arith.constant 49 : index
    %c0_185 = arith.constant 0 : index
    %143 = vector.load %arg16[%c49_184, %c0_185] : memref<72x64xbf16, #tpu.memory_space<vmem>>, vector<4x64xbf16>
    %c50_186 = arith.constant 50 : index
    %c0_187 = arith.constant 0 : index
    %144 = vector.load %arg16[%c50_186, %c0_187] : memref<72x64xbf16, #tpu.memory_space<vmem>>, vector<4x64xbf16>
    %145 = tpu.concatenate %136, %137, %138, %139, %140, %141, %142, %143, %144 in 1 : vector<4x64xbf16>, vector<4x64xbf16>, vector<4x64xbf16>, vector<4x64xbf16>, vector<4x64xbf16>, vector<4x64xbf16>, vector<4x64xbf16>, vector<4x64xbf16>, vector<4x64xbf16> -> vector<4x576xbf16>
    %c16 = arith.constant 16 : index
    %c0_188 = arith.constant 0 : index
    %146 = vector.load %arg17[%c16, %c0_188] : memref<32x576xbf16, #tpu.memory_space<vmem>>, vector<4x576xbf16>
    tpu.vector_store %arg17[%c16, %c0_188], %145 {strides = array<i32>} : memref<32x576xbf16, #tpu.memory_space<vmem>>, vector<4x576xbf16>,
    %c42_189 = arith.constant 42 : index
    %c0_190 = arith.constant 0 : index
    %147 = vector.load %arg16[%c42_189, %c0_190] : memref<72x64xbf16, #tpu.memory_space<vmem>>, vector<4x64xbf16>
    %c43_191 = arith.constant 43 : index
    %c0_192 = arith.constant 0 : index
    %148 = vector.load %arg16[%c43_191, %c0_192] : memref<72x64xbf16, #tpu.memory_space<vmem>>, vector<4x64xbf16>
    %c44_193 = arith.constant 44 : index
    %c0_194 = arith.constant 0 : index
    %149 = vector.load %arg16[%c44_193, %c0_194] : memref<72x64xbf16, #tpu.memory_space<vmem>>, vector<4x64xbf16>
    %c48_195 = arith.constant 48 : index
    %c0_196 = arith.constant 0 : index
    %150 = vector.load %arg16[%c48_195, %c0_196] : memref<72x64xbf16, #tpu.memory_space<vmem>>, vector<4x64xbf16>
    %c49_197 = arith.constant 49 : index
    %c0_198 = arith.constant 0 : index
    %151 = vector.load %arg16[%c49_197, %c0_198] : memref<72x64xbf16, #tpu.memory_space<vmem>>, vector<4x64xbf16>
    %c50_199 = arith.constant 50 : index
    %c0_200 = arith.constant 0 : index
    %152 = vector.load %arg16[%c50_199, %c0_200] : memref<72x64xbf16, #tpu.memory_space<vmem>>, vector<4x64xbf16>
    %c54_201 = arith.constant 54 : index
    %c0_202 = arith.constant 0 : index
    %153 = vector.load %arg16[%c54_201, %c0_202] : memref<72x64xbf16, #tpu.memory_space<vmem>>, vector<4x64xbf16>
    %c55 = arith.constant 55 : index
    %c0_203 = arith.constant 0 : index
    %154 = vector.load %arg16[%c55, %c0_203] : memref<72x64xbf16, #tpu.memory_space<vmem>>, vector<4x64xbf16>
    %c56_204 = arith.constant 56 : index
    %c0_205 = arith.constant 0 : index
    %155 = vector.load %arg16[%c56_204, %c0_205] : memref<72x64xbf16, #tpu.memory_space<vmem>>, vector<4x64xbf16>
    %156 = tpu.concatenate %147, %148, %149, %150, %151, %152, %153, %154, %155 in 1 : vector<4x64xbf16>, vector<4x64xbf16>, vector<4x64xbf16>, vector<4x64xbf16>, vector<4x64xbf16>, vector<4x64xbf16>, vector<4x64xbf16>, vector<4x64xbf16>, vector<4x64xbf16> -> vector<4x576xbf16>
    %c20_206 = arith.constant 20 : index
    %c0_207 = arith.constant 0 : index
    %157 = vector.load %arg17[%c20_206, %c0_207] : memref<32x576xbf16, #tpu.memory_space<vmem>>, vector<4x576xbf16>
    tpu.vector_store %arg17[%c20_206, %c0_207], %156 {strides = array<i32>} : memref<32x576xbf16, #tpu.memory_space<vmem>>, vector<4x576xbf16>,
    %c48_208 = arith.constant 48 : index
    %c0_209 = arith.constant 0 : index
    %158 = vector.load %arg16[%c48_208, %c0_209] : memref<72x64xbf16, #tpu.memory_space<vmem>>, vector<4x64xbf16>
    %c49_210 = arith.constant 49 : index
    %c0_211 = arith.constant 0 : index
    %159 = vector.load %arg16[%c49_210, %c0_211] : memref<72x64xbf16, #tpu.memory_space<vmem>>, vector<4x64xbf16>
    %c50_212 = arith.constant 50 : index
    %c0_213 = arith.constant 0 : index
    %160 = vector.load %arg16[%c50_212, %c0_213] : memref<72x64xbf16, #tpu.memory_space<vmem>>, vector<4x64xbf16>
    %c54_214 = arith.constant 54 : index
    %c0_215 = arith.constant 0 : index
    %161 = vector.load %arg16[%c54_214, %c0_215] : memref<72x64xbf16, #tpu.memory_space<vmem>>, vector<4x64xbf16>
    %c55_216 = arith.constant 55 : index
    %c0_217 = arith.constant 0 : index
    %162 = vector.load %arg16[%c55_216, %c0_217] : memref<72x64xbf16, #tpu.memory_space<vmem>>, vector<4x64xbf16>
    %c56_218 = arith.constant 56 : index
    %c0_219 = arith.constant 0 : index
    %163 = vector.load %arg16[%c56_218, %c0_219] : memref<72x64xbf16, #tpu.memory_space<vmem>>, vector<4x64xbf16>
    %c60_220 = arith.constant 60 : index
    %c0_221 = arith.constant 0 : index
    %164 = vector.load %arg16[%c60_220, %c0_221] : memref<72x64xbf16, #tpu.memory_space<vmem>>, vector<4x64xbf16>
    %c61 = arith.constant 61 : index
    %c0_222 = arith.constant 0 : index
    %165 = vector.load %arg16[%c61, %c0_222] : memref<72x64xbf16, #tpu.memory_space<vmem>>, vector<4x64xbf16>
    %c62 = arith.constant 62 : index
    %c0_223 = arith.constant 0 : index
    %166 = vector.load %arg16[%c62, %c0_223] : memref<72x64xbf16, #tpu.memory_space<vmem>>, vector<4x64xbf16>
    %167 = tpu.concatenate %158, %159, %160, %161, %162, %163, %164, %165, %166 in 1 : vector<4x64xbf16>, vector<4x64xbf16>, vector<4x64xbf16>, vector<4x64xbf16>, vector<4x64xbf16>, vector<4x64xbf16>, vector<4x64xbf16>, vector<4x64xbf16>, vector<4x64xbf16> -> vector<4x576xbf16>
    %c24_224 = arith.constant 24 : index
    %c0_225 = arith.constant 0 : index
    %168 = vector.load %arg17[%c24_224, %c0_225] : memref<32x576xbf16, #tpu.memory_space<vmem>>, vector<4x576xbf16>
    tpu.vector_store %arg17[%c24_224, %c0_225], %167 {strides = array<i32>} : memref<32x576xbf16, #tpu.memory_space<vmem>>, vector<4x576xbf16>,
    %c54_226 = arith.constant 54 : index
    %c0_227 = arith.constant 0 : index
    %169 = vector.load %arg16[%c54_226, %c0_227] : memref<72x64xbf16, #tpu.memory_space<vmem>>, vector<4x64xbf16>
    %c55_228 = arith.constant 55 : index
    %c0_229 = arith.constant 0 : index
    %170 = vector.load %arg16[%c55_228, %c0_229] : memref<72x64xbf16, #tpu.memory_space<vmem>>, vector<4x64xbf16>
    %c56_230 = arith.constant 56 : index
    %c0_231 = arith.constant 0 : index
    %171 = vector.load %arg16[%c56_230, %c0_231] : memref<72x64xbf16, #tpu.memory_space<vmem>>, vector<4x64xbf16>
    %c60_232 = arith.constant 60 : index
    %c0_233 = arith.constant 0 : index
    %172 = vector.load %arg16[%c60_232, %c0_233] : memref<72x64xbf16, #tpu.memory_space<vmem>>, vector<4x64xbf16>
    %c61_234 = arith.constant 61 : index
    %c0_235 = arith.constant 0 : index
    %173 = vector.load %arg16[%c61_234, %c0_235] : memref<72x64xbf16, #tpu.memory_space<vmem>>, vector<4x64xbf16>
    %c62_236 = arith.constant 62 : index
    %c0_237 = arith.constant 0 : index
    %174 = vector.load %arg16[%c62_236, %c0_237] : memref<72x64xbf16, #tpu.memory_space<vmem>>, vector<4x64xbf16>
    %c66_238 = arith.constant 66 : index
    %c0_239 = arith.constant 0 : index
    %175 = vector.load %arg16[%c66_238, %c0_239] : memref<72x64xbf16, #tpu.memory_space<vmem>>, vector<4x64xbf16>
    %c67 = arith.constant 67 : index
    %c0_240 = arith.constant 0 : index
    %176 = vector.load %arg16[%c67, %c0_240] : memref<72x64xbf16, #tpu.memory_space<vmem>>, vector<4x64xbf16>
    %c68 = arith.constant 68 : index
    %c0_241 = arith.constant 0 : index
    %177 = vector.load %arg16[%c68, %c0_241] : memref<72x64xbf16, #tpu.memory_space<vmem>>, vector<4x64xbf16>
    %178 = tpu.concatenate %169, %170, %171, %172, %173, %174, %175, %176, %177 in 1 : vector<4x64xbf16>, vector<4x64xbf16>, vector<4x64xbf16>, vector<4x64xbf16>, vector<4x64xbf16>, vector<4x64xbf16>, vector<4x64xbf16>, vector<4x64xbf16>, vector<4x64xbf16> -> vector<4x576xbf16>
    %c28_242 = arith.constant 28 : index
    %c0_243 = arith.constant 0 : index
    %179 = vector.load %arg17[%c28_242, %c0_243] : memref<32x576xbf16, #tpu.memory_space<vmem>>, vector<4x576xbf16>
    tpu.vector_store %arg17[%c28_242, %c0_243], %178 {strides = array<i32>} : memref<32x576xbf16, #tpu.memory_space<vmem>>, vector<4x576xbf16>,
    %c0_244 = arith.constant 0 : index
    %c0_245 = arith.constant 0 : index
    %180 = vector.load %arg17[%c0_244, %c0_245] : memref<32x576xbf16, #tpu.memory_space<vmem>>, vector<32x576xbf16>
    %c0_246 = arith.constant 0 : index
    %c0_247 = arith.constant 0 : index
    %181 = vector.load %arg6[%c0_246, %c0_247] : memref<576x64xbf16, #tpu.memory_space<vmem>>, vector<576x64xbf16>
    %cst_248 = arith.constant dense<0.000000e+00> : vector<32x64xf32>
    %182 = tpu.matmul %180, %181, %cst_248 {dimension_numbers = #tpu.dot_dimension_numbers<[1], [0], [0], [1], [0, 0, 1, 1], [], []>} : vector<32x576xbf16>, vector<576x64xbf16>, vector<32x64xf32> -> vector<32x64xf32>
    %c0_249 = arith.constant 0 : index
    %c0_250 = arith.constant 0 : index
    %183 = vector.load %arg7[%c0_249, %c0_250] : memref<1x64xf32, #tpu.memory_space<vmem>>, vector<1x64xf32>
    %184 = vector.broadcast %183 : vector<1x64xf32> to vector<32x64xf32>
    %185 = arith.addf %182, %184 : vector<32x64xf32>
    %cst_251 = arith.constant 0.000000e+00 : f32
    %186 = vector.broadcast %cst_251 : f32 to vector<32x64xf32>
    %187 = arith.maximumf %185, %186 : vector<32x64xf32>
    %188 = arith.truncf %187 : vector<32x64xf32> to vector<32x64xbf16>
    %189 = vector.extract_strided_slice %188 {offsets = [0, 0], sizes = [16, 64], strides = [1, 1]} : vector<32x64xbf16> to vector<16x64xbf16>
    %c0_252 = arith.constant 0 : index
    %c0_253 = arith.constant 0 : index
    %c0_254 = arith.constant 0 : index
    %190 = vector.load %arg18[%c0_252, %c0_253, %c0_254] : memref<2x16x64xbf16, #tpu.memory_space<vmem>>, vector<1x16x64xbf16>
    %191 = vector.shape_cast %190 : vector<1x16x64xbf16> to vector<16x64xbf16>
    %192 = vector.shape_cast %189 : vector<16x64xbf16> to vector<1x16x64xbf16>
    tpu.vector_store %arg18[%c0_252, %c0_253, %c0_254], %192 {strides = array<i32>} : memref<2x16x64xbf16, #tpu.memory_space<vmem>>, vector<1x16x64xbf16>,
    %193 = vector.extract_strided_slice %188 {offsets = [16, 0], sizes = [16, 64], strides = [1, 1]} : vector<32x64xbf16> to vector<16x64xbf16>
    %c1_255 = arith.constant 1 : index
    %c0_256 = arith.constant 0 : index
    %c0_257 = arith.constant 0 : index
    %194 = vector.load %arg18[%c1_255, %c0_256, %c0_257] : memref<2x16x64xbf16, #tpu.memory_space<vmem>>, vector<1x16x64xbf16>
    %195 = vector.shape_cast %194 : vector<1x16x64xbf16> to vector<16x64xbf16>
    %196 = vector.shape_cast %193 : vector<16x64xbf16> to vector<1x16x64xbf16>
    tpu.vector_store %arg18[%c1_255, %c0_256, %c0_257], %196 {strides = array<i32>} : memref<2x16x64xbf16, #tpu.memory_space<vmem>>, vector<1x16x64xbf16>,
    %c0_258 = arith.constant 0 : index
    %c0_259 = arith.constant 0 : index
    %197 = vector.load %arg9[%c0_258, %c0_259] : memref<1x512xf32, #tpu.memory_space<vmem>>, vector<1x512xf32>
    %198 = vector.shape_cast %197 : vector<1x512xf32> to vector<1x512xf32>
    %199 = vector.broadcast %198 : vector<1x512xf32> to vector<2x512xf32>
    %c0_260 = arith.constant 0 : index
    %c0_261 = arith.constant 0 : index
    %c0_262 = arith.constant 0 : index
    %200 = vector.load %arg18[%c0_260, %c0_261, %c0_262] : memref<2x16x64xbf16, #tpu.memory_space<vmem>>, vector<2x1x64xbf16>
    %201 = vector.shape_cast %200 : vector<2x1x64xbf16> to vector<2x64xbf16>
    %c0_263 = arith.constant 0 : index
    %c0_264 = arith.constant 0 : index
    %202 = vector.load %arg8[%c0_263, %c0_264] : memref<1024x512xbf16, #tpu.memory_space<vmem>>, vector<64x512xbf16>
    %cst_265 = arith.constant dense<0.000000e+00> : vector<2x512xf32>
    %203 = tpu.matmul %201, %202, %cst_265 {dimension_numbers = #tpu.dot_dimension_numbers<[1], [0], [0], [1], [0, 0, 1, 1], [], []>} : vector<2x64xbf16>, vector<64x512xbf16>, vector<2x512xf32> -> vector<2x512xf32>
    %204 = arith.addf %199, %203 : vector<2x512xf32>
    %c0_266 = arith.constant 0 : index
    %c1_267 = arith.constant 1 : index
    %c0_268 = arith.constant 0 : index
    %205 = vector.load %arg18[%c0_266, %c1_267, %c0_268] : memref<2x16x64xbf16, #tpu.memory_space<vmem>>, vector<2x1x64xbf16>
    %206 = vector.shape_cast %205 : vector<2x1x64xbf16> to vector<2x64xbf16>
    %c64_269 = arith.constant 64 : index
    %c0_270 = arith.constant 0 : index
    %207 = vector.load %arg8[%c64_269, %c0_270] : memref<1024x512xbf16, #tpu.memory_space<vmem>>, vector<64x512xbf16>
    %cst_271 = arith.constant dense<0.000000e+00> : vector<2x512xf32>
    %208 = tpu.matmul %206, %207, %cst_271 {dimension_numbers = #tpu.dot_dimension_numbers<[1], [0], [0], [1], [0, 0, 1, 1], [], []>} : vector<2x64xbf16>, vector<64x512xbf16>, vector<2x512xf32> -> vector<2x512xf32>
    %209 = arith.addf %204, %208 : vector<2x512xf32>
    %c0_272 = arith.constant 0 : index
    %c2_273 = arith.constant 2 : index
    %c0_274 = arith.constant 0 : index
    %210 = vector.load %arg18[%c0_272, %c2_273, %c0_274] : memref<2x16x64xbf16, #tpu.memory_space<vmem>>, vector<2x1x64xbf16>
    %211 = vector.shape_cast %210 : vector<2x1x64xbf16> to vector<2x64xbf16>
    %c128 = arith.constant 128 : index
    %c0_275 = arith.constant 0 : index
    %212 = vector.load %arg8[%c128, %c0_275] : memref<1024x512xbf16, #tpu.memory_space<vmem>>, vector<64x512xbf16>
    %cst_276 = arith.constant dense<0.000000e+00> : vector<2x512xf32>
    %213 = tpu.matmul %211, %212, %cst_276 {dimension_numbers = #tpu.dot_dimension_numbers<[1], [0], [0], [1], [0, 0, 1, 1], [], []>} : vector<2x64xbf16>, vector<64x512xbf16>, vector<2x512xf32> -> vector<2x512xf32>
    %214 = arith.addf %209, %213 : vector<2x512xf32>
    %c0_277 = arith.constant 0 : index
    %c3 = arith.constant 3 : index
    %c0_278 = arith.constant 0 : index
    %215 = vector.load %arg18[%c0_277, %c3, %c0_278] : memref<2x16x64xbf16, #tpu.memory_space<vmem>>, vector<2x1x64xbf16>
    %216 = vector.shape_cast %215 : vector<2x1x64xbf16> to vector<2x64xbf16>
    %c192 = arith.constant 192 : index
    %c0_279 = arith.constant 0 : index
    %217 = vector.load %arg8[%c192, %c0_279] : memref<1024x512xbf16, #tpu.memory_space<vmem>>, vector<64x512xbf16>
    %cst_280 = arith.constant dense<0.000000e+00> : vector<2x512xf32>
    %218 = tpu.matmul %216, %217, %cst_280 {dimension_numbers = #tpu.dot_dimension_numbers<[1], [0], [0], [1], [0, 0, 1, 1], [], []>} : vector<2x64xbf16>, vector<64x512xbf16>, vector<2x512xf32> -> vector<2x512xf32>
    %219 = arith.addf %214, %218 : vector<2x512xf32>
    %c0_281 = arith.constant 0 : index
    %c4_282 = arith.constant 4 : index
    %c0_283 = arith.constant 0 : index
    %220 = vector.load %arg18[%c0_281, %c4_282, %c0_283] : memref<2x16x64xbf16, #tpu.memory_space<vmem>>, vector<2x1x64xbf16>
    %221 = vector.shape_cast %220 : vector<2x1x64xbf16> to vector<2x64xbf16>
    %c256 = arith.constant 256 : index
    %c0_284 = arith.constant 0 : index
    %222 = vector.load %arg8[%c256, %c0_284] : memref<1024x512xbf16, #tpu.memory_space<vmem>>, vector<64x512xbf16>
    %cst_285 = arith.constant dense<0.000000e+00> : vector<2x512xf32>
    %223 = tpu.matmul %221, %222, %cst_285 {dimension_numbers = #tpu.dot_dimension_numbers<[1], [0], [0], [1], [0, 0, 1, 1], [], []>} : vector<2x64xbf16>, vector<64x512xbf16>, vector<2x512xf32> -> vector<2x512xf32>
    %224 = arith.addf %219, %223 : vector<2x512xf32>
    %c0_286 = arith.constant 0 : index
    %c5 = arith.constant 5 : index
    %c0_287 = arith.constant 0 : index
    %225 = vector.load %arg18[%c0_286, %c5, %c0_287] : memref<2x16x64xbf16, #tpu.memory_space<vmem>>, vector<2x1x64xbf16>
    %226 = vector.shape_cast %225 : vector<2x1x64xbf16> to vector<2x64xbf16>
    %c320 = arith.constant 320 : index
    %c0_288 = arith.constant 0 : index
    %227 = vector.load %arg8[%c320, %c0_288] : memref<1024x512xbf16, #tpu.memory_space<vmem>>, vector<64x512xbf16>
    %cst_289 = arith.constant dense<0.000000e+00> : vector<2x512xf32>
    %228 = tpu.matmul %226, %227, %cst_289 {dimension_numbers = #tpu.dot_dimension_numbers<[1], [0], [0], [1], [0, 0, 1, 1], [], []>} : vector<2x64xbf16>, vector<64x512xbf16>, vector<2x512xf32> -> vector<2x512xf32>
    %229 = arith.addf %224, %228 : vector<2x512xf32>
    %c0_290 = arith.constant 0 : index
    %c6_291 = arith.constant 6 : index
    %c0_292 = arith.constant 0 : index
    %230 = vector.load %arg18[%c0_290, %c6_291, %c0_292] : memref<2x16x64xbf16, #tpu.memory_space<vmem>>, vector<2x1x64xbf16>
    %231 = vector.shape_cast %230 : vector<2x1x64xbf16> to vector<2x64xbf16>
    %c384 = arith.constant 384 : index
    %c0_293 = arith.constant 0 : index
    %232 = vector.load %arg8[%c384, %c0_293] : memref<1024x512xbf16, #tpu.memory_space<vmem>>, vector<64x512xbf16>
    %cst_294 = arith.constant dense<0.000000e+00> : vector<2x512xf32>
    %233 = tpu.matmul %231, %232, %cst_294 {dimension_numbers = #tpu.dot_dimension_numbers<[1], [0], [0], [1], [0, 0, 1, 1], [], []>} : vector<2x64xbf16>, vector<64x512xbf16>, vector<2x512xf32> -> vector<2x512xf32>
    %234 = arith.addf %229, %233 : vector<2x512xf32>
    %c0_295 = arith.constant 0 : index
    %c7_296 = arith.constant 7 : index
    %c0_297 = arith.constant 0 : index
    %235 = vector.load %arg18[%c0_295, %c7_296, %c0_297] : memref<2x16x64xbf16, #tpu.memory_space<vmem>>, vector<2x1x64xbf16>
    %236 = vector.shape_cast %235 : vector<2x1x64xbf16> to vector<2x64xbf16>
    %c448 = arith.constant 448 : index
    %c0_298 = arith.constant 0 : index
    %237 = vector.load %arg8[%c448, %c0_298] : memref<1024x512xbf16, #tpu.memory_space<vmem>>, vector<64x512xbf16>
    %cst_299 = arith.constant dense<0.000000e+00> : vector<2x512xf32>
    %238 = tpu.matmul %236, %237, %cst_299 {dimension_numbers = #tpu.dot_dimension_numbers<[1], [0], [0], [1], [0, 0, 1, 1], [], []>} : vector<2x64xbf16>, vector<64x512xbf16>, vector<2x512xf32> -> vector<2x512xf32>
    %239 = arith.addf %234, %238 : vector<2x512xf32>
    %c0_300 = arith.constant 0 : index
    %c8_301 = arith.constant 8 : index
    %c0_302 = arith.constant 0 : index
    %240 = vector.load %arg18[%c0_300, %c8_301, %c0_302] : memref<2x16x64xbf16, #tpu.memory_space<vmem>>, vector<2x1x64xbf16>
    %241 = vector.shape_cast %240 : vector<2x1x64xbf16> to vector<2x64xbf16>
    %c512 = arith.constant 512 : index
    %c0_303 = arith.constant 0 : index
    %242 = vector.load %arg8[%c512, %c0_303] : memref<1024x512xbf16, #tpu.memory_space<vmem>>, vector<64x512xbf16>
    %cst_304 = arith.constant dense<0.000000e+00> : vector<2x512xf32>
    %243 = tpu.matmul %241, %242, %cst_304 {dimension_numbers = #tpu.dot_dimension_numbers<[1], [0], [0], [1], [0, 0, 1, 1], [], []>} : vector<2x64xbf16>, vector<64x512xbf16>, vector<2x512xf32> -> vector<2x512xf32>
    %244 = arith.addf %239, %243 : vector<2x512xf32>
    %c0_305 = arith.constant 0 : index
    %c9 = arith.constant 9 : index
    %c0_306 = arith.constant 0 : index
    %245 = vector.load %arg18[%c0_305, %c9, %c0_306] : memref<2x16x64xbf16, #tpu.memory_space<vmem>>, vector<2x1x64xbf16>
    %246 = vector.shape_cast %245 : vector<2x1x64xbf16> to vector<2x64xbf16>
    %c576 = arith.constant 576 : index
    %c0_307 = arith.constant 0 : index
    %247 = vector.load %arg8[%c576, %c0_307] : memref<1024x512xbf16, #tpu.memory_space<vmem>>, vector<64x512xbf16>
    %cst_308 = arith.constant dense<0.000000e+00> : vector<2x512xf32>
    %248 = tpu.matmul %246, %247, %cst_308 {dimension_numbers = #tpu.dot_dimension_numbers<[1], [0], [0], [1], [0, 0, 1, 1], [], []>} : vector<2x64xbf16>, vector<64x512xbf16>, vector<2x512xf32> -> vector<2x512xf32>
    %249 = arith.addf %244, %248 : vector<2x512xf32>
    %c0_309 = arith.constant 0 : index
    %c10 = arith.constant 10 : index
    %c0_310 = arith.constant 0 : index
    %250 = vector.load %arg18[%c0_309, %c10, %c0_310] : memref<2x16x64xbf16, #tpu.memory_space<vmem>>, vector<2x1x64xbf16>
    %251 = vector.shape_cast %250 : vector<2x1x64xbf16> to vector<2x64xbf16>
    %c640 = arith.constant 640 : index
    %c0_311 = arith.constant 0 : index
    %252 = vector.load %arg8[%c640, %c0_311] : memref<1024x512xbf16, #tpu.memory_space<vmem>>, vector<64x512xbf16>
    %cst_312 = arith.constant dense<0.000000e+00> : vector<2x512xf32>
    %253 = tpu.matmul %251, %252, %cst_312 {dimension_numbers = #tpu.dot_dimension_numbers<[1], [0], [0], [1], [0, 0, 1, 1], [], []>} : vector<2x64xbf16>, vector<64x512xbf16>, vector<2x512xf32> -> vector<2x512xf32>
    %254 = arith.addf %249, %253 : vector<2x512xf32>
    %c0_313 = arith.constant 0 : index
    %c11 = arith.constant 11 : index
    %c0_314 = arith.constant 0 : index
    %255 = vector.load %arg18[%c0_313, %c11, %c0_314] : memref<2x16x64xbf16, #tpu.memory_space<vmem>>, vector<2x1x64xbf16>
    %256 = vector.shape_cast %255 : vector<2x1x64xbf16> to vector<2x64xbf16>
    %c704 = arith.constant 704 : index
    %c0_315 = arith.constant 0 : index
    %257 = vector.load %arg8[%c704, %c0_315] : memref<1024x512xbf16, #tpu.memory_space<vmem>>, vector<64x512xbf16>
    %cst_316 = arith.constant dense<0.000000e+00> : vector<2x512xf32>
    %258 = tpu.matmul %256, %257, %cst_316 {dimension_numbers = #tpu.dot_dimension_numbers<[1], [0], [0], [1], [0, 0, 1, 1], [], []>} : vector<2x64xbf16>, vector<64x512xbf16>, vector<2x512xf32> -> vector<2x512xf32>
    %259 = arith.addf %254, %258 : vector<2x512xf32>
    %c0_317 = arith.constant 0 : index
    %c12_318 = arith.constant 12 : index
    %c0_319 = arith.constant 0 : index
    %260 = vector.load %arg18[%c0_317, %c12_318, %c0_319] : memref<2x16x64xbf16, #tpu.memory_space<vmem>>, vector<2x1x64xbf16>
    %261 = vector.shape_cast %260 : vector<2x1x64xbf16> to vector<2x64xbf16>
    %c768 = arith.constant 768 : index
    %c0_320 = arith.constant 0 : index
    %262 = vector.load %arg8[%c768, %c0_320] : memref<1024x512xbf16, #tpu.memory_space<vmem>>, vector<64x512xbf16>
    %cst_321 = arith.constant dense<0.000000e+00> : vector<2x512xf32>
    %263 = tpu.matmul %261, %262, %cst_321 {dimension_numbers = #tpu.dot_dimension_numbers<[1], [0], [0], [1], [0, 0, 1, 1], [], []>} : vector<2x64xbf16>, vector<64x512xbf16>, vector<2x512xf32> -> vector<2x512xf32>
    %264 = arith.addf %259, %263 : vector<2x512xf32>
    %c0_322 = arith.constant 0 : index
    %c13_323 = arith.constant 13 : index
    %c0_324 = arith.constant 0 : index
    %265 = vector.load %arg18[%c0_322, %c13_323, %c0_324] : memref<2x16x64xbf16, #tpu.memory_space<vmem>>, vector<2x1x64xbf16>
    %266 = vector.shape_cast %265 : vector<2x1x64xbf16> to vector<2x64xbf16>
    %c832 = arith.constant 832 : index
    %c0_325 = arith.constant 0 : index
    %267 = vector.load %arg8[%c832, %c0_325] : memref<1024x512xbf16, #tpu.memory_space<vmem>>, vector<64x512xbf16>
    %cst_326 = arith.constant dense<0.000000e+00> : vector<2x512xf32>
    %268 = tpu.matmul %266, %267, %cst_326 {dimension_numbers = #tpu.dot_dimension_numbers<[1], [0], [0], [1], [0, 0, 1, 1], [], []>} : vector<2x64xbf16>, vector<64x512xbf16>, vector<2x512xf32> -> vector<2x512xf32>
    %269 = arith.addf %264, %268 : vector<2x512xf32>
    %c0_327 = arith.constant 0 : index
    %c14_328 = arith.constant 14 : index
    %c0_329 = arith.constant 0 : index
    %270 = vector.load %arg18[%c0_327, %c14_328, %c0_329] : memref<2x16x64xbf16, #tpu.memory_space<vmem>>, vector<2x1x64xbf16>
    %271 = vector.shape_cast %270 : vector<2x1x64xbf16> to vector<2x64xbf16>
    %c896 = arith.constant 896 : index
    %c0_330 = arith.constant 0 : index
    %272 = vector.load %arg8[%c896, %c0_330] : memref<1024x512xbf16, #tpu.memory_space<vmem>>, vector<64x512xbf16>
    %cst_331 = arith.constant dense<0.000000e+00> : vector<2x512xf32>
    %273 = tpu.matmul %271, %272, %cst_331 {dimension_numbers = #tpu.dot_dimension_numbers<[1], [0], [0], [1], [0, 0, 1, 1], [], []>} : vector<2x64xbf16>, vector<64x512xbf16>, vector<2x512xf32> -> vector<2x512xf32>
    %274 = arith.addf %269, %273 : vector<2x512xf32>
    %c0_332 = arith.constant 0 : index
    %c15_333 = arith.constant 15 : index
    %c0_334 = arith.constant 0 : index
    %275 = vector.load %arg18[%c0_332, %c15_333, %c0_334] : memref<2x16x64xbf16, #tpu.memory_space<vmem>>, vector<2x1x64xbf16>
    %276 = vector.shape_cast %275 : vector<2x1x64xbf16> to vector<2x64xbf16>
    %c960 = arith.constant 960 : index
    %c0_335 = arith.constant 0 : index
    %277 = vector.load %arg8[%c960, %c0_335] : memref<1024x512xbf16, #tpu.memory_space<vmem>>, vector<64x512xbf16>
    %cst_336 = arith.constant dense<0.000000e+00> : vector<2x512xf32>
    %278 = tpu.matmul %276, %277, %cst_336 {dimension_numbers = #tpu.dot_dimension_numbers<[1], [0], [0], [1], [0, 0, 1, 1], [], []>} : vector<2x64xbf16>, vector<64x512xbf16>, vector<2x512xf32> -> vector<2x512xf32>
    %279 = arith.addf %274, %278 : vector<2x512xf32>
    %cst_337 = arith.constant 0.000000e+00 : f32
    %280 = vector.broadcast %cst_337 : f32 to vector<2x512xf32>
    %281 = arith.maximumf %279, %280 : vector<2x512xf32>
    %282 = arith.truncf %281 : vector<2x512xf32> to vector<2x512xbf16>
    %c0_338 = arith.constant 0 : index
    %c0_339 = arith.constant 0 : index
    %283 = vector.load %arg10[%c0_338, %c0_339] : memref<512x128xbf16, #tpu.memory_space<vmem>>, vector<512x128xbf16>
    %cst_340 = arith.constant dense<0.000000e+00> : vector<2x128xf32>
    %284 = tpu.matmul %282, %283, %cst_340 {dimension_numbers = #tpu.dot_dimension_numbers<[1], [0], [0], [1], [0, 0, 1, 1], [], []>} : vector<2x512xbf16>, vector<512x128xbf16>, vector<2x128xf32> -> vector<2x128xf32>
    %c0_341 = arith.constant 0 : index
    %c0_342 = arith.constant 0 : index
    %285 = vector.load %arg1[%c0_341, %c0_342] : memref<2x4xbf16, #tpu.memory_space<vmem>>, vector<2x4xbf16>
    %c0_343 = arith.constant 0 : index
    %c0_344 = arith.constant 0 : index
    %286 = vector.load %arg11[%c0_343, %c0_344] : memref<4x128xbf16, #tpu.memory_space<vmem>>, vector<4x128xbf16>
    %cst_345 = arith.constant dense<0.000000e+00> : vector<2x128xf32>
    %287 = tpu.matmul %285, %286, %cst_345 {dimension_numbers = #tpu.dot_dimension_numbers<[1], [0], [0], [1], [0, 0, 1, 1], [], []>} : vector<2x4xbf16>, vector<4x128xbf16>, vector<2x128xf32> -> vector<2x128xf32>
    %288 = arith.addf %284, %287 : vector<2x128xf32>
    %c0_346 = arith.constant 0 : index
    %c0_347 = arith.constant 0 : index
    %289 = vector.load %arg12[%c0_346, %c0_347] : memref<1x128xf32, #tpu.memory_space<vmem>>, vector<1x128xf32>
    %290 = vector.broadcast %289 : vector<1x128xf32> to vector<2x128xf32>
    %291 = arith.addf %288, %290 : vector<2x128xf32>
    %c0_348 = arith.constant 0 : index
    %c0_349 = arith.constant 0 : index
    %292 = vector.load %arg13[%c0_348, %c0_349] : memref<2x128xf32, #tpu.memory_space<vmem>>, vector<2x128xf32>
    tpu.vector_store %arg13[%c0_348, %c0_349], %291 {strides = array<i32>} : memref<2x128xf32, #tpu.memory_space<vmem>>, vector<2x128xf32>,
    return
  }
}

</mosaic_0001>

<llo_original>
// kernel: tile.8
$region0: #{tile.8}
  #allocation0 [shape = 's32[1]{0}', space=sflag, size = 0x4, scoped, tag = 'scoped memory for tile.8']
  %s0 = inlined_call_operand.vmem [shape: f32[32], index: 0, kind: input, shape index: {}]
  %s1 = inlined_call_operand.vmem [shape: f32[4,32], index: 1, kind: output, shape index: {}]
  // Predicated region
  $region2: #{tile.8} parent=0 // pred_check
    _
  $region3: #{tile.8} parent=0 // pred_check_branch
    %3 = sbr.rel (0) target = $region5
  $region4: #{tile.8} parent=0 // pred_region
    _
  $region5: #{tile.8} parent=0 // pred_fallthru
    _
  %v4 = vld [vmem:[%s0] ss:$0 sm:$0xff]
  %5 = vst [vmem:[%s1] sm:$0xf] %v4

// kernel: tile.9
$region0: #{tile.9}
  %s0 = inlined_call_operand.vmem [shape: f32[4,32], index: 0, kind: input, shape index: {}]
  %s1 = inlined_call_operand.vmem [shape: f32[1,128], index: 1, kind: output, shape index: {}]
  $region1: #{tile.9} parent=0
    #allocation0 [shape = 'u8[4096]{0}', space=vmem, size = 0x1000, scoped, tag = 'scoped mem for output reshape']
    #allocation1 [shape = 'u8[4096]{0}', space=vmem, size = 0x1000, scoped, tag = 'scoped mem for input reshape']
    %s3 = sshll.u32 1, 4
    %s4 = ssub.s32 %s3, 1
    %v5 = vld [vmem:[%s0] sm:%s4]
    %6 = vst [vmem:[#allocation1] sm:%s4] %v5
    %v7 = vld [vmem:[#allocation1] sm:$0x1]
    %vm8 = vcmask 261120
    %9 = vst.msk [vmem:[#allocation0] sm:$0x1] %vm8, %v7
    %s10 = scalar_lea.vmem [#allocation1], 3
    %v11 = vld [vmem:[%s10] sm:$0x1]
    %12 = vrot.lane.b32.xlu0 %v11, 96
    %v13 = vpop.permute.xlu0 %12
    %vm14 = vcmask 1048320
    %15 = vst.msk [vmem:[#allocation0] sm:$0x1] %vm14, %v13
    %s16 = scalar_lea.vmem [#allocation1], 2
    %v17 = vld [vmem:[%s16] sm:$0x1]
    %18 = vrot.lane.b32.xlu0 %v17, 64
    %v19 = vpop.permute.xlu0 %18
    %vm20 = vcmask 785920
    %21 = vst.msk [vmem:[#allocation0] sm:$0x1] %vm20, %v19
    %s22 = scalar_lea.vmem [#allocation1], 1
    %v23 = vld [vmem:[%s22] sm:$0x1]
    %24 = vrot.lane.b32.xlu0 %v23, 32
    %v25 = vpop.permute.xlu0 %24
    %vm26 = vcmask 523520
    %27 = vst.msk [vmem:[#allocation0] sm:$0x1] %vm26, %v25
    %s29 = sshll.u32 1, 1
    %s30 = ssub.s32 %s29, 1
    %v32 = vld [vmem:[#allocation0] sm:%s30]
    %s33 = sshll.u32 1, 1
    %s34 = ssub.s32 %s33, 1
    %35 = vst [vmem:[%s1] sm:%s34] %v32

// kernel: critic_forward.1
$region0: #{critic_forward.1}
  #allocation0 [shape = 'u32[]', space=smem, size = 0x4, offset = 0x4, fixed_abs, tag = 'smem constant byte address 0x4 - core index']
  #allocation1 [shape = 'u32[144,128]{1,0:T(1,128)}', space=vmem, size = 0x12000, scoped, tag = 'internal scratch']
  #allocation2 [shape = 'bf16[98,128]{1,0:T(8,128)(2,1)}', space=vmem, size = 0x6800, scoped, tag = 'scratch operand']
  #allocation3 [shape = 'bf16[72,512]{1,0:T(8,128)(2,1)}', space=vmem, size = 0x12000, scoped, tag = 'scratch operand']
  #allocation4 [shape = 'bf16[72,64]{1,0:T(8,128)(2,1)}', space=vmem, size = 0x4800, scoped, tag = 'scratch operand']
  #allocation5 [shape = 'bf16[32,576]{1,0:T(8,128)(2,1)}', space=vmem, size = 0xa000, scoped, tag = 'scratch operand']
  #allocation6 [shape = 'bf16[2,16,64]{2,1,0:T(8,128)(2,1)}', space=vmem, size = 0x2000, scoped, tag = 'scratch operand']
  %s0 = inlined_call_operand.vmem [shape: bf16[98,432], index: 0, kind: input, shape index: {}]
  %s1 = inlined_call_operand.vmem [shape: bf16[2,4], index: 1, kind: input, shape index: {}]
  %s2 = inlined_call_operand.vmem [shape: bf16[432,128], index: 2, kind: input, shape index: {}]
  %s3 = inlined_call_operand.vmem [shape: f32[1,128], index: 3, kind: input, shape index: {}]
  %s4 = inlined_call_operand.vmem [shape: bf16[512,64], index: 4, kind: input, shape index: {}]
  %s5 = inlined_call_operand.vmem [shape: f32[1,64], index: 5, kind: input, shape index: {}]
  %s6 = inlined_call_operand.vmem [shape: bf16[576,64], index: 6, kind: input, shape index: {}]
  %s7 = inlined_call_operand.vmem [shape: f32[1,64], index: 7, kind: input, shape index: {}]
  %s8 = inlined_call_operand.vmem [shape: bf16[1024,512], index: 8, kind: input, shape index: {}]
  %s9 = inlined_call_operand.vmem [shape: f32[1,512], index: 9, kind: input, shape index: {}]
  %s10 = inlined_call_operand.vmem [shape: bf16[512,128], index: 10, kind: input, shape index: {}]
  %s11 = inlined_call_operand.vmem [shape: bf16[4,128], index: 11, kind: input, shape index: {}]
  %s12 = inlined_call_operand.vmem [shape: f32[1,128], index: 12, kind: input, shape index: {}]
  %s13 = inlined_call_operand.vmem [shape: f32[2,128], index: 13, kind: output, shape index: {}]
  %s14 = sld [smem:[#allocation0]]
  $region62: #{critic_forward.1} parent=0
    _
  %s16 = ssub.s32 1, %s14
  %s17 = scalar_select 0, %s16, %s14
  // Predicated region
  $region2: #{critic_forward.1} parent=0 // pred_check
    _
  $region3: #{critic_forward.1} parent=0 // pred_check_branch
    %19 = sbr.rel (0) target = $region5
  $region4: #{critic_forward.1} parent=0 // pred_region
    _
  $region5: #{critic_forward.1} parent=0 // pred_fallthru
    _
  // Predicated region
  $region6: #{critic_forward.1} parent=0 // pred_check
    _
  $region7: #{critic_forward.1} parent=0 // pred_check_branch
    %21 = sbr.rel (0) target = $region9
  $region8: #{critic_forward.1} parent=0 // pred_region
    _
  $region9: #{critic_forward.1} parent=0 // pred_fallthru
    _
  // Predicated region
  $region10: #{critic_forward.1} parent=0 // pred_check
    _
  $region11: #{critic_forward.1} parent=0 // pred_check_branch
    %23 = sbr.rel (0) target = $region13
  $region12: #{critic_forward.1} parent=0 // pred_region
    _
  $region13: #{critic_forward.1} parent=0 // pred_fallthru
    _
  // Predicated region
  $region14: #{critic_forward.1} parent=0 // pred_check
    _
  $region15: #{critic_forward.1} parent=0 // pred_check_branch
    %25 = sbr.rel (0) target = $region17
  $region16: #{critic_forward.1} parent=0 // pred_region
    _
  $region17: #{critic_forward.1} parent=0 // pred_fallthru
    _
  // Predicated region
  $region18: #{critic_forward.1} parent=0 // pred_check
    _
  $region19: #{critic_forward.1} parent=0 // pred_check_branch
    %27 = sbr.rel (0) target = $region21
  $region20: #{critic_forward.1} parent=0 // pred_region
    _
  $region21: #{critic_forward.1} parent=0 // pred_fallthru
    _
  // Predicated region
  $region22: #{critic_forward.1} parent=0 // pred_check
    _
  $region23: #{critic_forward.1} parent=0 // pred_check_branch
    %29 = sbr.rel (0) target = $region25
  $region24: #{critic_forward.1} parent=0 // pred_region
    _
  $region25: #{critic_forward.1} parent=0 // pred_fallthru
    _
  // Predicated region
  $region26: #{critic_forward.1} parent=0 // pred_check
    _
  $region27: #{critic_forward.1} parent=0 // pred_check_branch
    %31 = sbr.rel (0) target = $region29
  $region28: #{critic_forward.1} parent=0 // pred_region
    _
  $region29: #{critic_forward.1} parent=0 // pred_fallthru
    _
  // Predicated region
  $region30: #{critic_forward.1} parent=0 // pred_check
    _
  $region31: #{critic_forward.1} parent=0 // pred_check_branch
    %33 = sbr.rel (0) target = $region33
  $region32: #{critic_forward.1} parent=0 // pred_region
    _
  $region33: #{critic_forward.1} parent=0 // pred_fallthru
    _
  // Predicated region
  $region34: #{critic_forward.1} parent=0 // pred_check
    _
  $region35: #{critic_forward.1} parent=0 // pred_check_branch
    %35 = sbr.rel (0) target = $region37
  $region36: #{critic_forward.1} parent=0 // pred_region
    _
  $region37: #{critic_forward.1} parent=0 // pred_fallthru
    _
  // Predicated region
  $region38: #{critic_forward.1} parent=0 // pred_check
    _
  $region39: #{critic_forward.1} parent=0 // pred_check_branch
    %37 = sbr.rel (0) target = $region41
  $region40: #{critic_forward.1} parent=0 // pred_region
    _
  $region41: #{critic_forward.1} parent=0 // pred_fallthru
    _
  // Predicated region
  $region42: #{critic_forward.1} parent=0 // pred_check
    _
  $region43: #{critic_forward.1} parent=0 // pred_check_branch
    %39 = sbr.rel (0) target = $region45
  $region44: #{critic_forward.1} parent=0 // pred_region
    _
  $region45: #{critic_forward.1} parent=0 // pred_fallthru
    _
  // Predicated region
  $region46: #{critic_forward.1} parent=0 // pred_check
    _
  $region47: #{critic_forward.1} parent=0 // pred_check_branch
    %41 = sbr.rel (0) target = $region49
  $region48: #{critic_forward.1} parent=0 // pred_region
    _
  $region49: #{critic_forward.1} parent=0 // pred_fallthru
    _
  // Predicated region
  $region50: #{critic_forward.1} parent=0 // pred_check
    _
  $region51: #{critic_forward.1} parent=0 // pred_check_branch
    %43 = sbr.rel (0) target = $region53
  $region52: #{critic_forward.1} parent=0 // pred_region
    _
  $region53: #{critic_forward.1} parent=0 // pred_fallthru
    _
  %v45 = vld [vmem:[%s0] sm:$0xff]
  %v46 = vld [vmem:[%s0 + $0x8] sm:$0xff]
  %v47 = vld [vmem:[%s0 + $0x10] sm:$0xff]
  %v48 = vld [vmem:[%s0 + $0x18] sm:$0xff]
  %v49 = vld [vmem:[%s0 + $0x20] sm:$0xff]
  %v50 = vld [vmem:[%s0 + $0x28] sm:$0xff]
  %v51 = vld [vmem:[%s0 + $0x30] sm:$0xff]
  %v52 = vld [vmem:[%s0 + $0x38] sm:$0xff]
  %v53 = vld [vmem:[%s0 + $0x40] sm:$0xff]
  %v54 = vld [vmem:[%s0 + $0x48] sm:$0xff]
  %v55 = vld [vmem:[%s0 + $0x50] sm:$0xff]
  %v56 = vld [vmem:[%s0 + $0x58] sm:$0xff]
  %v57 = vld [vmem:[%s0 + $0x60] sm:$0xff]
  %v58 = vld [vmem:[%s0 + $0x68] sm:$0xff]
  %v59 = vld [vmem:[%s0 + $0x70] sm:$0xff]
  %v60 = vld [vmem:[%s0 + $0x78] sm:$0xff]
  %v61 = vld [vmem:[%s0 + $0x80] sm:$0xff]
  %v62 = vld [vmem:[%s0 + $0x88] sm:$0xff]
  %v63 = vld [vmem:[%s0 + $0x90] sm:$0xff]
  %v64 = vld [vmem:[%s0 + $0x98] sm:$0xff]
  %v65 = vld [vmem:[%s0 + $0xa0] sm:$0xff]
  %v66 = vld [vmem:[%s0 + $0xa8] sm:$0xff]
  %v67 = vld [vmem:[%s0 + $0xb0] sm:$0xff]
  %v68 = vld [vmem:[%s0 + $0xb8] sm:$0xff]
  %v69 = vld [vmem:[%s0 + $0xc0] sm:$0x11]
  %v70 = vld [vmem:[%s0 + $0xc8] sm:$0x11]
  %v71 = vld [vmem:[%s2] sm:$0xf]
  %v72 = vld [vmem:[%s2 + $0x4] sm:$0xf]
  %v73 = vld [vmem:[%s2 + $0x8] sm:$0xf]
  %v74 = vld [vmem:[%s2 + $0xc] sm:$0xf]
  %v75 = vld [vmem:[%s2 + $0x10] sm:$0xf]
  %v76 = vld [vmem:[%s2 + $0x14] sm:$0xf]
  %v77 = vld [vmem:[%s2 + $0x18] sm:$0xf]
  %v78 = vld [vmem:[%s2 + $0x1c] sm:$0xf]
  %v79 = vld [vmem:[%s2 + $0x20] sm:$0xf]
  %v80 = vld [vmem:[%s2 + $0x24] sm:$0xf]
  %v81 = vld [vmem:[%s2 + $0x28] sm:$0xf]
  %v82 = vld [vmem:[%s2 + $0x2c] sm:$0xf]
  %v83 = vld [vmem:[%s2 + $0x30] sm:$0xf]
  %v84 = vld [vmem:[%s2 + $0x34] sm:$0xf]
  %v85 = vld [vmem:[%s2 + $0x38] sm:$0xf]
  %v86 = vld [vmem:[%s2 + $0x3c] sm:$0xf]
  %v87 = vld [vmem:[%s2 + $0x40] sm:$0xf]
  %v88 = vld [vmem:[%s2 + $0x44] sm:$0xf]
  %v89 = vld [vmem:[%s2 + $0x48] sm:$0xf]
  %v90 = vld [vmem:[%s2 + $0x4c] sm:$0xf]
  %v91 = vld [vmem:[%s2 + $0x50] sm:$0xf]
  %v92 = vld [vmem:[%s2 + $0x54] sm:$0xf]
  %v93 = vld [vmem:[%s2 + $0x58] sm:$0xf]
  %v94 = vld [vmem:[%s2 + $0x5c] sm:$0xf]
  %v95 = vld [vmem:[%s2 + $0x60] sm:$0xf]
  %v96 = vld [vmem:[%s2 + $0x64] sm:$0xf]
  %v97 = vld [vmem:[%s2 + $0x68] sm:$0xf]
  %v98 = vld [vmem:[%s2 + $0x6c] sm:$0xf]
  %v99 = vld [vmem:[%s2 + $0x70] sm:$0xf]
  %v100 = vld [vmem:[%s2 + $0x74] sm:$0xf]
  %v101 = vld [vmem:[%s2 + $0x78] sm:$0xf]
  %v102 = vld [vmem:[%s2 + $0x7c] sm:$0xf]
  %v103 = vld [vmem:[%s2 + $0x80] sm:$0xf]
  %v104 = vld [vmem:[%s2 + $0x84] sm:$0xf]
  %v105 = vld [vmem:[%s2 + $0x88] sm:$0xf]
  %v106 = vld [vmem:[%s2 + $0x8c] sm:$0xf]
  %v107 = vld [vmem:[%s2 + $0x90] sm:$0xf]
  %v108 = vld [vmem:[%s2 + $0x94] sm:$0xf]
  %v109 = vld [vmem:[%s2 + $0x98] sm:$0xf]
  %v110 = vld [vmem:[%s2 + $0x9c] sm:$0xf]
  %v111 = vld [vmem:[%s2 + $0xa0] sm:$0xf]
  %v112 = vld [vmem:[%s2 + $0xa4] sm:$0xf]
  %v113 = vld [vmem:[%s2 + $0xa8] sm:$0xf]
  %v114 = vld [vmem:[%s2 + $0xac] sm:$0xf]
  %v115 = vld [vmem:[%s2 + $0xb0] sm:$0xf]
  %v116 = vld [vmem:[%s2 + $0xb4] sm:$0xf]
  %v117 = vld [vmem:[%s2 + $0xb8] sm:$0xf]
  %v118 = vld [vmem:[%s2 + $0xbc] sm:$0xf]
  %v119 = vld [vmem:[%s2 + $0xc0] sm:$0xf]
  %v120 = vld [vmem:[%s2 + $0xc4] sm:$0xf]
  %v121 = vld [vmem:[%s2 + $0xc8] sm:$0xf]
  %v122 = vld [vmem:[%s2 + $0xcc] sm:$0xf]
  %v123 = vld [vmem:[%s2 + $0xd0] sm:$0xf]
  %v124 = vld [vmem:[%s2 + $0xd4] sm:$0xf]
  %v125 = vld [vmem:[%s3] sm:$0x1]
  %v127 = vlaneseq
  %v128 = vshrl.u32 %v127, 7
  %v129 = vsub.s32 0, %v128
  %v130 = vrot.slane %v125, %v129
  %v158 = vunpack.c.l.b16 %v45
  %v159 = vunpack.c.h.b16 %v45
  %v160 = vunpack.c.l.b16 %v46
  %v161 = vunpack.c.h.b16 %v46
  %v162 = vunpack.c.l.b16 %v47
  %v163 = vunpack.c.h.b16 %v47
  %v164 = vunpack.c.l.b16 %v48
  %v165 = vunpack.c.h.b16 %v48
  %v166 = vunpack.c.l.b16 %v49
  %v167 = vunpack.c.h.b16 %v49
  %v168 = vunpack.c.l.b16 %v50
  %v169 = vunpack.c.h.b16 %v50
  %v170 = vunpack.c.l.b16 %v51
  %v171 = vunpack.c.h.b16 %v51
  %v172 = vunpack.c.l.b16 %v52
  %v173 = vunpack.c.h.b16 %v52
  %v174 = vunpack.c.l.b16 %v53
  %v175 = vunpack.c.h.b16 %v53
  %v176 = vunpack.c.l.b16 %v54
  %v177 = vunpack.c.h.b16 %v54
  %v178 = vunpack.c.l.b16 %v55
  %v179 = vunpack.c.h.b16 %v55
  %v180 = vunpack.c.l.b16 %v56
  %v181 = vunpack.c.h.b16 %v56
  %v182 = vunpack.c.l.b16 %v57
  %v183 = vunpack.c.h.b16 %v57
  %v184 = vunpack.c.l.b16 %v58
  %v185 = vunpack.c.h.b16 %v58
  %v186 = vunpack.c.l.b16 %v59
  %v187 = vunpack.c.h.b16 %v59
  %v188 = vunpack.c.l.b16 %v60
  %v189 = vunpack.c.h.b16 %v60
  %v190 = vunpack.c.l.b16 %v61
  %v191 = vunpack.c.h.b16 %v61
  %v192 = vunpack.c.l.b16 %v62
  %v193 = vunpack.c.h.b16 %v62
  %v194 = vunpack.c.l.b16 %v63
  %v195 = vunpack.c.h.b16 %v63
  %v196 = vunpack.c.l.b16 %v64
  %v197 = vunpack.c.h.b16 %v64
  %v198 = vunpack.c.l.b16 %v65
  %v199 = vunpack.c.h.b16 %v65
  %v200 = vunpack.c.l.b16 %v66
  %v201 = vunpack.c.h.b16 %v66
  %v202 = vunpack.c.l.b16 %v67
  %v203 = vunpack.c.h.b16 %v67
  %v204 = vunpack.c.l.b16 %v68
  %v205 = vunpack.c.h.b16 %v68
  %v206 = vunpack.c.l.b16 %v69
  %v207 = vunpack.c.h.b16 %v69
  %v208 = vunpack.c.l.b16 %v70
  %v209 = vunpack.c.h.b16 %v70
  %v210 = vpack.c.b16 %v162, %v158
  %v211 = vpack.c.b16 %v163, %v159
  %v212 = vpack.c.b16 %v164, %v160
  %v213 = vpack.c.b16 %v165, %v161
  %v214 = vpack.c.b16 %v170, %v166
  %v215 = vpack.c.b16 %v171, %v167
  %v216 = vpack.c.b16 %v172, %v168
  %v217 = vpack.c.b16 %v173, %v169
  %v218 = vpack.c.b16 %v178, %v174
  %v219 = vpack.c.b16 %v179, %v175
  %v220 = vpack.c.b16 %v180, %v176
  %v221 = vpack.c.b16 %v181, %v177
  %v222 = vpack.c.b16 %v186, %v182
  %v223 = vpack.c.b16 %v187, %v183
  %v224 = vpack.c.b16 %v188, %v184
  %v225 = vpack.c.b16 %v189, %v185
  %v226 = vpack.c.b16 %v194, %v190
  %v227 = vpack.c.b16 %v195, %v191
  %v228 = vpack.c.b16 %v196, %v192
  %v229 = vpack.c.b16 %v197, %v193
  %v230 = vpack.c.b16 %v202, %v198
  %v231 = vpack.c.b16 %v203, %v199
  %v232 = vpack.c.b16 %v204, %v200
  %v233 = vpack.c.b16 %v205, %v201
  %v234 = vpack.c.b16 %v206, %v206
  %v235 = vpack.c.b16 %v207, %v207
  %v236 = vpack.c.b16 %v208, %v208
  %v237 = vpack.c.b16 %v209, %v209
  %v313 = vunpack.c.l.b16 %v71
  %v314 = vunpack.c.l.b16 %v72
  %v315 = vunpack.c.l.b16 %v73
  %v316 = vunpack.c.l.b16 %v74
  %v317 = vunpack.c.l.b16 %v75
  %v318 = vunpack.c.l.b16 %v76
  %v319 = vunpack.c.l.b16 %v77
  %v320 = vunpack.c.l.b16 %v78
  %v321 = vunpack.c.l.b16 %v79
  %v322 = vunpack.c.l.b16 %v80
  %v323 = vunpack.c.l.b16 %v81
  %v324 = vunpack.c.l.b16 %v82
  %v325 = vunpack.c.l.b16 %v83
  %v326 = vunpack.c.l.b16 %v84
  %v327 = vunpack.c.l.b16 %v85
  %v328 = vunpack.c.l.b16 %v86
  %v329 = vunpack.c.l.b16 %v87
  %v330 = vunpack.c.l.b16 %v88
  %v331 = vunpack.c.l.b16 %v89
  %v332 = vunpack.c.l.b16 %v90
  %v333 = vunpack.c.l.b16 %v91
  %v334 = vunpack.c.l.b16 %v92
  %v335 = vunpack.c.l.b16 %v93
  %v336 = vunpack.c.l.b16 %v94
  %v337 = vunpack.c.l.b16 %v95
  %v338 = vunpack.c.l.b16 %v96
  %v339 = vunpack.c.l.b16 %v97
  %v340 = vunpack.c.l.b16 %v98
  %v341 = vunpack.c.l.b16 %v99
  %v342 = vunpack.c.l.b16 %v100
  %v343 = vunpack.c.l.b16 %v101
  %v344 = vunpack.c.l.b16 %v102
  %v345 = vunpack.c.l.b16 %v103
  %v346 = vunpack.c.l.b16 %v104
  %v347 = vunpack.c.l.b16 %v105
  %v348 = vunpack.c.l.b16 %v106
  %v349 = vunpack.c.l.b16 %v107
  %v350 = vunpack.c.l.b16 %v108
  %v351 = vunpack.c.l.b16 %v109
  %v352 = vunpack.c.l.b16 %v110
  %v353 = vunpack.c.l.b16 %v111
  %v354 = vunpack.c.l.b16 %v112
  %v355 = vunpack.c.l.b16 %v113
  %v356 = vunpack.c.l.b16 %v114
  %v357 = vunpack.c.l.b16 %v115
  %v358 = vunpack.c.l.b16 %v116
  %v359 = vunpack.c.l.b16 %v117
  %v360 = vunpack.c.l.b16 %v118
  %v361 = vunpack.c.l.b16 %v119
  %v362 = vunpack.c.l.b16 %v120
  %v363 = vunpack.c.l.b16 %v121
  %v364 = vunpack.c.l.b16 %v122
  %v365 = vunpack.c.l.b16 %v123
  %v366 = vunpack.c.l.b16 %v124
  %v367 = vpack.c.b16 %v314, %v313
  %v368 = vpack.c.b16 %v316, %v315
  %v369 = vpack.c.b16 %v318, %v317
  %v370 = vpack.c.b16 %v320, %v319
  %v371 = vpack.c.b16 %v322, %v321
  %v372 = vpack.c.b16 %v324, %v323
  %v373 = vpack.c.b16 %v326, %v325
  %v374 = vpack.c.b16 %v328, %v327
  %v375 = vpack.c.b16 %v330, %v329
  %v376 = vpack.c.b16 %v332, %v331
  %v377 = vpack.c.b16 %v334, %v333
  %v378 = vpack.c.b16 %v336, %v335
  %v379 = vpack.c.b16 %v338, %v337
  %v380 = vpack.c.b16 %v340, %v339
  %v381 = vpack.c.b16 %v342, %v341
  %v382 = vpack.c.b16 %v344, %v343
  %v383 = vpack.c.b16 %v346, %v345
  %v384 = vpack.c.b16 %v348, %v347
  %v385 = vpack.c.b16 %v350, %v349
  %v386 = vpack.c.b16 %v352, %v351
  %v387 = vpack.c.b16 %v354, %v353
  %v388 = vpack.c.b16 %v356, %v355
  %v389 = vpack.c.b16 %v358, %v357
  %v390 = vpack.c.b16 %v360, %v359
  %v391 = vpack.c.b16 %v362, %v361
  %v392 = vpack.c.b16 %v364, %v363
  %v393 = vpack.c.b16 %v366, %v365
  %vm421 = vcmask 392192
  %v423 = vsel %vm421, %v213, 0
  %v426 = vsel %vm421, %v217, 0
  %v429 = vsel %vm421, %v221, 0
  %v432 = vsel %vm421, %v225, 0
  %v435 = vsel %vm421, %v229, 0
  %v438 = vsel %vm421, %v233, 0
  %v441 = vsel %vm421, %v237, 0
  %443 = vmatprep.subr.bf16.mxu0 0
  %444 = vmatpush1.bf16.msra.mxu0 %v374
  %445 = vmatprep.subr.bf16.mxu0 0
  %446 = vmatpush1.bf16.msra.mxu0 %v373
  %447 = vmatprep.subr.bf16.mxu0 0
  %448 = vmatpush1.bf16.msra.mxu0 %v372
  %449 = vmatprep.subr.bf16.mxu0 0
  %450 = vmatpush1.bf16.msra.mxu0 %v371
  %451 = vmatprep.subr.bf16.mxu0 0
  %452 = vmatpush1.bf16.msra.mxu0 %v370
  %453 = vmatprep.subr.bf16.mxu0 0
  %454 = vmatpush1.bf16.msra.mxu0 %v369
  %455 = vmatprep.subr.bf16.mxu0 0
  %456 = vmatpush1.bf16.msra.mxu0 %v368
  %457 = vmatprep.subr.bf16.mxu0 0
  %458 = vmatpush1.bf16.msra.mxu0 %v367
  %459 = vmatprep.subr.bf16.mxu0 0
  %460 = vmatpush2.bf16.msra.mxu0 %v382
  %461 = vmatprep.subr.bf16.mxu0 0
  %462 = vmatpush2.bf16.msra.mxu0 %v381
  %463 = vmatprep.subr.bf16.mxu0 0
  %464 = vmatpush2.bf16.msra.mxu0 %v380
  %465 = vmatprep.subr.bf16.mxu0 0
  %466 = vmatpush2.bf16.msra.mxu0 %v379
  %467 = vmatprep.subr.bf16.mxu0 0
  %468 = vmatpush2.bf16.msra.mxu0 %v378
  %469 = vmatprep.subr.bf16.mxu0 0
  %470 = vmatpush2.bf16.msra.mxu0 %v377
  %471 = vmatprep.subr.bf16.mxu0 0
  %472 = vmatpush2.bf16.msra.mxu0 %v376
  %473 = vmatprep.subr.bf16.mxu0 0
  %474 = vmatpush2.bf16.msra.mxu0 %v375
  %475 = vmatprep.mubr.bf16.mxu0 %v211
  %476 = vmatmul.mubr.bf16.gmra.mxu0 %v210
  %v477 = vpop.f32.mrf.mxu0
  %v478 = vadd.f32 %v130, %v477
  %v479 = vpop.f32.mrf.mxu0
  %v480 = vpop.f32.mrf.mxu0
  %v481 = vadd.f32 %v130, %v480
  %v482 = vpop.f32.mrf.mxu0
  %483 = vmatprep.mubr.bf16.mxu0 %v215
  %484 = vmatmul.mubr.bf16.gmra.mxu0 %v214
  %v485 = vpop.f32.mrf.mxu0
  %v486 = vadd.f32 %v130, %v485
  %v487 = vpop.f32.mrf.mxu0
  %v488 = vpop.f32.mrf.mxu0
  %v489 = vadd.f32 %v130, %v488
  %v490 = vpop.f32.mrf.mxu0
  %491 = vmatprep.mubr.bf16.mxu0 %v219
  %492 = vmatmul.mubr.bf16.gmra.mxu0 %v218
  %v493 = vpop.f32.mrf.mxu0
  %v494 = vadd.f32 %v130, %v493
  %v495 = vpop.f32.mrf.mxu0
  %v496 = vpop.f32.mrf.mxu0
  %v497 = vadd.f32 %v130, %v496
  %v498 = vpop.f32.mrf.mxu0
  %499 = vmatprep.mubr.bf16.mxu0 %v223
  %500 = vmatmul.mubr.bf16.gmra.mxu0 %v222
  %v501 = vpop.f32.mrf.mxu0
  %v502 = vadd.f32 %v130, %v501
  %v503 = vpop.f32.mrf.mxu0
  %v504 = vpop.f32.mrf.mxu0
  %v505 = vadd.f32 %v130, %v504
  %v506 = vpop.f32.mrf.mxu0
  %507 = vmatprep.mubr.bf16.mxu0 %v227
  %508 = vmatmul.mubr.bf16.gmra.mxu0 %v226
  %v509 = vpop.f32.mrf.mxu0
  %v510 = vadd.f32 %v130, %v509
  %v511 = vpop.f32.mrf.mxu0
  %v512 = vpop.f32.mrf.mxu0
  %v513 = vadd.f32 %v130, %v512
  %v514 = vpop.f32.mrf.mxu0
  %515 = vmatprep.mubr.bf16.mxu0 %v231
  %516 = vmatmul.mubr.bf16.gmra.mxu0 %v230
  %v517 = vpop.f32.mrf.mxu0
  %v518 = vadd.f32 %v130, %v517
  %v519 = vpop.f32.mrf.mxu0
  %v520 = vpop.f32.mrf.mxu0
  %v521 = vadd.f32 %v130, %v520
  %v522 = vpop.f32.mrf.mxu0
  %523 = vmatprep.mubr.bf16.mxu0 %v235
  %524 = vmatmul.mubr.bf16.gmra.mxu0 %v234
  %v525 = vpop.f32.mrf.mxu0
  %v526 = vadd.f32 %v130, %v525
  %v527 = vpop.f32.mrf.mxu0
  %v528 = vpop.f32.mrf.mxu0
  %v529 = vpop.f32.mrf.mxu0
  %530 = vdwg.mxu0
  %531 = vmatprep.subr.bf16.mxu0 0
  %532 = vmatpush1.bf16.msra.mxu0 %v390
  %533 = vmatprep.subr.bf16.mxu0 0
  %534 = vmatpush1.bf16.msra.mxu0 %v389
  %535 = vmatprep.subr.bf16.mxu0 0
  %536 = vmatpush1.bf16.msra.mxu0 %v388
  %537 = vmatprep.subr.bf16.mxu0 0
  %538 = vmatpush1.bf16.msra.mxu0 %v387
  %539 = vmatprep.subr.bf16.mxu0 0
  %540 = vmatpush1.bf16.msra.mxu0 %v386
  %541 = vmatprep.subr.bf16.mxu0 0
  %542 = vmatpush1.bf16.msra.mxu0 %v385
  %543 = vmatprep.subr.bf16.mxu0 0
  %544 = vmatpush1.bf16.msra.mxu0 %v384
  %545 = vmatprep.subr.bf16.mxu0 0
  %546 = vmatpush1.bf16.msra.mxu0 %v383
  %547 = vmatprep.subr.bf16.mxu0 0
  %548 = vmatpush2.bf16.msra.mxu0 0
  %549 = vmatprep.subr.bf16.mxu0 0
  %550 = vmatpush2.bf16.msra.mxu0 0
  %551 = vmatprep.subr.bf16.mxu0 0
  %552 = vmatpush2.bf16.msra.mxu0 0
  %553 = vmatprep.subr.bf16.mxu0 0
  %554 = vmatpush2.bf16.msra.mxu0 0
  %555 = vmatprep.subr.bf16.mxu0 0
  %556 = vmatpush2.bf16.msra.mxu0 0
  %557 = vmatprep.subr.bf16.mxu0 0
  %558 = vmatpush2.bf16.msra.mxu0 %v393
  %559 = vmatprep.subr.bf16.mxu0 0
  %560 = vmatpush2.bf16.msra.mxu0 %v392
  %561 = vmatprep.subr.bf16.mxu0 0
  %562 = vmatpush2.bf16.msra.mxu0 %v391
  %563 = vmatprep.mubr.bf16.mxu0 %v423
  %564 = vmatmul.mubr.bf16.gmra.mxu0 %v212
  %v565 = vpop.f32.mrf.mxu0
  %v566 = vadd.f32 %v478, %v565
  %v567 = vpop.f32.mrf.mxu0
  %v568 = vpop.f32.mrf.mxu0
  %v569 = vadd.f32 %v481, %v568
  %v570 = vpop.f32.mrf.mxu0
  %571 = vmatprep.mubr.bf16.mxu0 %v426
  %572 = vmatmul.mubr.bf16.gmra.mxu0 %v216
  %v573 = vpop.f32.mrf.mxu0
  %v574 = vadd.f32 %v486, %v573
  %v575 = vpop.f32.mrf.mxu0
  %v576 = vpop.f32.mrf.mxu0
  %v577 = vadd.f32 %v489, %v576
  %v578 = vpop.f32.mrf.mxu0
  %579 = vmatprep.mubr.bf16.mxu0 %v429
  %580 = vmatmul.mubr.bf16.gmra.mxu0 %v220
  %v581 = vpop.f32.mrf.mxu0
  %v582 = vadd.f32 %v494, %v581
  %v583 = vpop.f32.mrf.mxu0
  %v584 = vpop.f32.mrf.mxu0
  %v585 = vadd.f32 %v497, %v584
  %v586 = vpop.f32.mrf.mxu0
  %587 = vmatprep.mubr.bf16.mxu0 %v432
  %588 = vmatmul.mubr.bf16.gmra.mxu0 %v224
  %v589 = vpop.f32.mrf.mxu0
  %v590 = vadd.f32 %v502, %v589
  %v591 = vpop.f32.mrf.mxu0
  %v592 = vpop.f32.mrf.mxu0
  %v593 = vadd.f32 %v505, %v592
  %v594 = vpop.f32.mrf.mxu0
  %595 = vmatprep.mubr.bf16.mxu0 %v435
  %596 = vmatmul.mubr.bf16.gmra.mxu0 %v228
  %v597 = vpop.f32.mrf.mxu0
  %v598 = vadd.f32 %v510, %v597
  %v599 = vpop.f32.mrf.mxu0
  %v600 = vpop.f32.mrf.mxu0
  %v601 = vadd.f32 %v513, %v600
  %v602 = vpop.f32.mrf.mxu0
  %603 = vmatprep.mubr.bf16.mxu0 %v438
  %604 = vmatmul.mubr.bf16.gmra.mxu0 %v232
  %v605 = vpop.f32.mrf.mxu0
  %v606 = vadd.f32 %v518, %v605
  %v607 = vpop.f32.mrf.mxu0
  %v608 = vpop.f32.mrf.mxu0
  %v609 = vadd.f32 %v521, %v608
  %v610 = vpop.f32.mrf.mxu0
  %611 = vmatprep.mubr.bf16.mxu0 %v441
  %612 = vmatmul.mubr.bf16.gmra.mxu0 %v236
  %v613 = vpop.f32.mrf.mxu0
  %v614 = vadd.f32 %v526, %v613
  %v615 = vpop.f32.mrf.mxu0
  %v616 = vpop.f32.mrf.mxu0
  %v617 = vpop.f32.mrf.mxu0
  %618 = vdwg.mxu0
  %v619 = vmax.f32 %v566, 0.0
  %v620 = vmax.f32 %v569, 0.0
  %v621 = vmax.f32 %v574, 0.0
  %v622 = vmax.f32 %v577, 0.0
  %v623 = vmax.f32 %v582, 0.0
  %v624 = vmax.f32 %v585, 0.0
  %v625 = vmax.f32 %v590, 0.0
  %v626 = vmax.f32 %v593, 0.0
  %v627 = vmax.f32 %v598, 0.0
  %v628 = vmax.f32 %v601, 0.0
  %v629 = vmax.f32 %v606, 0.0
  %v630 = vmax.f32 %v609, 0.0
  %v631 = vmax.f32 %v614, 0.0
  %v632 = vpack.c.bf16 %v620, %v619
  %v633 = vpack.c.bf16 %v622, %v621
  %v634 = vpack.c.bf16 %v624, %v623
  %v635 = vpack.c.bf16 %v626, %v625
  %v636 = vpack.c.bf16 %v628, %v627
  %v637 = vpack.c.bf16 %v630, %v629
  %v638 = vpack.c.bf16 %v631, %v631
  %v646 = vunpack.c.l.b16 %v632
  %v647 = vunpack.c.h.b16 %v632
  %v648 = vunpack.c.l.b16 %v633
  %v649 = vunpack.c.h.b16 %v633
  %v650 = vunpack.c.l.b16 %v634
  %v651 = vunpack.c.h.b16 %v634
  %v652 = vunpack.c.l.b16 %v635
  %v653 = vunpack.c.h.b16 %v635
  %v654 = vunpack.c.l.b16 %v636
  %v655 = vunpack.c.h.b16 %v636
  %v656 = vunpack.c.l.b16 %v637
  %v657 = vunpack.c.h.b16 %v637
  %v658 = vunpack.c.l.b16 %v638
  %v659 = vpack.c.b16 %v646, %v646
  %v660 = vpack.c.b16 %v647, %v647
  %v661 = vpack.c.b16 %v648, %v648
  %v662 = vpack.c.b16 %v649, %v649
  %v663 = vpack.c.b16 %v650, %v650
  %v664 = vpack.c.b16 %v651, %v651
  %v665 = vpack.c.b16 %v652, %v652
  %v666 = vpack.c.b16 %v653, %v653
  %v667 = vpack.c.b16 %v654, %v654
  %v668 = vpack.c.b16 %v655, %v655
  %v669 = vpack.c.b16 %v656, %v656
  %v670 = vpack.c.b16 %v657, %v657
  %v671 = vpack.c.b16 %v658, %v658
  %685 = vst [vmem:[#allocation2] sm:$0xf] %v659
  %686 = vst [vmem:[#allocation2 + $0x4] sm:$0xf] %v660
  %687 = vst [vmem:[#allocation2 + $0x8] sm:$0xf] %v661
  %688 = vst [vmem:[#allocation2 + $0xc] sm:$0xf] %v662
  %689 = vst [vmem:[#allocation2 + $0x10] sm:$0xf] %v663
  %690 = vst [vmem:[#allocation2 + $0x14] sm:$0xf] %v664
  %691 = vst [vmem:[#allocation2 + $0x18] sm:$0xf] %v665
  %692 = vst [vmem:[#allocation2 + $0x1c] sm:$0xf] %v666
  %693 = vst [vmem:[#allocation2 + $0x20] sm:$0xf] %v667
  %694 = vst [vmem:[#allocation2 + $0x24] sm:$0xf] %v668
  %695 = vst [vmem:[#allocation2 + $0x28] sm:$0xf] %v669
  %696 = vst [vmem:[#allocation2 + $0x2c] sm:$0xf] %v670
  %697 = vst [vmem:[#allocation2 + $0x30] sm:$0x1] %v671
  %v698 = vld [vmem:[#allocation2] sm:$0x7]
  %v699 = vld [vmem:[#allocation2] sm:$0xf]
  %v700 = vld [vmem:[#allocation2] sm:$0x8]
  %v701 = vld [vmem:[#allocation2 + $0x4] sm:$0x7]
  %v703 = vunpack.c.l.b16 %v699
  %v704 = vpack.c.b16 %v703, %v703
  %v706 = vshrl.u32 %v704, 16
  %v708 = vshll.u32 %v704, 16
  %v710 = vrot.slane %v708, 1
  %v711 = vor.u32 %v706, %v710
  %v714 = vunpack.c.l.b16 %v700
  %v715 = vunpack.c.l.b16 %v701
  %v716 = vpack.c.b16 %v715, %v714
  %v718 = vshrl.u32 %v716, 16
  %v720 = vrot.slane %v718, 3
  %v721 = vshll.u32 %v716, 16
  %v723 = vrot.slane %v721, 4
  %v724 = vor.u32 %v720, %v723
  %v726 = vunpack.c.l.b16 %v698
  %v727 = vunpack.c.l.b16 %v711
  %v728 = vunpack.c.l.b16 %v724
  %v729 = vpack.c.b16 %v727, %v726
  %v730 = vpack.c.b16 %v715, %v728
  %733 = vst [vmem:[#allocation3] sm:$0x77] %v729
  %734 = vst [vmem:[#allocation3 + $0x8] sm:$0x77] %v730
  %v735 = vld [vmem:[#allocation2] sm:$0x8]
  %v736 = vld [vmem:[#allocation2 + $0x4] sm:$0x7]
  %v737 = vld [vmem:[#allocation2 + $0x4] sm:$0x8]
  %v738 = vld [vmem:[#allocation2 + $0x8] sm:$0x3]
  %v739 = vld [vmem:[#allocation2 + $0x8] sm:$0x7]
  %v742 = vunpack.c.l.b16 %v735
  %v743 = vunpack.c.l.b16 %v736
  %v744 = vpack.c.b16 %v743, %v743
  %v746 = vshrl.u32 %v744, 16
  %v748 = vrot.slane %v746, 4
  %v749 = vshll.u32 %v744, 16
  %v751 = vrot.slane %v749, 5
  %v752 = vor.u32 %v748, %v751
  %v755 = vunpack.c.l.b16 %v737
  %v756 = vunpack.c.l.b16 %v738
  %v757 = vpack.c.b16 %v756, %v755
  %v759 = vshrl.u32 %v757, 16
  %v761 = vrot.slane %v759, 7
  %v762 = vshll.u32 %v757, 16
  %v764 = vor.u32 %v761, %v762
  %v766 = vunpack.c.l.b16 %v739
  %v767 = vunpack.c.l.b16 %v752
  %v768 = vunpack.c.l.b16 %v764
  %v769 = vunpack.c.h.b16 %v752
  %v770 = vunpack.c.h.b16 %v764
  %v771 = vpack.c.b16 %v767, %v742
  %v772 = vpack.c.b16 %v755, %v768
  %v773 = vpack.c.b16 %v769, %v743
  %v774 = vpack.c.b16 %v766, %v770
  %vm775 = vsmask.f32 3328
  %vm776 = vsmask.f32 7440
  %vm777 = vmor %vm775, %vm776
  %v779 = vshrl.u32 %v771, 16
  %v781 = vrot.slane %v779, 4
  %v782 = vrot.slane %v781, 4
  %v784 = vshll.u32 %v773, 16
  %v786 = vrot.slane %v784, 5
  %v787 = vsel %vm777, %v782, %v786
  %v789 = vshrl.u32 %v772, 16
  %v791 = vrot.slane %v789, 4
  %v792 = vrot.slane %v791, 4
  %v794 = vshll.u32 %v774, 16
  %v796 = vrot.slane %v794, 5
  %v797 = vsel %vm777, %v792, %v796
  %v798 = vshrl.u32 %v773, 16
  %v800 = vrot.slane %v798, 4
  %v801 = vor.u32 %v800, %v786
  %v802 = vrot.slane %v801, 4
  %v803 = vshrl.u32 %v774, 16
  %v805 = vrot.slane %v803, 4
  %v806 = vor.u32 %v805, %v796
  %v807 = vrot.slane %v806, 4
  %812 = vst [vmem:[#allocation3] sm:$0x88] %v787
  %813 = vst [vmem:[#allocation3 + $0x8] sm:$0x88] %v797
  %814 = vst [vmem:[#allocation3 + $0x10] sm:$0x33] %v802
  %815 = vst [vmem:[#allocation3 + $0x18] sm:$0x33] %v807
  %v816 = vld [vmem:[#allocation2 + $0x4] sm:$0x8]
  %v817 = vld [vmem:[#allocation2 + $0x8] sm:$0x3]
  %v818 = vld [vmem:[#allocation2 + $0x8] sm:$0x7]
  %v819 = vld [vmem:[#allocation2 + $0x8] sm:$0xc]
  %v820 = vld [vmem:[#allocation2 + $0xc] sm:$0x3]
  %v821 = vld [vmem:[#allocation2 + $0x8] sm:$0x8]
  %v824 = vunpack.c.l.b16 %v816
  %v825 = vunpack.c.l.b16 %v817
  %v827 = vunpack.c.l.b16 %v818
  %v828 = vpack.c.b16 %v827, %v824
  %v830 = vshrl.u32 %v828, 16
  %v832 = vshll.u32 %v828, 16
  %v834 = vrot.slane %v832, 1
  %v835 = vor.u32 %v830, %v834
  %v838 = vunpack.c.l.b16 %v819
  %v839 = vunpack.c.l.b16 %v820
  %v840 = vpack.c.b16 %v839, %v838
  %v842 = vshrl.u32 %v840, 16
  %v844 = vrot.slane %v842, 7
  %v845 = vshll.u32 %v840, 16
  %v847 = vor.u32 %v844, %v845
  %v849 = vunpack.c.l.b16 %v821
  %v850 = vunpack.c.l.b16 %v835
  %v851 = vunpack.c.l.b16 %v847
  %v852 = vunpack.c.h.b16 %v835
  %v853 = vunpack.c.h.b16 %v847
  %v854 = vpack.c.b16 %v850, %v824
  %v855 = vpack.c.b16 %v849, %v851
  %v856 = vpack.c.b16 %v852, %v825
  %v857 = vpack.c.b16 %v839, %v853
  %vm858 = vcmask 1042432
  %vm859 = vcmask 1046532
  %vm860 = vmor %vm858, %vm859
  %v861 = vrot.slane %v854, 5
  %v862 = vrot.slane %v861, 4
  %v863 = vrot.slane %v856, 5
  %v864 = vsel %vm860, %v862, %v863
  %v865 = vrot.slane %v855, 5
  %v866 = vrot.slane %v865, 4
  %v867 = vrot.slane %v857, 5
  %v868 = vsel %vm860, %v866, %v867
  %v869 = vrot.slane %v863, 4
  %v870 = vrot.slane %v867, 4
  %875 = vst [vmem:[#allocation3 + $0x10] sm:$0xcc] %v864
  %876 = vst [vmem:[#allocation3 + $0x18] sm:$0xcc] %v868
  %877 = vst [vmem:[#allocation3 + $0x20] sm:$0x11] %v869
  %878 = vst [vmem:[#allocation3 + $0x28] sm:$0x11] %v870
  %v879 = vld [vmem:[#allocation2 + $0x8] sm:$0xc]
  %v880 = vld [vmem:[#allocation2 + $0xc] sm:$0x3]
  %v881 = vld [vmem:[#allocation2 + $0x8] sm:$0x8]
  %v882 = vld [vmem:[#allocation2 + $0xc] sm:$0xc]
  %v883 = vld [vmem:[#allocation2 + $0x10] sm:$0x1]
  %v884 = vld [vmem:[#allocation2 + $0x10] sm:$0x3]
  %v887 = vunpack.c.l.b16 %v879
  %v888 = vunpack.c.l.b16 %v880
  %v890 = vunpack.c.l.b16 %v881
  %v891 = vpack.c.b16 %v888, %v890
  %v893 = vshrl.u32 %v891, 16
  %v895 = vshll.u32 %v891, 16
  %v897 = vrot.slane %v895, 1
  %v898 = vor.u32 %v893, %v897
  %v901 = vunpack.c.l.b16 %v882
  %v902 = vunpack.c.l.b16 %v883
  %v903 = vpack.c.b16 %v902, %v901
  %v905 = vshrl.u32 %v903, 16
  %v907 = vrot.slane %v905, 7
  %v908 = vshll.u32 %v903, 16
  %v910 = vor.u32 %v907, %v908
  %v912 = vunpack.c.l.b16 %v884
  %v913 = vunpack.c.l.b16 %v898
  %v914 = vunpack.c.l.b16 %v910
  %v915 = vunpack.c.h.b16 %v898
  %v916 = vunpack.c.h.b16 %v910
  %v917 = vpack.c.b16 %v913, %v887
  %v918 = vpack.c.b16 %v901, %v914
  %v919 = vpack.c.b16 %v915, %v888
  %v920 = vpack.c.b16 %v912, %v916
  %vm921 = vsmask.f32 2304
  %vm922 = vsmask.f32 6416
  %vm923 = vmor %vm921, %vm922
  %v925 = vshrl.u32 %v917, 16
  %v927 = vrot.slane %v925, 5
  %v928 = vshll.u32 %v917, 16
  %v930 = vrot.slane %v928, 6
  %v931 = vor.u32 %v927, %v930
  %v932 = vrot.slane %v931, 4
  %v934 = vshrl.u32 %v919, 16
  %v936 = vrot.slane %v934, 5
  %v937 = vshll.u32 %v919, 16
  %v939 = vrot.slane %v937, 6
  %v940 = vor.u32 %v936, %v939
  %v941 = vsel %vm923, %v932, %v940
  %v943 = vshrl.u32 %v918, 16
  %v945 = vrot.slane %v943, 5
  %v946 = vshll.u32 %v918, 16
  %v948 = vrot.slane %v946, 6
  %v949 = vor.u32 %v945, %v948
  %v950 = vrot.slane %v949, 4
  %v952 = vshrl.u32 %v920, 16
  %v954 = vrot.slane %v952, 5
  %v955 = vshll.u32 %v920, 16
  %v957 = vrot.slane %v955, 6
  %v958 = vor.u32 %v954, %v957
  %v959 = vsel %vm923, %v950, %v958
  %962 = vst [vmem:[#allocation3 + $0x20] sm:$0xee] %v941
  %963 = vst [vmem:[#allocation3 + $0x28] sm:$0xee] %v959
  %v964 = vld [vmem:[#allocation2 + $0xc] sm:$0xc]
  %v965 = vld [vmem:[#allocation2 + $0x10] sm:$0x1]
  %v966 = vld [vmem:[#allocation2 + $0x10] sm:$0x3]
  %v967 = vld [vmem:[#allocation2 + $0x10] sm:$0xe]
  %v968 = vld [vmem:[#allocation2 + $0x14] sm:$0x1]
  %v969 = vld [vmem:[#allocation2 + $0x10] sm:$0xc]
  %v972 = vunpack.c.l.b16 %v964
  %v973 = vunpack.c.l.b16 %v965
  %v975 = vunpack.c.l.b16 %v966
  %v976 = vpack.c.b16 %v975, %v972
  %v978 = vshrl.u32 %v976, 16
  %v980 = vshll.u32 %v976, 16
  %v982 = vrot.slane %v980, 1
  %v983 = vor.u32 %v978, %v982
  %v986 = vunpack.c.l.b16 %v967
  %v987 = vunpack.c.l.b16 %v968
  %v988 = vpack.c.b16 %v987, %v986
  %v990 = vshrl.u32 %v988, 16
  %v992 = vrot.slane %v990, 7
  %v993 = vshll.u32 %v988, 16
  %v995 = vor.u32 %v992, %v993
  %v997 = vunpack.c.l.b16 %v969
  %v998 = vunpack.c.l.b16 %v983
  %v999 = vunpack.c.l.b16 %v995
  %v1000 = vunpack.c.h.b16 %v983
  %v1001 = vunpack.c.h.b16 %v995
  %v1002 = vpack.c.b16 %v998, %v972
  %v1003 = vpack.c.b16 %v997, %v999
  %v1004 = vpack.c.b16 %v1000, %v973
  %v1005 = vpack.c.b16 %v987, %v1001
  %vm1006 = vcmask 1041408
  %vm1007 = vcmask 1045508
  %vm1008 = vmor %vm1006, %vm1007
  %v1009 = vrot.slane %v1002, 6
  %v1010 = vrot.slane %v1009, 4
  %v1011 = vrot.slane %v1004, 6
  %v1012 = vsel %vm1008, %v1010, %v1011
  %v1013 = vrot.slane %v1003, 6
  %v1014 = vrot.slane %v1013, 4
  %v1015 = vrot.slane %v1005, 6
  %v1016 = vsel %vm1008, %v1014, %v1015
  %1019 = vst [vmem:[#allocation3 + $0x30] sm:$0x77] %v1012
  %1020 = vst [vmem:[#allocation3 + $0x38] sm:$0x77] %v1016
  %v1021 = vld [vmem:[#allocation2 + $0x10] sm:$0xe]
  %v1022 = vld [vmem:[#allocation2 + $0x14] sm:$0x1]
  %v1023 = vld [vmem:[#allocation2 + $0x10] sm:$0xc]
  %v1024 = vld [vmem:[#allocation2 + $0x14] sm:$0xe]
  %v1025 = vld [vmem:[#allocation2 + $0x18] sm:$0x1]
  %v1028 = vunpack.c.l.b16 %v1021
  %v1029 = vunpack.c.l.b16 %v1022
  %v1031 = vunpack.c.l.b16 %v1023
  %v1032 = vpack.c.b16 %v1029, %v1031
  %v1034 = vshrl.u32 %v1032, 16
  %v1036 = vshll.u32 %v1032, 16
  %v1038 = vrot.slane %v1036, 1
  %v1039 = vor.u32 %v1034, %v1038
  %v1041 = vunpack.c.l.b16 %v1024
  %v1042 = vpack.c.b16 %v1041, %v1041
  %v1044 = vshrl.u32 %v1042, 16
  %v1046 = vrot.slane %v1044, 7
  %v1047 = vshll.u32 %v1042, 16
  %v1049 = vor.u32 %v1046, %v1047
  %v1051 = vunpack.c.l.b16 %v1025
  %v1052 = vunpack.c.l.b16 %v1039
  %v1053 = vunpack.c.l.b16 %v1049
  %v1054 = vunpack.c.h.b16 %v1039
  %v1055 = vunpack.c.h.b16 %v1049
  %v1056 = vpack.c.b16 %v1052, %v1028
  %v1057 = vpack.c.b16 %v1041, %v1053
  %v1058 = vpack.c.b16 %v1054, %v1029
  %v1059 = vpack.c.b16 %v1051, %v1055
  %vm1060 = vsmask.f32 1280
  %vm1061 = vsmask.f32 5392
  %vm1062 = vmor %vm1060, %vm1061
  %v1064 = vshrl.u32 %v1056, 16
  %v1066 = vrot.slane %v1064, 6
  %v1067 = vshll.u32 %v1056, 16
  %v1069 = vrot.slane %v1067, 7
  %v1070 = vor.u32 %v1066, %v1069
  %v1072 = vshrl.u32 %v1057, 16
  %v1074 = vrot.slane %v1072, 6
  %v1075 = vshll.u32 %v1057, 16
  %v1077 = vrot.slane %v1075, 7
  %v1078 = vor.u32 %v1074, %v1077
  %v1079 = vrot.slane %v1070, 4
  %v1081 = vshll.u32 %v1058, 16
  %v1083 = vrot.slane %v1081, 7
  %v1084 = vsel %vm1062, %v1079, %v1083
  %v1085 = vrot.slane %v1078, 4
  %v1087 = vshll.u32 %v1059, 16
  %v1089 = vrot.slane %v1087, 7
  %v1090 = vsel %vm1062, %v1085, %v1089
  %1095 = vst [vmem:[#allocation3 + $0x30] sm:$0x88] %v1070
  %1096 = vst [vmem:[#allocation3 + $0x38] sm:$0x88] %v1078
  %1097 = vst [vmem:[#allocation3 + $0x40] sm:$0x33] %v1084
  %1098 = vst [vmem:[#allocation3 + $0x48] sm:$0x33] %v1090
  %v1099 = vld [vmem:[#allocation2 + $0x18] sm:$0xf]
  %v1100 = vld [vmem:[#allocation2 + $0x18] sm:$0xe]
  %v1101 = vld [vmem:[#allocation2 + $0x1c] sm:$0x7]
  %v1102 = vld [vmem:[#allocation2 + $0x1c] sm:$0xf]
  %v1104 = vunpack.c.l.b16 %v1100
  %v1105 = vpack.c.b16 %v1104, %v1104
  %v1107 = vshrl.u32 %v1105, 16
  %v1109 = vshll.u32 %v1105, 16
  %v1111 = vrot.slane %v1109, 1
  %v1112 = vor.u32 %v1107, %v1111
  %v1114 = vunpack.c.l.b16 %v1101
  %v1115 = vpack.c.b16 %v1114, %v1114
  %v1117 = vshrl.u32 %v1115, 16
  %v1119 = vrot.slane %v1117, 7
  %v1120 = vshll.u32 %v1115, 16
  %v1122 = vor.u32 %v1119, %v1120
  %v1125 = vunpack.c.l.b16 %v1099
  %v1126 = vunpack.c.l.b16 %v1112
  %v1127 = vunpack.c.l.b16 %v1122
  %v1128 = vunpack.c.l.b16 %v1102
  %v1129 = vpack.c.b16 %v1126, %v1125
  %v1130 = vpack.c.b16 %v1128, %v1127
  %v1132 = vshrl.u32 %v1129, 16
  %v1134 = vrot.slane %v1132, 6
  %v1135 = vshll.u32 %v1129, 16
  %v1137 = vrot.slane %v1135, 7
  %v1138 = vor.u32 %v1134, %v1137
  %v1140 = vshrl.u32 %v1130, 16
  %v1142 = vrot.slane %v1140, 6
  %v1143 = vshll.u32 %v1130, 16
  %v1145 = vrot.slane %v1143, 7
  %v1146 = vor.u32 %v1142, %v1145
  %v1147 = vrot.slane %v1138, 4
  %v1148 = vrot.slane %v1146, 4
  %1153 = vst [vmem:[#allocation3 + $0x40] sm:$0xcc] %v1138
  %1154 = vst [vmem:[#allocation3 + $0x48] sm:$0xcc] %v1146
  %1155 = vst [vmem:[#allocation3 + $0x50] sm:$0x11] %v1147
  %1156 = vst [vmem:[#allocation3 + $0x58] sm:$0x11] %v1148
  %v1157 = vld [vmem:[#allocation2 + $0x1c] sm:$0x7]
  %v1158 = vld [vmem:[#allocation2 + $0x1c] sm:$0xf]
  %v1159 = vld [vmem:[#allocation2 + $0x1c] sm:$0x8]
  %v1160 = vld [vmem:[#allocation2 + $0x20] sm:$0x7]
  %v1162 = vunpack.c.l.b16 %v1158
  %v1163 = vpack.c.b16 %v1162, %v1162
  %v1165 = vshrl.u32 %v1163, 16
  %v1167 = vshll.u32 %v1163, 16
  %v1169 = vrot.slane %v1167, 1
  %v1170 = vor.u32 %v1165, %v1169
  %v1173 = vunpack.c.l.b16 %v1159
  %v1174 = vunpack.c.l.b16 %v1160
  %v1175 = vpack.c.b16 %v1174, %v1173
  %v1177 = vshrl.u32 %v1175, 16
  %v1179 = vrot.slane %v1177, 3
  %v1180 = vshll.u32 %v1175, 16
  %v1182 = vrot.slane %v1180, 4
  %v1183 = vor.u32 %v1179, %v1182
  %v1185 = vunpack.c.l.b16 %v1157
  %v1186 = vunpack.c.l.b16 %v1170
  %v1187 = vunpack.c.l.b16 %v1183
  %v1188 = vpack.c.b16 %v1186, %v1185
  %v1189 = vpack.c.b16 %v1174, %v1187
  %v1190 = vrot.slane %v1188, 7
  %v1191 = vrot.slane %v1189, 7
  %1194 = vst [vmem:[#allocation3 + $0x50] sm:$0xee] %v1190
  %1195 = vst [vmem:[#allocation3 + $0x58] sm:$0xee] %v1191
  %v1196 = vld [vmem:[#allocation2 + $0x1c] sm:$0x8]
  %v1197 = vld [vmem:[#allocation2 + $0x20] sm:$0x7]
  %v1198 = vld [vmem:[#allocation2 + $0x20] sm:$0x8]
  %v1199 = vld [vmem:[#allocation2 + $0x24] sm:$0x3]
  %v1200 = vld [vmem:[#allocation2 + $0x24] sm:$0x7]
  %v1203 = vunpack.c.l.b16 %v1196
  %v1204 = vunpack.c.l.b16 %v1197
  %v1205 = vpack.c.b16 %v1204, %v1204
  %v1207 = vshrl.u32 %v1205, 16
  %v1209 = vrot.slane %v1207, 4
  %v1210 = vshll.u32 %v1205, 16
  %v1212 = vrot.slane %v1210, 5
  %v1213 = vor.u32 %v1209, %v1212
  %v1216 = vunpack.c.l.b16 %v1198
  %v1217 = vunpack.c.l.b16 %v1199
  %v1218 = vpack.c.b16 %v1217, %v1216
  %v1220 = vshrl.u32 %v1218, 16
  %v1222 = vrot.slane %v1220, 7
  %v1223 = vshll.u32 %v1218, 16
  %v1225 = vor.u32 %v1222, %v1223
  %v1227 = vunpack.c.l.b16 %v1200
  %v1228 = vunpack.c.l.b16 %v1213
  %v1229 = vunpack.c.l.b16 %v1225
  %v1230 = vunpack.c.h.b16 %v1213
  %v1231 = vunpack.c.h.b16 %v1225
  %v1232 = vpack.c.b16 %v1228, %v1203
  %v1233 = vpack.c.b16 %v1216, %v1229
  %v1234 = vpack.c.b16 %v1230, %v1204
  %v1235 = vpack.c.b16 %v1227, %v1231
  %vm1236 = vsmask.f32 256
  %vm1237 = vsmask.f32 4368
  %vm1238 = vmor %vm1236, %vm1237
  %v1240 = vshrl.u32 %v1232, 16
  %v1242 = vrot.slane %v1240, 7
  %v1243 = vrot.slane %v1242, 4
  %v1245 = vshrl.u32 %v1234, 16
  %v1247 = vrot.slane %v1245, 7
  %v1248 = vshll.u32 %v1234, 16
  %v1250 = vor.u32 %v1247, %v1248
  %v1251 = vsel %vm1238, %v1243, %v1250
  %v1253 = vshrl.u32 %v1233, 16
  %v1255 = vrot.slane %v1253, 7
  %v1256 = vrot.slane %v1255, 4
  %v1258 = vshrl.u32 %v1235, 16
  %v1260 = vrot.slane %v1258, 7
  %v1261 = vshll.u32 %v1235, 16
  %v1263 = vor.u32 %v1260, %v1261
  %v1264 = vsel %vm1238, %v1256, %v1263
  %1267 = vst [vmem:[#allocation3 + $0x60] sm:$0x77] %v1251
  %1268 = vst [vmem:[#allocation3 + $0x68] sm:$0x77] %v1264
  %v1269 = vld [vmem:[#allocation2 + $0x20] sm:$0x8]
  %v1270 = vld [vmem:[#allocation2 + $0x24] sm:$0x3]
  %v1271 = vld [vmem:[#allocation2 + $0x24] sm:$0x7]
  %v1272 = vld [vmem:[#allocation2 + $0x24] sm:$0xc]
  %v1273 = vld [vmem:[#allocation2 + $0x28] sm:$0x3]
  %v1274 = vld [vmem:[#allocation2 + $0x24] sm:$0x8]
  %v1277 = vunpack.c.l.b16 %v1269
  %v1278 = vunpack.c.l.b16 %v1270
  %v1280 = vunpack.c.l.b16 %v1271
  %v1281 = vpack.c.b16 %v1280, %v1277
  %v1283 = vshrl.u32 %v1281, 16
  %v1285 = vshll.u32 %v1281, 16
  %v1287 = vrot.slane %v1285, 1
  %v1288 = vor.u32 %v1283, %v1287
  %v1291 = vunpack.c.l.b16 %v1272
  %v1292 = vunpack.c.l.b16 %v1273
  %v1293 = vpack.c.b16 %v1292, %v1291
  %v1295 = vshrl.u32 %v1293, 16
  %v1297 = vrot.slane %v1295, 7
  %v1298 = vshll.u32 %v1293, 16
  %v1300 = vor.u32 %v1297, %v1298
  %v1302 = vunpack.c.l.b16 %v1274
  %v1303 = vunpack.c.l.b16 %v1288
  %v1304 = vunpack.c.l.b16 %v1300
  %v1305 = vunpack.c.h.b16 %v1288
  %v1306 = vunpack.c.h.b16 %v1300
  %v1307 = vpack.c.b16 %v1303, %v1277
  %v1308 = vpack.c.b16 %v1302, %v1304
  %v1309 = vpack.c.b16 %v1305, %v1278
  %v1310 = vpack.c.b16 %v1292, %v1306
  %1315 = vst [vmem:[#allocation3 + $0x60] sm:$0x88] %v1307
  %1316 = vst [vmem:[#allocation3 + $0x68] sm:$0x88] %v1308
  %1317 = vst [vmem:[#allocation3 + $0x70] sm:$0x33] %v1309
  %1318 = vst [vmem:[#allocation3 + $0x78] sm:$0x33] %v1310
  %v1319 = vld [vmem:[#allocation2 + $0x24] sm:$0xc]
  %v1320 = vld [vmem:[#allocation2 + $0x28] sm:$0x3]
  %v1321 = vld [vmem:[#allocation2 + $0x24] sm:$0x8]
  %v1322 = vld [vmem:[#allocation2 + $0x28] sm:$0xc]
  %v1323 = vld [vmem:[#allocation2 + $0x2c] sm:$0x1]
  %v1324 = vld [vmem:[#allocation2 + $0x2c] sm:$0x3]
  %v1327 = vunpack.c.l.b16 %v1319
  %v1328 = vunpack.c.l.b16 %v1320
  %v1330 = vunpack.c.l.b16 %v1321
  %v1331 = vpack.c.b16 %v1328, %v1330
  %v1333 = vshrl.u32 %v1331, 16
  %v1335 = vshll.u32 %v1331, 16
  %v1337 = vrot.slane %v1335, 1
  %v1338 = vor.u32 %v1333, %v1337
  %v1341 = vunpack.c.l.b16 %v1322
  %v1342 = vunpack.c.l.b16 %v1323
  %v1343 = vpack.c.b16 %v1342, %v1341
  %v1345 = vshrl.u32 %v1343, 16
  %v1347 = vrot.slane %v1345, 7
  %v1348 = vshll.u32 %v1343, 16
  %v1350 = vor.u32 %v1347, %v1348
  %v1352 = vunpack.c.l.b16 %v1324
  %v1353 = vunpack.c.l.b16 %v1338
  %v1354 = vunpack.c.l.b16 %v1350
  %v1355 = vunpack.c.h.b16 %v1338
  %v1356 = vunpack.c.h.b16 %v1350
  %v1357 = vpack.c.b16 %v1353, %v1327
  %v1358 = vpack.c.b16 %v1341, %v1354
  %v1359 = vpack.c.b16 %v1355, %v1328
  %v1360 = vpack.c.b16 %v1352, %v1356
  %v1362 = vshrl.u32 %v1357, 16
  %v1364 = vrot.slane %v1362, 4
  %v1365 = vshll.u32 %v1357, 16
  %v1367 = vrot.slane %v1365, 5
  %v1368 = vor.u32 %v1364, %v1367
  %v1369 = vrot.slane %v1368, 4
  %v1371 = vshll.u32 %v1359, 16
  %v1373 = vrot.slane %v1371, 5
  %v1374 = vsel %vm777, %v1369, %v1373
  %v1376 = vshrl.u32 %v1358, 16
  %v1378 = vrot.slane %v1376, 4
  %v1379 = vshll.u32 %v1358, 16
  %v1381 = vrot.slane %v1379, 5
  %v1382 = vor.u32 %v1378, %v1381
  %v1383 = vrot.slane %v1382, 4
  %v1385 = vshll.u32 %v1360, 16
  %v1387 = vrot.slane %v1385, 5
  %v1388 = vsel %vm777, %v1383, %v1387
  %v1389 = vshrl.u32 %v1359, 16
  %v1391 = vrot.slane %v1389, 4
  %v1392 = vor.u32 %v1391, %v1373
  %v1393 = vrot.slane %v1392, 4
  %v1394 = vshrl.u32 %v1360, 16
  %v1396 = vrot.slane %v1394, 4
  %v1397 = vor.u32 %v1396, %v1387
  %v1398 = vrot.slane %v1397, 4
  %1403 = vst [vmem:[#allocation3 + $0x70] sm:$0xcc] %v1374
  %1404 = vst [vmem:[#allocation3 + $0x78] sm:$0xcc] %v1388
  %1405 = vst [vmem:[#allocation3 + $0x80] sm:$0x11] %v1393
  %1406 = vst [vmem:[#allocation3 + $0x88] sm:$0x11] %v1398
  %v1407 = vld [vmem:[#allocation2 + $0x28] sm:$0xc]
  %v1408 = vld [vmem:[#allocation2 + $0x2c] sm:$0x1]
  %v1409 = vld [vmem:[#allocation2 + $0x2c] sm:$0x3]
  %v1410 = vld [vmem:[#allocation2 + $0x2c] sm:$0xe]
  %v1411 = vld [vmem:[#allocation2 + $0x30] sm:$0x1]
  %v1412 = vld [vmem:[#allocation2 + $0x2c] sm:$0xc]
  %v1415 = vunpack.c.l.b16 %v1407
  %v1416 = vunpack.c.l.b16 %v1408
  %v1418 = vunpack.c.l.b16 %v1409
  %v1419 = vpack.c.b16 %v1418, %v1415
  %v1421 = vshrl.u32 %v1419, 16
  %v1423 = vshll.u32 %v1419, 16
  %v1425 = vrot.slane %v1423, 1
  %v1426 = vor.u32 %v1421, %v1425
  %v1429 = vunpack.c.l.b16 %v1410
  %v1430 = vunpack.c.l.b16 %v1411
  %v1431 = vpack.c.b16 %v1430, %v1429
  %v1433 = vshrl.u32 %v1431, 16
  %v1435 = vrot.slane %v1433, 7
  %v1436 = vshll.u32 %v1431, 16
  %v1438 = vor.u32 %v1435, %v1436
  %v1440 = vunpack.c.l.b16 %v1412
  %v1441 = vunpack.c.l.b16 %v1426
  %v1442 = vunpack.c.l.b16 %v1438
  %v1443 = vunpack.c.h.b16 %v1426
  %v1444 = vunpack.c.h.b16 %v1438
  %v1445 = vpack.c.b16 %v1441, %v1415
  %v1446 = vpack.c.b16 %v1440, %v1442
  %v1447 = vpack.c.b16 %v1443, %v1416
  %v1448 = vpack.c.b16 %v1430, %v1444
  %v1449 = vrot.slane %v1445, 5
  %v1450 = vrot.slane %v1449, 4
  %v1451 = vrot.slane %v1447, 5
  %v1452 = vsel %vm860, %v1450, %v1451
  %v1453 = vrot.slane %v1446, 5
  %v1454 = vrot.slane %v1453, 4
  %v1455 = vrot.slane %v1448, 5
  %v1456 = vsel %vm860, %v1454, %v1455
  %1459 = vst [vmem:[#allocation3 + $0x80] sm:$0xee] %v1452
  %1460 = vst [vmem:[#allocation3 + $0x88] sm:$0xee] %v1456
  %v1461 = vld [vmem:[#allocation3] sm:$0xff]
  %v1462 = vld [vmem:[#allocation3 + $0x8] sm:$0xff]
  %v1463 = vld [vmem:[#allocation3 + $0x10] sm:$0xff]
  %v1464 = vld [vmem:[#allocation3 + $0x18] sm:$0xff]
  %v1465 = vld [vmem:[#allocation3 + $0x20] sm:$0xff]
  %v1466 = vld [vmem:[#allocation3 + $0x28] sm:$0xff]
  %v1467 = vld [vmem:[#allocation3 + $0x30] sm:$0xff]
  %v1468 = vld [vmem:[#allocation3 + $0x38] sm:$0xff]
  %v1469 = vld [vmem:[#allocation3 + $0x40] sm:$0xff]
  %v1470 = vld [vmem:[#allocation3 + $0x48] sm:$0xff]
  %v1471 = vld [vmem:[#allocation3 + $0x50] sm:$0xff]
  %v1472 = vld [vmem:[#allocation3 + $0x58] sm:$0xff]
  %v1473 = vld [vmem:[#allocation3 + $0x60] sm:$0xff]
  %v1474 = vld [vmem:[#allocation3 + $0x68] sm:$0xff]
  %v1475 = vld [vmem:[#allocation3 + $0x70] sm:$0xff]
  %v1476 = vld [vmem:[#allocation3 + $0x78] sm:$0xff]
  %v1477 = vld [vmem:[#allocation3 + $0x80] sm:$0xff]
  %v1478 = vld [vmem:[#allocation3 + $0x88] sm:$0xff]
  %v1479 = vld [vmem:[%s4] sm:$0xf]
  %v1480 = vld [vmem:[%s4 + $0x4] sm:$0xf]
  %v1481 = vld [vmem:[%s4 + $0x8] sm:$0xf]
  %v1482 = vld [vmem:[%s4 + $0xc] sm:$0xf]
  %v1483 = vld [vmem:[%s4 + $0x10] sm:$0xf]
  %v1484 = vld [vmem:[%s4 + $0x14] sm:$0xf]
  %v1485 = vld [vmem:[%s4 + $0x18] sm:$0xf]
  %v1486 = vld [vmem:[%s4 + $0x1c] sm:$0xf]
  %v1487 = vld [vmem:[%s4 + $0x20] sm:$0xf]
  %v1488 = vld [vmem:[%s4 + $0x24] sm:$0xf]
  %v1489 = vld [vmem:[%s4 + $0x28] sm:$0xf]
  %v1490 = vld [vmem:[%s4 + $0x2c] sm:$0xf]
  %v1491 = vld [vmem:[%s4 + $0x30] sm:$0xf]
  %v1492 = vld [vmem:[%s4 + $0x34] sm:$0xf]
  %v1493 = vld [vmem:[%s4 + $0x38] sm:$0xf]
  %v1494 = vld [vmem:[%s4 + $0x3c] sm:$0xf]
  %v1495 = vld [vmem:[%s4 + $0x40] sm:$0xf]
  %v1496 = vld [vmem:[%s4 + $0x44] sm:$0xf]
  %v1497 = vld [vmem:[%s4 + $0x48] sm:$0xf]
  %v1498 = vld [vmem:[%s4 + $0x4c] sm:$0xf]
  %v1499 = vld [vmem:[%s4 + $0x50] sm:$0xf]
  %v1500 = vld [vmem:[%s4 + $0x54] sm:$0xf]
  %v1501 = vld [vmem:[%s4 + $0x58] sm:$0xf]
  %v1502 = vld [vmem:[%s4 + $0x5c] sm:$0xf]
  %v1503 = vld [vmem:[%s4 + $0x60] sm:$0xf]
  %v1504 = vld [vmem:[%s4 + $0x64] sm:$0xf]
  %v1505 = vld [vmem:[%s4 + $0x68] sm:$0xf]
  %v1506 = vld [vmem:[%s4 + $0x6c] sm:$0xf]
  %v1507 = vld [vmem:[%s4 + $0x70] sm:$0xf]
  %v1508 = vld [vmem:[%s4 + $0x74] sm:$0xf]
  %v1509 = vld [vmem:[%s4 + $0x78] sm:$0xf]
  %v1510 = vld [vmem:[%s4 + $0x7c] sm:$0xf]
  %v1511 = vld [vmem:[%s4 + $0x80] sm:$0xf]
  %v1512 = vld [vmem:[%s4 + $0x84] sm:$0xf]
  %v1513 = vld [vmem:[%s4 + $0x88] sm:$0xf]
  %v1514 = vld [vmem:[%s4 + $0x8c] sm:$0xf]
  %v1515 = vld [vmem:[%s4 + $0x90] sm:$0xf]
  %v1516 = vld [vmem:[%s4 + $0x94] sm:$0xf]
  %v1517 = vld [vmem:[%s4 + $0x98] sm:$0xf]
  %v1518 = vld [vmem:[%s4 + $0x9c] sm:$0xf]
  %v1519 = vld [vmem:[%s4 + $0xa0] sm:$0xf]
  %v1520 = vld [vmem:[%s4 + $0xa4] sm:$0xf]
  %v1521 = vld [vmem:[%s4 + $0xa8] sm:$0xf]
  %v1522 = vld [vmem:[%s4 + $0xac] sm:$0xf]
  %v1523 = vld [vmem:[%s4 + $0xb0] sm:$0xf]
  %v1524 = vld [vmem:[%s4 + $0xb4] sm:$0xf]
  %v1525 = vld [vmem:[%s4 + $0xb8] sm:$0xf]
  %v1526 = vld [vmem:[%s4 + $0xbc] sm:$0xf]
  %v1527 = vld [vmem:[%s4 + $0xc0] sm:$0xf]
  %v1528 = vld [vmem:[%s4 + $0xc4] sm:$0xf]
  %v1529 = vld [vmem:[%s4 + $0xc8] sm:$0xf]
  %v1530 = vld [vmem:[%s4 + $0xcc] sm:$0xf]
  %v1531 = vld [vmem:[%s4 + $0xd0] sm:$0xf]
  %v1532 = vld [vmem:[%s4 + $0xd4] sm:$0xf]
  %v1533 = vld [vmem:[%s4 + $0xd8] sm:$0xf]
  %v1534 = vld [vmem:[%s4 + $0xdc] sm:$0xf]
  %v1535 = vld [vmem:[%s4 + $0xe0] sm:$0xf]
  %v1536 = vld [vmem:[%s4 + $0xe4] sm:$0xf]
  %v1537 = vld [vmem:[%s4 + $0xe8] sm:$0xf]
  %v1538 = vld [vmem:[%s4 + $0xec] sm:$0xf]
  %v1539 = vld [vmem:[%s4 + $0xf0] sm:$0xf]
  %v1540 = vld [vmem:[%s4 + $0xf4] sm:$0xf]
  %v1541 = vld [vmem:[%s4 + $0xf8] sm:$0xf]
  %v1542 = vld [vmem:[%s4 + $0xfc] sm:$0xf]
  %v1543 = vld [vmem:[%s5] sm:$0x1]
  %v1545 = vlaneseq
  %v1546 = vshrl.u32 %v1545, 7
  %v1547 = vsub.s32 0, %v1546
  %v1548 = vrot.slane %v1543, %v1547
  %v1568 = vunpack.c.l.b16 %v1461
  %v1569 = vunpack.c.h.b16 %v1461
  %v1570 = vunpack.c.l.b16 %v1462
  %v1571 = vunpack.c.h.b16 %v1462
  %v1572 = vunpack.c.l.b16 %v1463
  %v1573 = vunpack.c.h.b16 %v1463
  %v1574 = vunpack.c.l.b16 %v1464
  %v1575 = vunpack.c.h.b16 %v1464
  %v1576 = vunpack.c.l.b16 %v1465
  %v1577 = vunpack.c.h.b16 %v1465
  %v1578 = vunpack.c.l.b16 %v1466
  %v1579 = vunpack.c.h.b16 %v1466
  %v1580 = vunpack.c.l.b16 %v1467
  %v1581 = vunpack.c.h.b16 %v1467
  %v1582 = vunpack.c.l.b16 %v1468
  %v1583 = vunpack.c.h.b16 %v1468
  %v1584 = vunpack.c.l.b16 %v1469
  %v1585 = vunpack.c.h.b16 %v1469
  %v1586 = vunpack.c.l.b16 %v1470
  %v1587 = vunpack.c.h.b16 %v1470
  %v1588 = vunpack.c.l.b16 %v1471
  %v1589 = vunpack.c.h.b16 %v1471
  %v1590 = vunpack.c.l.b16 %v1472
  %v1591 = vunpack.c.h.b16 %v1472
  %v1592 = vunpack.c.l.b16 %v1473
  %v1593 = vunpack.c.h.b16 %v1473
  %v1594 = vunpack.c.l.b16 %v1474
  %v1595 = vunpack.c.h.b16 %v1474
  %v1596 = vunpack.c.l.b16 %v1475
  %v1597 = vunpack.c.h.b16 %v1475
  %v1598 = vunpack.c.l.b16 %v1476
  %v1599 = vunpack.c.h.b16 %v1476
  %v1600 = vunpack.c.l.b16 %v1477
  %v1601 = vunpack.c.h.b16 %v1477
  %v1602 = vunpack.c.l.b16 %v1478
  %v1603 = vunpack.c.h.b16 %v1478
  %v1604 = vpack.c.b16 %v1572, %v1568
  %v1605 = vpack.c.b16 %v1573, %v1569
  %v1606 = vpack.c.b16 %v1574, %v1570
  %v1607 = vpack.c.b16 %v1575, %v1571
  %v1608 = vpack.c.b16 %v1580, %v1576
  %v1609 = vpack.c.b16 %v1581, %v1577
  %v1610 = vpack.c.b16 %v1582, %v1578
  %v1611 = vpack.c.b16 %v1583, %v1579
  %v1612 = vpack.c.b16 %v1588, %v1584
  %v1613 = vpack.c.b16 %v1589, %v1585
  %v1614 = vpack.c.b16 %v1590, %v1586
  %v1615 = vpack.c.b16 %v1591, %v1587
  %v1616 = vpack.c.b16 %v1596, %v1592
  %v1617 = vpack.c.b16 %v1597, %v1593
  %v1618 = vpack.c.b16 %v1598, %v1594
  %v1619 = vpack.c.b16 %v1599, %v1595
  %v1620 = vpack.c.b16 %v1600, %v1600
  %v1621 = vpack.c.b16 %v1601, %v1601
  %v1622 = vpack.c.b16 %v1602, %v1602
  %v1623 = vpack.c.b16 %v1603, %v1603
  %v1708 = vunpack.c.l.b16 %v1479
  %v1709 = vunpack.c.l.b16 %v1480
  %v1710 = vunpack.c.l.b16 %v1481
  %v1711 = vunpack.c.l.b16 %v1482
  %v1712 = vunpack.c.l.b16 %v1483
  %v1713 = vunpack.c.l.b16 %v1484
  %v1714 = vunpack.c.l.b16 %v1485
  %v1715 = vunpack.c.l.b16 %v1486
  %v1716 = vunpack.c.l.b16 %v1487
  %v1717 = vunpack.c.l.b16 %v1488
  %v1718 = vunpack.c.l.b16 %v1489
  %v1719 = vunpack.c.l.b16 %v1490
  %v1720 = vunpack.c.l.b16 %v1491
  %v1721 = vunpack.c.l.b16 %v1492
  %v1722 = vunpack.c.l.b16 %v1493
  %v1723 = vunpack.c.l.b16 %v1494
  %v1724 = vunpack.c.l.b16 %v1495
  %v1725 = vunpack.c.l.b16 %v1496
  %v1726 = vunpack.c.l.b16 %v1497
  %v1727 = vunpack.c.l.b16 %v1498
  %v1728 = vunpack.c.l.b16 %v1499
  %v1729 = vunpack.c.l.b16 %v1500
  %v1730 = vunpack.c.l.b16 %v1501
  %v1731 = vunpack.c.l.b16 %v1502
  %v1732 = vunpack.c.l.b16 %v1503
  %v1733 = vunpack.c.l.b16 %v1504
  %v1734 = vunpack.c.l.b16 %v1505
  %v1735 = vunpack.c.l.b16 %v1506
  %v1736 = vunpack.c.l.b16 %v1507
  %v1737 = vunpack.c.l.b16 %v1508
  %v1738 = vunpack.c.l.b16 %v1509
  %v1739 = vunpack.c.l.b16 %v1510
  %v1740 = vunpack.c.l.b16 %v1511
  %v1741 = vunpack.c.l.b16 %v1512
  %v1742 = vunpack.c.l.b16 %v1513
  %v1743 = vunpack.c.l.b16 %v1514
  %v1744 = vunpack.c.l.b16 %v1515
  %v1745 = vunpack.c.l.b16 %v1516
  %v1746 = vunpack.c.l.b16 %v1517
  %v1747 = vunpack.c.l.b16 %v1518
  %v1748 = vunpack.c.l.b16 %v1519
  %v1749 = vunpack.c.l.b16 %v1520
  %v1750 = vunpack.c.l.b16 %v1521
  %v1751 = vunpack.c.l.b16 %v1522
  %v1752 = vunpack.c.l.b16 %v1523
  %v1753 = vunpack.c.l.b16 %v1524
  %v1754 = vunpack.c.l.b16 %v1525
  %v1755 = vunpack.c.l.b16 %v1526
  %v1756 = vunpack.c.l.b16 %v1527
  %v1757 = vunpack.c.l.b16 %v1528
  %v1758 = vunpack.c.l.b16 %v1529
  %v1759 = vunpack.c.l.b16 %v1530
  %v1760 = vunpack.c.l.b16 %v1531
  %v1761 = vunpack.c.l.b16 %v1532
  %v1762 = vunpack.c.l.b16 %v1533
  %v1763 = vunpack.c.l.b16 %v1534
  %v1764 = vunpack.c.l.b16 %v1535
  %v1765 = vunpack.c.l.b16 %v1536
  %v1766 = vunpack.c.l.b16 %v1537
  %v1767 = vunpack.c.l.b16 %v1538
  %v1768 = vunpack.c.l.b16 %v1539
  %v1769 = vunpack.c.l.b16 %v1540
  %v1770 = vunpack.c.l.b16 %v1541
  %v1771 = vunpack.c.l.b16 %v1542
  %v1772 = vpack.c.b16 %v1709, %v1708
  %v1773 = vpack.c.b16 %v1711, %v1710
  %v1774 = vpack.c.b16 %v1713, %v1712
  %v1775 = vpack.c.b16 %v1715, %v1714
  %v1776 = vpack.c.b16 %v1717, %v1716
  %v1777 = vpack.c.b16 %v1719, %v1718
  %v1778 = vpack.c.b16 %v1721, %v1720
  %v1779 = vpack.c.b16 %v1723, %v1722
  %v1780 = vpack.c.b16 %v1725, %v1724
  %v1781 = vpack.c.b16 %v1727, %v1726
  %v1782 = vpack.c.b16 %v1729, %v1728
  %v1783 = vpack.c.b16 %v1731, %v1730
  %v1784 = vpack.c.b16 %v1733, %v1732
  %v1785 = vpack.c.b16 %v1735, %v1734
  %v1786 = vpack.c.b16 %v1737, %v1736
  %v1787 = vpack.c.b16 %v1739, %v1738
  %v1788 = vpack.c.b16 %v1741, %v1740
  %v1789 = vpack.c.b16 %v1743, %v1742
  %v1790 = vpack.c.b16 %v1745, %v1744
  %v1791 = vpack.c.b16 %v1747, %v1746
  %v1792 = vpack.c.b16 %v1749, %v1748
  %v1793 = vpack.c.b16 %v1751, %v1750
  %v1794 = vpack.c.b16 %v1753, %v1752
  %v1795 = vpack.c.b16 %v1755, %v1754
  %v1796 = vpack.c.b16 %v1757, %v1756
  %v1797 = vpack.c.b16 %v1759, %v1758
  %v1798 = vpack.c.b16 %v1761, %v1760
  %v1799 = vpack.c.b16 %v1763, %v1762
  %v1800 = vpack.c.b16 %v1765, %v1764
  %v1801 = vpack.c.b16 %v1767, %v1766
  %v1802 = vpack.c.b16 %v1769, %v1768
  %v1803 = vpack.c.b16 %v1771, %v1770
  %1836 = vmatprep.subr.bf16.mxu0 0
  %1837 = vmatpush1.bf16.msra.mxu0 %v1779
  %1838 = vmatprep.subr.bf16.mxu0 0
  %1839 = vmatpush1.bf16.msra.mxu0 %v1778
  %1840 = vmatprep.subr.bf16.mxu0 0
  %1841 = vmatpush1.bf16.msra.mxu0 %v1777
  %1842 = vmatprep.subr.bf16.mxu0 0
  %1843 = vmatpush1.bf16.msra.mxu0 %v1776
  %1844 = vmatprep.subr.bf16.mxu0 0
  %1845 = vmatpush1.bf16.msra.mxu0 %v1775
  %1846 = vmatprep.subr.bf16.mxu0 0
  %1847 = vmatpush1.bf16.msra.mxu0 %v1774
  %1848 = vmatprep.subr.bf16.mxu0 0
  %1849 = vmatpush1.bf16.msra.mxu0 %v1773
  %1850 = vmatprep.subr.bf16.mxu0 0
  %1851 = vmatpush1.bf16.msra.mxu0 %v1772
  %1852 = vmatprep.subr.bf16.mxu0 0
  %1853 = vmatpush2.bf16.msra.mxu0 %v1787
  %1854 = vmatprep.subr.bf16.mxu0 0
  %1855 = vmatpush2.bf16.msra.mxu0 %v1786
  %1856 = vmatprep.subr.bf16.mxu0 0
  %1857 = vmatpush2.bf16.msra.mxu0 %v1785
  %1858 = vmatprep.subr.bf16.mxu0 0
  %1859 = vmatpush2.bf16.msra.mxu0 %v1784
  %1860 = vmatprep.subr.bf16.mxu0 0
  %1861 = vmatpush2.bf16.msra.mxu0 %v1783
  %1862 = vmatprep.subr.bf16.mxu0 0
  %1863 = vmatpush2.bf16.msra.mxu0 %v1782
  %1864 = vmatprep.subr.bf16.mxu0 0
  %1865 = vmatpush2.bf16.msra.mxu0 %v1781
  %1866 = vmatprep.subr.bf16.mxu0 0
  %1867 = vmatpush2.bf16.msra.mxu0 %v1780
  %1868 = vmatprep.mubr.bf16.mxu0 %v1605
  %1869 = vmatmul.mubr.bf16.gmra.mxu0 %v1604
  %v1870 = vpop.f32.mrf.mxu0
  %v1871 = vadd.f32 %v1548, %v1870
  %v1872 = vpop.f32.mrf.mxu0
  %v1873 = vpop.f32.mrf.mxu0
  %v1874 = vadd.f32 %v1548, %v1873
  %v1875 = vpop.f32.mrf.mxu0
  %1876 = vmatprep.mubr.bf16.mxu0 %v1609
  %1877 = vmatmul.mubr.bf16.gmra.mxu0 %v1608
  %v1878 = vpop.f32.mrf.mxu0
  %v1879 = vadd.f32 %v1548, %v1878
  %v1880 = vpop.f32.mrf.mxu0
  %v1881 = vpop.f32.mrf.mxu0
  %v1882 = vadd.f32 %v1548, %v1881
  %v1883 = vpop.f32.mrf.mxu0
  %1884 = vmatprep.mubr.bf16.mxu0 %v1613
  %1885 = vmatmul.mubr.bf16.gmra.mxu0 %v1612
  %v1886 = vpop.f32.mrf.mxu0
  %v1887 = vadd.f32 %v1548, %v1886
  %v1888 = vpop.f32.mrf.mxu0
  %v1889 = vpop.f32.mrf.mxu0
  %v1890 = vadd.f32 %v1548, %v1889
  %v1891 = vpop.f32.mrf.mxu0
  %1892 = vmatprep.mubr.bf16.mxu0 %v1617
  %1893 = vmatmul.mubr.bf16.gmra.mxu0 %v1616
  %v1894 = vpop.f32.mrf.mxu0
  %v1895 = vadd.f32 %v1548, %v1894
  %v1896 = vpop.f32.mrf.mxu0
  %v1897 = vpop.f32.mrf.mxu0
  %v1898 = vadd.f32 %v1548, %v1897
  %v1899 = vpop.f32.mrf.mxu0
  %1900 = vmatprep.mubr.bf16.mxu0 %v1621
  %1901 = vmatmul.mubr.bf16.gmra.mxu0 %v1620
  %v1902 = vpop.f32.mrf.mxu0
  %v1903 = vadd.f32 %v1548, %v1902
  %v1904 = vpop.f32.mrf.mxu0
  %v1905 = vpop.f32.mrf.mxu0
  %v1906 = vpop.f32.mrf.mxu0
  %1907 = vdwg.mxu0
  %1908 = vmatprep.subr.bf16.mxu0 0
  %1909 = vmatpush1.bf16.msra.mxu0 %v1795
  %1910 = vmatprep.subr.bf16.mxu0 0
  %1911 = vmatpush1.bf16.msra.mxu0 %v1794
  %1912 = vmatprep.subr.bf16.mxu0 0
  %1913 = vmatpush1.bf16.msra.mxu0 %v1793
  %1914 = vmatprep.subr.bf16.mxu0 0
  %1915 = vmatpush1.bf16.msra.mxu0 %v1792
  %1916 = vmatprep.subr.bf16.mxu0 0
  %1917 = vmatpush1.bf16.msra.mxu0 %v1791
  %1918 = vmatprep.subr.bf16.mxu0 0
  %1919 = vmatpush1.bf16.msra.mxu0 %v1790
  %1920 = vmatprep.subr.bf16.mxu0 0
  %1921 = vmatpush1.bf16.msra.mxu0 %v1789
  %1922 = vmatprep.subr.bf16.mxu0 0
  %1923 = vmatpush1.bf16.msra.mxu0 %v1788
  %1924 = vmatprep.subr.bf16.mxu0 0
  %1925 = vmatpush2.bf16.msra.mxu0 %v1803
  %1926 = vmatprep.subr.bf16.mxu0 0
  %1927 = vmatpush2.bf16.msra.mxu0 %v1802
  %1928 = vmatprep.subr.bf16.mxu0 0
  %1929 = vmatpush2.bf16.msra.mxu0 %v1801
  %1930 = vmatprep.subr.bf16.mxu0 0
  %1931 = vmatpush2.bf16.msra.mxu0 %v1800
  %1932 = vmatprep.subr.bf16.mxu0 0
  %1933 = vmatpush2.bf16.msra.mxu0 %v1799
  %1934 = vmatprep.subr.bf16.mxu0 0
  %1935 = vmatpush2.bf16.msra.mxu0 %v1798
  %1936 = vmatprep.subr.bf16.mxu0 0
  %1937 = vmatpush2.bf16.msra.mxu0 %v1797
  %1938 = vmatprep.subr.bf16.mxu0 0
  %1939 = vmatpush2.bf16.msra.mxu0 %v1796
  %1940 = vmatprep.mubr.bf16.mxu0 %v1607
  %1941 = vmatmul.mubr.bf16.gmra.mxu0 %v1606
  %v1942 = vpop.f32.mrf.mxu0
  %v1943 = vadd.f32 %v1871, %v1942
  %v1944 = vpop.f32.mrf.mxu0
  %v1945 = vpop.f32.mrf.mxu0
  %v1946 = vadd.f32 %v1874, %v1945
  %v1947 = vpop.f32.mrf.mxu0
  %1948 = vmatprep.mubr.bf16.mxu0 %v1611
  %1949 = vmatmul.mubr.bf16.gmra.mxu0 %v1610
  %v1950 = vpop.f32.mrf.mxu0
  %v1951 = vadd.f32 %v1879, %v1950
  %v1952 = vpop.f32.mrf.mxu0
  %v1953 = vpop.f32.mrf.mxu0
  %v1954 = vadd.f32 %v1882, %v1953
  %v1955 = vpop.f32.mrf.mxu0
  %1956 = vmatprep.mubr.bf16.mxu0 %v1615
  %1957 = vmatmul.mubr.bf16.gmra.mxu0 %v1614
  %v1958 = vpop.f32.mrf.mxu0
  %v1959 = vadd.f32 %v1887, %v1958
  %v1960 = vpop.f32.mrf.mxu0
  %v1961 = vpop.f32.mrf.mxu0
  %v1962 = vadd.f32 %v1890, %v1961
  %v1963 = vpop.f32.mrf.mxu0
  %1964 = vmatprep.mubr.bf16.mxu0 %v1619
  %1965 = vmatmul.mubr.bf16.gmra.mxu0 %v1618
  %v1966 = vpop.f32.mrf.mxu0
  %v1967 = vadd.f32 %v1895, %v1966
  %v1968 = vpop.f32.mrf.mxu0
  %v1969 = vpop.f32.mrf.mxu0
  %v1970 = vadd.f32 %v1898, %v1969
  %v1971 = vpop.f32.mrf.mxu0
  %1972 = vmatprep.mubr.bf16.mxu0 %v1623
  %1973 = vmatmul.mubr.bf16.gmra.mxu0 %v1622
  %v1974 = vpop.f32.mrf.mxu0
  %v1975 = vadd.f32 %v1903, %v1974
  %v1976 = vpop.f32.mrf.mxu0
  %v1977 = vpop.f32.mrf.mxu0
  %v1978 = vpop.f32.mrf.mxu0
  %1979 = vdwg.mxu0
  %v1980 = vmax.f32 %v1943, 0.0
  %v1981 = vmax.f32 %v1946, 0.0
  %v1982 = vmax.f32 %v1951, 0.0
  %v1983 = vmax.f32 %v1954, 0.0
  %v1984 = vmax.f32 %v1959, 0.0
  %v1985 = vmax.f32 %v1962, 0.0
  %v1986 = vmax.f32 %v1967, 0.0
  %v1987 = vmax.f32 %v1970, 0.0
  %v1988 = vmax.f32 %v1975, 0.0
  %v1989 = vpack.c.bf16 %v1981, %v1980
  %v1990 = vpack.c.bf16 %v1983, %v1982
  %v1991 = vpack.c.bf16 %v1985, %v1984
  %v1992 = vpack.c.bf16 %v1987, %v1986
  %v1993 = vpack.c.bf16 %v1988, %v1988
  %v1999 = vunpack.c.l.b16 %v1989
  %v2000 = vunpack.c.h.b16 %v1989
  %v2001 = vunpack.c.l.b16 %v1990
  %v2002 = vunpack.c.h.b16 %v1990
  %v2003 = vunpack.c.l.b16 %v1991
  %v2004 = vunpack.c.h.b16 %v1991
  %v2005 = vunpack.c.l.b16 %v1992
  %v2006 = vunpack.c.h.b16 %v1992
  %v2007 = vunpack.c.l.b16 %v1993
  %v2008 = vpack.c.b16 %v1999, %v1999
  %v2009 = vpack.c.b16 %v2000, %v2000
  %v2010 = vpack.c.b16 %v2001, %v2001
  %v2011 = vpack.c.b16 %v2002, %v2002
  %v2012 = vpack.c.b16 %v2003, %v2003
  %v2013 = vpack.c.b16 %v2004, %v2004
  %v2014 = vpack.c.b16 %v2005, %v2005
  %v2015 = vpack.c.b16 %v2006, %v2006
  %v2016 = vpack.c.b16 %v2007, %v2007
  %vm2026 = vcmask 519168
  %2027 = vst.msk [vmem:[#allocation4] sm:$0xf] %vm2026, %v2008
  %2028 = vst.msk [vmem:[#allocation4 + $0x4] sm:$0xf] %vm2026, %v2009
  %2029 = vst.msk [vmem:[#allocation4 + $0x8] sm:$0xf] %vm2026, %v2010
  %2030 = vst.msk [vmem:[#allocation4 + $0xc] sm:$0xf] %vm2026, %v2011
  %2031 = vst.msk [vmem:[#allocation4 + $0x10] sm:$0xf] %vm2026, %v2012
  %2032 = vst.msk [vmem:[#allocation4 + $0x14] sm:$0xf] %vm2026, %v2013
  %2033 = vst.msk [vmem:[#allocation4 + $0x18] sm:$0xf] %vm2026, %v2014
  %2034 = vst.msk [vmem:[#allocation4 + $0x1c] sm:$0xf] %vm2026, %v2015
  %2035 = vst.msk [vmem:[#allocation4 + $0x20] sm:$0xf] %vm2026, %v2016
  %v2036 = vld [vmem:[#allocation4] sm:$0x3]
  %v2037 = vld [vmem:[#allocation4] sm:$0x7]
  %v2038 = vld [vmem:[#allocation4] sm:$0x6]
  %v2039 = vld [vmem:[#allocation4] sm:$0x8]
  %v2040 = vld [vmem:[#allocation4 + $0x4] sm:$0x1]
  %v2041 = vld [vmem:[#allocation4 + $0x4] sm:$0x3]
  %v2042 = vld [vmem:[#allocation4 + $0x4] sm:$0xc]
  %v2043 = vld [vmem:[#allocation4 + $0x8] sm:$0x1]
  %v2044 = vld [vmem:[#allocation4 + $0x4] sm:$0x8]
  %v2046 = vunpack.c.l.b16 %v2037
  %v2047 = vpack.c.b16 %v2046, %v2046
  %v2049 = vshrl.u32 %v2047, 16
  %v2051 = vshll.u32 %v2047, 16
  %v2053 = vrot.slane %v2051, 1
  %v2054 = vor.u32 %v2049, %v2053
  %2055 = vrot.lane.b32.xlu0 %v2054, 64
  %v2056 = vpop.permute.xlu0 %2055
  %v2058 = vunpack.c.l.b16 %v2038
  %v2059 = vpack.c.b16 %v2058, %v2058
  %v2060 = vrot.slane %v2059, 1
  %v2063 = vunpack.c.l.b16 %v2039
  %v2064 = vunpack.c.l.b16 %v2040
  %v2065 = vpack.c.b16 %v2064, %v2063
  %v2066 = vrot.slane %v2065, 3
  %2067 = vrot.lane.b32.xlu0 %v2066, 64
  %v2068 = vpop.permute.xlu0 %2067
  %v2070 = vunpack.c.l.b16 %v2041
  %v2071 = vpack.c.b16 %v2070, %v2063
  %v2073 = vshrl.u32 %v2071, 16
  %v2075 = vrot.slane %v2073, 3
  %v2076 = vshll.u32 %v2071, 16
  %v2078 = vrot.slane %v2076, 4
  %v2079 = vor.u32 %v2075, %v2078
  %v2080 = vpack.c.b16 %v2070, %v2070
  %2081 = vrot.lane.b32.xlu0 %v2080, 64
  %v2082 = vpop.permute.xlu0 %2081
  %v2084 = vunpack.c.l.b16 %v2042
  %v2085 = vpack.c.b16 %v2084, %v2084
  %v2086 = vrot.slane %v2085, 2
  %v2088 = vunpack.c.l.b16 %v2043
  %v2089 = vpack.c.b16 %v2088, %v2084
  %v2091 = vshrl.u32 %v2089, 16
  %v2093 = vrot.slane %v2091, 2
  %v2094 = vshll.u32 %v2089, 16
  %v2096 = vrot.slane %v2094, 3
  %v2097 = vor.u32 %v2093, %v2096
  %2098 = vrot.lane.b32.xlu0 %v2097, 64
  %v2099 = vpop.permute.xlu0 %2098
  %v2101 = vunpack.c.l.b16 %v2044
  %v2102 = vpack.c.b16 %v2088, %v2101
  %v2103 = vrot.slane %v2102, 3
  %vm2104 = vcmask 523264
  %v2107 = vsel %vm2104, %v2036, %v2056
  %v2110 = vsel %vm2104, %v2060, %v2068
  %v2113 = vsel %vm2104, %v2079, %v2082
  %v2116 = vsel %vm2104, %v2086, %v2099
  %v2121 = vunpack.c.l.b16 %v2107
  %v2122 = vunpack.c.l.b16 %v2110
  %v2123 = vunpack.c.l.b16 %v2113
  %v2124 = vunpack.c.l.b16 %v2116
  %v2125 = vunpack.c.l.b16 %v2103
  %v2126 = vpack.c.b16 %v2122, %v2121
  %v2127 = vpack.c.b16 %v2124, %v2123
  %v2128 = vpack.c.b16 %v2125, %v2125
  %2132 = vst [vmem:[#allocation5] sm:$0x33] %v2126
  %2133 = vst [vmem:[#allocation5 + $0x8] sm:$0x33] %v2127
  %vm2134 = vcmask 517120
  %2135 = vst.msk [vmem:[#allocation5 + $0x10] sm:$0x3] %vm2134, %v2128
  %v2136 = vld [vmem:[#allocation4] sm:$0x8]
  %v2137 = vld [vmem:[#allocation4 + $0x4] sm:$0x1]
  %v2138 = vld [vmem:[#allocation4 + $0x4] sm:$0x3]
  %v2139 = vld [vmem:[#allocation4 + $0x4] sm:$0xc]
  %v2140 = vld [vmem:[#allocation4 + $0x8] sm:$0x1]
  %v2141 = vld [vmem:[#allocation4 + $0x4] sm:$0x8]
  %v2142 = vld [vmem:[#allocation4 + $0x8] sm:$0x6]
  %v2143 = vld [vmem:[#allocation4 + $0x8] sm:$0xe]
  %v2144 = vld [vmem:[#allocation4 + $0x8] sm:$0xc]
  %v2147 = vunpack.c.l.b16 %v2136
  %v2148 = vunpack.c.l.b16 %v2137
  %v2149 = vpack.c.b16 %v2148, %v2147
  %v2151 = vunpack.c.l.b16 %v2138
  %v2152 = vpack.c.b16 %v2151, %v2147
  %v2154 = vshrl.u32 %v2152, 16
  %v2156 = vshll.u32 %v2152, 16
  %v2158 = vrot.slane %v2156, 1
  %v2159 = vor.u32 %v2154, %v2158
  %2160 = vrot.lane.b32.xlu0 %v2159, 64
  %v2161 = vpop.permute.xlu0 %2160
  %v2162 = vpack.c.b16 %v2151, %v2151
  %v2163 = vrot.slane %v2162, 5
  %v2165 = vunpack.c.l.b16 %v2139
  %v2166 = vpack.c.b16 %v2165, %v2165
  %v2167 = vrot.slane %v2166, 7
  %2168 = vrot.lane.b32.xlu0 %v2167, 64
  %v2169 = vpop.permute.xlu0 %2168
  %v2171 = vunpack.c.l.b16 %v2140
  %v2172 = vpack.c.b16 %v2171, %v2165
  %v2174 = vshrl.u32 %v2172, 16
  %v2176 = vrot.slane %v2174, 7
  %v2177 = vshll.u32 %v2172, 16
  %v2179 = vor.u32 %v2176, %v2177
  %v2181 = vunpack.c.l.b16 %v2141
  %v2182 = vpack.c.b16 %v2171, %v2181
  %2183 = vrot.lane.b32.xlu0 %v2182, 64
  %v2184 = vpop.permute.xlu0 %2183
  %v2186 = vunpack.c.l.b16 %v2142
  %v2187 = vpack.c.b16 %v2186, %v2186
  %v2188 = vrot.slane %v2187, 6
  %v2190 = vunpack.c.l.b16 %v2143
  %v2191 = vpack.c.b16 %v2190, %v2190
  %v2193 = vshrl.u32 %v2191, 16
  %v2195 = vrot.slane %v2193, 6
  %v2196 = vshll.u32 %v2191, 16
  %v2198 = vrot.slane %v2196, 7
  %v2199 = vor.u32 %v2195, %v2198
  %2200 = vrot.lane.b32.xlu0 %v2199, 64
  %v2201 = vpop.permute.xlu0 %2200
  %v2203 = vunpack.c.l.b16 %v2144
  %v2204 = vpack.c.b16 %v2203, %v2203
  %v2205 = vrot.slane %v2204, 7
  %v2208 = vsel %vm2104, %v2149, %v2161
  %v2211 = vsel %vm2104, %v2163, %v2169
  %v2214 = vsel %vm2104, %v2179, %v2184
  %v2217 = vsel %vm2104, %v2188, %v2201
  %v2222 = vunpack.c.l.b16 %v2208
  %v2223 = vunpack.c.l.b16 %v2211
  %v2224 = vunpack.c.l.b16 %v2214
  %v2225 = vunpack.c.l.b16 %v2217
  %v2226 = vunpack.c.l.b16 %v2205
  %v2227 = vunpack.c.h.b16 %v2208
  %v2228 = vunpack.c.h.b16 %v2211
  %v2229 = vunpack.c.h.b16 %v2214
  %v2230 = vunpack.c.h.b16 %v2217
  %v2231 = vunpack.c.h.b16 %v2205
  %v2232 = vpack.c.b16 %v2223, %v2222
  %v2233 = vpack.c.b16 %v2225, %v2224
  %v2234 = vpack.c.b16 %v2226, %v2226
  %v2235 = vpack.c.b16 %v2228, %v2227
  %v2236 = vpack.c.b16 %v2230, %v2229
  %v2237 = vpack.c.b16 %v2231, %v2231
  %v2238 = vrot.slane %v2232, 5
  %v2239 = vrot.slane %v2238, 4
  %v2240 = vrot.slane %v2235, 5
  %v2241 = vsel %vm860, %v2239, %v2240
  %v2242 = vrot.slane %v2233, 5
  %v2243 = vrot.slane %v2242, 4
  %v2244 = vrot.slane %v2236, 5
  %v2245 = vsel %vm860, %v2243, %v2244
  %v2246 = vrot.slane %v2234, 5
  %v2247 = vrot.slane %v2246, 4
  %v2248 = vrot.slane %v2237, 5
  %v2249 = vsel %vm860, %v2247, %v2248
  %2253 = vst [vmem:[#allocation5] sm:$0xcc] %v2241
  %2254 = vst [vmem:[#allocation5 + $0x8] sm:$0xcc] %v2245
  %vm2255 = vcmask 519170
  %2256 = vst.msk [vmem:[#allocation5 + $0x10] sm:$0xc] %vm2255, %v2249
  %v2257 = vld [vmem:[#allocation4 + $0x4] sm:$0xc]
  %v2258 = vld [vmem:[#allocation4 + $0x8] sm:$0x1]
  %v2259 = vld [vmem:[#allocation4 + $0x4] sm:$0x8]
  %v2260 = vld [vmem:[#allocation4 + $0x8] sm:$0x6]
  %v2261 = vld [vmem:[#allocation4 + $0x8] sm:$0xe]
  %v2262 = vld [vmem:[#allocation4 + $0x8] sm:$0xc]
  %v2263 = vld [vmem:[#allocation4 + $0xc] sm:$0x3]
  %v2264 = vld [vmem:[#allocation4 + $0xc] sm:$0x7]
  %v2265 = vld [vmem:[#allocation4 + $0xc] sm:$0x6]
  %v2268 = vunpack.c.l.b16 %v2257
  %v2269 = vunpack.c.l.b16 %v2258
  %v2270 = vpack.c.b16 %v2269, %v2268
  %v2272 = vshrl.u32 %v2270, 16
  %v2274 = vshll.u32 %v2270, 16
  %v2276 = vrot.slane %v2274, 1
  %v2277 = vor.u32 %v2272, %v2276
  %2278 = vrot.lane.b32.xlu0 %v2277, 64
  %v2279 = vpop.permute.xlu0 %2278
  %v2281 = vunpack.c.l.b16 %v2259
  %v2282 = vpack.c.b16 %v2269, %v2281
  %v2283 = vrot.slane %v2282, 1
  %v2285 = vunpack.c.l.b16 %v2260
  %v2286 = vpack.c.b16 %v2285, %v2285
  %v2287 = vrot.slane %v2286, 7
  %2288 = vrot.lane.b32.xlu0 %v2287, 64
  %v2289 = vpop.permute.xlu0 %2288
  %v2291 = vunpack.c.l.b16 %v2261
  %v2292 = vpack.c.b16 %v2291, %v2291
  %v2294 = vshrl.u32 %v2292, 16
  %v2296 = vrot.slane %v2294, 7
  %v2297 = vshll.u32 %v2292, 16
  %v2299 = vor.u32 %v2296, %v2297
  %v2301 = vunpack.c.l.b16 %v2262
  %v2302 = vpack.c.b16 %v2301, %v2301
  %2303 = vrot.lane.b32.xlu0 %v2302, 64
  %v2304 = vpop.permute.xlu0 %2303
  %v2306 = vunpack.c.l.b16 %v2263
  %v2307 = vpack.c.b16 %v2306, %v2306
  %v2308 = vrot.slane %v2307, 6
  %v2310 = vunpack.c.l.b16 %v2264
  %v2311 = vpack.c.b16 %v2310, %v2310
  %v2313 = vshrl.u32 %v2311, 16
  %v2315 = vrot.slane %v2313, 6
  %v2316 = vshll.u32 %v2311, 16
  %v2318 = vrot.slane %v2316, 7
  %v2319 = vor.u32 %v2315, %v2318
  %2320 = vrot.lane.b32.xlu0 %v2319, 64
  %v2321 = vpop.permute.xlu0 %2320
  %v2323 = vunpack.c.l.b16 %v2265
  %v2324 = vpack.c.b16 %v2323, %v2323
  %v2325 = vrot.slane %v2324, 7
  %v2328 = vsel %vm2104, %v2257, %v2279
  %v2331 = vsel %vm2104, %v2283, %v2289
  %v2334 = vsel %vm2104, %v2299, %v2304
  %v2337 = vsel %vm2104, %v2308, %v2321
  %v2342 = vunpack.c.l.b16 %v2328
  %v2343 = vunpack.c.l.b16 %v2331
  %v2344 = vunpack.c.l.b16 %v2334
  %v2345 = vunpack.c.l.b16 %v2337
  %v2346 = vunpack.c.l.b16 %v2325
  %v2347 = vpack.c.b16 %v2343, %v2342
  %v2348 = vpack.c.b16 %v2345, %v2344
  %v2349 = vpack.c.b16 %v2346, %v2346
  %v2350 = vrot.slane %v2347, 6
  %v2351 = vrot.slane %v2350, 4
  %v2352 = vrot.slane %v2348, 6
  %v2353 = vrot.slane %v2352, 4
  %v2354 = vrot.slane %v2349, 6
  %v2355 = vrot.slane %v2354, 4
  %2359 = vst [vmem:[#allocation5 + $0x14] sm:$0x33] %v2351
  %2360 = vst [vmem:[#allocation5 + $0x1c] sm:$0x33] %v2353
  %2361 = vst.msk [vmem:[#allocation5 + $0x24] sm:$0x3] %vm2134, %v2355
  %v2362 = vld [vmem:[#allocation4 + $0x8] sm:$0x6]
  %v2363 = vld [vmem:[#allocation4 + $0x8] sm:$0xe]
  %v2364 = vld [vmem:[#allocation4 + $0x8] sm:$0xc]
  %v2365 = vld [vmem:[#allocation4 + $0xc] sm:$0x3]
  %v2366 = vld [vmem:[#allocation4 + $0xc] sm:$0x7]
  %v2367 = vld [vmem:[#allocation4 + $0xc] sm:$0x6]
  %v2368 = vld [vmem:[#allocation4 + $0xc] sm:$0x8]
  %v2369 = vld [vmem:[#allocation4 + $0x10] sm:$0x1]
  %v2370 = vld [vmem:[#allocation4 + $0x10] sm:$0x3]
  %v2372 = vunpack.c.l.b16 %v2363
  %v2373 = vpack.c.b16 %v2372, %v2372
  %v2375 = vshrl.u32 %v2373, 16
  %v2377 = vshll.u32 %v2373, 16
  %v2379 = vrot.slane %v2377, 1
  %v2380 = vor.u32 %v2375, %v2379
  %2381 = vrot.lane.b32.xlu0 %v2380, 64
  %v2382 = vpop.permute.xlu0 %2381
  %v2384 = vunpack.c.l.b16 %v2364
  %v2385 = vpack.c.b16 %v2384, %v2384
  %v2386 = vrot.slane %v2385, 1
  %v2388 = vunpack.c.l.b16 %v2365
  %v2389 = vpack.c.b16 %v2388, %v2388
  %v2390 = vrot.slane %v2389, 7
  %2391 = vrot.lane.b32.xlu0 %v2390, 64
  %v2392 = vpop.permute.xlu0 %2391
  %v2394 = vunpack.c.l.b16 %v2366
  %v2395 = vpack.c.b16 %v2394, %v2394
  %v2397 = vshrl.u32 %v2395, 16
  %v2399 = vrot.slane %v2397, 7
  %v2400 = vshll.u32 %v2395, 16
  %v2402 = vor.u32 %v2399, %v2400
  %v2404 = vunpack.c.l.b16 %v2367
  %v2405 = vpack.c.b16 %v2404, %v2404
  %2406 = vrot.lane.b32.xlu0 %v2405, 64
  %v2407 = vpop.permute.xlu0 %2406
  %v2410 = vunpack.c.l.b16 %v2368
  %v2411 = vunpack.c.l.b16 %v2369
  %v2412 = vpack.c.b16 %v2411, %v2410
  %v2413 = vrot.slane %v2412, 2
  %v2415 = vunpack.c.l.b16 %v2370
  %v2416 = vpack.c.b16 %v2415, %v2410
  %v2418 = vshrl.u32 %v2416, 16
  %v2420 = vrot.slane %v2418, 2
  %v2421 = vshll.u32 %v2416, 16
  %v2423 = vrot.slane %v2421, 3
  %v2424 = vor.u32 %v2420, %v2423
  %2425 = vrot.lane.b32.xlu0 %v2424, 64
  %v2426 = vpop.permute.xlu0 %2425
  %v2427 = vpack.c.b16 %v2415, %v2415
  %v2428 = vrot.slane %v2427, 7
  %v2431 = vsel %vm2104, %v2362, %v2382
  %v2434 = vsel %vm2104, %v2386, %v2392
  %v2437 = vsel %vm2104, %v2402, %v2407
  %v2440 = vsel %vm2104, %v2413, %v2426
  %v2445 = vunpack.c.l.b16 %v2431
  %v2446 = vunpack.c.l.b16 %v2434
  %v2447 = vunpack.c.l.b16 %v2437
  %v2448 = vunpack.c.l.b16 %v2440
  %v2449 = vunpack.c.l.b16 %v2428
  %v2450 = vpack.c.b16 %v2446, %v2445
  %v2451 = vpack.c.b16 %v2448, %v2447
  %v2452 = vpack.c.b16 %v2449, %v2449
  %v2453 = vrot.slane %v2450, 7
  %v2454 = vrot.slane %v2451, 7
  %v2455 = vrot.slane %v2452, 7
  %2459 = vst [vmem:[#allocation5 + $0x14] sm:$0xcc] %v2453
  %2460 = vst [vmem:[#allocation5 + $0x1c] sm:$0xcc] %v2454
  %2461 = vst.msk [vmem:[#allocation5 + $0x24] sm:$0xc] %vm2255, %v2455
  %v2462 = vld [vmem:[#allocation4 + $0x10] sm:$0xc]
  %v2463 = vld [vmem:[#allocation4 + $0x14] sm:$0x1]
  %v2464 = vld [vmem:[#allocation4 + $0x10] sm:$0x8]
  %v2465 = vld [vmem:[#allocation4 + $0x14] sm:$0x6]
  %v2466 = vld [vmem:[#allocation4 + $0x14] sm:$0xe]
  %v2467 = vld [vmem:[#allocation4 + $0x14] sm:$0xc]
  %v2468 = vld [vmem:[#allocation4 + $0x18] sm:$0x3]
  %v2469 = vld [vmem:[#allocation4 + $0x18] sm:$0x7]
  %v2470 = vld [vmem:[#allocation4 + $0x18] sm:$0x6]
  %v2473 = vunpack.c.l.b16 %v2462
  %v2474 = vunpack.c.l.b16 %v2463
  %v2475 = vpack.c.b16 %v2474, %v2473
  %v2477 = vshrl.u32 %v2475, 16
  %v2479 = vshll.u32 %v2475, 16
  %v2481 = vrot.slane %v2479, 1
  %v2482 = vor.u32 %v2477, %v2481
  %2483 = vrot.lane.b32.xlu0 %v2482, 64
  %v2484 = vpop.permute.xlu0 %2483
  %v2486 = vunpack.c.l.b16 %v2464
  %v2487 = vpack.c.b16 %v2474, %v2486
  %v2488 = vrot.slane %v2487, 1
  %v2490 = vunpack.c.l.b16 %v2465
  %v2491 = vpack.c.b16 %v2490, %v2490
  %v2492 = vrot.slane %v2491, 7
  %2493 = vrot.lane.b32.xlu0 %v2492, 64
  %v2494 = vpop.permute.xlu0 %2493
  %v2496 = vunpack.c.l.b16 %v2466
  %v2497 = vpack.c.b16 %v2496, %v2496
  %v2499 = vshrl.u32 %v2497, 16
  %v2501 = vrot.slane %v2499, 7
  %v2502 = vshll.u32 %v2497, 16
  %v2504 = vor.u32 %v2501, %v2502
  %v2506 = vunpack.c.l.b16 %v2467
  %v2507 = vpack.c.b16 %v2506, %v2506
  %2508 = vrot.lane.b32.xlu0 %v2507, 64
  %v2509 = vpop.permute.xlu0 %2508
  %v2511 = vunpack.c.l.b16 %v2468
  %v2512 = vpack.c.b16 %v2511, %v2511
  %v2513 = vrot.slane %v2512, 6
  %v2515 = vunpack.c.l.b16 %v2469
  %v2516 = vpack.c.b16 %v2515, %v2515
  %v2518 = vshrl.u32 %v2516, 16
  %v2520 = vrot.slane %v2518, 6
  %v2521 = vshll.u32 %v2516, 16
  %v2523 = vrot.slane %v2521, 7
  %v2524 = vor.u32 %v2520, %v2523
  %2525 = vrot.lane.b32.xlu0 %v2524, 64
  %v2526 = vpop.permute.xlu0 %2525
  %v2528 = vunpack.c.l.b16 %v2470
  %v2529 = vpack.c.b16 %v2528, %v2528
  %v2530 = vrot.slane %v2529, 7
  %v2533 = vsel %vm2104, %v2462, %v2484
  %v2536 = vsel %vm2104, %v2488, %v2494
  %v2539 = vsel %vm2104, %v2504, %v2509
  %v2542 = vsel %vm2104, %v2513, %v2526
  %v2547 = vunpack.c.l.b16 %v2533
  %v2548 = vunpack.c.l.b16 %v2536
  %v2549 = vunpack.c.l.b16 %v2539
  %v2550 = vunpack.c.l.b16 %v2542
  %v2551 = vunpack.c.l.b16 %v2530
  %v2552 = vpack.c.b16 %v2548, %v2547
  %v2553 = vpack.c.b16 %v2550, %v2549
  %v2554 = vpack.c.b16 %v2551, %v2551
  %v2555 = vrot.slane %v2552, 6
  %v2556 = vrot.slane %v2555, 4
  %v2557 = vrot.slane %v2553, 6
  %v2558 = vrot.slane %v2557, 4
  %v2559 = vrot.slane %v2554, 6
  %v2560 = vrot.slane %v2559, 4
  %2564 = vst [vmem:[#allocation5 + $0x28] sm:$0x33] %v2556
  %2565 = vst [vmem:[#allocation5 + $0x30] sm:$0x33] %v2558
  %2566 = vst.msk [vmem:[#allocation5 + $0x38] sm:$0x3] %vm2134, %v2560
  %v2567 = vld [vmem:[#allocation4 + $0x14] sm:$0x6]
  %v2568 = vld [vmem:[#allocation4 + $0x14] sm:$0xe]
  %v2569 = vld [vmem:[#allocation4 + $0x14] sm:$0xc]
  %v2570 = vld [vmem:[#allocation4 + $0x18] sm:$0x3]
  %v2571 = vld [vmem:[#allocation4 + $0x18] sm:$0x7]
  %v2572 = vld [vmem:[#allocation4 + $0x18] sm:$0x6]
  %v2573 = vld [vmem:[#allocation4 + $0x18] sm:$0x8]
  %v2574 = vld [vmem:[#allocation4 + $0x1c] sm:$0x1]
  %v2575 = vld [vmem:[#allocation4 + $0x1c] sm:$0x3]
  %v2577 = vunpack.c.l.b16 %v2568
  %v2578 = vpack.c.b16 %v2577, %v2577
  %v2580 = vshrl.u32 %v2578, 16
  %v2582 = vshll.u32 %v2578, 16
  %v2584 = vrot.slane %v2582, 1
  %v2585 = vor.u32 %v2580, %v2584
  %2586 = vrot.lane.b32.xlu0 %v2585, 64
  %v2587 = vpop.permute.xlu0 %2586
  %v2589 = vunpack.c.l.b16 %v2569
  %v2590 = vpack.c.b16 %v2589, %v2589
  %v2591 = vrot.slane %v2590, 1
  %v2593 = vunpack.c.l.b16 %v2570
  %v2594 = vpack.c.b16 %v2593, %v2593
  %v2595 = vrot.slane %v2594, 7
  %2596 = vrot.lane.b32.xlu0 %v2595, 64
  %v2597 = vpop.permute.xlu0 %2596
  %v2599 = vunpack.c.l.b16 %v2571
  %v2600 = vpack.c.b16 %v2599, %v2599
  %v2602 = vshrl.u32 %v2600, 16
  %v2604 = vrot.slane %v2602, 7
  %v2605 = vshll.u32 %v2600, 16
  %v2607 = vor.u32 %v2604, %v2605
  %v2609 = vunpack.c.l.b16 %v2572
  %v2610 = vpack.c.b16 %v2609, %v2609
  %2611 = vrot.lane.b32.xlu0 %v2610, 64
  %v2612 = vpop.permute.xlu0 %2611
  %v2615 = vunpack.c.l.b16 %v2573
  %v2616 = vunpack.c.l.b16 %v2574
  %v2617 = vpack.c.b16 %v2616, %v2615
  %v2618 = vrot.slane %v2617, 2
  %v2620 = vunpack.c.l.b16 %v2575
  %v2621 = vpack.c.b16 %v2620, %v2615
  %v2623 = vshrl.u32 %v2621, 16
  %v2625 = vrot.slane %v2623, 2
  %v2626 = vshll.u32 %v2621, 16
  %v2628 = vrot.slane %v2626, 3
  %v2629 = vor.u32 %v2625, %v2628
  %2630 = vrot.lane.b32.xlu0 %v2629, 64
  %v2631 = vpop.permute.xlu0 %2630
  %v2632 = vpack.c.b16 %v2620, %v2620
  %v2633 = vrot.slane %v2632, 7
  %v2636 = vsel %vm2104, %v2567, %v2587
  %v2639 = vsel %vm2104, %v2591, %v2597
  %v2642 = vsel %vm2104, %v2607, %v2612
  %v2645 = vsel %vm2104, %v2618, %v2631
  %v2650 = vunpack.c.l.b16 %v2636
  %v2651 = vunpack.c.l.b16 %v2639
  %v2652 = vunpack.c.l.b16 %v2642
  %v2653 = vunpack.c.l.b16 %v2645
  %v2654 = vunpack.c.l.b16 %v2633
  %v2655 = vpack.c.b16 %v2651, %v2650
  %v2656 = vpack.c.b16 %v2653, %v2652
  %v2657 = vpack.c.b16 %v2654, %v2654
  %v2658 = vrot.slane %v2655, 7
  %v2659 = vrot.slane %v2656, 7
  %v2660 = vrot.slane %v2657, 7
  %2664 = vst [vmem:[#allocation5 + $0x28] sm:$0xcc] %v2658
  %2665 = vst [vmem:[#allocation5 + $0x30] sm:$0xcc] %v2659
  %2666 = vst.msk [vmem:[#allocation5 + $0x38] sm:$0xc] %vm2255, %v2660
  %v2667 = vld [vmem:[#allocation4 + $0x18] sm:$0x3]
  %v2668 = vld [vmem:[#allocation4 + $0x18] sm:$0x7]
  %v2669 = vld [vmem:[#allocation4 + $0x18] sm:$0x6]
  %v2670 = vld [vmem:[#allocation4 + $0x18] sm:$0x8]
  %v2671 = vld [vmem:[#allocation4 + $0x1c] sm:$0x1]
  %v2672 = vld [vmem:[#allocation4 + $0x1c] sm:$0x3]
  %v2673 = vld [vmem:[#allocation4 + $0x1c] sm:$0xc]
  %v2674 = vld [vmem:[#allocation4 + $0x20] sm:$0x1]
  %v2675 = vld [vmem:[#allocation4 + $0x1c] sm:$0x8]
  %v2677 = vunpack.c.l.b16 %v2668
  %v2678 = vpack.c.b16 %v2677, %v2677
  %v2680 = vshrl.u32 %v2678, 16
  %v2682 = vshll.u32 %v2678, 16
  %v2684 = vrot.slane %v2682, 1
  %v2685 = vor.u32 %v2680, %v2684
  %2686 = vrot.lane.b32.xlu0 %v2685, 64
  %v2687 = vpop.permute.xlu0 %2686
  %v2689 = vunpack.c.l.b16 %v2669
  %v2690 = vpack.c.b16 %v2689, %v2689
  %v2691 = vrot.slane %v2690, 1
  %v2694 = vunpack.c.l.b16 %v2670
  %v2695 = vunpack.c.l.b16 %v2671
  %v2696 = vpack.c.b16 %v2695, %v2694
  %v2697 = vrot.slane %v2696, 3
  %2698 = vrot.lane.b32.xlu0 %v2697, 64
  %v2699 = vpop.permute.xlu0 %2698
  %v2701 = vunpack.c.l.b16 %v2672
  %v2702 = vpack.c.b16 %v2701, %v2694
  %v2704 = vshrl.u32 %v2702, 16
  %v2706 = vrot.slane %v2704, 3
  %v2707 = vshll.u32 %v2702, 16
  %v2709 = vrot.slane %v2707, 4
  %v2710 = vor.u32 %v2706, %v2709
  %v2711 = vpack.c.b16 %v2701, %v2701
  %2712 = vrot.lane.b32.xlu0 %v2711, 64
  %v2713 = vpop.permute.xlu0 %2712
  %v2715 = vunpack.c.l.b16 %v2673
  %v2716 = vpack.c.b16 %v2715, %v2715
  %v2717 = vrot.slane %v2716, 2
  %v2719 = vunpack.c.l.b16 %v2674
  %v2720 = vpack.c.b16 %v2719, %v2715
  %v2722 = vshrl.u32 %v2720, 16
  %v2724 = vrot.slane %v2722, 2
  %v2725 = vshll.u32 %v2720, 16
  %v2727 = vrot.slane %v2725, 3
  %v2728 = vor.u32 %v2724, %v2727
  %2729 = vrot.lane.b32.xlu0 %v2728, 64
  %v2730 = vpop.permute.xlu0 %2729
  %v2732 = vunpack.c.l.b16 %v2675
  %v2733 = vpack.c.b16 %v2719, %v2732
  %v2734 = vrot.slane %v2733, 3
  %v2737 = vsel %vm2104, %v2667, %v2687
  %v2740 = vsel %vm2104, %v2691, %v2699
  %v2743 = vsel %vm2104, %v2710, %v2713
  %v2746 = vsel %vm2104, %v2717, %v2730
  %v2751 = vunpack.c.l.b16 %v2737
  %v2752 = vunpack.c.l.b16 %v2740
  %v2753 = vunpack.c.l.b16 %v2743
  %v2754 = vunpack.c.l.b16 %v2746
  %v2755 = vunpack.c.l.b16 %v2734
  %v2756 = vpack.c.b16 %v2752, %v2751
  %v2757 = vpack.c.b16 %v2754, %v2753
  %v2758 = vpack.c.b16 %v2755, %v2755
  %2762 = vst [vmem:[#allocation5 + $0x3c] sm:$0x33] %v2756
  %2763 = vst [vmem:[#allocation5 + $0x44] sm:$0x33] %v2757
  %2764 = vst.msk [vmem:[#allocation5 + $0x4c] sm:$0x3] %vm2134, %v2758
  %v2765 = vld [vmem:[#allocation4 + $0x18] sm:$0x8]
  %v2766 = vld [vmem:[#allocation4 + $0x1c] sm:$0x1]
  %v2767 = vld [vmem:[#allocation4 + $0x1c] sm:$0x3]
  %v2768 = vld [vmem:[#allocation4 + $0x1c] sm:$0xc]
  %v2769 = vld [vmem:[#allocation4 + $0x20] sm:$0x1]
  %v2770 = vld [vmem:[#allocation4 + $0x1c] sm:$0x8]
  %v2771 = vld [vmem:[#allocation4 + $0x20] sm:$0x6]
  %v2772 = vld [vmem:[#allocation4 + $0x20] sm:$0xe]
  %v2773 = vld [vmem:[#allocation4 + $0x20] sm:$0xc]
  %v2776 = vunpack.c.l.b16 %v2765
  %v2777 = vunpack.c.l.b16 %v2766
  %v2778 = vpack.c.b16 %v2777, %v2776
  %v2780 = vunpack.c.l.b16 %v2767
  %v2781 = vpack.c.b16 %v2780, %v2776
  %v2783 = vshrl.u32 %v2781, 16
  %v2785 = vshll.u32 %v2781, 16
  %v2787 = vrot.slane %v2785, 1
  %v2788 = vor.u32 %v2783, %v2787
  %2789 = vrot.lane.b32.xlu0 %v2788, 64
  %v2790 = vpop.permute.xlu0 %2789
  %v2791 = vpack.c.b16 %v2780, %v2780
  %v2792 = vrot.slane %v2791, 5
  %v2794 = vunpack.c.l.b16 %v2768
  %v2795 = vpack.c.b16 %v2794, %v2794
  %v2796 = vrot.slane %v2795, 7
  %2797 = vrot.lane.b32.xlu0 %v2796, 64
  %v2798 = vpop.permute.xlu0 %2797
  %v2800 = vunpack.c.l.b16 %v2769
  %v2801 = vpack.c.b16 %v2800, %v2794
  %v2803 = vshrl.u32 %v2801, 16
  %v2805 = vrot.slane %v2803, 7
  %v2806 = vshll.u32 %v2801, 16
  %v2808 = vor.u32 %v2805, %v2806
  %v2810 = vunpack.c.l.b16 %v2770
  %v2811 = vpack.c.b16 %v2800, %v2810
  %2812 = vrot.lane.b32.xlu0 %v2811, 64
  %v2813 = vpop.permute.xlu0 %2812
  %v2815 = vunpack.c.l.b16 %v2771
  %v2816 = vpack.c.b16 %v2815, %v2815
  %v2817 = vrot.slane %v2816, 6
  %v2819 = vunpack.c.l.b16 %v2772
  %v2820 = vpack.c.b16 %v2819, %v2819
  %v2822 = vshrl.u32 %v2820, 16
  %v2824 = vrot.slane %v2822, 6
  %v2825 = vshll.u32 %v2820, 16
  %v2827 = vrot.slane %v2825, 7
  %v2828 = vor.u32 %v2824, %v2827
  %2829 = vrot.lane.b32.xlu0 %v2828, 64
  %v2830 = vpop.permute.xlu0 %2829
  %v2832 = vunpack.c.l.b16 %v2773
  %v2833 = vpack.c.b16 %v2832, %v2832
  %v2834 = vrot.slane %v2833, 7
  %v2837 = vsel %vm2104, %v2778, %v2790
  %v2840 = vsel %vm2104, %v2792, %v2798
  %v2843 = vsel %vm2104, %v2808, %v2813
  %v2846 = vsel %vm2104, %v2817, %v2830
  %v2851 = vunpack.c.l.b16 %v2837
  %v2852 = vunpack.c.l.b16 %v2840
  %v2853 = vunpack.c.l.b16 %v2843
  %v2854 = vunpack.c.l.b16 %v2846
  %v2855 = vunpack.c.l.b16 %v2834
  %v2856 = vunpack.c.h.b16 %v2837
  %v2857 = vunpack.c.h.b16 %v2840
  %v2858 = vunpack.c.h.b16 %v2843
  %v2859 = vunpack.c.h.b16 %v2846
  %v2860 = vunpack.c.h.b16 %v2834
  %v2861 = vpack.c.b16 %v2852, %v2851
  %v2862 = vpack.c.b16 %v2854, %v2853
  %v2863 = vpack.c.b16 %v2855, %v2855
  %v2864 = vpack.c.b16 %v2857, %v2856
  %v2865 = vpack.c.b16 %v2859, %v2858
  %v2866 = vpack.c.b16 %v2860, %v2860
  %v2867 = vrot.slane %v2861, 5
  %v2868 = vrot.slane %v2867, 4
  %v2869 = vrot.slane %v2864, 5
  %v2870 = vsel %vm860, %v2868, %v2869
  %v2871 = vrot.slane %v2862, 5
  %v2872 = vrot.slane %v2871, 4
  %v2873 = vrot.slane %v2865, 5
  %v2874 = vsel %vm860, %v2872, %v2873
  %v2875 = vrot.slane %v2863, 5
  %v2876 = vrot.slane %v2875, 4
  %v2877 = vrot.slane %v2866, 5
  %v2878 = vsel %vm860, %v2876, %v2877
  %2882 = vst [vmem:[#allocation5 + $0x3c] sm:$0xcc] %v2870
  %2883 = vst [vmem:[#allocation5 + $0x44] sm:$0xcc] %v2874
  %2884 = vst.msk [vmem:[#allocation5 + $0x4c] sm:$0xc] %vm2255, %v2878
  %v2885 = vld [vmem:[#allocation5] sm:$0xff]
  %v2886 = vld [vmem:[#allocation5 + $0x8] sm:$0xff]
  %v2887 = vld [vmem:[#allocation5 + $0x10] sm:$0xf]
  %v2888 = vld [vmem:[#allocation5 + $0x14] sm:$0xff]
  %v2889 = vld [vmem:[#allocation5 + $0x1c] sm:$0xff]
  %v2890 = vld [vmem:[#allocation5 + $0x24] sm:$0xf]
  %v2891 = vld [vmem:[#allocation5 + $0x28] sm:$0xff]
  %v2892 = vld [vmem:[#allocation5 + $0x30] sm:$0xff]
  %v2893 = vld [vmem:[#allocation5 + $0x38] sm:$0xf]
  %v2894 = vld [vmem:[#allocation5 + $0x3c] sm:$0xff]
  %v2895 = vld [vmem:[#allocation5 + $0x44] sm:$0xff]
  %v2896 = vld [vmem:[#allocation5 + $0x4c] sm:$0xf]
  %v2897 = vld [vmem:[%s6] sm:$0xf]
  %v2898 = vld [vmem:[%s6 + $0x4] sm:$0xf]
  %v2899 = vld [vmem:[%s6 + $0x8] sm:$0xf]
  %v2900 = vld [vmem:[%s6 + $0xc] sm:$0xf]
  %v2901 = vld [vmem:[%s6 + $0x10] sm:$0xf]
  %v2902 = vld [vmem:[%s6 + $0x14] sm:$0xf]
  %v2903 = vld [vmem:[%s6 + $0x18] sm:$0xf]
  %v2904 = vld [vmem:[%s6 + $0x1c] sm:$0xf]
  %v2905 = vld [vmem:[%s6 + $0x20] sm:$0xf]
  %v2906 = vld [vmem:[%s6 + $0x24] sm:$0xf]
  %v2907 = vld [vmem:[%s6 + $0x28] sm:$0xf]
  %v2908 = vld [vmem:[%s6 + $0x2c] sm:$0xf]
  %v2909 = vld [vmem:[%s6 + $0x30] sm:$0xf]
  %v2910 = vld [vmem:[%s6 + $0x34] sm:$0xf]
  %v2911 = vld [vmem:[%s6 + $0x38] sm:$0xf]
  %v2912 = vld [vmem:[%s6 + $0x3c] sm:$0xf]
  %v2913 = vld [vmem:[%s6 + $0x40] sm:$0xf]
  %v2914 = vld [vmem:[%s6 + $0x44] sm:$0xf]
  %v2915 = vld [vmem:[%s6 + $0x48] sm:$0xf]
  %v2916 = vld [vmem:[%s6 + $0x4c] sm:$0xf]
  %v2917 = vld [vmem:[%s6 + $0x50] sm:$0xf]
  %v2918 = vld [vmem:[%s6 + $0x54] sm:$0xf]
  %v2919 = vld [vmem:[%s6 + $0x58] sm:$0xf]
  %v2920 = vld [vmem:[%s6 + $0x5c] sm:$0xf]
  %v2921 = vld [vmem:[%s6 + $0x60] sm:$0xf]
  %v2922 = vld [vmem:[%s6 + $0x64] sm:$0xf]
  %v2923 = vld [vmem:[%s6 + $0x68] sm:$0xf]
  %v2924 = vld [vmem:[%s6 + $0x6c] sm:$0xf]
  %v2925 = vld [vmem:[%s6 + $0x70] sm:$0xf]
  %v2926 = vld [vmem:[%s6 + $0x74] sm:$0xf]
  %v2927 = vld [vmem:[%s6 + $0x78] sm:$0xf]
  %v2928 = vld [vmem:[%s6 + $0x7c] sm:$0xf]
  %v2929 = vld [vmem:[%s6 + $0x80] sm:$0xf]
  %v2930 = vld [vmem:[%s6 + $0x84] sm:$0xf]
  %v2931 = vld [vmem:[%s6 + $0x88] sm:$0xf]
  %v2932 = vld [vmem:[%s6 + $0x8c] sm:$0xf]
  %v2933 = vld [vmem:[%s6 + $0x90] sm:$0xf]
  %v2934 = vld [vmem:[%s6 + $0x94] sm:$0xf]
  %v2935 = vld [vmem:[%s6 + $0x98] sm:$0xf]
  %v2936 = vld [vmem:[%s6 + $0x9c] sm:$0xf]
  %v2937 = vld [vmem:[%s6 + $0xa0] sm:$0xf]
  %v2938 = vld [vmem:[%s6 + $0xa4] sm:$0xf]
  %v2939 = vld [vmem:[%s6 + $0xa8] sm:$0xf]
  %v2940 = vld [vmem:[%s6 + $0xac] sm:$0xf]
  %v2941 = vld [vmem:[%s6 + $0xb0] sm:$0xf]
  %v2942 = vld [vmem:[%s6 + $0xb4] sm:$0xf]
  %v2943 = vld [vmem:[%s6 + $0xb8] sm:$0xf]
  %v2944 = vld [vmem:[%s6 + $0xbc] sm:$0xf]
  %v2945 = vld [vmem:[%s6 + $0xc0] sm:$0xf]
  %v2946 = vld [vmem:[%s6 + $0xc4] sm:$0xf]
  %v2947 = vld [vmem:[%s6 + $0xc8] sm:$0xf]
  %v2948 = vld [vmem:[%s6 + $0xcc] sm:$0xf]
  %v2949 = vld [vmem:[%s6 + $0xd0] sm:$0xf]
  %v2950 = vld [vmem:[%s6 + $0xd4] sm:$0xf]
  %v2951 = vld [vmem:[%s6 + $0xd8] sm:$0xf]
  %v2952 = vld [vmem:[%s6 + $0xdc] sm:$0xf]
  %v2953 = vld [vmem:[%s6 + $0xe0] sm:$0xf]
  %v2954 = vld [vmem:[%s6 + $0xe4] sm:$0xf]
  %v2955 = vld [vmem:[%s6 + $0xe8] sm:$0xf]
  %v2956 = vld [vmem:[%s6 + $0xec] sm:$0xf]
  %v2957 = vld [vmem:[%s6 + $0xf0] sm:$0xf]
  %v2958 = vld [vmem:[%s6 + $0xf4] sm:$0xf]
  %v2959 = vld [vmem:[%s6 + $0xf8] sm:$0xf]
  %v2960 = vld [vmem:[%s6 + $0xfc] sm:$0xf]
  %v2961 = vld [vmem:[%s6 + $0x100] sm:$0xf]
  %v2962 = vld [vmem:[%s6 + $0x104] sm:$0xf]
  %v2963 = vld [vmem:[%s6 + $0x108] sm:$0xf]
  %v2964 = vld [vmem:[%s6 + $0x10c] sm:$0xf]
  %v2965 = vld [vmem:[%s6 + $0x110] sm:$0xf]
  %v2966 = vld [vmem:[%s6 + $0x114] sm:$0xf]
  %v2967 = vld [vmem:[%s6 + $0x118] sm:$0xf]
  %v2968 = vld [vmem:[%s6 + $0x11c] sm:$0xf]
  %v2969 = vld [vmem:[%s7] sm:$0x1]
  %v2971 = vlaneseq
  %v2972 = vshrl.u32 %v2971, 7
  %v2973 = vsub.s32 0, %v2972
  %v2974 = vrot.slane %v2969, %v2973
  %v2988 = vunpack.c.l.b16 %v2885
  %v2989 = vunpack.c.h.b16 %v2885
  %v2990 = vunpack.c.l.b16 %v2886
  %v2991 = vunpack.c.h.b16 %v2886
  %v2992 = vunpack.c.l.b16 %v2887
  %v2993 = vunpack.c.l.b16 %v2888
  %v2994 = vunpack.c.h.b16 %v2888
  %v2995 = vunpack.c.l.b16 %v2889
  %v2996 = vunpack.c.h.b16 %v2889
  %v2997 = vunpack.c.l.b16 %v2890
  %v2998 = vunpack.c.l.b16 %v2891
  %v2999 = vunpack.c.h.b16 %v2891
  %v3000 = vunpack.c.l.b16 %v2892
  %v3001 = vunpack.c.h.b16 %v2892
  %v3002 = vunpack.c.l.b16 %v2893
  %v3003 = vunpack.c.l.b16 %v2894
  %v3004 = vunpack.c.h.b16 %v2894
  %v3005 = vunpack.c.l.b16 %v2895
  %v3006 = vunpack.c.h.b16 %v2895
  %v3007 = vunpack.c.l.b16 %v2896
  %v3008 = vpack.c.b16 %v2993, %v2988
  %v3009 = vpack.c.b16 %v2994, %v2989
  %v3010 = vpack.c.b16 %v2995, %v2990
  %v3011 = vpack.c.b16 %v2996, %v2991
  %v3012 = vpack.c.b16 %v2997, %v2992
  %v3013 = vpack.c.b16 %v3003, %v2998
  %v3014 = vpack.c.b16 %v3004, %v2999
  %v3015 = vpack.c.b16 %v3005, %v3000
  %v3016 = vpack.c.b16 %v3006, %v3001
  %v3017 = vpack.c.b16 %v3007, %v3002
  %v3098 = vunpack.c.l.b16 %v2897
  %v3099 = vunpack.c.l.b16 %v2898
  %v3100 = vunpack.c.l.b16 %v2899
  %v3101 = vunpack.c.l.b16 %v2900
  %v3102 = vunpack.c.l.b16 %v2901
  %v3103 = vunpack.c.l.b16 %v2902
  %v3104 = vunpack.c.l.b16 %v2903
  %v3105 = vunpack.c.l.b16 %v2904
  %v3106 = vunpack.c.l.b16 %v2905
  %v3107 = vunpack.c.l.b16 %v2906
  %v3108 = vunpack.c.l.b16 %v2907
  %v3109 = vunpack.c.l.b16 %v2908
  %v3110 = vunpack.c.l.b16 %v2909
  %v3111 = vunpack.c.l.b16 %v2910
  %v3112 = vunpack.c.l.b16 %v2911
  %v3113 = vunpack.c.l.b16 %v2912
  %v3114 = vunpack.c.l.b16 %v2913
  %v3115 = vunpack.c.l.b16 %v2914
  %v3116 = vunpack.c.l.b16 %v2915
  %v3117 = vunpack.c.l.b16 %v2916
  %v3118 = vunpack.c.l.b16 %v2917
  %v3119 = vunpack.c.l.b16 %v2918
  %v3120 = vunpack.c.l.b16 %v2919
  %v3121 = vunpack.c.l.b16 %v2920
  %v3122 = vunpack.c.l.b16 %v2921
  %v3123 = vunpack.c.l.b16 %v2922
  %v3124 = vunpack.c.l.b16 %v2923
  %v3125 = vunpack.c.l.b16 %v2924
  %v3126 = vunpack.c.l.b16 %v2925
  %v3127 = vunpack.c.l.b16 %v2926
  %v3128 = vunpack.c.l.b16 %v2927
  %v3129 = vunpack.c.l.b16 %v2928
  %v3130 = vunpack.c.l.b16 %v2929
  %v3131 = vunpack.c.l.b16 %v2930
  %v3132 = vunpack.c.l.b16 %v2931
  %v3133 = vunpack.c.l.b16 %v2932
  %v3134 = vunpack.c.l.b16 %v2933
  %v3135 = vunpack.c.l.b16 %v2934
  %v3136 = vunpack.c.l.b16 %v2935
  %v3137 = vunpack.c.l.b16 %v2936
  %v3138 = vunpack.c.l.b16 %v2937
  %v3139 = vunpack.c.l.b16 %v2938
  %v3140 = vunpack.c.l.b16 %v2939
  %v3141 = vunpack.c.l.b16 %v2940
  %v3142 = vunpack.c.l.b16 %v2941
  %v3143 = vunpack.c.l.b16 %v2942
  %v3144 = vunpack.c.l.b16 %v2943
  %v3145 = vunpack.c.l.b16 %v2944
  %v3146 = vunpack.c.l.b16 %v2945
  %v3147 = vunpack.c.l.b16 %v2946
  %v3148 = vunpack.c.l.b16 %v2947
  %v3149 = vunpack.c.l.b16 %v2948
  %v3150 = vunpack.c.l.b16 %v2949
  %v3151 = vunpack.c.l.b16 %v2950
  %v3152 = vunpack.c.l.b16 %v2951
  %v3153 = vunpack.c.l.b16 %v2952
  %v3154 = vunpack.c.l.b16 %v2953
  %v3155 = vunpack.c.l.b16 %v2954
  %v3156 = vunpack.c.l.b16 %v2955
  %v3157 = vunpack.c.l.b16 %v2956
  %v3158 = vunpack.c.l.b16 %v2957
  %v3159 = vunpack.c.l.b16 %v2958
  %v3160 = vunpack.c.l.b16 %v2959
  %v3161 = vunpack.c.l.b16 %v2960
  %v3162 = vunpack.c.l.b16 %v2961
  %v3163 = vunpack.c.l.b16 %v2962
  %v3164 = vunpack.c.l.b16 %v2963
  %v3165 = vunpack.c.l.b16 %v2964
  %v3166 = vunpack.c.l.b16 %v2965
  %v3167 = vunpack.c.l.b16 %v2966
  %v3168 = vunpack.c.l.b16 %v2967
  %v3169 = vunpack.c.l.b16 %v2968
  %v3170 = vpack.c.b16 %v3099, %v3098
  %v3171 = vpack.c.b16 %v3101, %v3100
  %v3172 = vpack.c.b16 %v3103, %v3102
  %v3173 = vpack.c.b16 %v3105, %v3104
  %v3174 = vpack.c.b16 %v3107, %v3106
  %v3175 = vpack.c.b16 %v3109, %v3108
  %v3176 = vpack.c.b16 %v3111, %v3110
  %v3177 = vpack.c.b16 %v3113, %v3112
  %v3178 = vpack.c.b16 %v3115, %v3114
  %v3179 = vpack.c.b16 %v3117, %v3116
  %v3180 = vpack.c.b16 %v3119, %v3118
  %v3181 = vpack.c.b16 %v3121, %v3120
  %v3182 = vpack.c.b16 %v3123, %v3122
  %v3183 = vpack.c.b16 %v3125, %v3124
  %v3184 = vpack.c.b16 %v3127, %v3126
  %v3185 = vpack.c.b16 %v3129, %v3128
  %v3186 = vpack.c.b16 %v3131, %v3130
  %v3187 = vpack.c.b16 %v3133, %v3132
  %v3188 = vpack.c.b16 %v3135, %v3134
  %v3189 = vpack.c.b16 %v3137, %v3136
  %v3190 = vpack.c.b16 %v3139, %v3138
  %v3191 = vpack.c.b16 %v3141, %v3140
  %v3192 = vpack.c.b16 %v3143, %v3142
  %v3193 = vpack.c.b16 %v3145, %v3144
  %v3194 = vpack.c.b16 %v3147, %v3146
  %v3195 = vpack.c.b16 %v3149, %v3148
  %v3196 = vpack.c.b16 %v3151, %v3150
  %v3197 = vpack.c.b16 %v3153, %v3152
  %v3198 = vpack.c.b16 %v3155, %v3154
  %v3199 = vpack.c.b16 %v3157, %v3156
  %v3200 = vpack.c.b16 %v3159, %v3158
  %v3201 = vpack.c.b16 %v3161, %v3160
  %v3202 = vpack.c.b16 %v3163, %v3162
  %v3203 = vpack.c.b16 %v3165, %v3164
  %v3204 = vpack.c.b16 %v3167, %v3166
  %v3205 = vpack.c.b16 %v3169, %v3168
  %v3243 = vsel %vm2104, %v3012, 0
  %v3246 = vsel %vm2104, %v3017, 0
  %3248 = vmatprep.subr.bf16.mxu0 0
  %3249 = vmatpush1.bf16.msra.mxu0 %v3177
  %3250 = vmatprep.subr.bf16.mxu0 0
  %3251 = vmatpush1.bf16.msra.mxu0 %v3176
  %3252 = vmatprep.subr.bf16.mxu0 0
  %3253 = vmatpush1.bf16.msra.mxu0 %v3175
  %3254 = vmatprep.subr.bf16.mxu0 0
  %3255 = vmatpush1.bf16.msra.mxu0 %v3174
  %3256 = vmatprep.subr.bf16.mxu0 0
  %3257 = vmatpush1.bf16.msra.mxu0 %v3173
  %3258 = vmatprep.subr.bf16.mxu0 0
  %3259 = vmatpush1.bf16.msra.mxu0 %v3172
  %3260 = vmatprep.subr.bf16.mxu0 0
  %3261 = vmatpush1.bf16.msra.mxu0 %v3171
  %3262 = vmatprep.subr.bf16.mxu0 0
  %3263 = vmatpush1.bf16.msra.mxu0 %v3170
  %3264 = vmatprep.subr.bf16.mxu0 0
  %3265 = vmatpush2.bf16.msra.mxu0 %v3185
  %3266 = vmatprep.subr.bf16.mxu0 0
  %3267 = vmatpush2.bf16.msra.mxu0 %v3184
  %3268 = vmatprep.subr.bf16.mxu0 0
  %3269 = vmatpush2.bf16.msra.mxu0 %v3183
  %3270 = vmatprep.subr.bf16.mxu0 0
  %3271 = vmatpush2.bf16.msra.mxu0 %v3182
  %3272 = vmatprep.subr.bf16.mxu0 0
  %3273 = vmatpush2.bf16.msra.mxu0 %v3181
  %3274 = vmatprep.subr.bf16.mxu0 0
  %3275 = vmatpush2.bf16.msra.mxu0 %v3180
  %3276 = vmatprep.subr.bf16.mxu0 0
  %3277 = vmatpush2.bf16.msra.mxu0 %v3179
  %3278 = vmatprep.subr.bf16.mxu0 0
  %3279 = vmatpush2.bf16.msra.mxu0 %v3178
  %3280 = vmatprep.mubr.bf16.mxu0 %v3009
  %3281 = vmatmul.mubr.bf16.gmra.mxu0 %v3008
  %v3282 = vpop.f32.mrf.mxu0
  %v3283 = vadd.f32 %v2974, %v3282
  %v3284 = vpop.f32.mrf.mxu0
  %v3285 = vpop.f32.mrf.mxu0
  %v3286 = vadd.f32 %v2974, %v3285
  %v3287 = vpop.f32.mrf.mxu0
  %3288 = vmatprep.mubr.bf16.mxu0 %v3014
  %3289 = vmatmul.mubr.bf16.gmra.mxu0 %v3013
  %v3290 = vpop.f32.mrf.mxu0
  %v3291 = vadd.f32 %v2974, %v3290
  %v3292 = vpop.f32.mrf.mxu0
  %v3293 = vpop.f32.mrf.mxu0
  %v3294 = vadd.f32 %v2974, %v3293
  %v3295 = vpop.f32.mrf.mxu0
  %3296 = vdwg.mxu0
  %3297 = vmatprep.subr.bf16.mxu0 0
  %3298 = vmatpush1.bf16.msra.mxu0 %v3193
  %3299 = vmatprep.subr.bf16.mxu0 0
  %3300 = vmatpush1.bf16.msra.mxu0 %v3192
  %3301 = vmatprep.subr.bf16.mxu0 0
  %3302 = vmatpush1.bf16.msra.mxu0 %v3191
  %3303 = vmatprep.subr.bf16.mxu0 0
  %3304 = vmatpush1.bf16.msra.mxu0 %v3190
  %3305 = vmatprep.subr.bf16.mxu0 0
  %3306 = vmatpush1.bf16.msra.mxu0 %v3189
  %3307 = vmatprep.subr.bf16.mxu0 0
  %3308 = vmatpush1.bf16.msra.mxu0 %v3188
  %3309 = vmatprep.subr.bf16.mxu0 0
  %3310 = vmatpush1.bf16.msra.mxu0 %v3187
  %3311 = vmatprep.subr.bf16.mxu0 0
  %3312 = vmatpush1.bf16.msra.mxu0 %v3186
  %3313 = vmatprep.subr.bf16.mxu0 0
  %3314 = vmatpush2.bf16.msra.mxu0 %v3201
  %3315 = vmatprep.subr.bf16.mxu0 0
  %3316 = vmatpush2.bf16.msra.mxu0 %v3200
  %3317 = vmatprep.subr.bf16.mxu0 0
  %3318 = vmatpush2.bf16.msra.mxu0 %v3199
  %3319 = vmatprep.subr.bf16.mxu0 0
  %3320 = vmatpush2.bf16.msra.mxu0 %v3198
  %3321 = vmatprep.subr.bf16.mxu0 0
  %3322 = vmatpush2.bf16.msra.mxu0 %v3197
  %3323 = vmatprep.subr.bf16.mxu0 0
  %3324 = vmatpush2.bf16.msra.mxu0 %v3196
  %3325 = vmatprep.subr.bf16.mxu0 0
  %3326 = vmatpush2.bf16.msra.mxu0 %v3195
  %3327 = vmatprep.subr.bf16.mxu0 0
  %3328 = vmatpush2.bf16.msra.mxu0 %v3194
  %3329 = vmatprep.mubr.bf16.mxu0 %v3011
  %3330 = vmatmul.mubr.bf16.gmra.mxu0 %v3010
  %v3331 = vpop.f32.mrf.mxu0
  %v3332 = vadd.f32 %v3283, %v3331
  %v3333 = vpop.f32.mrf.mxu0
  %v3334 = vpop.f32.mrf.mxu0
  %v3335 = vadd.f32 %v3286, %v3334
  %v3336 = vpop.f32.mrf.mxu0
  %3337 = vmatprep.mubr.bf16.mxu0 %v3016
  %3338 = vmatmul.mubr.bf16.gmra.mxu0 %v3015
  %v3339 = vpop.f32.mrf.mxu0
  %v3340 = vadd.f32 %v3291, %v3339
  %v3341 = vpop.f32.mrf.mxu0
  %v3342 = vpop.f32.mrf.mxu0
  %v3343 = vadd.f32 %v3294, %v3342
  %v3344 = vpop.f32.mrf.mxu0
  %3345 = vdwg.mxu0
  %3346 = vmatprep.subr.bf16.mxu0 0
  %3347 = vmatpush1.bf16.msra.mxu0 0
  %3348 = vmatprep.subr.bf16.mxu0 0
  %3349 = vmatpush1.bf16.msra.mxu0 0
  %3350 = vmatprep.subr.bf16.mxu0 0
  %3351 = vmatpush1.bf16.msra.mxu0 0
  %3352 = vmatprep.subr.bf16.mxu0 0
  %3353 = vmatpush1.bf16.msra.mxu0 0
  %3354 = vmatprep.subr.bf16.mxu0 0
  %3355 = vmatpush1.bf16.msra.mxu0 %v3205
  %3356 = vmatprep.subr.bf16.mxu0 0
  %3357 = vmatpush1.bf16.msra.mxu0 %v3204
  %3358 = vmatprep.subr.bf16.mxu0 0
  %3359 = vmatpush1.bf16.msra.mxu0 %v3203
  %3360 = vmatprep.subr.bf16.mxu0 0
  %3361 = vmatpush1.bf16.msra.mxu0 %v3202
  %3362 = vmatprep.subr.bf16.mxu0 0
  %3363 = vmatpush2.bf16.msra.mxu0 0
  %3364 = vmatprep.subr.bf16.mxu0 0
  %3365 = vmatpush2.bf16.msra.mxu0 0
  %3366 = vmatprep.subr.bf16.mxu0 0
  %3367 = vmatpush2.bf16.msra.mxu0 0
  %3368 = vmatprep.subr.bf16.mxu0 0
  %3369 = vmatpush2.bf16.msra.mxu0 0
  %3370 = vmatprep.subr.bf16.mxu0 0
  %3371 = vmatpush2.bf16.msra.mxu0 0
  %3372 = vmatprep.subr.bf16.mxu0 0
  %3373 = vmatpush2.bf16.msra.mxu0 0
  %3374 = vmatprep.subr.bf16.mxu0 0
  %3375 = vmatpush2.bf16.msra.mxu0 0
  %3376 = vmatprep.subr.bf16.mxu0 0
  %3377 = vmatpush2.bf16.msra.mxu0 0
  %3378 = vmatprep.mubr.bf16.mxu0 0
  %3379 = vmatmul.mubr.bf16.gmra.mxu0 %v3243
  %v3380 = vpop.f32.mrf.mxu0
  %v3381 = vadd.f32 %v3332, %v3380
  %v3382 = vpop.f32.mrf.mxu0
  %v3383 = vpop.f32.mrf.mxu0
  %v3384 = vadd.f32 %v3335, %v3383
  %v3385 = vpop.f32.mrf.mxu0
  %3386 = vmatprep.mubr.bf16.mxu0 0
  %3387 = vmatmul.mubr.bf16.gmra.mxu0 %v3246
  %v3388 = vpop.f32.mrf.mxu0
  %v3389 = vadd.f32 %v3340, %v3388
  %v3390 = vpop.f32.mrf.mxu0
  %v3391 = vpop.f32.mrf.mxu0
  %v3392 = vadd.f32 %v3343, %v3391
  %v3393 = vpop.f32.mrf.mxu0
  %3394 = vdwg.mxu0
  %v3395 = vmax.f32 %v3381, 0.0
  %v3396 = vmax.f32 %v3384, 0.0
  %v3397 = vmax.f32 %v3389, 0.0
  %v3398 = vmax.f32 %v3392, 0.0
  %v3399 = vpack.c.bf16 %v3396, %v3395
  %v3400 = vpack.c.bf16 %v3398, %v3397
  %v3402 = vunpack.c.l.b16 %v3399
  %v3403 = vunpack.c.h.b16 %v3399
  %v3404 = vpack.c.b16 %v3402, %v3402
  %v3405 = vpack.c.b16 %v3403, %v3403
  %3408 = vst.msk [vmem:[#allocation6] sm:$0xf] %vm2026, %v3404
  %3409 = vst.msk [vmem:[#allocation6 + $0x4] sm:$0xf] %vm2026, %v3405
  %v3411 = vunpack.c.l.b16 %v3400
  %v3412 = vunpack.c.h.b16 %v3400
  %v3413 = vpack.c.b16 %v3411, %v3411
  %v3414 = vpack.c.b16 %v3412, %v3412
  %s3417 = scalar_lea.vmem [#allocation6], 8
  %3418 = vst.msk [vmem:[%s3417] sm:$0xf] %vm2026, %v3413
  %3419 = vst.msk [vmem:[%s3417 + $0x4] sm:$0xf] %vm2026, %v3414
  %v3420 = vld [vmem:[%s9] sm:$0xf]
  %v3422 = vlaneseq
  %v3423 = vshrl.u32 %v3422, 7
  %v3424 = vsub.s32 0, %v3423
  %v3425 = vrot.slane %v3420, %v3424
  %v3426 = vlaneseq
  %v3427 = vshrl.u32 %v3426, 7
  %v3428 = vsub.s32 1, %v3427
  %v3429 = vrot.slane %v3420, %v3428
  %v3430 = vlaneseq
  %v3431 = vshrl.u32 %v3430, 7
  %v3432 = vsub.s32 2, %v3431
  %v3433 = vrot.slane %v3420, %v3432
  %v3434 = vlaneseq
  %v3435 = vshrl.u32 %v3434, 7
  %v3436 = vsub.s32 3, %v3435
  %v3437 = vrot.slane %v3420, %v3436
  %v3442 = vld [vmem:[#allocation6] sm:$0x1]
  %v3443 = vld [vmem:[#allocation6 + $0x8] sm:$0x1]
  %v3444 = vld [vmem:[%s8] sm:$0xff]
  %v3445 = vld [vmem:[%s8 + $0x8] sm:$0xff]
  %v3446 = vld [vmem:[%s8 + $0x10] sm:$0xff]
  %v3447 = vld [vmem:[%s8 + $0x18] sm:$0xff]
  %v3448 = vld [vmem:[%s8 + $0x20] sm:$0xff]
  %v3449 = vld [vmem:[%s8 + $0x28] sm:$0xff]
  %v3450 = vld [vmem:[%s8 + $0x30] sm:$0xff]
  %v3451 = vld [vmem:[%s8 + $0x38] sm:$0xff]
  %v3452 = vld [vmem:[%s8 + $0x40] sm:$0xff]
  %v3453 = vld [vmem:[%s8 + $0x48] sm:$0xff]
  %v3454 = vld [vmem:[%s8 + $0x50] sm:$0xff]
  %v3455 = vld [vmem:[%s8 + $0x58] sm:$0xff]
  %v3456 = vld [vmem:[%s8 + $0x60] sm:$0xff]
  %v3457 = vld [vmem:[%s8 + $0x68] sm:$0xff]
  %v3458 = vld [vmem:[%s8 + $0x70] sm:$0xff]
  %v3459 = vld [vmem:[%s8 + $0x78] sm:$0xff]
  %v3462 = vunpack.c.l.b16 %v3442
  %v3463 = vunpack.c.l.b16 %v3443
  %v3464 = vpack.c.b16 %v3462, %v3462
  %v3465 = vpack.c.b16 %v3463, %v3463
  %v3466 = vunpack.c.l.b16 %v3464
  %v3467 = vunpack.c.l.b16 %v3465
  %v3468 = vrot.slane %v3467, 7
  %vm3469 = vcmask 1041409
  %v3470 = vsel %vm3469, %v3468, %v3466
  %v3471 = vpack.c.b16 %v3470, %v3470
  %v3488 = vunpack.c.l.b16 %v3444
  %v3489 = vunpack.c.h.b16 %v3444
  %v3490 = vunpack.c.l.b16 %v3445
  %v3491 = vunpack.c.h.b16 %v3445
  %v3492 = vunpack.c.l.b16 %v3446
  %v3493 = vunpack.c.h.b16 %v3446
  %v3494 = vunpack.c.l.b16 %v3447
  %v3495 = vunpack.c.h.b16 %v3447
  %v3496 = vunpack.c.l.b16 %v3448
  %v3497 = vunpack.c.h.b16 %v3448
  %v3498 = vunpack.c.l.b16 %v3449
  %v3499 = vunpack.c.h.b16 %v3449
  %v3500 = vunpack.c.l.b16 %v3450
  %v3501 = vunpack.c.h.b16 %v3450
  %v3502 = vunpack.c.l.b16 %v3451
  %v3503 = vunpack.c.h.b16 %v3451
  %v3504 = vunpack.c.l.b16 %v3452
  %v3505 = vunpack.c.h.b16 %v3452
  %v3506 = vunpack.c.l.b16 %v3453
  %v3507 = vunpack.c.h.b16 %v3453
  %v3508 = vunpack.c.l.b16 %v3454
  %v3509 = vunpack.c.h.b16 %v3454
  %v3510 = vunpack.c.l.b16 %v3455
  %v3511 = vunpack.c.h.b16 %v3455
  %v3512 = vunpack.c.l.b16 %v3456
  %v3513 = vunpack.c.h.b16 %v3456
  %v3514 = vunpack.c.l.b16 %v3457
  %v3515 = vunpack.c.h.b16 %v3457
  %v3516 = vunpack.c.l.b16 %v3458
  %v3517 = vunpack.c.h.b16 %v3458
  %v3518 = vunpack.c.l.b16 %v3459
  %v3519 = vunpack.c.h.b16 %v3459
  %v3520 = vpack.c.b16 %v3492, %v3488
  %v3521 = vpack.c.b16 %v3493, %v3489
  %v3522 = vpack.c.b16 %v3494, %v3490
  %v3523 = vpack.c.b16 %v3495, %v3491
  %v3524 = vpack.c.b16 %v3500, %v3496
  %v3525 = vpack.c.b16 %v3501, %v3497
  %v3526 = vpack.c.b16 %v3502, %v3498
  %v3527 = vpack.c.b16 %v3503, %v3499
  %v3528 = vpack.c.b16 %v3508, %v3504
  %v3529 = vpack.c.b16 %v3509, %v3505
  %v3530 = vpack.c.b16 %v3510, %v3506
  %v3531 = vpack.c.b16 %v3511, %v3507
  %v3532 = vpack.c.b16 %v3516, %v3512
  %v3533 = vpack.c.b16 %v3517, %v3513
  %v3534 = vpack.c.b16 %v3518, %v3514
  %v3535 = vpack.c.b16 %v3519, %v3515
  %v3553 = vsel %vm2104, %v3471, 0
  %3555 = vmatprep.subr.bf16.mxu0 0
  %3556 = vmatpush1.bf16.msra.mxu0 0
  %3557 = vmatprep.subr.bf16.mxu0 0
  %3558 = vmatpush1.bf16.msra.mxu0 0
  %3559 = vmatprep.subr.bf16.mxu0 0
  %3560 = vmatpush1.bf16.msra.mxu0 0
  %3561 = vmatprep.subr.bf16.mxu0 0
  %3562 = vmatpush1.bf16.msra.mxu0 0
  %3563 = vmatprep.subr.bf16.mxu0 %v3533
  %3564 = vmatpush1.bf16.msra.mxu0 %v3532
  %3565 = vmatprep.subr.bf16.mxu0 %v3529
  %3566 = vmatpush1.bf16.msra.mxu0 %v3528
  %3567 = vmatprep.subr.bf16.mxu0 %v3525
  %3568 = vmatpush1.bf16.msra.mxu0 %v3524
  %3569 = vmatprep.subr.bf16.mxu0 %v3521
  %3570 = vmatpush1.bf16.msra.mxu0 %v3520
  %3571 = vmatprep.subr.bf16.mxu0 0
  %3572 = vmatpush2.bf16.msra.mxu0 0
  %3573 = vmatprep.subr.bf16.mxu0 0
  %3574 = vmatpush2.bf16.msra.mxu0 0
  %3575 = vmatprep.subr.bf16.mxu0 0
  %3576 = vmatpush2.bf16.msra.mxu0 0
  %3577 = vmatprep.subr.bf16.mxu0 0
  %3578 = vmatpush2.bf16.msra.mxu0 0
  %3579 = vmatprep.subr.bf16.mxu0 0
  %3580 = vmatpush2.bf16.msra.mxu0 0
  %3581 = vmatprep.subr.bf16.mxu0 0
  %3582 = vmatpush2.bf16.msra.mxu0 0
  %3583 = vmatprep.subr.bf16.mxu0 0
  %3584 = vmatpush2.bf16.msra.mxu0 0
  %3585 = vmatprep.subr.bf16.mxu0 0
  %3586 = vmatpush2.bf16.msra.mxu0 0
  %3587 = vmatprep.mubr.bf16.mxu0 0
  %3588 = vmatmul.mubr.bf16.gmra.mxu0 %v3553
  %v3589 = vpop.f32.mrf.mxu0
  %v3590 = vadd.f32 0.0, %v3589
  %v3591 = vpop.f32.mrf.mxu0
  %v3592 = vadd.f32 0.0, %v3591
  %v3593 = vpop.f32.mrf.mxu0
  %v3594 = vpop.f32.mrf.mxu0
  %3595 = vdwg.mxu0
  %3596 = vmatprep.subr.bf16.mxu0 0
  %3597 = vmatpush1.bf16.msra.mxu0 0
  %3598 = vmatprep.subr.bf16.mxu0 0
  %3599 = vmatpush1.bf16.msra.mxu0 0
  %3600 = vmatprep.subr.bf16.mxu0 0
  %3601 = vmatpush1.bf16.msra.mxu0 0
  %3602 = vmatprep.subr.bf16.mxu0 0
  %3603 = vmatpush1.bf16.msra.mxu0 0
  %3604 = vmatprep.subr.bf16.mxu0 %v3535
  %3605 = vmatpush1.bf16.msra.mxu0 %v3534
  %3606 = vmatprep.subr.bf16.mxu0 %v3531
  %3607 = vmatpush1.bf16.msra.mxu0 %v3530
  %3608 = vmatprep.subr.bf16.mxu0 %v3527
  %3609 = vmatpush1.bf16.msra.mxu0 %v3526
  %3610 = vmatprep.subr.bf16.mxu0 %v3523
  %3611 = vmatpush1.bf16.msra.mxu0 %v3522
  %3612 = vmatprep.subr.bf16.mxu0 0
  %3613 = vmatpush2.bf16.msra.mxu0 0
  %3614 = vmatprep.subr.bf16.mxu0 0
  %3615 = vmatpush2.bf16.msra.mxu0 0
  %3616 = vmatprep.subr.bf16.mxu0 0
  %3617 = vmatpush2.bf16.msra.mxu0 0
  %3618 = vmatprep.subr.bf16.mxu0 0
  %3619 = vmatpush2.bf16.msra.mxu0 0
  %3620 = vmatprep.subr.bf16.mxu0 0
  %3621 = vmatpush2.bf16.msra.mxu0 0
  %3622 = vmatprep.subr.bf16.mxu0 0
  %3623 = vmatpush2.bf16.msra.mxu0 0
  %3624 = vmatprep.subr.bf16.mxu0 0
  %3625 = vmatpush2.bf16.msra.mxu0 0
  %3626 = vmatprep.subr.bf16.mxu0 0
  %3627 = vmatpush2.bf16.msra.mxu0 0
  %3628 = vmatprep.mubr.bf16.mxu0 0
  %3629 = vmatmul.mubr.bf16.gmra.mxu0 %v3553
  %v3630 = vpop.f32.mrf.mxu0
  %v3631 = vadd.f32 0.0, %v3630
  %v3632 = vpop.f32.mrf.mxu0
  %v3633 = vadd.f32 0.0, %v3632
  %v3634 = vpop.f32.mrf.mxu0
  %v3635 = vpop.f32.mrf.mxu0
  %3636 = vdwg.mxu0
  %v3637 = vadd.f32 %v3425, %v3590
  %v3638 = vadd.f32 %v3429, %v3592
  %v3639 = vadd.f32 %v3433, %v3631
  %v3640 = vadd.f32 %v3437, %v3633
  %v3641 = vld [vmem:[%s8 + $0x80] sm:$0xff]
  %v3642 = vld [vmem:[%s8 + $0x88] sm:$0xff]
  %v3643 = vld [vmem:[%s8 + $0x90] sm:$0xff]
  %v3644 = vld [vmem:[%s8 + $0x98] sm:$0xff]
  %v3645 = vld [vmem:[%s8 + $0xa0] sm:$0xff]
  %v3646 = vld [vmem:[%s8 + $0xa8] sm:$0xff]
  %v3647 = vld [vmem:[%s8 + $0xb0] sm:$0xff]
  %v3648 = vld [vmem:[%s8 + $0xb8] sm:$0xff]
  %v3649 = vld [vmem:[%s8 + $0xc0] sm:$0xff]
  %v3650 = vld [vmem:[%s8 + $0xc8] sm:$0xff]
  %v3651 = vld [vmem:[%s8 + $0xd0] sm:$0xff]
  %v3652 = vld [vmem:[%s8 + $0xd8] sm:$0xff]
  %v3653 = vld [vmem:[%s8 + $0xe0] sm:$0xff]
  %v3654 = vld [vmem:[%s8 + $0xe8] sm:$0xff]
  %v3655 = vld [vmem:[%s8 + $0xf0] sm:$0xff]
  %v3656 = vld [vmem:[%s8 + $0xf8] sm:$0xff]
  %v3657 = vrot.slane %v3466, 1
  %v3658 = vsel %vm3469, %v3467, %v3657
  %v3659 = vpack.c.b16 %v3658, %v3658
  %v3676 = vunpack.c.l.b16 %v3641
  %v3677 = vunpack.c.h.b16 %v3641
  %v3678 = vunpack.c.l.b16 %v3642
  %v3679 = vunpack.c.h.b16 %v3642
  %v3680 = vunpack.c.l.b16 %v3643
  %v3681 = vunpack.c.h.b16 %v3643
  %v3682 = vunpack.c.l.b16 %v3644
  %v3683 = vunpack.c.h.b16 %v3644
  %v3684 = vunpack.c.l.b16 %v3645
  %v3685 = vunpack.c.h.b16 %v3645
  %v3686 = vunpack.c.l.b16 %v3646
  %v3687 = vunpack.c.h.b16 %v3646
  %v3688 = vunpack.c.l.b16 %v3647
  %v3689 = vunpack.c.h.b16 %v3647
  %v3690 = vunpack.c.l.b16 %v3648
  %v3691 = vunpack.c.h.b16 %v3648
  %v3692 = vunpack.c.l.b16 %v3649
  %v3693 = vunpack.c.h.b16 %v3649
  %v3694 = vunpack.c.l.b16 %v3650
  %v3695 = vunpack.c.h.b16 %v3650
  %v3696 = vunpack.c.l.b16 %v3651
  %v3697 = vunpack.c.h.b16 %v3651
  %v3698 = vunpack.c.l.b16 %v3652
  %v3699 = vunpack.c.h.b16 %v3652
  %v3700 = vunpack.c.l.b16 %v3653
  %v3701 = vunpack.c.h.b16 %v3653
  %v3702 = vunpack.c.l.b16 %v3654
  %v3703 = vunpack.c.h.b16 %v3654
  %v3704 = vunpack.c.l.b16 %v3655
  %v3705 = vunpack.c.h.b16 %v3655
  %v3706 = vunpack.c.l.b16 %v3656
  %v3707 = vunpack.c.h.b16 %v3656
  %v3708 = vpack.c.b16 %v3680, %v3676
  %v3709 = vpack.c.b16 %v3681, %v3677
  %v3710 = vpack.c.b16 %v3682, %v3678
  %v3711 = vpack.c.b16 %v3683, %v3679
  %v3712 = vpack.c.b16 %v3688, %v3684
  %v3713 = vpack.c.b16 %v3689, %v3685
  %v3714 = vpack.c.b16 %v3690, %v3686
  %v3715 = vpack.c.b16 %v3691, %v3687
  %v3716 = vpack.c.b16 %v3696, %v3692
  %v3717 = vpack.c.b16 %v3697, %v3693
  %v3718 = vpack.c.b16 %v3698, %v3694
  %v3719 = vpack.c.b16 %v3699, %v3695
  %v3720 = vpack.c.b16 %v3704, %v3700
  %v3721 = vpack.c.b16 %v3705, %v3701
  %v3722 = vpack.c.b16 %v3706, %v3702
  %v3723 = vpack.c.b16 %v3707, %v3703
  %v3741 = vsel %vm2104, %v3659, 0
  %3743 = vmatprep.subr.bf16.mxu0 0
  %3744 = vmatpush1.bf16.msra.mxu0 0
  %3745 = vmatprep.subr.bf16.mxu0 0
  %3746 = vmatpush1.bf16.msra.mxu0 0
  %3747 = vmatprep.subr.bf16.mxu0 0
  %3748 = vmatpush1.bf16.msra.mxu0 0
  %3749 = vmatprep.subr.bf16.mxu0 0
  %3750 = vmatpush1.bf16.msra.mxu0 0
  %3751 = vmatprep.subr.bf16.mxu0 %v3721
  %3752 = vmatpush1.bf16.msra.mxu0 %v3720
  %3753 = vmatprep.subr.bf16.mxu0 %v3717
  %3754 = vmatpush1.bf16.msra.mxu0 %v3716
  %3755 = vmatprep.subr.bf16.mxu0 %v3713
  %3756 = vmatpush1.bf16.msra.mxu0 %v3712
  %3757 = vmatprep.subr.bf16.mxu0 %v3709
  %3758 = vmatpush1.bf16.msra.mxu0 %v3708
  %3759 = vmatprep.subr.bf16.mxu0 0
  %3760 = vmatpush2.bf16.msra.mxu0 0
  %3761 = vmatprep.subr.bf16.mxu0 0
  %3762 = vmatpush2.bf16.msra.mxu0 0
  %3763 = vmatprep.subr.bf16.mxu0 0
  %3764 = vmatpush2.bf16.msra.mxu0 0
  %3765 = vmatprep.subr.bf16.mxu0 0
  %3766 = vmatpush2.bf16.msra.mxu0 0
  %3767 = vmatprep.subr.bf16.mxu0 0
  %3768 = vmatpush2.bf16.msra.mxu0 0
  %3769 = vmatprep.subr.bf16.mxu0 0
  %3770 = vmatpush2.bf16.msra.mxu0 0
  %3771 = vmatprep.subr.bf16.mxu0 0
  %3772 = vmatpush2.bf16.msra.mxu0 0
  %3773 = vmatprep.subr.bf16.mxu0 0
  %3774 = vmatpush2.bf16.msra.mxu0 0
  %3775 = vmatprep.mubr.bf16.mxu0 0
  %3776 = vmatmul.mubr.bf16.gmra.mxu0 %v3741
  %v3777 = vpop.f32.mrf.mxu0
  %v3778 = vadd.f32 0.0, %v3777
  %v3779 = vpop.f32.mrf.mxu0
  %v3780 = vadd.f32 0.0, %v3779
  %v3781 = vpop.f32.mrf.mxu0
  %v3782 = vpop.f32.mrf.mxu0
  %3783 = vdwg.mxu0
  %3784 = vmatprep.subr.bf16.mxu0 0
  %3785 = vmatpush1.bf16.msra.mxu0 0
  %3786 = vmatprep.subr.bf16.mxu0 0
  %3787 = vmatpush1.bf16.msra.mxu0 0
  %3788 = vmatprep.subr.bf16.mxu0 0
  %3789 = vmatpush1.bf16.msra.mxu0 0
  %3790 = vmatprep.subr.bf16.mxu0 0
  %3791 = vmatpush1.bf16.msra.mxu0 0
  %3792 = vmatprep.subr.bf16.mxu0 %v3723
  %3793 = vmatpush1.bf16.msra.mxu0 %v3722
  %3794 = vmatprep.subr.bf16.mxu0 %v3719
  %3795 = vmatpush1.bf16.msra.mxu0 %v3718
  %3796 = vmatprep.subr.bf16.mxu0 %v3715
  %3797 = vmatpush1.bf16.msra.mxu0 %v3714
  %3798 = vmatprep.subr.bf16.mxu0 %v3711
  %3799 = vmatpush1.bf16.msra.mxu0 %v3710
  %3800 = vmatprep.subr.bf16.mxu0 0
  %3801 = vmatpush2.bf16.msra.mxu0 0
  %3802 = vmatprep.subr.bf16.mxu0 0
  %3803 = vmatpush2.bf16.msra.mxu0 0
  %3804 = vmatprep.subr.bf16.mxu0 0
  %3805 = vmatpush2.bf16.msra.mxu0 0
  %3806 = vmatprep.subr.bf16.mxu0 0
  %3807 = vmatpush2.bf16.msra.mxu0 0
  %3808 = vmatprep.subr.bf16.mxu0 0
  %3809 = vmatpush2.bf16.msra.mxu0 0
  %3810 = vmatprep.subr.bf16.mxu0 0
  %3811 = vmatpush2.bf16.msra.mxu0 0
  %3812 = vmatprep.subr.bf16.mxu0 0
  %3813 = vmatpush2.bf16.msra.mxu0 0
  %3814 = vmatprep.subr.bf16.mxu0 0
  %3815 = vmatpush2.bf16.msra.mxu0 0
  %3816 = vmatprep.mubr.bf16.mxu0 0
  %3817 = vmatmul.mubr.bf16.gmra.mxu0 %v3741
  %v3818 = vpop.f32.mrf.mxu0
  %v3819 = vadd.f32 0.0, %v3818
  %v3820 = vpop.f32.mrf.mxu0
  %v3821 = vadd.f32 0.0, %v3820
  %v3822 = vpop.f32.mrf.mxu0
  %v3823 = vpop.f32.mrf.mxu0
  %3824 = vdwg.mxu0
  %v3825 = vadd.f32 %v3637, %v3778
  %v3826 = vadd.f32 %v3638, %v3780
  %v3827 = vadd.f32 %v3639, %v3819
  %v3828 = vadd.f32 %v3640, %v3821
  %v3829 = vld [vmem:[#allocation6] sm:$0x2]
  %v3830 = vld [vmem:[#allocation6 + $0x8] sm:$0x2]
  %v3831 = vld [vmem:[%s8 + $0x100] sm:$0xff]
  %v3832 = vld [vmem:[%s8 + $0x108] sm:$0xff]
  %v3833 = vld [vmem:[%s8 + $0x110] sm:$0xff]
  %v3834 = vld [vmem:[%s8 + $0x118] sm:$0xff]
  %v3835 = vld [vmem:[%s8 + $0x120] sm:$0xff]
  %v3836 = vld [vmem:[%s8 + $0x128] sm:$0xff]
  %v3837 = vld [vmem:[%s8 + $0x130] sm:$0xff]
  %v3838 = vld [vmem:[%s8 + $0x138] sm:$0xff]
  %v3839 = vld [vmem:[%s8 + $0x140] sm:$0xff]
  %v3840 = vld [vmem:[%s8 + $0x148] sm:$0xff]
  %v3841 = vld [vmem:[%s8 + $0x150] sm:$0xff]
  %v3842 = vld [vmem:[%s8 + $0x158] sm:$0xff]
  %v3843 = vld [vmem:[%s8 + $0x160] sm:$0xff]
  %v3844 = vld [vmem:[%s8 + $0x168] sm:$0xff]
  %v3845 = vld [vmem:[%s8 + $0x170] sm:$0xff]
  %v3846 = vld [vmem:[%s8 + $0x178] sm:$0xff]
  %v3849 = vunpack.c.l.b16 %v3829
  %v3850 = vunpack.c.l.b16 %v3830
  %v3851 = vpack.c.b16 %v3849, %v3849
  %v3852 = vpack.c.b16 %v3850, %v3850
  %v3853 = vunpack.c.l.b16 %v3851
  %v3854 = vunpack.c.l.b16 %v3852
  %v3855 = vrot.slane %v3853, 2
  %v3856 = vrot.slane %v3854, 1
  %v3857 = vsel %vm3469, %v3856, %v3855
  %v3858 = vpack.c.b16 %v3857, %v3857
  %v3875 = vunpack.c.l.b16 %v3831
  %v3876 = vunpack.c.h.b16 %v3831
  %v3877 = vunpack.c.l.b16 %v3832
  %v3878 = vunpack.c.h.b16 %v3832
  %v3879 = vunpack.c.l.b16 %v3833
  %v3880 = vunpack.c.h.b16 %v3833
  %v3881 = vunpack.c.l.b16 %v3834
  %v3882 = vunpack.c.h.b16 %v3834
  %v3883 = vunpack.c.l.b16 %v3835
  %v3884 = vunpack.c.h.b16 %v3835
  %v3885 = vunpack.c.l.b16 %v3836
  %v3886 = vunpack.c.h.b16 %v3836
  %v3887 = vunpack.c.l.b16 %v3837
  %v3888 = vunpack.c.h.b16 %v3837
  %v3889 = vunpack.c.l.b16 %v3838
  %v3890 = vunpack.c.h.b16 %v3838
  %v3891 = vunpack.c.l.b16 %v3839
  %v3892 = vunpack.c.h.b16 %v3839
  %v3893 = vunpack.c.l.b16 %v3840
  %v3894 = vunpack.c.h.b16 %v3840
  %v3895 = vunpack.c.l.b16 %v3841
  %v3896 = vunpack.c.h.b16 %v3841
  %v3897 = vunpack.c.l.b16 %v3842
  %v3898 = vunpack.c.h.b16 %v3842
  %v3899 = vunpack.c.l.b16 %v3843
  %v3900 = vunpack.c.h.b16 %v3843
  %v3901 = vunpack.c.l.b16 %v3844
  %v3902 = vunpack.c.h.b16 %v3844
  %v3903 = vunpack.c.l.b16 %v3845
  %v3904 = vunpack.c.h.b16 %v3845
  %v3905 = vunpack.c.l.b16 %v3846
  %v3906 = vunpack.c.h.b16 %v3846
  %v3907 = vpack.c.b16 %v3879, %v3875
  %v3908 = vpack.c.b16 %v3880, %v3876
  %v3909 = vpack.c.b16 %v3881, %v3877
  %v3910 = vpack.c.b16 %v3882, %v3878
  %v3911 = vpack.c.b16 %v3887, %v3883
  %v3912 = vpack.c.b16 %v3888, %v3884
  %v3913 = vpack.c.b16 %v3889, %v3885
  %v3914 = vpack.c.b16 %v3890, %v3886
  %v3915 = vpack.c.b16 %v3895, %v3891
  %v3916 = vpack.c.b16 %v3896, %v3892
  %v3917 = vpack.c.b16 %v3897, %v3893
  %v3918 = vpack.c.b16 %v3898, %v3894
  %v3919 = vpack.c.b16 %v3903, %v3899
  %v3920 = vpack.c.b16 %v3904, %v3900
  %v3921 = vpack.c.b16 %v3905, %v3901
  %v3922 = vpack.c.b16 %v3906, %v3902
  %v3940 = vsel %vm2104, %v3858, 0
  %3942 = vmatprep.subr.bf16.mxu0 0
  %3943 = vmatpush1.bf16.msra.mxu0 0
  %3944 = vmatprep.subr.bf16.mxu0 0
  %3945 = vmatpush1.bf16.msra.mxu0 0
  %3946 = vmatprep.subr.bf16.mxu0 0
  %3947 = vmatpush1.bf16.msra.mxu0 0
  %3948 = vmatprep.subr.bf16.mxu0 0
  %3949 = vmatpush1.bf16.msra.mxu0 0
  %3950 = vmatprep.subr.bf16.mxu0 %v3920
  %3951 = vmatpush1.bf16.msra.mxu0 %v3919
  %3952 = vmatprep.subr.bf16.mxu0 %v3916
  %3953 = vmatpush1.bf16.msra.mxu0 %v3915
  %3954 = vmatprep.subr.bf16.mxu0 %v3912
  %3955 = vmatpush1.bf16.msra.mxu0 %v3911
  %3956 = vmatprep.subr.bf16.mxu0 %v3908
  %3957 = vmatpush1.bf16.msra.mxu0 %v3907
  %3958 = vmatprep.subr.bf16.mxu0 0
  %3959 = vmatpush2.bf16.msra.mxu0 0
  %3960 = vmatprep.subr.bf16.mxu0 0
  %3961 = vmatpush2.bf16.msra.mxu0 0
  %3962 = vmatprep.subr.bf16.mxu0 0
  %3963 = vmatpush2.bf16.msra.mxu0 0
  %3964 = vmatprep.subr.bf16.mxu0 0
  %3965 = vmatpush2.bf16.msra.mxu0 0
  %3966 = vmatprep.subr.bf16.mxu0 0
  %3967 = vmatpush2.bf16.msra.mxu0 0
  %3968 = vmatprep.subr.bf16.mxu0 0
  %3969 = vmatpush2.bf16.msra.mxu0 0
  %3970 = vmatprep.subr.bf16.mxu0 0
  %3971 = vmatpush2.bf16.msra.mxu0 0
  %3972 = vmatprep.subr.bf16.mxu0 0
  %3973 = vmatpush2.bf16.msra.mxu0 0
  %3974 = vmatprep.mubr.bf16.mxu0 0
  %3975 = vmatmul.mubr.bf16.gmra.mxu0 %v3940
  %v3976 = vpop.f32.mrf.mxu0
  %v3977 = vadd.f32 0.0, %v3976
  %v3978 = vpop.f32.mrf.mxu0
  %v3979 = vadd.f32 0.0, %v3978
  %v3980 = vpop.f32.mrf.mxu0
  %v3981 = vpop.f32.mrf.mxu0
  %3982 = vdwg.mxu0
  %3983 = vmatprep.subr.bf16.mxu0 0
  %3984 = vmatpush1.bf16.msra.mxu0 0
  %3985 = vmatprep.subr.bf16.mxu0 0
  %3986 = vmatpush1.bf16.msra.mxu0 0
  %3987 = vmatprep.subr.bf16.mxu0 0
  %3988 = vmatpush1.bf16.msra.mxu0 0
  %3989 = vmatprep.subr.bf16.mxu0 0
  %3990 = vmatpush1.bf16.msra.mxu0 0
  %3991 = vmatprep.subr.bf16.mxu0 %v3922
  %3992 = vmatpush1.bf16.msra.mxu0 %v3921
  %3993 = vmatprep.subr.bf16.mxu0 %v3918
  %3994 = vmatpush1.bf16.msra.mxu0 %v3917
  %3995 = vmatprep.subr.bf16.mxu0 %v3914
  %3996 = vmatpush1.bf16.msra.mxu0 %v3913
  %3997 = vmatprep.subr.bf16.mxu0 %v3910
  %3998 = vmatpush1.bf16.msra.mxu0 %v3909
  %3999 = vmatprep.subr.bf16.mxu0 0
  %4000 = vmatpush2.bf16.msra.mxu0 0
  %4001 = vmatprep.subr.bf16.mxu0 0
  %4002 = vmatpush2.bf16.msra.mxu0 0
  %4003 = vmatprep.subr.bf16.mxu0 0
  %4004 = vmatpush2.bf16.msra.mxu0 0
  %4005 = vmatprep.subr.bf16.mxu0 0
  %4006 = vmatpush2.bf16.msra.mxu0 0
  %4007 = vmatprep.subr.bf16.mxu0 0
  %4008 = vmatpush2.bf16.msra.mxu0 0
  %4009 = vmatprep.subr.bf16.mxu0 0
  %4010 = vmatpush2.bf16.msra.mxu0 0
  %4011 = vmatprep.subr.bf16.mxu0 0
  %4012 = vmatpush2.bf16.msra.mxu0 0
  %4013 = vmatprep.subr.bf16.mxu0 0
  %4014 = vmatpush2.bf16.msra.mxu0 0
  %4015 = vmatprep.mubr.bf16.mxu0 0
  %4016 = vmatmul.mubr.bf16.gmra.mxu0 %v3940
  %v4017 = vpop.f32.mrf.mxu0
  %v4018 = vadd.f32 0.0, %v4017
  %v4019 = vpop.f32.mrf.mxu0
  %v4020 = vadd.f32 0.0, %v4019
  %v4021 = vpop.f32.mrf.mxu0
  %v4022 = vpop.f32.mrf.mxu0
  %4023 = vdwg.mxu0
  %v4024 = vadd.f32 %v3825, %v3977
  %v4025 = vadd.f32 %v3826, %v3979
  %v4026 = vadd.f32 %v3827, %v4018
  %v4027 = vadd.f32 %v3828, %v4020
  %v4028 = vld [vmem:[%s8 + $0x180] sm:$0xff]
  %v4029 = vld [vmem:[%s8 + $0x188] sm:$0xff]
  %v4030 = vld [vmem:[%s8 + $0x190] sm:$0xff]
  %v4031 = vld [vmem:[%s8 + $0x198] sm:$0xff]
  %v4032 = vld [vmem:[%s8 + $0x1a0] sm:$0xff]
  %v4033 = vld [vmem:[%s8 + $0x1a8] sm:$0xff]
  %v4034 = vld [vmem:[%s8 + $0x1b0] sm:$0xff]
  %v4035 = vld [vmem:[%s8 + $0x1b8] sm:$0xff]
  %v4036 = vld [vmem:[%s8 + $0x1c0] sm:$0xff]
  %v4037 = vld [vmem:[%s8 + $0x1c8] sm:$0xff]
  %v4038 = vld [vmem:[%s8 + $0x1d0] sm:$0xff]
  %v4039 = vld [vmem:[%s8 + $0x1d8] sm:$0xff]
  %v4040 = vld [vmem:[%s8 + $0x1e0] sm:$0xff]
  %v4041 = vld [vmem:[%s8 + $0x1e8] sm:$0xff]
  %v4042 = vld [vmem:[%s8 + $0x1f0] sm:$0xff]
  %v4043 = vld [vmem:[%s8 + $0x1f8] sm:$0xff]
  %v4044 = vrot.slane %v3853, 3
  %v4045 = vrot.slane %v3854, 2
  %v4046 = vsel %vm3469, %v4045, %v4044
  %v4047 = vpack.c.b16 %v4046, %v4046
  %v4064 = vunpack.c.l.b16 %v4028
  %v4065 = vunpack.c.h.b16 %v4028
  %v4066 = vunpack.c.l.b16 %v4029
  %v4067 = vunpack.c.h.b16 %v4029
  %v4068 = vunpack.c.l.b16 %v4030
  %v4069 = vunpack.c.h.b16 %v4030
  %v4070 = vunpack.c.l.b16 %v4031
  %v4071 = vunpack.c.h.b16 %v4031
  %v4072 = vunpack.c.l.b16 %v4032
  %v4073 = vunpack.c.h.b16 %v4032
  %v4074 = vunpack.c.l.b16 %v4033
  %v4075 = vunpack.c.h.b16 %v4033
  %v4076 = vunpack.c.l.b16 %v4034
  %v4077 = vunpack.c.h.b16 %v4034
  %v4078 = vunpack.c.l.b16 %v4035
  %v4079 = vunpack.c.h.b16 %v4035
  %v4080 = vunpack.c.l.b16 %v4036
  %v4081 = vunpack.c.h.b16 %v4036
  %v4082 = vunpack.c.l.b16 %v4037
  %v4083 = vunpack.c.h.b16 %v4037
  %v4084 = vunpack.c.l.b16 %v4038
  %v4085 = vunpack.c.h.b16 %v4038
  %v4086 = vunpack.c.l.b16 %v4039
  %v4087 = vunpack.c.h.b16 %v4039
  %v4088 = vunpack.c.l.b16 %v4040
  %v4089 = vunpack.c.h.b16 %v4040
  %v4090 = vunpack.c.l.b16 %v4041
  %v4091 = vunpack.c.h.b16 %v4041
  %v4092 = vunpack.c.l.b16 %v4042
  %v4093 = vunpack.c.h.b16 %v4042
  %v4094 = vunpack.c.l.b16 %v4043
  %v4095 = vunpack.c.h.b16 %v4043
  %v4096 = vpack.c.b16 %v4068, %v4064
  %v4097 = vpack.c.b16 %v4069, %v4065
  %v4098 = vpack.c.b16 %v4070, %v4066
  %v4099 = vpack.c.b16 %v4071, %v4067
  %v4100 = vpack.c.b16 %v4076, %v4072
  %v4101 = vpack.c.b16 %v4077, %v4073
  %v4102 = vpack.c.b16 %v4078, %v4074
  %v4103 = vpack.c.b16 %v4079, %v4075
  %v4104 = vpack.c.b16 %v4084, %v4080
  %v4105 = vpack.c.b16 %v4085, %v4081
  %v4106 = vpack.c.b16 %v4086, %v4082
  %v4107 = vpack.c.b16 %v4087, %v4083
  %v4108 = vpack.c.b16 %v4092, %v4088
  %v4109 = vpack.c.b16 %v4093, %v4089
  %v4110 = vpack.c.b16 %v4094, %v4090
  %v4111 = vpack.c.b16 %v4095, %v4091
  %v4129 = vsel %vm2104, %v4047, 0
  %4131 = vmatprep.subr.bf16.mxu0 0
  %4132 = vmatpush1.bf16.msra.mxu0 0
  %4133 = vmatprep.subr.bf16.mxu0 0
  %4134 = vmatpush1.bf16.msra.mxu0 0
  %4135 = vmatprep.subr.bf16.mxu0 0
  %4136 = vmatpush1.bf16.msra.mxu0 0
  %4137 = vmatprep.subr.bf16.mxu0 0
  %4138 = vmatpush1.bf16.msra.mxu0 0
  %4139 = vmatprep.subr.bf16.mxu0 %v4109
  %4140 = vmatpush1.bf16.msra.mxu0 %v4108
  %4141 = vmatprep.subr.bf16.mxu0 %v4105
  %4142 = vmatpush1.bf16.msra.mxu0 %v4104
  %4143 = vmatprep.subr.bf16.mxu0 %v4101
  %4144 = vmatpush1.bf16.msra.mxu0 %v4100
  %4145 = vmatprep.subr.bf16.mxu0 %v4097
  %4146 = vmatpush1.bf16.msra.mxu0 %v4096
  %4147 = vmatprep.subr.bf16.mxu0 0
  %4148 = vmatpush2.bf16.msra.mxu0 0
  %4149 = vmatprep.subr.bf16.mxu0 0
  %4150 = vmatpush2.bf16.msra.mxu0 0
  %4151 = vmatprep.subr.bf16.mxu0 0
  %4152 = vmatpush2.bf16.msra.mxu0 0
  %4153 = vmatprep.subr.bf16.mxu0 0
  %4154 = vmatpush2.bf16.msra.mxu0 0
  %4155 = vmatprep.subr.bf16.mxu0 0
  %4156 = vmatpush2.bf16.msra.mxu0 0
  %4157 = vmatprep.subr.bf16.mxu0 0
  %4158 = vmatpush2.bf16.msra.mxu0 0
  %4159 = vmatprep.subr.bf16.mxu0 0
  %4160 = vmatpush2.bf16.msra.mxu0 0
  %4161 = vmatprep.subr.bf16.mxu0 0
  %4162 = vmatpush2.bf16.msra.mxu0 0
  %4163 = vmatprep.mubr.bf16.mxu0 0
  %4164 = vmatmul.mubr.bf16.gmra.mxu0 %v4129
  %v4165 = vpop.f32.mrf.mxu0
  %v4166 = vadd.f32 0.0, %v4165
  %v4167 = vpop.f32.mrf.mxu0
  %v4168 = vadd.f32 0.0, %v4167
  %v4169 = vpop.f32.mrf.mxu0
  %v4170 = vpop.f32.mrf.mxu0
  %4171 = vdwg.mxu0
  %4172 = vmatprep.subr.bf16.mxu0 0
  %4173 = vmatpush1.bf16.msra.mxu0 0
  %4174 = vmatprep.subr.bf16.mxu0 0
  %4175 = vmatpush1.bf16.msra.mxu0 0
  %4176 = vmatprep.subr.bf16.mxu0 0
  %4177 = vmatpush1.bf16.msra.mxu0 0
  %4178 = vmatprep.subr.bf16.mxu0 0
  %4179 = vmatpush1.bf16.msra.mxu0 0
  %4180 = vmatprep.subr.bf16.mxu0 %v4111
  %4181 = vmatpush1.bf16.msra.mxu0 %v4110
  %4182 = vmatprep.subr.bf16.mxu0 %v4107
  %4183 = vmatpush1.bf16.msra.mxu0 %v4106
  %4184 = vmatprep.subr.bf16.mxu0 %v4103
  %4185 = vmatpush1.bf16.msra.mxu0 %v4102
  %4186 = vmatprep.subr.bf16.mxu0 %v4099
  %4187 = vmatpush1.bf16.msra.mxu0 %v4098
  %4188 = vmatprep.subr.bf16.mxu0 0
  %4189 = vmatpush2.bf16.msra.mxu0 0
  %4190 = vmatprep.subr.bf16.mxu0 0
  %4191 = vmatpush2.bf16.msra.mxu0 0
  %4192 = vmatprep.subr.bf16.mxu0 0
  %4193 = vmatpush2.bf16.msra.mxu0 0
  %4194 = vmatprep.subr.bf16.mxu0 0
  %4195 = vmatpush2.bf16.msra.mxu0 0
  %4196 = vmatprep.subr.bf16.mxu0 0
  %4197 = vmatpush2.bf16.msra.mxu0 0
  %4198 = vmatprep.subr.bf16.mxu0 0
  %4199 = vmatpush2.bf16.msra.mxu0 0
  %4200 = vmatprep.subr.bf16.mxu0 0
  %4201 = vmatpush2.bf16.msra.mxu0 0
  %4202 = vmatprep.subr.bf16.mxu0 0
  %4203 = vmatpush2.bf16.msra.mxu0 0
  %4204 = vmatprep.mubr.bf16.mxu0 0
  %4205 = vmatmul.mubr.bf16.gmra.mxu0 %v4129
  %v4206 = vpop.f32.mrf.mxu0
  %v4207 = vadd.f32 0.0, %v4206
  %v4208 = vpop.f32.mrf.mxu0
  %v4209 = vadd.f32 0.0, %v4208
  %v4210 = vpop.f32.mrf.mxu0
  %v4211 = vpop.f32.mrf.mxu0
  %4212 = vdwg.mxu0
  %v4213 = vadd.f32 %v4024, %v4166
  %v4214 = vadd.f32 %v4025, %v4168
  %v4215 = vadd.f32 %v4026, %v4207
  %v4216 = vadd.f32 %v4027, %v4209
  %v4217 = vld [vmem:[#allocation6] sm:$0x4]
  %v4218 = vld [vmem:[#allocation6 + $0x8] sm:$0x4]
  %v4219 = vld [vmem:[%s8 + $0x200] sm:$0xff]
  %v4220 = vld [vmem:[%s8 + $0x208] sm:$0xff]
  %v4221 = vld [vmem:[%s8 + $0x210] sm:$0xff]
  %v4222 = vld [vmem:[%s8 + $0x218] sm:$0xff]
  %v4223 = vld [vmem:[%s8 + $0x220] sm:$0xff]
  %v4224 = vld [vmem:[%s8 + $0x228] sm:$0xff]
  %v4225 = vld [vmem:[%s8 + $0x230] sm:$0xff]
  %v4226 = vld [vmem:[%s8 + $0x238] sm:$0xff]
  %v4227 = vld [vmem:[%s8 + $0x240] sm:$0xff]
  %v4228 = vld [vmem:[%s8 + $0x248] sm:$0xff]
  %v4229 = vld [vmem:[%s8 + $0x250] sm:$0xff]
  %v4230 = vld [vmem:[%s8 + $0x258] sm:$0xff]
  %v4231 = vld [vmem:[%s8 + $0x260] sm:$0xff]
  %v4232 = vld [vmem:[%s8 + $0x268] sm:$0xff]
  %v4233 = vld [vmem:[%s8 + $0x270] sm:$0xff]
  %v4234 = vld [vmem:[%s8 + $0x278] sm:$0xff]
  %v4237 = vunpack.c.l.b16 %v4217
  %v4238 = vunpack.c.l.b16 %v4218
  %v4239 = vpack.c.b16 %v4237, %v4237
  %v4240 = vpack.c.b16 %v4238, %v4238
  %v4241 = vunpack.c.l.b16 %v4239
  %v4242 = vunpack.c.l.b16 %v4240
  %v4243 = vrot.slane %v4241, 4
  %v4244 = vrot.slane %v4242, 3
  %v4245 = vsel %vm3469, %v4244, %v4243
  %v4246 = vpack.c.b16 %v4245, %v4245
  %v4263 = vunpack.c.l.b16 %v4219
  %v4264 = vunpack.c.h.b16 %v4219
  %v4265 = vunpack.c.l.b16 %v4220
  %v4266 = vunpack.c.h.b16 %v4220
  %v4267 = vunpack.c.l.b16 %v4221
  %v4268 = vunpack.c.h.b16 %v4221
  %v4269 = vunpack.c.l.b16 %v4222
  %v4270 = vunpack.c.h.b16 %v4222
  %v4271 = vunpack.c.l.b16 %v4223
  %v4272 = vunpack.c.h.b16 %v4223
  %v4273 = vunpack.c.l.b16 %v4224
  %v4274 = vunpack.c.h.b16 %v4224
  %v4275 = vunpack.c.l.b16 %v4225
  %v4276 = vunpack.c.h.b16 %v4225
  %v4277 = vunpack.c.l.b16 %v4226
  %v4278 = vunpack.c.h.b16 %v4226
  %v4279 = vunpack.c.l.b16 %v4227
  %v4280 = vunpack.c.h.b16 %v4227
  %v4281 = vunpack.c.l.b16 %v4228
  %v4282 = vunpack.c.h.b16 %v4228
  %v4283 = vunpack.c.l.b16 %v4229
  %v4284 = vunpack.c.h.b16 %v4229
  %v4285 = vunpack.c.l.b16 %v4230
  %v4286 = vunpack.c.h.b16 %v4230
  %v4287 = vunpack.c.l.b16 %v4231
  %v4288 = vunpack.c.h.b16 %v4231
  %v4289 = vunpack.c.l.b16 %v4232
  %v4290 = vunpack.c.h.b16 %v4232
  %v4291 = vunpack.c.l.b16 %v4233
  %v4292 = vunpack.c.h.b16 %v4233
  %v4293 = vunpack.c.l.b16 %v4234
  %v4294 = vunpack.c.h.b16 %v4234
  %v4295 = vpack.c.b16 %v4267, %v4263
  %v4296 = vpack.c.b16 %v4268, %v4264
  %v4297 = vpack.c.b16 %v4269, %v4265
  %v4298 = vpack.c.b16 %v4270, %v4266
  %v4299 = vpack.c.b16 %v4275, %v4271
  %v4300 = vpack.c.b16 %v4276, %v4272
  %v4301 = vpack.c.b16 %v4277, %v4273
  %v4302 = vpack.c.b16 %v4278, %v4274
  %v4303 = vpack.c.b16 %v4283, %v4279
  %v4304 = vpack.c.b16 %v4284, %v4280
  %v4305 = vpack.c.b16 %v4285, %v4281
  %v4306 = vpack.c.b16 %v4286, %v4282
  %v4307 = vpack.c.b16 %v4291, %v4287
  %v4308 = vpack.c.b16 %v4292, %v4288
  %v4309 = vpack.c.b16 %v4293, %v4289
  %v4310 = vpack.c.b16 %v4294, %v4290
  %v4328 = vsel %vm2104, %v4246, 0
  %4330 = vmatprep.subr.bf16.mxu0 0
  %4331 = vmatpush1.bf16.msra.mxu0 0
  %4332 = vmatprep.subr.bf16.mxu0 0
  %4333 = vmatpush1.bf16.msra.mxu0 0
  %4334 = vmatprep.subr.bf16.mxu0 0
  %4335 = vmatpush1.bf16.msra.mxu0 0
  %4336 = vmatprep.subr.bf16.mxu0 0
  %4337 = vmatpush1.bf16.msra.mxu0 0
  %4338 = vmatprep.subr.bf16.mxu0 %v4308
  %4339 = vmatpush1.bf16.msra.mxu0 %v4307
  %4340 = vmatprep.subr.bf16.mxu0 %v4304
  %4341 = vmatpush1.bf16.msra.mxu0 %v4303
  %4342 = vmatprep.subr.bf16.mxu0 %v4300
  %4343 = vmatpush1.bf16.msra.mxu0 %v4299
  %4344 = vmatprep.subr.bf16.mxu0 %v4296
  %4345 = vmatpush1.bf16.msra.mxu0 %v4295
  %4346 = vmatprep.subr.bf16.mxu0 0
  %4347 = vmatpush2.bf16.msra.mxu0 0
  %4348 = vmatprep.subr.bf16.mxu0 0
  %4349 = vmatpush2.bf16.msra.mxu0 0
  %4350 = vmatprep.subr.bf16.mxu0 0
  %4351 = vmatpush2.bf16.msra.mxu0 0
  %4352 = vmatprep.subr.bf16.mxu0 0
  %4353 = vmatpush2.bf16.msra.mxu0 0
  %4354 = vmatprep.subr.bf16.mxu0 0
  %4355 = vmatpush2.bf16.msra.mxu0 0
  %4356 = vmatprep.subr.bf16.mxu0 0
  %4357 = vmatpush2.bf16.msra.mxu0 0
  %4358 = vmatprep.subr.bf16.mxu0 0
  %4359 = vmatpush2.bf16.msra.mxu0 0
  %4360 = vmatprep.subr.bf16.mxu0 0
  %4361 = vmatpush2.bf16.msra.mxu0 0
  %4362 = vmatprep.mubr.bf16.mxu0 0
  %4363 = vmatmul.mubr.bf16.gmra.mxu0 %v4328
  %v4364 = vpop.f32.mrf.mxu0
  %v4365 = vadd.f32 0.0, %v4364
  %v4366 = vpop.f32.mrf.mxu0
  %v4367 = vadd.f32 0.0, %v4366
  %v4368 = vpop.f32.mrf.mxu0
  %v4369 = vpop.f32.mrf.mxu0
  %4370 = vdwg.mxu0
  %4371 = vmatprep.subr.bf16.mxu0 0
  %4372 = vmatpush1.bf16.msra.mxu0 0
  %4373 = vmatprep.subr.bf16.mxu0 0
  %4374 = vmatpush1.bf16.msra.mxu0 0
  %4375 = vmatprep.subr.bf16.mxu0 0
  %4376 = vmatpush1.bf16.msra.mxu0 0
  %4377 = vmatprep.subr.bf16.mxu0 0
  %4378 = vmatpush1.bf16.msra.mxu0 0
  %4379 = vmatprep.subr.bf16.mxu0 %v4310
  %4380 = vmatpush1.bf16.msra.mxu0 %v4309
  %4381 = vmatprep.subr.bf16.mxu0 %v4306
  %4382 = vmatpush1.bf16.msra.mxu0 %v4305
  %4383 = vmatprep.subr.bf16.mxu0 %v4302
  %4384 = vmatpush1.bf16.msra.mxu0 %v4301
  %4385 = vmatprep.subr.bf16.mxu0 %v4298
  %4386 = vmatpush1.bf16.msra.mxu0 %v4297
  %4387 = vmatprep.subr.bf16.mxu0 0
  %4388 = vmatpush2.bf16.msra.mxu0 0
  %4389 = vmatprep.subr.bf16.mxu0 0
  %4390 = vmatpush2.bf16.msra.mxu0 0
  %4391 = vmatprep.subr.bf16.mxu0 0
  %4392 = vmatpush2.bf16.msra.mxu0 0
  %4393 = vmatprep.subr.bf16.mxu0 0
  %4394 = vmatpush2.bf16.msra.mxu0 0
  %4395 = vmatprep.subr.bf16.mxu0 0
  %4396 = vmatpush2.bf16.msra.mxu0 0
  %4397 = vmatprep.subr.bf16.mxu0 0
  %4398 = vmatpush2.bf16.msra.mxu0 0
  %4399 = vmatprep.subr.bf16.mxu0 0
  %4400 = vmatpush2.bf16.msra.mxu0 0
  %4401 = vmatprep.subr.bf16.mxu0 0
  %4402 = vmatpush2.bf16.msra.mxu0 0
  %4403 = vmatprep.mubr.bf16.mxu0 0
  %4404 = vmatmul.mubr.bf16.gmra.mxu0 %v4328
  %v4405 = vpop.f32.mrf.mxu0
  %v4406 = vadd.f32 0.0, %v4405
  %v4407 = vpop.f32.mrf.mxu0
  %v4408 = vadd.f32 0.0, %v4407
  %v4409 = vpop.f32.mrf.mxu0
  %v4410 = vpop.f32.mrf.mxu0
  %4411 = vdwg.mxu0
  %v4412 = vadd.f32 %v4213, %v4365
  %v4413 = vadd.f32 %v4214, %v4367
  %v4414 = vadd.f32 %v4215, %v4406
  %v4415 = vadd.f32 %v4216, %v4408
  %v4416 = vld [vmem:[%s8 + $0x280] sm:$0xff]
  %v4417 = vld [vmem:[%s8 + $0x288] sm:$0xff]
  %v4418 = vld [vmem:[%s8 + $0x290] sm:$0xff]
  %v4419 = vld [vmem:[%s8 + $0x298] sm:$0xff]
  %v4420 = vld [vmem:[%s8 + $0x2a0] sm:$0xff]
  %v4421 = vld [vmem:[%s8 + $0x2a8] sm:$0xff]
  %v4422 = vld [vmem:[%s8 + $0x2b0] sm:$0xff]
  %v4423 = vld [vmem:[%s8 + $0x2b8] sm:$0xff]
  %v4424 = vld [vmem:[%s8 + $0x2c0] sm:$0xff]
  %v4425 = vld [vmem:[%s8 + $0x2c8] sm:$0xff]
  %v4426 = vld [vmem:[%s8 + $0x2d0] sm:$0xff]
  %v4427 = vld [vmem:[%s8 + $0x2d8] sm:$0xff]
  %v4428 = vld [vmem:[%s8 + $0x2e0] sm:$0xff]
  %v4429 = vld [vmem:[%s8 + $0x2e8] sm:$0xff]
  %v4430 = vld [vmem:[%s8 + $0x2f0] sm:$0xff]
  %v4431 = vld [vmem:[%s8 + $0x2f8] sm:$0xff]
  %v4432 = vrot.slane %v4241, 5
  %v4433 = vrot.slane %v4242, 4
  %v4434 = vsel %vm3469, %v4433, %v4432
  %v4435 = vpack.c.b16 %v4434, %v4434
  %v4452 = vunpack.c.l.b16 %v4416
  %v4453 = vunpack.c.h.b16 %v4416
  %v4454 = vunpack.c.l.b16 %v4417
  %v4455 = vunpack.c.h.b16 %v4417
  %v4456 = vunpack.c.l.b16 %v4418
  %v4457 = vunpack.c.h.b16 %v4418
  %v4458 = vunpack.c.l.b16 %v4419
  %v4459 = vunpack.c.h.b16 %v4419
  %v4460 = vunpack.c.l.b16 %v4420
  %v4461 = vunpack.c.h.b16 %v4420
  %v4462 = vunpack.c.l.b16 %v4421
  %v4463 = vunpack.c.h.b16 %v4421
  %v4464 = vunpack.c.l.b16 %v4422
  %v4465 = vunpack.c.h.b16 %v4422
  %v4466 = vunpack.c.l.b16 %v4423
  %v4467 = vunpack.c.h.b16 %v4423
  %v4468 = vunpack.c.l.b16 %v4424
  %v4469 = vunpack.c.h.b16 %v4424
  %v4470 = vunpack.c.l.b16 %v4425
  %v4471 = vunpack.c.h.b16 %v4425
  %v4472 = vunpack.c.l.b16 %v4426
  %v4473 = vunpack.c.h.b16 %v4426
  %v4474 = vunpack.c.l.b16 %v4427
  %v4475 = vunpack.c.h.b16 %v4427
  %v4476 = vunpack.c.l.b16 %v4428
  %v4477 = vunpack.c.h.b16 %v4428
  %v4478 = vunpack.c.l.b16 %v4429
  %v4479 = vunpack.c.h.b16 %v4429
  %v4480 = vunpack.c.l.b16 %v4430
  %v4481 = vunpack.c.h.b16 %v4430
  %v4482 = vunpack.c.l.b16 %v4431
  %v4483 = vunpack.c.h.b16 %v4431
  %v4484 = vpack.c.b16 %v4456, %v4452
  %v4485 = vpack.c.b16 %v4457, %v4453
  %v4486 = vpack.c.b16 %v4458, %v4454
  %v4487 = vpack.c.b16 %v4459, %v4455
  %v4488 = vpack.c.b16 %v4464, %v4460
  %v4489 = vpack.c.b16 %v4465, %v4461
  %v4490 = vpack.c.b16 %v4466, %v4462
  %v4491 = vpack.c.b16 %v4467, %v4463
  %v4492 = vpack.c.b16 %v4472, %v4468
  %v4493 = vpack.c.b16 %v4473, %v4469
  %v4494 = vpack.c.b16 %v4474, %v4470
  %v4495 = vpack.c.b16 %v4475, %v4471
  %v4496 = vpack.c.b16 %v4480, %v4476
  %v4497 = vpack.c.b16 %v4481, %v4477
  %v4498 = vpack.c.b16 %v4482, %v4478
  %v4499 = vpack.c.b16 %v4483, %v4479
  %v4517 = vsel %vm2104, %v4435, 0
  %4519 = vmatprep.subr.bf16.mxu0 0
  %4520 = vmatpush1.bf16.msra.mxu0 0
  %4521 = vmatprep.subr.bf16.mxu0 0
  %4522 = vmatpush1.bf16.msra.mxu0 0
  %4523 = vmatprep.subr.bf16.mxu0 0
  %4524 = vmatpush1.bf16.msra.mxu0 0
  %4525 = vmatprep.subr.bf16.mxu0 0
  %4526 = vmatpush1.bf16.msra.mxu0 0
  %4527 = vmatprep.subr.bf16.mxu0 %v4497
  %4528 = vmatpush1.bf16.msra.mxu0 %v4496
  %4529 = vmatprep.subr.bf16.mxu0 %v4493
  %4530 = vmatpush1.bf16.msra.mxu0 %v4492
  %4531 = vmatprep.subr.bf16.mxu0 %v4489
  %4532 = vmatpush1.bf16.msra.mxu0 %v4488
  %4533 = vmatprep.subr.bf16.mxu0 %v4485
  %4534 = vmatpush1.bf16.msra.mxu0 %v4484
  %4535 = vmatprep.subr.bf16.mxu0 0
  %4536 = vmatpush2.bf16.msra.mxu0 0
  %4537 = vmatprep.subr.bf16.mxu0 0
  %4538 = vmatpush2.bf16.msra.mxu0 0
  %4539 = vmatprep.subr.bf16.mxu0 0
  %4540 = vmatpush2.bf16.msra.mxu0 0
  %4541 = vmatprep.subr.bf16.mxu0 0
  %4542 = vmatpush2.bf16.msra.mxu0 0
  %4543 = vmatprep.subr.bf16.mxu0 0
  %4544 = vmatpush2.bf16.msra.mxu0 0
  %4545 = vmatprep.subr.bf16.mxu0 0
  %4546 = vmatpush2.bf16.msra.mxu0 0
  %4547 = vmatprep.subr.bf16.mxu0 0
  %4548 = vmatpush2.bf16.msra.mxu0 0
  %4549 = vmatprep.subr.bf16.mxu0 0
  %4550 = vmatpush2.bf16.msra.mxu0 0
  %4551 = vmatprep.mubr.bf16.mxu0 0
  %4552 = vmatmul.mubr.bf16.gmra.mxu0 %v4517
  %v4553 = vpop.f32.mrf.mxu0
  %v4554 = vadd.f32 0.0, %v4553
  %v4555 = vpop.f32.mrf.mxu0
  %v4556 = vadd.f32 0.0, %v4555
  %v4557 = vpop.f32.mrf.mxu0
  %v4558 = vpop.f32.mrf.mxu0
  %4559 = vdwg.mxu0
  %4560 = vmatprep.subr.bf16.mxu0 0
  %4561 = vmatpush1.bf16.msra.mxu0 0
  %4562 = vmatprep.subr.bf16.mxu0 0
  %4563 = vmatpush1.bf16.msra.mxu0 0
  %4564 = vmatprep.subr.bf16.mxu0 0
  %4565 = vmatpush1.bf16.msra.mxu0 0
  %4566 = vmatprep.subr.bf16.mxu0 0
  %4567 = vmatpush1.bf16.msra.mxu0 0
  %4568 = vmatprep.subr.bf16.mxu0 %v4499
  %4569 = vmatpush1.bf16.msra.mxu0 %v4498
  %4570 = vmatprep.subr.bf16.mxu0 %v4495
  %4571 = vmatpush1.bf16.msra.mxu0 %v4494
  %4572 = vmatprep.subr.bf16.mxu0 %v4491
  %4573 = vmatpush1.bf16.msra.mxu0 %v4490
  %4574 = vmatprep.subr.bf16.mxu0 %v4487
  %4575 = vmatpush1.bf16.msra.mxu0 %v4486
  %4576 = vmatprep.subr.bf16.mxu0 0
  %4577 = vmatpush2.bf16.msra.mxu0 0
  %4578 = vmatprep.subr.bf16.mxu0 0
  %4579 = vmatpush2.bf16.msra.mxu0 0
  %4580 = vmatprep.subr.bf16.mxu0 0
  %4581 = vmatpush2.bf16.msra.mxu0 0
  %4582 = vmatprep.subr.bf16.mxu0 0
  %4583 = vmatpush2.bf16.msra.mxu0 0
  %4584 = vmatprep.subr.bf16.mxu0 0
  %4585 = vmatpush2.bf16.msra.mxu0 0
  %4586 = vmatprep.subr.bf16.mxu0 0
  %4587 = vmatpush2.bf16.msra.mxu0 0
  %4588 = vmatprep.subr.bf16.mxu0 0
  %4589 = vmatpush2.bf16.msra.mxu0 0
  %4590 = vmatprep.subr.bf16.mxu0 0
  %4591 = vmatpush2.bf16.msra.mxu0 0
  %4592 = vmatprep.mubr.bf16.mxu0 0
  %4593 = vmatmul.mubr.bf16.gmra.mxu0 %v4517
  %v4594 = vpop.f32.mrf.mxu0
  %v4595 = vadd.f32 0.0, %v4594
  %v4596 = vpop.f32.mrf.mxu0
  %v4597 = vadd.f32 0.0, %v4596
  %v4598 = vpop.f32.mrf.mxu0
  %v4599 = vpop.f32.mrf.mxu0
  %4600 = vdwg.mxu0
  %v4601 = vadd.f32 %v4412, %v4554
  %v4602 = vadd.f32 %v4413, %v4556
  %v4603 = vadd.f32 %v4414, %v4595
  %v4604 = vadd.f32 %v4415, %v4597
  %v4605 = vld [vmem:[#allocation6] sm:$0x8]
  %v4606 = vld [vmem:[#allocation6 + $0x8] sm:$0x8]
  %v4607 = vld [vmem:[%s8 + $0x300] sm:$0xff]
  %v4608 = vld [vmem:[%s8 + $0x308] sm:$0xff]
  %v4609 = vld [vmem:[%s8 + $0x310] sm:$0xff]
  %v4610 = vld [vmem:[%s8 + $0x318] sm:$0xff]
  %v4611 = vld [vmem:[%s8 + $0x320] sm:$0xff]
  %v4612 = vld [vmem:[%s8 + $0x328] sm:$0xff]
  %v4613 = vld [vmem:[%s8 + $0x330] sm:$0xff]
  %v4614 = vld [vmem:[%s8 + $0x338] sm:$0xff]
  %v4615 = vld [vmem:[%s8 + $0x340] sm:$0xff]
  %v4616 = vld [vmem:[%s8 + $0x348] sm:$0xff]
  %v4617 = vld [vmem:[%s8 + $0x350] sm:$0xff]
  %v4618 = vld [vmem:[%s8 + $0x358] sm:$0xff]
  %v4619 = vld [vmem:[%s8 + $0x360] sm:$0xff]
  %v4620 = vld [vmem:[%s8 + $0x368] sm:$0xff]
  %v4621 = vld [vmem:[%s8 + $0x370] sm:$0xff]
  %v4622 = vld [vmem:[%s8 + $0x378] sm:$0xff]
  %v4625 = vunpack.c.l.b16 %v4605
  %v4626 = vunpack.c.l.b16 %v4606
  %v4627 = vpack.c.b16 %v4625, %v4625
  %v4628 = vpack.c.b16 %v4626, %v4626
  %v4629 = vunpack.c.l.b16 %v4627
  %v4630 = vunpack.c.l.b16 %v4628
  %v4631 = vrot.slane %v4629, 6
  %v4632 = vrot.slane %v4630, 5
  %v4633 = vsel %vm3469, %v4632, %v4631
  %v4634 = vpack.c.b16 %v4633, %v4633
  %v4651 = vunpack.c.l.b16 %v4607
  %v4652 = vunpack.c.h.b16 %v4607
  %v4653 = vunpack.c.l.b16 %v4608
  %v4654 = vunpack.c.h.b16 %v4608
  %v4655 = vunpack.c.l.b16 %v4609
  %v4656 = vunpack.c.h.b16 %v4609
  %v4657 = vunpack.c.l.b16 %v4610
  %v4658 = vunpack.c.h.b16 %v4610
  %v4659 = vunpack.c.l.b16 %v4611
  %v4660 = vunpack.c.h.b16 %v4611
  %v4661 = vunpack.c.l.b16 %v4612
  %v4662 = vunpack.c.h.b16 %v4612
  %v4663 = vunpack.c.l.b16 %v4613
  %v4664 = vunpack.c.h.b16 %v4613
  %v4665 = vunpack.c.l.b16 %v4614
  %v4666 = vunpack.c.h.b16 %v4614
  %v4667 = vunpack.c.l.b16 %v4615
  %v4668 = vunpack.c.h.b16 %v4615
  %v4669 = vunpack.c.l.b16 %v4616
  %v4670 = vunpack.c.h.b16 %v4616
  %v4671 = vunpack.c.l.b16 %v4617
  %v4672 = vunpack.c.h.b16 %v4617
  %v4673 = vunpack.c.l.b16 %v4618
  %v4674 = vunpack.c.h.b16 %v4618
  %v4675 = vunpack.c.l.b16 %v4619
  %v4676 = vunpack.c.h.b16 %v4619
  %v4677 = vunpack.c.l.b16 %v4620
  %v4678 = vunpack.c.h.b16 %v4620
  %v4679 = vunpack.c.l.b16 %v4621
  %v4680 = vunpack.c.h.b16 %v4621
  %v4681 = vunpack.c.l.b16 %v4622
  %v4682 = vunpack.c.h.b16 %v4622
  %v4683 = vpack.c.b16 %v4655, %v4651
  %v4684 = vpack.c.b16 %v4656, %v4652
  %v4685 = vpack.c.b16 %v4657, %v4653
  %v4686 = vpack.c.b16 %v4658, %v4654
  %v4687 = vpack.c.b16 %v4663, %v4659
  %v4688 = vpack.c.b16 %v4664, %v4660
  %v4689 = vpack.c.b16 %v4665, %v4661
  %v4690 = vpack.c.b16 %v4666, %v4662
  %v4691 = vpack.c.b16 %v4671, %v4667
  %v4692 = vpack.c.b16 %v4672, %v4668
  %v4693 = vpack.c.b16 %v4673, %v4669
  %v4694 = vpack.c.b16 %v4674, %v4670
  %v4695 = vpack.c.b16 %v4679, %v4675
  %v4696 = vpack.c.b16 %v4680, %v4676
  %v4697 = vpack.c.b16 %v4681, %v4677
  %v4698 = vpack.c.b16 %v4682, %v4678
  %v4716 = vsel %vm2104, %v4634, 0
  %4718 = vmatprep.subr.bf16.mxu0 0
  %4719 = vmatpush1.bf16.msra.mxu0 0
  %4720 = vmatprep.subr.bf16.mxu0 0
  %4721 = vmatpush1.bf16.msra.mxu0 0
  %4722 = vmatprep.subr.bf16.mxu0 0
  %4723 = vmatpush1.bf16.msra.mxu0 0
  %4724 = vmatprep.subr.bf16.mxu0 0
  %4725 = vmatpush1.bf16.msra.mxu0 0
  %4726 = vmatprep.subr.bf16.mxu0 %v4696
  %4727 = vmatpush1.bf16.msra.mxu0 %v4695
  %4728 = vmatprep.subr.bf16.mxu0 %v4692
  %4729 = vmatpush1.bf16.msra.mxu0 %v4691
  %4730 = vmatprep.subr.bf16.mxu0 %v4688
  %4731 = vmatpush1.bf16.msra.mxu0 %v4687
  %4732 = vmatprep.subr.bf16.mxu0 %v4684
  %4733 = vmatpush1.bf16.msra.mxu0 %v4683
  %4734 = vmatprep.subr.bf16.mxu0 0
  %4735 = vmatpush2.bf16.msra.mxu0 0
  %4736 = vmatprep.subr.bf16.mxu0 0
  %4737 = vmatpush2.bf16.msra.mxu0 0
  %4738 = vmatprep.subr.bf16.mxu0 0
  %4739 = vmatpush2.bf16.msra.mxu0 0
  %4740 = vmatprep.subr.bf16.mxu0 0
  %4741 = vmatpush2.bf16.msra.mxu0 0
  %4742 = vmatprep.subr.bf16.mxu0 0
  %4743 = vmatpush2.bf16.msra.mxu0 0
  %4744 = vmatprep.subr.bf16.mxu0 0
  %4745 = vmatpush2.bf16.msra.mxu0 0
  %4746 = vmatprep.subr.bf16.mxu0 0
  %4747 = vmatpush2.bf16.msra.mxu0 0
  %4748 = vmatprep.subr.bf16.mxu0 0
  %4749 = vmatpush2.bf16.msra.mxu0 0
  %4750 = vmatprep.mubr.bf16.mxu0 0
  %4751 = vmatmul.mubr.bf16.gmra.mxu0 %v4716
  %v4752 = vpop.f32.mrf.mxu0
  %v4753 = vadd.f32 0.0, %v4752
  %v4754 = vpop.f32.mrf.mxu0
  %v4755 = vadd.f32 0.0, %v4754
  %v4756 = vpop.f32.mrf.mxu0
  %v4757 = vpop.f32.mrf.mxu0
  %4758 = vdwg.mxu0
  %4759 = vmatprep.subr.bf16.mxu0 0
  %4760 = vmatpush1.bf16.msra.mxu0 0
  %4761 = vmatprep.subr.bf16.mxu0 0
  %4762 = vmatpush1.bf16.msra.mxu0 0
  %4763 = vmatprep.subr.bf16.mxu0 0
  %4764 = vmatpush1.bf16.msra.mxu0 0
  %4765 = vmatprep.subr.bf16.mxu0 0
  %4766 = vmatpush1.bf16.msra.mxu0 0
  %4767 = vmatprep.subr.bf16.mxu0 %v4698
  %4768 = vmatpush1.bf16.msra.mxu0 %v4697
  %4769 = vmatprep.subr.bf16.mxu0 %v4694
  %4770 = vmatpush1.bf16.msra.mxu0 %v4693
  %4771 = vmatprep.subr.bf16.mxu0 %v4690
  %4772 = vmatpush1.bf16.msra.mxu0 %v4689
  %4773 = vmatprep.subr.bf16.mxu0 %v4686
  %4774 = vmatpush1.bf16.msra.mxu0 %v4685
  %4775 = vmatprep.subr.bf16.mxu0 0
  %4776 = vmatpush2.bf16.msra.mxu0 0
  %4777 = vmatprep.subr.bf16.mxu0 0
  %4778 = vmatpush2.bf16.msra.mxu0 0
  %4779 = vmatprep.subr.bf16.mxu0 0
  %4780 = vmatpush2.bf16.msra.mxu0 0
  %4781 = vmatprep.subr.bf16.mxu0 0
  %4782 = vmatpush2.bf16.msra.mxu0 0
  %4783 = vmatprep.subr.bf16.mxu0 0
  %4784 = vmatpush2.bf16.msra.mxu0 0
  %4785 = vmatprep.subr.bf16.mxu0 0
  %4786 = vmatpush2.bf16.msra.mxu0 0
  %4787 = vmatprep.subr.bf16.mxu0 0
  %4788 = vmatpush2.bf16.msra.mxu0 0
  %4789 = vmatprep.subr.bf16.mxu0 0
  %4790 = vmatpush2.bf16.msra.mxu0 0
  %4791 = vmatprep.mubr.bf16.mxu0 0
  %4792 = vmatmul.mubr.bf16.gmra.mxu0 %v4716
  %v4793 = vpop.f32.mrf.mxu0
  %v4794 = vadd.f32 0.0, %v4793
  %v4795 = vpop.f32.mrf.mxu0
  %v4796 = vadd.f32 0.0, %v4795
  %v4797 = vpop.f32.mrf.mxu0
  %v4798 = vpop.f32.mrf.mxu0
  %4799 = vdwg.mxu0
  %v4800 = vadd.f32 %v4601, %v4753
  %v4801 = vadd.f32 %v4602, %v4755
  %v4802 = vadd.f32 %v4603, %v4794
  %v4803 = vadd.f32 %v4604, %v4796
  %v4804 = vld [vmem:[%s8 + $0x380] sm:$0xff]
  %v4805 = vld [vmem:[%s8 + $0x388] sm:$0xff]
  %v4806 = vld [vmem:[%s8 + $0x390] sm:$0xff]
  %v4807 = vld [vmem:[%s8 + $0x398] sm:$0xff]
  %v4808 = vld [vmem:[%s8 + $0x3a0] sm:$0xff]
  %v4809 = vld [vmem:[%s8 + $0x3a8] sm:$0xff]
  %v4810 = vld [vmem:[%s8 + $0x3b0] sm:$0xff]
  %v4811 = vld [vmem:[%s8 + $0x3b8] sm:$0xff]
  %v4812 = vld [vmem:[%s8 + $0x3c0] sm:$0xff]
  %v4813 = vld [vmem:[%s8 + $0x3c8] sm:$0xff]
  %v4814 = vld [vmem:[%s8 + $0x3d0] sm:$0xff]
  %v4815 = vld [vmem:[%s8 + $0x3d8] sm:$0xff]
  %v4816 = vld [vmem:[%s8 + $0x3e0] sm:$0xff]
  %v4817 = vld [vmem:[%s8 + $0x3e8] sm:$0xff]
  %v4818 = vld [vmem:[%s8 + $0x3f0] sm:$0xff]
  %v4819 = vld [vmem:[%s8 + $0x3f8] sm:$0xff]
  %v4820 = vrot.slane %v4629, 7
  %v4821 = vrot.slane %v4630, 6
  %v4822 = vsel %vm3469, %v4821, %v4820
  %v4823 = vpack.c.b16 %v4822, %v4822
  %v4840 = vunpack.c.l.b16 %v4804
  %v4841 = vunpack.c.h.b16 %v4804
  %v4842 = vunpack.c.l.b16 %v4805
  %v4843 = vunpack.c.h.b16 %v4805
  %v4844 = vunpack.c.l.b16 %v4806
  %v4845 = vunpack.c.h.b16 %v4806
  %v4846 = vunpack.c.l.b16 %v4807
  %v4847 = vunpack.c.h.b16 %v4807
  %v4848 = vunpack.c.l.b16 %v4808
  %v4849 = vunpack.c.h.b16 %v4808
  %v4850 = vunpack.c.l.b16 %v4809
  %v4851 = vunpack.c.h.b16 %v4809
  %v4852 = vunpack.c.l.b16 %v4810
  %v4853 = vunpack.c.h.b16 %v4810
  %v4854 = vunpack.c.l.b16 %v4811
  %v4855 = vunpack.c.h.b16 %v4811
  %v4856 = vunpack.c.l.b16 %v4812
  %v4857 = vunpack.c.h.b16 %v4812
  %v4858 = vunpack.c.l.b16 %v4813
  %v4859 = vunpack.c.h.b16 %v4813
  %v4860 = vunpack.c.l.b16 %v4814
  %v4861 = vunpack.c.h.b16 %v4814
  %v4862 = vunpack.c.l.b16 %v4815
  %v4863 = vunpack.c.h.b16 %v4815
  %v4864 = vunpack.c.l.b16 %v4816
  %v4865 = vunpack.c.h.b16 %v4816
  %v4866 = vunpack.c.l.b16 %v4817
  %v4867 = vunpack.c.h.b16 %v4817
  %v4868 = vunpack.c.l.b16 %v4818
  %v4869 = vunpack.c.h.b16 %v4818
  %v4870 = vunpack.c.l.b16 %v4819
  %v4871 = vunpack.c.h.b16 %v4819
  %v4872 = vpack.c.b16 %v4844, %v4840
  %v4873 = vpack.c.b16 %v4845, %v4841
  %v4874 = vpack.c.b16 %v4846, %v4842
  %v4875 = vpack.c.b16 %v4847, %v4843
  %v4876 = vpack.c.b16 %v4852, %v4848
  %v4877 = vpack.c.b16 %v4853, %v4849
  %v4878 = vpack.c.b16 %v4854, %v4850
  %v4879 = vpack.c.b16 %v4855, %v4851
  %v4880 = vpack.c.b16 %v4860, %v4856
  %v4881 = vpack.c.b16 %v4861, %v4857
  %v4882 = vpack.c.b16 %v4862, %v4858
  %v4883 = vpack.c.b16 %v4863, %v4859
  %v4884 = vpack.c.b16 %v4868, %v4864
  %v4885 = vpack.c.b16 %v4869, %v4865
  %v4886 = vpack.c.b16 %v4870, %v4866
  %v4887 = vpack.c.b16 %v4871, %v4867
  %v4905 = vsel %vm2104, %v4823, 0
  %4907 = vmatprep.subr.bf16.mxu0 0
  %4908 = vmatpush1.bf16.msra.mxu0 0
  %4909 = vmatprep.subr.bf16.mxu0 0
  %4910 = vmatpush1.bf16.msra.mxu0 0
  %4911 = vmatprep.subr.bf16.mxu0 0
  %4912 = vmatpush1.bf16.msra.mxu0 0
  %4913 = vmatprep.subr.bf16.mxu0 0
  %4914 = vmatpush1.bf16.msra.mxu0 0
  %4915 = vmatprep.subr.bf16.mxu0 %v4885
  %4916 = vmatpush1.bf16.msra.mxu0 %v4884
  %4917 = vmatprep.subr.bf16.mxu0 %v4881
  %4918 = vmatpush1.bf16.msra.mxu0 %v4880
  %4919 = vmatprep.subr.bf16.mxu0 %v4877
  %4920 = vmatpush1.bf16.msra.mxu0 %v4876
  %4921 = vmatprep.subr.bf16.mxu0 %v4873
  %4922 = vmatpush1.bf16.msra.mxu0 %v4872
  %4923 = vmatprep.subr.bf16.mxu0 0
  %4924 = vmatpush2.bf16.msra.mxu0 0
  %4925 = vmatprep.subr.bf16.mxu0 0
  %4926 = vmatpush2.bf16.msra.mxu0 0
  %4927 = vmatprep.subr.bf16.mxu0 0
  %4928 = vmatpush2.bf16.msra.mxu0 0
  %4929 = vmatprep.subr.bf16.mxu0 0
  %4930 = vmatpush2.bf16.msra.mxu0 0
  %4931 = vmatprep.subr.bf16.mxu0 0
  %4932 = vmatpush2.bf16.msra.mxu0 0
  %4933 = vmatprep.subr.bf16.mxu0 0
  %4934 = vmatpush2.bf16.msra.mxu0 0
  %4935 = vmatprep.subr.bf16.mxu0 0
  %4936 = vmatpush2.bf16.msra.mxu0 0
  %4937 = vmatprep.subr.bf16.mxu0 0
  %4938 = vmatpush2.bf16.msra.mxu0 0
  %4939 = vmatprep.mubr.bf16.mxu0 0
  %4940 = vmatmul.mubr.bf16.gmra.mxu0 %v4905
  %v4941 = vpop.f32.mrf.mxu0
  %v4942 = vadd.f32 0.0, %v4941
  %v4943 = vpop.f32.mrf.mxu0
  %v4944 = vadd.f32 0.0, %v4943
  %v4945 = vpop.f32.mrf.mxu0
  %v4946 = vpop.f32.mrf.mxu0
  %4947 = vdwg.mxu0
  %4948 = vmatprep.subr.bf16.mxu0 0
  %4949 = vmatpush1.bf16.msra.mxu0 0
  %4950 = vmatprep.subr.bf16.mxu0 0
  %4951 = vmatpush1.bf16.msra.mxu0 0
  %4952 = vmatprep.subr.bf16.mxu0 0
  %4953 = vmatpush1.bf16.msra.mxu0 0
  %4954 = vmatprep.subr.bf16.mxu0 0
  %4955 = vmatpush1.bf16.msra.mxu0 0
  %4956 = vmatprep.subr.bf16.mxu0 %v4887
  %4957 = vmatpush1.bf16.msra.mxu0 %v4886
  %4958 = vmatprep.subr.bf16.mxu0 %v4883
  %4959 = vmatpush1.bf16.msra.mxu0 %v4882
  %4960 = vmatprep.subr.bf16.mxu0 %v4879
  %4961 = vmatpush1.bf16.msra.mxu0 %v4878
  %4962 = vmatprep.subr.bf16.mxu0 %v4875
  %4963 = vmatpush1.bf16.msra.mxu0 %v4874
  %4964 = vmatprep.subr.bf16.mxu0 0
  %4965 = vmatpush2.bf16.msra.mxu0 0
  %4966 = vmatprep.subr.bf16.mxu0 0
  %4967 = vmatpush2.bf16.msra.mxu0 0
  %4968 = vmatprep.subr.bf16.mxu0 0
  %4969 = vmatpush2.bf16.msra.mxu0 0
  %4970 = vmatprep.subr.bf16.mxu0 0
  %4971 = vmatpush2.bf16.msra.mxu0 0
  %4972 = vmatprep.subr.bf16.mxu0 0
  %4973 = vmatpush2.bf16.msra.mxu0 0
  %4974 = vmatprep.subr.bf16.mxu0 0
  %4975 = vmatpush2.bf16.msra.mxu0 0
  %4976 = vmatprep.subr.bf16.mxu0 0
  %4977 = vmatpush2.bf16.msra.mxu0 0
  %4978 = vmatprep.subr.bf16.mxu0 0
  %4979 = vmatpush2.bf16.msra.mxu0 0
  %4980 = vmatprep.mubr.bf16.mxu0 0
  %4981 = vmatmul.mubr.bf16.gmra.mxu0 %v4905
  %v4982 = vpop.f32.mrf.mxu0
  %v4983 = vadd.f32 0.0, %v4982
  %v4984 = vpop.f32.mrf.mxu0
  %v4985 = vadd.f32 0.0, %v4984
  %v4986 = vpop.f32.mrf.mxu0
  %v4987 = vpop.f32.mrf.mxu0
  %4988 = vdwg.mxu0
  %v4989 = vadd.f32 %v4800, %v4942
  %v4990 = vadd.f32 %v4801, %v4944
  %v4991 = vadd.f32 %v4802, %v4983
  %v4992 = vadd.f32 %v4803, %v4985
  %v4993 = vld [vmem:[#allocation6 + $0x4] sm:$0x1]
  %v4994 = vld [vmem:[#allocation6 + $0xc] sm:$0x1]
  %v4995 = vld [vmem:[%s8 + $0x400] sm:$0xff]
  %v4996 = vld [vmem:[%s8 + $0x408] sm:$0xff]
  %v4997 = vld [vmem:[%s8 + $0x410] sm:$0xff]
  %v4998 = vld [vmem:[%s8 + $0x418] sm:$0xff]
  %v4999 = vld [vmem:[%s8 + $0x420] sm:$0xff]
  %v5000 = vld [vmem:[%s8 + $0x428] sm:$0xff]
  %v5001 = vld [vmem:[%s8 + $0x430] sm:$0xff]
  %v5002 = vld [vmem:[%s8 + $0x438] sm:$0xff]
  %v5003 = vld [vmem:[%s8 + $0x440] sm:$0xff]
  %v5004 = vld [vmem:[%s8 + $0x448] sm:$0xff]
  %v5005 = vld [vmem:[%s8 + $0x450] sm:$0xff]
  %v5006 = vld [vmem:[%s8 + $0x458] sm:$0xff]
  %v5007 = vld [vmem:[%s8 + $0x460] sm:$0xff]
  %v5008 = vld [vmem:[%s8 + $0x468] sm:$0xff]
  %v5009 = vld [vmem:[%s8 + $0x470] sm:$0xff]
  %v5010 = vld [vmem:[%s8 + $0x478] sm:$0xff]
  %v5013 = vunpack.c.l.b16 %v4993
  %v5014 = vunpack.c.l.b16 %v4994
  %v5015 = vpack.c.b16 %v5013, %v5013
  %v5016 = vpack.c.b16 %v5014, %v5014
  %v5017 = vunpack.c.l.b16 %v5015
  %v5018 = vunpack.c.l.b16 %v5016
  %v5019 = vrot.slane %v5018, 7
  %v5020 = vsel %vm3469, %v5019, %v5017
  %v5021 = vpack.c.b16 %v5020, %v5020
  %v5038 = vunpack.c.l.b16 %v4995
  %v5039 = vunpack.c.h.b16 %v4995
  %v5040 = vunpack.c.l.b16 %v4996
  %v5041 = vunpack.c.h.b16 %v4996
  %v5042 = vunpack.c.l.b16 %v4997
  %v5043 = vunpack.c.h.b16 %v4997
  %v5044 = vunpack.c.l.b16 %v4998
  %v5045 = vunpack.c.h.b16 %v4998
  %v5046 = vunpack.c.l.b16 %v4999
  %v5047 = vunpack.c.h.b16 %v4999
  %v5048 = vunpack.c.l.b16 %v5000
  %v5049 = vunpack.c.h.b16 %v5000
  %v5050 = vunpack.c.l.b16 %v5001
  %v5051 = vunpack.c.h.b16 %v5001
  %v5052 = vunpack.c.l.b16 %v5002
  %v5053 = vunpack.c.h.b16 %v5002
  %v5054 = vunpack.c.l.b16 %v5003
  %v5055 = vunpack.c.h.b16 %v5003
  %v5056 = vunpack.c.l.b16 %v5004
  %v5057 = vunpack.c.h.b16 %v5004
  %v5058 = vunpack.c.l.b16 %v5005
  %v5059 = vunpack.c.h.b16 %v5005
  %v5060 = vunpack.c.l.b16 %v5006
  %v5061 = vunpack.c.h.b16 %v5006
  %v5062 = vunpack.c.l.b16 %v5007
  %v5063 = vunpack.c.h.b16 %v5007
  %v5064 = vunpack.c.l.b16 %v5008
  %v5065 = vunpack.c.h.b16 %v5008
  %v5066 = vunpack.c.l.b16 %v5009
  %v5067 = vunpack.c.h.b16 %v5009
  %v5068 = vunpack.c.l.b16 %v5010
  %v5069 = vunpack.c.h.b16 %v5010
  %v5070 = vpack.c.b16 %v5042, %v5038
  %v5071 = vpack.c.b16 %v5043, %v5039
  %v5072 = vpack.c.b16 %v5044, %v5040
  %v5073 = vpack.c.b16 %v5045, %v5041
  %v5074 = vpack.c.b16 %v5050, %v5046
  %v5075 = vpack.c.b16 %v5051, %v5047
  %v5076 = vpack.c.b16 %v5052, %v5048
  %v5077 = vpack.c.b16 %v5053, %v5049
  %v5078 = vpack.c.b16 %v5058, %v5054
  %v5079 = vpack.c.b16 %v5059, %v5055
  %v5080 = vpack.c.b16 %v5060, %v5056
  %v5081 = vpack.c.b16 %v5061, %v5057
  %v5082 = vpack.c.b16 %v5066, %v5062
  %v5083 = vpack.c.b16 %v5067, %v5063
  %v5084 = vpack.c.b16 %v5068, %v5064
  %v5085 = vpack.c.b16 %v5069, %v5065
  %v5103 = vsel %vm2104, %v5021, 0
  %5105 = vmatprep.subr.bf16.mxu0 0
  %5106 = vmatpush1.bf16.msra.mxu0 0
  %5107 = vmatprep.subr.bf16.mxu0 0
  %5108 = vmatpush1.bf16.msra.mxu0 0
  %5109 = vmatprep.subr.bf16.mxu0 0
  %5110 = vmatpush1.bf16.msra.mxu0 0
  %5111 = vmatprep.subr.bf16.mxu0 0
  %5112 = vmatpush1.bf16.msra.mxu0 0
  %5113 = vmatprep.subr.bf16.mxu0 %v5083
  %5114 = vmatpush1.bf16.msra.mxu0 %v5082
  %5115 = vmatprep.subr.bf16.mxu0 %v5079
  %5116 = vmatpush1.bf16.msra.mxu0 %v5078
  %5117 = vmatprep.subr.bf16.mxu0 %v5075
  %5118 = vmatpush1.bf16.msra.mxu0 %v5074
  %5119 = vmatprep.subr.bf16.mxu0 %v5071
  %5120 = vmatpush1.bf16.msra.mxu0 %v5070
  %5121 = vmatprep.subr.bf16.mxu0 0
  %5122 = vmatpush2.bf16.msra.mxu0 0
  %5123 = vmatprep.subr.bf16.mxu0 0
  %5124 = vmatpush2.bf16.msra.mxu0 0
  %5125 = vmatprep.subr.bf16.mxu0 0
  %5126 = vmatpush2.bf16.msra.mxu0 0
  %5127 = vmatprep.subr.bf16.mxu0 0
  %5128 = vmatpush2.bf16.msra.mxu0 0
  %5129 = vmatprep.subr.bf16.mxu0 0
  %5130 = vmatpush2.bf16.msra.mxu0 0
  %5131 = vmatprep.subr.bf16.mxu0 0
  %5132 = vmatpush2.bf16.msra.mxu0 0
  %5133 = vmatprep.subr.bf16.mxu0 0
  %5134 = vmatpush2.bf16.msra.mxu0 0
  %5135 = vmatprep.subr.bf16.mxu0 0
  %5136 = vmatpush2.bf16.msra.mxu0 0
  %5137 = vmatprep.mubr.bf16.mxu0 0
  %5138 = vmatmul.mubr.bf16.gmra.mxu0 %v5103
  %v5139 = vpop.f32.mrf.mxu0
  %v5140 = vadd.f32 0.0, %v5139
  %v5141 = vpop.f32.mrf.mxu0
  %v5142 = vadd.f32 0.0, %v5141
  %v5143 = vpop.f32.mrf.mxu0
  %v5144 = vpop.f32.mrf.mxu0
  %5145 = vdwg.mxu0
  %5146 = vmatprep.subr.bf16.mxu0 0
  %5147 = vmatpush1.bf16.msra.mxu0 0
  %5148 = vmatprep.subr.bf16.mxu0 0
  %5149 = vmatpush1.bf16.msra.mxu0 0
  %5150 = vmatprep.subr.bf16.mxu0 0
  %5151 = vmatpush1.bf16.msra.mxu0 0
  %5152 = vmatprep.subr.bf16.mxu0 0
  %5153 = vmatpush1.bf16.msra.mxu0 0
  %5154 = vmatprep.subr.bf16.mxu0 %v5085
  %5155 = vmatpush1.bf16.msra.mxu0 %v5084
  %5156 = vmatprep.subr.bf16.mxu0 %v5081
  %5157 = vmatpush1.bf16.msra.mxu0 %v5080
  %5158 = vmatprep.subr.bf16.mxu0 %v5077
  %5159 = vmatpush1.bf16.msra.mxu0 %v5076
  %5160 = vmatprep.subr.bf16.mxu0 %v5073
  %5161 = vmatpush1.bf16.msra.mxu0 %v5072
  %5162 = vmatprep.subr.bf16.mxu0 0
  %5163 = vmatpush2.bf16.msra.mxu0 0
  %5164 = vmatprep.subr.bf16.mxu0 0
  %5165 = vmatpush2.bf16.msra.mxu0 0
  %5166 = vmatprep.subr.bf16.mxu0 0
  %5167 = vmatpush2.bf16.msra.mxu0 0
  %5168 = vmatprep.subr.bf16.mxu0 0
  %5169 = vmatpush2.bf16.msra.mxu0 0
  %5170 = vmatprep.subr.bf16.mxu0 0
  %5171 = vmatpush2.bf16.msra.mxu0 0
  %5172 = vmatprep.subr.bf16.mxu0 0
  %5173 = vmatpush2.bf16.msra.mxu0 0
  %5174 = vmatprep.subr.bf16.mxu0 0
  %5175 = vmatpush2.bf16.msra.mxu0 0
  %5176 = vmatprep.subr.bf16.mxu0 0
  %5177 = vmatpush2.bf16.msra.mxu0 0
  %5178 = vmatprep.mubr.bf16.mxu0 0
  %5179 = vmatmul.mubr.bf16.gmra.mxu0 %v5103
  %v5180 = vpop.f32.mrf.mxu0
  %v5181 = vadd.f32 0.0, %v5180
  %v5182 = vpop.f32.mrf.mxu0
  %v5183 = vadd.f32 0.0, %v5182
  %v5184 = vpop.f32.mrf.mxu0
  %v5185 = vpop.f32.mrf.mxu0
  %5186 = vdwg.mxu0
  %v5187 = vadd.f32 %v4989, %v5140
  %v5188 = vadd.f32 %v4990, %v5142
  %v5189 = vadd.f32 %v4991, %v5181
  %v5190 = vadd.f32 %v4992, %v5183
  %v5191 = vld [vmem:[%s8 + $0x480] sm:$0xff]
  %v5192 = vld [vmem:[%s8 + $0x488] sm:$0xff]
  %v5193 = vld [vmem:[%s8 + $0x490] sm:$0xff]
  %v5194 = vld [vmem:[%s8 + $0x498] sm:$0xff]
  %v5195 = vld [vmem:[%s8 + $0x4a0] sm:$0xff]
  %v5196 = vld [vmem:[%s8 + $0x4a8] sm:$0xff]
  %v5197 = vld [vmem:[%s8 + $0x4b0] sm:$0xff]
  %v5198 = vld [vmem:[%s8 + $0x4b8] sm:$0xff]
  %v5199 = vld [vmem:[%s8 + $0x4c0] sm:$0xff]
  %v5200 = vld [vmem:[%s8 + $0x4c8] sm:$0xff]
  %v5201 = vld [vmem:[%s8 + $0x4d0] sm:$0xff]
  %v5202 = vld [vmem:[%s8 + $0x4d8] sm:$0xff]
  %v5203 = vld [vmem:[%s8 + $0x4e0] sm:$0xff]
  %v5204 = vld [vmem:[%s8 + $0x4e8] sm:$0xff]
  %v5205 = vld [vmem:[%s8 + $0x4f0] sm:$0xff]
  %v5206 = vld [vmem:[%s8 + $0x4f8] sm:$0xff]
  %v5207 = vrot.slane %v5017, 1
  %v5208 = vsel %vm3469, %v5018, %v5207
  %v5209 = vpack.c.b16 %v5208, %v5208
  %v5226 = vunpack.c.l.b16 %v5191
  %v5227 = vunpack.c.h.b16 %v5191
  %v5228 = vunpack.c.l.b16 %v5192
  %v5229 = vunpack.c.h.b16 %v5192
  %v5230 = vunpack.c.l.b16 %v5193
  %v5231 = vunpack.c.h.b16 %v5193
  %v5232 = vunpack.c.l.b16 %v5194
  %v5233 = vunpack.c.h.b16 %v5194
  %v5234 = vunpack.c.l.b16 %v5195
  %v5235 = vunpack.c.h.b16 %v5195
  %v5236 = vunpack.c.l.b16 %v5196
  %v5237 = vunpack.c.h.b16 %v5196
  %v5238 = vunpack.c.l.b16 %v5197
  %v5239 = vunpack.c.h.b16 %v5197
  %v5240 = vunpack.c.l.b16 %v5198
  %v5241 = vunpack.c.h.b16 %v5198
  %v5242 = vunpack.c.l.b16 %v5199
  %v5243 = vunpack.c.h.b16 %v5199
  %v5244 = vunpack.c.l.b16 %v5200
  %v5245 = vunpack.c.h.b16 %v5200
  %v5246 = vunpack.c.l.b16 %v5201
  %v5247 = vunpack.c.h.b16 %v5201
  %v5248 = vunpack.c.l.b16 %v5202
  %v5249 = vunpack.c.h.b16 %v5202
  %v5250 = vunpack.c.l.b16 %v5203
  %v5251 = vunpack.c.h.b16 %v5203
  %v5252 = vunpack.c.l.b16 %v5204
  %v5253 = vunpack.c.h.b16 %v5204
  %v5254 = vunpack.c.l.b16 %v5205
  %v5255 = vunpack.c.h.b16 %v5205
  %v5256 = vunpack.c.l.b16 %v5206
  %v5257 = vunpack.c.h.b16 %v5206
  %v5258 = vpack.c.b16 %v5230, %v5226
  %v5259 = vpack.c.b16 %v5231, %v5227
  %v5260 = vpack.c.b16 %v5232, %v5228
  %v5261 = vpack.c.b16 %v5233, %v5229
  %v5262 = vpack.c.b16 %v5238, %v5234
  %v5263 = vpack.c.b16 %v5239, %v5235
  %v5264 = vpack.c.b16 %v5240, %v5236
  %v5265 = vpack.c.b16 %v5241, %v5237
  %v5266 = vpack.c.b16 %v5246, %v5242
  %v5267 = vpack.c.b16 %v5247, %v5243
  %v5268 = vpack.c.b16 %v5248, %v5244
  %v5269 = vpack.c.b16 %v5249, %v5245
  %v5270 = vpack.c.b16 %v5254, %v5250
  %v5271 = vpack.c.b16 %v5255, %v5251
  %v5272 = vpack.c.b16 %v5256, %v5252
  %v5273 = vpack.c.b16 %v5257, %v5253
  %v5291 = vsel %vm2104, %v5209, 0
  %5293 = vmatprep.subr.bf16.mxu0 0
  %5294 = vmatpush1.bf16.msra.mxu0 0
  %5295 = vmatprep.subr.bf16.mxu0 0
  %5296 = vmatpush1.bf16.msra.mxu0 0
  %5297 = vmatprep.subr.bf16.mxu0 0
  %5298 = vmatpush1.bf16.msra.mxu0 0
  %5299 = vmatprep.subr.bf16.mxu0 0
  %5300 = vmatpush1.bf16.msra.mxu0 0
  %5301 = vmatprep.subr.bf16.mxu0 %v5271
  %5302 = vmatpush1.bf16.msra.mxu0 %v5270
  %5303 = vmatprep.subr.bf16.mxu0 %v5267
  %5304 = vmatpush1.bf16.msra.mxu0 %v5266
  %5305 = vmatprep.subr.bf16.mxu0 %v5263
  %5306 = vmatpush1.bf16.msra.mxu0 %v5262
  %5307 = vmatprep.subr.bf16.mxu0 %v5259
  %5308 = vmatpush1.bf16.msra.mxu0 %v5258
  %5309 = vmatprep.subr.bf16.mxu0 0
  %5310 = vmatpush2.bf16.msra.mxu0 0
  %5311 = vmatprep.subr.bf16.mxu0 0
  %5312 = vmatpush2.bf16.msra.mxu0 0
  %5313 = vmatprep.subr.bf16.mxu0 0
  %5314 = vmatpush2.bf16.msra.mxu0 0
  %5315 = vmatprep.subr.bf16.mxu0 0
  %5316 = vmatpush2.bf16.msra.mxu0 0
  %5317 = vmatprep.subr.bf16.mxu0 0
  %5318 = vmatpush2.bf16.msra.mxu0 0
  %5319 = vmatprep.subr.bf16.mxu0 0
  %5320 = vmatpush2.bf16.msra.mxu0 0
  %5321 = vmatprep.subr.bf16.mxu0 0
  %5322 = vmatpush2.bf16.msra.mxu0 0
  %5323 = vmatprep.subr.bf16.mxu0 0
  %5324 = vmatpush2.bf16.msra.mxu0 0
  %5325 = vmatprep.mubr.bf16.mxu0 0
  %5326 = vmatmul.mubr.bf16.gmra.mxu0 %v5291
  %v5327 = vpop.f32.mrf.mxu0
  %v5328 = vadd.f32 0.0, %v5327
  %v5329 = vpop.f32.mrf.mxu0
  %v5330 = vadd.f32 0.0, %v5329
  %v5331 = vpop.f32.mrf.mxu0
  %v5332 = vpop.f32.mrf.mxu0
  %5333 = vdwg.mxu0
  %5334 = vmatprep.subr.bf16.mxu0 0
  %5335 = vmatpush1.bf16.msra.mxu0 0
  %5336 = vmatprep.subr.bf16.mxu0 0
  %5337 = vmatpush1.bf16.msra.mxu0 0
  %5338 = vmatprep.subr.bf16.mxu0 0
  %5339 = vmatpush1.bf16.msra.mxu0 0
  %5340 = vmatprep.subr.bf16.mxu0 0
  %5341 = vmatpush1.bf16.msra.mxu0 0
  %5342 = vmatprep.subr.bf16.mxu0 %v5273
  %5343 = vmatpush1.bf16.msra.mxu0 %v5272
  %5344 = vmatprep.subr.bf16.mxu0 %v5269
  %5345 = vmatpush1.bf16.msra.mxu0 %v5268
  %5346 = vmatprep.subr.bf16.mxu0 %v5265
  %5347 = vmatpush1.bf16.msra.mxu0 %v5264
  %5348 = vmatprep.subr.bf16.mxu0 %v5261
  %5349 = vmatpush1.bf16.msra.mxu0 %v5260
  %5350 = vmatprep.subr.bf16.mxu0 0
  %5351 = vmatpush2.bf16.msra.mxu0 0
  %5352 = vmatprep.subr.bf16.mxu0 0
  %5353 = vmatpush2.bf16.msra.mxu0 0
  %5354 = vmatprep.subr.bf16.mxu0 0
  %5355 = vmatpush2.bf16.msra.mxu0 0
  %5356 = vmatprep.subr.bf16.mxu0 0
  %5357 = vmatpush2.bf16.msra.mxu0 0
  %5358 = vmatprep.subr.bf16.mxu0 0
  %5359 = vmatpush2.bf16.msra.mxu0 0
  %5360 = vmatprep.subr.bf16.mxu0 0
  %5361 = vmatpush2.bf16.msra.mxu0 0
  %5362 = vmatprep.subr.bf16.mxu0 0
  %5363 = vmatpush2.bf16.msra.mxu0 0
  %5364 = vmatprep.subr.bf16.mxu0 0
  %5365 = vmatpush2.bf16.msra.mxu0 0
  %5366 = vmatprep.mubr.bf16.mxu0 0
  %5367 = vmatmul.mubr.bf16.gmra.mxu0 %v5291
  %v5368 = vpop.f32.mrf.mxu0
  %v5369 = vadd.f32 0.0, %v5368
  %v5370 = vpop.f32.mrf.mxu0
  %v5371 = vadd.f32 0.0, %v5370
  %v5372 = vpop.f32.mrf.mxu0
  %v5373 = vpop.f32.mrf.mxu0
  %5374 = vdwg.mxu0
  %v5375 = vadd.f32 %v5187, %v5328
  %v5376 = vadd.f32 %v5188, %v5330
  %v5377 = vadd.f32 %v5189, %v5369
  %v5378 = vadd.f32 %v5190, %v5371
  %v5379 = vld [vmem:[#allocation6 + $0x4] sm:$0x2]
  %v5380 = vld [vmem:[#allocation6 + $0xc] sm:$0x2]
  %v5381 = vld [vmem:[%s8 + $0x500] sm:$0xff]
  %v5382 = vld [vmem:[%s8 + $0x508] sm:$0xff]
  %v5383 = vld [vmem:[%s8 + $0x510] sm:$0xff]
  %v5384 = vld [vmem:[%s8 + $0x518] sm:$0xff]
  %v5385 = vld [vmem:[%s8 + $0x520] sm:$0xff]
  %v5386 = vld [vmem:[%s8 + $0x528] sm:$0xff]
  %v5387 = vld [vmem:[%s8 + $0x530] sm:$0xff]
  %v5388 = vld [vmem:[%s8 + $0x538] sm:$0xff]
  %v5389 = vld [vmem:[%s8 + $0x540] sm:$0xff]
  %v5390 = vld [vmem:[%s8 + $0x548] sm:$0xff]
  %v5391 = vld [vmem:[%s8 + $0x550] sm:$0xff]
  %v5392 = vld [vmem:[%s8 + $0x558] sm:$0xff]
  %v5393 = vld [vmem:[%s8 + $0x560] sm:$0xff]
  %v5394 = vld [vmem:[%s8 + $0x568] sm:$0xff]
  %v5395 = vld [vmem:[%s8 + $0x570] sm:$0xff]
  %v5396 = vld [vmem:[%s8 + $0x578] sm:$0xff]
  %v5399 = vunpack.c.l.b16 %v5379
  %v5400 = vunpack.c.l.b16 %v5380
  %v5401 = vpack.c.b16 %v5399, %v5399
  %v5402 = vpack.c.b16 %v5400, %v5400
  %v5403 = vunpack.c.l.b16 %v5401
  %v5404 = vunpack.c.l.b16 %v5402
  %v5405 = vrot.slane %v5403, 2
  %v5406 = vrot.slane %v5404, 1
  %v5407 = vsel %vm3469, %v5406, %v5405
  %v5408 = vpack.c.b16 %v5407, %v5407
  %v5425 = vunpack.c.l.b16 %v5381
  %v5426 = vunpack.c.h.b16 %v5381
  %v5427 = vunpack.c.l.b16 %v5382
  %v5428 = vunpack.c.h.b16 %v5382
  %v5429 = vunpack.c.l.b16 %v5383
  %v5430 = vunpack.c.h.b16 %v5383
  %v5431 = vunpack.c.l.b16 %v5384
  %v5432 = vunpack.c.h.b16 %v5384
  %v5433 = vunpack.c.l.b16 %v5385
  %v5434 = vunpack.c.h.b16 %v5385
  %v5435 = vunpack.c.l.b16 %v5386
  %v5436 = vunpack.c.h.b16 %v5386
  %v5437 = vunpack.c.l.b16 %v5387
  %v5438 = vunpack.c.h.b16 %v5387
  %v5439 = vunpack.c.l.b16 %v5388
  %v5440 = vunpack.c.h.b16 %v5388
  %v5441 = vunpack.c.l.b16 %v5389
  %v5442 = vunpack.c.h.b16 %v5389
  %v5443 = vunpack.c.l.b16 %v5390
  %v5444 = vunpack.c.h.b16 %v5390
  %v5445 = vunpack.c.l.b16 %v5391
  %v5446 = vunpack.c.h.b16 %v5391
  %v5447 = vunpack.c.l.b16 %v5392
  %v5448 = vunpack.c.h.b16 %v5392
  %v5449 = vunpack.c.l.b16 %v5393
  %v5450 = vunpack.c.h.b16 %v5393
  %v5451 = vunpack.c.l.b16 %v5394
  %v5452 = vunpack.c.h.b16 %v5394
  %v5453 = vunpack.c.l.b16 %v5395
  %v5454 = vunpack.c.h.b16 %v5395
  %v5455 = vunpack.c.l.b16 %v5396
  %v5456 = vunpack.c.h.b16 %v5396
  %v5457 = vpack.c.b16 %v5429, %v5425
  %v5458 = vpack.c.b16 %v5430, %v5426
  %v5459 = vpack.c.b16 %v5431, %v5427
  %v5460 = vpack.c.b16 %v5432, %v5428
  %v5461 = vpack.c.b16 %v5437, %v5433
  %v5462 = vpack.c.b16 %v5438, %v5434
  %v5463 = vpack.c.b16 %v5439, %v5435
  %v5464 = vpack.c.b16 %v5440, %v5436
  %v5465 = vpack.c.b16 %v5445, %v5441
  %v5466 = vpack.c.b16 %v5446, %v5442
  %v5467 = vpack.c.b16 %v5447, %v5443
  %v5468 = vpack.c.b16 %v5448, %v5444
  %v5469 = vpack.c.b16 %v5453, %v5449
  %v5470 = vpack.c.b16 %v5454, %v5450
  %v5471 = vpack.c.b16 %v5455, %v5451
  %v5472 = vpack.c.b16 %v5456, %v5452
  %v5490 = vsel %vm2104, %v5408, 0
  %5492 = vmatprep.subr.bf16.mxu0 0
  %5493 = vmatpush1.bf16.msra.mxu0 0
  %5494 = vmatprep.subr.bf16.mxu0 0
  %5495 = vmatpush1.bf16.msra.mxu0 0
  %5496 = vmatprep.subr.bf16.mxu0 0
  %5497 = vmatpush1.bf16.msra.mxu0 0
  %5498 = vmatprep.subr.bf16.mxu0 0
  %5499 = vmatpush1.bf16.msra.mxu0 0
  %5500 = vmatprep.subr.bf16.mxu0 %v5470
  %5501 = vmatpush1.bf16.msra.mxu0 %v5469
  %5502 = vmatprep.subr.bf16.mxu0 %v5466
  %5503 = vmatpush1.bf16.msra.mxu0 %v5465
  %5504 = vmatprep.subr.bf16.mxu0 %v5462
  %5505 = vmatpush1.bf16.msra.mxu0 %v5461
  %5506 = vmatprep.subr.bf16.mxu0 %v5458
  %5507 = vmatpush1.bf16.msra.mxu0 %v5457
  %5508 = vmatprep.subr.bf16.mxu0 0
  %5509 = vmatpush2.bf16.msra.mxu0 0
  %5510 = vmatprep.subr.bf16.mxu0 0
  %5511 = vmatpush2.bf16.msra.mxu0 0
  %5512 = vmatprep.subr.bf16.mxu0 0
  %5513 = vmatpush2.bf16.msra.mxu0 0
  %5514 = vmatprep.subr.bf16.mxu0 0
  %5515 = vmatpush2.bf16.msra.mxu0 0
  %5516 = vmatprep.subr.bf16.mxu0 0
  %5517 = vmatpush2.bf16.msra.mxu0 0
  %5518 = vmatprep.subr.bf16.mxu0 0
  %5519 = vmatpush2.bf16.msra.mxu0 0
  %5520 = vmatprep.subr.bf16.mxu0 0
  %5521 = vmatpush2.bf16.msra.mxu0 0
  %5522 = vmatprep.subr.bf16.mxu0 0
  %5523 = vmatpush2.bf16.msra.mxu0 0
  %5524 = vmatprep.mubr.bf16.mxu0 0
  %5525 = vmatmul.mubr.bf16.gmra.mxu0 %v5490
  %v5526 = vpop.f32.mrf.mxu0
  %v5527 = vadd.f32 0.0, %v5526
  %v5528 = vpop.f32.mrf.mxu0
  %v5529 = vadd.f32 0.0, %v5528
  %v5530 = vpop.f32.mrf.mxu0
  %v5531 = vpop.f32.mrf.mxu0
  %5532 = vdwg.mxu0
  %5533 = vmatprep.subr.bf16.mxu0 0
  %5534 = vmatpush1.bf16.msra.mxu0 0
  %5535 = vmatprep.subr.bf16.mxu0 0
  %5536 = vmatpush1.bf16.msra.mxu0 0
  %5537 = vmatprep.subr.bf16.mxu0 0
  %5538 = vmatpush1.bf16.msra.mxu0 0
  %5539 = vmatprep.subr.bf16.mxu0 0
  %5540 = vmatpush1.bf16.msra.mxu0 0
  %5541 = vmatprep.subr.bf16.mxu0 %v5472
  %5542 = vmatpush1.bf16.msra.mxu0 %v5471
  %5543 = vmatprep.subr.bf16.mxu0 %v5468
  %5544 = vmatpush1.bf16.msra.mxu0 %v5467
  %5545 = vmatprep.subr.bf16.mxu0 %v5464
  %5546 = vmatpush1.bf16.msra.mxu0 %v5463
  %5547 = vmatprep.subr.bf16.mxu0 %v5460
  %5548 = vmatpush1.bf16.msra.mxu0 %v5459
  %5549 = vmatprep.subr.bf16.mxu0 0
  %5550 = vmatpush2.bf16.msra.mxu0 0
  %5551 = vmatprep.subr.bf16.mxu0 0
  %5552 = vmatpush2.bf16.msra.mxu0 0
  %5553 = vmatprep.subr.bf16.mxu0 0
  %5554 = vmatpush2.bf16.msra.mxu0 0
  %5555 = vmatprep.subr.bf16.mxu0 0
  %5556 = vmatpush2.bf16.msra.mxu0 0
  %5557 = vmatprep.subr.bf16.mxu0 0
  %5558 = vmatpush2.bf16.msra.mxu0 0
  %5559 = vmatprep.subr.bf16.mxu0 0
  %5560 = vmatpush2.bf16.msra.mxu0 0
  %5561 = vmatprep.subr.bf16.mxu0 0
  %5562 = vmatpush2.bf16.msra.mxu0 0
  %5563 = vmatprep.subr.bf16.mxu0 0
  %5564 = vmatpush2.bf16.msra.mxu0 0
  %5565 = vmatprep.mubr.bf16.mxu0 0
  %5566 = vmatmul.mubr.bf16.gmra.mxu0 %v5490
  %v5567 = vpop.f32.mrf.mxu0
  %v5568 = vadd.f32 0.0, %v5567
  %v5569 = vpop.f32.mrf.mxu0
  %v5570 = vadd.f32 0.0, %v5569
  %v5571 = vpop.f32.mrf.mxu0
  %v5572 = vpop.f32.mrf.mxu0
  %5573 = vdwg.mxu0
  %v5574 = vadd.f32 %v5375, %v5527
  %v5575 = vadd.f32 %v5376, %v5529
  %v5576 = vadd.f32 %v5377, %v5568
  %v5577 = vadd.f32 %v5378, %v5570
  %v5578 = vld [vmem:[%s8 + $0x580] sm:$0xff]
  %v5579 = vld [vmem:[%s8 + $0x588] sm:$0xff]
  %v5580 = vld [vmem:[%s8 + $0x590] sm:$0xff]
  %v5581 = vld [vmem:[%s8 + $0x598] sm:$0xff]
  %v5582 = vld [vmem:[%s8 + $0x5a0] sm:$0xff]
  %v5583 = vld [vmem:[%s8 + $0x5a8] sm:$0xff]
  %v5584 = vld [vmem:[%s8 + $0x5b0] sm:$0xff]
  %v5585 = vld [vmem:[%s8 + $0x5b8] sm:$0xff]
  %v5586 = vld [vmem:[%s8 + $0x5c0] sm:$0xff]
  %v5587 = vld [vmem:[%s8 + $0x5c8] sm:$0xff]
  %v5588 = vld [vmem:[%s8 + $0x5d0] sm:$0xff]
  %v5589 = vld [vmem:[%s8 + $0x5d8] sm:$0xff]
  %v5590 = vld [vmem:[%s8 + $0x5e0] sm:$0xff]
  %v5591 = vld [vmem:[%s8 + $0x5e8] sm:$0xff]
  %v5592 = vld [vmem:[%s8 + $0x5f0] sm:$0xff]
  %v5593 = vld [vmem:[%s8 + $0x5f8] sm:$0xff]
  %v5594 = vrot.slane %v5403, 3
  %v5595 = vrot.slane %v5404, 2
  %v5596 = vsel %vm3469, %v5595, %v5594
  %v5597 = vpack.c.b16 %v5596, %v5596
  %v5614 = vunpack.c.l.b16 %v5578
  %v5615 = vunpack.c.h.b16 %v5578
  %v5616 = vunpack.c.l.b16 %v5579
  %v5617 = vunpack.c.h.b16 %v5579
  %v5618 = vunpack.c.l.b16 %v5580
  %v5619 = vunpack.c.h.b16 %v5580
  %v5620 = vunpack.c.l.b16 %v5581
  %v5621 = vunpack.c.h.b16 %v5581
  %v5622 = vunpack.c.l.b16 %v5582
  %v5623 = vunpack.c.h.b16 %v5582
  %v5624 = vunpack.c.l.b16 %v5583
  %v5625 = vunpack.c.h.b16 %v5583
  %v5626 = vunpack.c.l.b16 %v5584
  %v5627 = vunpack.c.h.b16 %v5584
  %v5628 = vunpack.c.l.b16 %v5585
  %v5629 = vunpack.c.h.b16 %v5585
  %v5630 = vunpack.c.l.b16 %v5586
  %v5631 = vunpack.c.h.b16 %v5586
  %v5632 = vunpack.c.l.b16 %v5587
  %v5633 = vunpack.c.h.b16 %v5587
  %v5634 = vunpack.c.l.b16 %v5588
  %v5635 = vunpack.c.h.b16 %v5588
  %v5636 = vunpack.c.l.b16 %v5589
  %v5637 = vunpack.c.h.b16 %v5589
  %v5638 = vunpack.c.l.b16 %v5590
  %v5639 = vunpack.c.h.b16 %v5590
  %v5640 = vunpack.c.l.b16 %v5591
  %v5641 = vunpack.c.h.b16 %v5591
  %v5642 = vunpack.c.l.b16 %v5592
  %v5643 = vunpack.c.h.b16 %v5592
  %v5644 = vunpack.c.l.b16 %v5593
  %v5645 = vunpack.c.h.b16 %v5593
  %v5646 = vpack.c.b16 %v5618, %v5614
  %v5647 = vpack.c.b16 %v5619, %v5615
  %v5648 = vpack.c.b16 %v5620, %v5616
  %v5649 = vpack.c.b16 %v5621, %v5617
  %v5650 = vpack.c.b16 %v5626, %v5622
  %v5651 = vpack.c.b16 %v5627, %v5623
  %v5652 = vpack.c.b16 %v5628, %v5624
  %v5653 = vpack.c.b16 %v5629, %v5625
  %v5654 = vpack.c.b16 %v5634, %v5630
  %v5655 = vpack.c.b16 %v5635, %v5631
  %v5656 = vpack.c.b16 %v5636, %v5632
  %v5657 = vpack.c.b16 %v5637, %v5633
  %v5658 = vpack.c.b16 %v5642, %v5638
  %v5659 = vpack.c.b16 %v5643, %v5639
  %v5660 = vpack.c.b16 %v5644, %v5640
  %v5661 = vpack.c.b16 %v5645, %v5641
  %v5679 = vsel %vm2104, %v5597, 0
  %5681 = vmatprep.subr.bf16.mxu0 0
  %5682 = vmatpush1.bf16.msra.mxu0 0
  %5683 = vmatprep.subr.bf16.mxu0 0
  %5684 = vmatpush1.bf16.msra.mxu0 0
  %5685 = vmatprep.subr.bf16.mxu0 0
  %5686 = vmatpush1.bf16.msra.mxu0 0
  %5687 = vmatprep.subr.bf16.mxu0 0
  %5688 = vmatpush1.bf16.msra.mxu0 0
  %5689 = vmatprep.subr.bf16.mxu0 %v5659
  %5690 = vmatpush1.bf16.msra.mxu0 %v5658
  %5691 = vmatprep.subr.bf16.mxu0 %v5655
  %5692 = vmatpush1.bf16.msra.mxu0 %v5654
  %5693 = vmatprep.subr.bf16.mxu0 %v5651
  %5694 = vmatpush1.bf16.msra.mxu0 %v5650
  %5695 = vmatprep.subr.bf16.mxu0 %v5647
  %5696 = vmatpush1.bf16.msra.mxu0 %v5646
  %5697 = vmatprep.subr.bf16.mxu0 0
  %5698 = vmatpush2.bf16.msra.mxu0 0
  %5699 = vmatprep.subr.bf16.mxu0 0
  %5700 = vmatpush2.bf16.msra.mxu0 0
  %5701 = vmatprep.subr.bf16.mxu0 0
  %5702 = vmatpush2.bf16.msra.mxu0 0
  %5703 = vmatprep.subr.bf16.mxu0 0
  %5704 = vmatpush2.bf16.msra.mxu0 0
  %5705 = vmatprep.subr.bf16.mxu0 0
  %5706 = vmatpush2.bf16.msra.mxu0 0
  %5707 = vmatprep.subr.bf16.mxu0 0
  %5708 = vmatpush2.bf16.msra.mxu0 0
  %5709 = vmatprep.subr.bf16.mxu0 0
  %5710 = vmatpush2.bf16.msra.mxu0 0
  %5711 = vmatprep.subr.bf16.mxu0 0
  %5712 = vmatpush2.bf16.msra.mxu0 0
  %5713 = vmatprep.mubr.bf16.mxu0 0
  %5714 = vmatmul.mubr.bf16.gmra.mxu0 %v5679
  %v5715 = vpop.f32.mrf.mxu0
  %v5716 = vadd.f32 0.0, %v5715
  %v5717 = vpop.f32.mrf.mxu0
  %v5718 = vadd.f32 0.0, %v5717
  %v5719 = vpop.f32.mrf.mxu0
  %v5720 = vpop.f32.mrf.mxu0
  %5721 = vdwg.mxu0
  %5722 = vmatprep.subr.bf16.mxu0 0
  %5723 = vmatpush1.bf16.msra.mxu0 0
  %5724 = vmatprep.subr.bf16.mxu0 0
  %5725 = vmatpush1.bf16.msra.mxu0 0
  %5726 = vmatprep.subr.bf16.mxu0 0
  %5727 = vmatpush1.bf16.msra.mxu0 0
  %5728 = vmatprep.subr.bf16.mxu0 0
  %5729 = vmatpush1.bf16.msra.mxu0 0
  %5730 = vmatprep.subr.bf16.mxu0 %v5661
  %5731 = vmatpush1.bf16.msra.mxu0 %v5660
  %5732 = vmatprep.subr.bf16.mxu0 %v5657
  %5733 = vmatpush1.bf16.msra.mxu0 %v5656
  %5734 = vmatprep.subr.bf16.mxu0 %v5653
  %5735 = vmatpush1.bf16.msra.mxu0 %v5652
  %5736 = vmatprep.subr.bf16.mxu0 %v5649
  %5737 = vmatpush1.bf16.msra.mxu0 %v5648
  %5738 = vmatprep.subr.bf16.mxu0 0
  %5739 = vmatpush2.bf16.msra.mxu0 0
  %5740 = vmatprep.subr.bf16.mxu0 0
  %5741 = vmatpush2.bf16.msra.mxu0 0
  %5742 = vmatprep.subr.bf16.mxu0 0
  %5743 = vmatpush2.bf16.msra.mxu0 0
  %5744 = vmatprep.subr.bf16.mxu0 0
  %5745 = vmatpush2.bf16.msra.mxu0 0
  %5746 = vmatprep.subr.bf16.mxu0 0
  %5747 = vmatpush2.bf16.msra.mxu0 0
  %5748 = vmatprep.subr.bf16.mxu0 0
  %5749 = vmatpush2.bf16.msra.mxu0 0
  %5750 = vmatprep.subr.bf16.mxu0 0
  %5751 = vmatpush2.bf16.msra.mxu0 0
  %5752 = vmatprep.subr.bf16.mxu0 0
  %5753 = vmatpush2.bf16.msra.mxu0 0
  %5754 = vmatprep.mubr.bf16.mxu0 0
  %5755 = vmatmul.mubr.bf16.gmra.mxu0 %v5679
  %v5756 = vpop.f32.mrf.mxu0
  %v5757 = vadd.f32 0.0, %v5756
  %v5758 = vpop.f32.mrf.mxu0
  %v5759 = vadd.f32 0.0, %v5758
  %v5760 = vpop.f32.mrf.mxu0
  %v5761 = vpop.f32.mrf.mxu0
  %5762 = vdwg.mxu0
  %v5763 = vadd.f32 %v5574, %v5716
  %v5764 = vadd.f32 %v5575, %v5718
  %v5765 = vadd.f32 %v5576, %v5757
  %v5766 = vadd.f32 %v5577, %v5759
  %v5767 = vld [vmem:[#allocation6 + $0x4] sm:$0x4]
  %v5768 = vld [vmem:[#allocation6 + $0xc] sm:$0x4]
  %v5769 = vld [vmem:[%s8 + $0x600] sm:$0xff]
  %v5770 = vld [vmem:[%s8 + $0x608] sm:$0xff]
  %v5771 = vld [vmem:[%s8 + $0x610] sm:$0xff]
  %v5772 = vld [vmem:[%s8 + $0x618] sm:$0xff]
  %v5773 = vld [vmem:[%s8 + $0x620] sm:$0xff]
  %v5774 = vld [vmem:[%s8 + $0x628] sm:$0xff]
  %v5775 = vld [vmem:[%s8 + $0x630] sm:$0xff]
  %v5776 = vld [vmem:[%s8 + $0x638] sm:$0xff]
  %v5777 = vld [vmem:[%s8 + $0x640] sm:$0xff]
  %v5778 = vld [vmem:[%s8 + $0x648] sm:$0xff]
  %v5779 = vld [vmem:[%s8 + $0x650] sm:$0xff]
  %v5780 = vld [vmem:[%s8 + $0x658] sm:$0xff]
  %v5781 = vld [vmem:[%s8 + $0x660] sm:$0xff]
  %v5782 = vld [vmem:[%s8 + $0x668] sm:$0xff]
  %v5783 = vld [vmem:[%s8 + $0x670] sm:$0xff]
  %v5784 = vld [vmem:[%s8 + $0x678] sm:$0xff]
  %v5787 = vunpack.c.l.b16 %v5767
  %v5788 = vunpack.c.l.b16 %v5768
  %v5789 = vpack.c.b16 %v5787, %v5787
  %v5790 = vpack.c.b16 %v5788, %v5788
  %v5791 = vunpack.c.l.b16 %v5789
  %v5792 = vunpack.c.l.b16 %v5790
  %v5793 = vrot.slane %v5791, 4
  %v5794 = vrot.slane %v5792, 3
  %v5795 = vsel %vm3469, %v5794, %v5793
  %v5796 = vpack.c.b16 %v5795, %v5795
  %v5813 = vunpack.c.l.b16 %v5769
  %v5814 = vunpack.c.h.b16 %v5769
  %v5815 = vunpack.c.l.b16 %v5770
  %v5816 = vunpack.c.h.b16 %v5770
  %v5817 = vunpack.c.l.b16 %v5771
  %v5818 = vunpack.c.h.b16 %v5771
  %v5819 = vunpack.c.l.b16 %v5772
  %v5820 = vunpack.c.h.b16 %v5772
  %v5821 = vunpack.c.l.b16 %v5773
  %v5822 = vunpack.c.h.b16 %v5773
  %v5823 = vunpack.c.l.b16 %v5774
  %v5824 = vunpack.c.h.b16 %v5774
  %v5825 = vunpack.c.l.b16 %v5775
  %v5826 = vunpack.c.h.b16 %v5775
  %v5827 = vunpack.c.l.b16 %v5776
  %v5828 = vunpack.c.h.b16 %v5776
  %v5829 = vunpack.c.l.b16 %v5777
  %v5830 = vunpack.c.h.b16 %v5777
  %v5831 = vunpack.c.l.b16 %v5778
  %v5832 = vunpack.c.h.b16 %v5778
  %v5833 = vunpack.c.l.b16 %v5779
  %v5834 = vunpack.c.h.b16 %v5779
  %v5835 = vunpack.c.l.b16 %v5780
  %v5836 = vunpack.c.h.b16 %v5780
  %v5837 = vunpack.c.l.b16 %v5781
  %v5838 = vunpack.c.h.b16 %v5781
  %v5839 = vunpack.c.l.b16 %v5782
  %v5840 = vunpack.c.h.b16 %v5782
  %v5841 = vunpack.c.l.b16 %v5783
  %v5842 = vunpack.c.h.b16 %v5783
  %v5843 = vunpack.c.l.b16 %v5784
  %v5844 = vunpack.c.h.b16 %v5784
  %v5845 = vpack.c.b16 %v5817, %v5813
  %v5846 = vpack.c.b16 %v5818, %v5814
  %v5847 = vpack.c.b16 %v5819, %v5815
  %v5848 = vpack.c.b16 %v5820, %v5816
  %v5849 = vpack.c.b16 %v5825, %v5821
  %v5850 = vpack.c.b16 %v5826, %v5822
  %v5851 = vpack.c.b16 %v5827, %v5823
  %v5852 = vpack.c.b16 %v5828, %v5824
  %v5853 = vpack.c.b16 %v5833, %v5829
  %v5854 = vpack.c.b16 %v5834, %v5830
  %v5855 = vpack.c.b16 %v5835, %v5831
  %v5856 = vpack.c.b16 %v5836, %v5832
  %v5857 = vpack.c.b16 %v5841, %v5837
  %v5858 = vpack.c.b16 %v5842, %v5838
  %v5859 = vpack.c.b16 %v5843, %v5839
  %v5860 = vpack.c.b16 %v5844, %v5840
  %v5878 = vsel %vm2104, %v5796, 0
  %5880 = vmatprep.subr.bf16.mxu0 0
  %5881 = vmatpush1.bf16.msra.mxu0 0
  %5882 = vmatprep.subr.bf16.mxu0 0
  %5883 = vmatpush1.bf16.msra.mxu0 0
  %5884 = vmatprep.subr.bf16.mxu0 0
  %5885 = vmatpush1.bf16.msra.mxu0 0
  %5886 = vmatprep.subr.bf16.mxu0 0
  %5887 = vmatpush1.bf16.msra.mxu0 0
  %5888 = vmatprep.subr.bf16.mxu0 %v5858
  %5889 = vmatpush1.bf16.msra.mxu0 %v5857
  %5890 = vmatprep.subr.bf16.mxu0 %v5854
  %5891 = vmatpush1.bf16.msra.mxu0 %v5853
  %5892 = vmatprep.subr.bf16.mxu0 %v5850
  %5893 = vmatpush1.bf16.msra.mxu0 %v5849
  %5894 = vmatprep.subr.bf16.mxu0 %v5846
  %5895 = vmatpush1.bf16.msra.mxu0 %v5845
  %5896 = vmatprep.subr.bf16.mxu0 0
  %5897 = vmatpush2.bf16.msra.mxu0 0
  %5898 = vmatprep.subr.bf16.mxu0 0
  %5899 = vmatpush2.bf16.msra.mxu0 0
  %5900 = vmatprep.subr.bf16.mxu0 0
  %5901 = vmatpush2.bf16.msra.mxu0 0
  %5902 = vmatprep.subr.bf16.mxu0 0
  %5903 = vmatpush2.bf16.msra.mxu0 0
  %5904 = vmatprep.subr.bf16.mxu0 0
  %5905 = vmatpush2.bf16.msra.mxu0 0
  %5906 = vmatprep.subr.bf16.mxu0 0
  %5907 = vmatpush2.bf16.msra.mxu0 0
  %5908 = vmatprep.subr.bf16.mxu0 0
  %5909 = vmatpush2.bf16.msra.mxu0 0
  %5910 = vmatprep.subr.bf16.mxu0 0
  %5911 = vmatpush2.bf16.msra.mxu0 0
  %5912 = vmatprep.mubr.bf16.mxu0 0
  %5913 = vmatmul.mubr.bf16.gmra.mxu0 %v5878
  %v5914 = vpop.f32.mrf.mxu0
  %v5915 = vadd.f32 0.0, %v5914
  %v5916 = vpop.f32.mrf.mxu0
  %v5917 = vadd.f32 0.0, %v5916
  %v5918 = vpop.f32.mrf.mxu0
  %v5919 = vpop.f32.mrf.mxu0
  %5920 = vdwg.mxu0
  %5921 = vmatprep.subr.bf16.mxu0 0
  %5922 = vmatpush1.bf16.msra.mxu0 0
  %5923 = vmatprep.subr.bf16.mxu0 0
  %5924 = vmatpush1.bf16.msra.mxu0 0
  %5925 = vmatprep.subr.bf16.mxu0 0
  %5926 = vmatpush1.bf16.msra.mxu0 0
  %5927 = vmatprep.subr.bf16.mxu0 0
  %5928 = vmatpush1.bf16.msra.mxu0 0
  %5929 = vmatprep.subr.bf16.mxu0 %v5860
  %5930 = vmatpush1.bf16.msra.mxu0 %v5859
  %5931 = vmatprep.subr.bf16.mxu0 %v5856
  %5932 = vmatpush1.bf16.msra.mxu0 %v5855
  %5933 = vmatprep.subr.bf16.mxu0 %v5852
  %5934 = vmatpush1.bf16.msra.mxu0 %v5851
  %5935 = vmatprep.subr.bf16.mxu0 %v5848
  %5936 = vmatpush1.bf16.msra.mxu0 %v5847
  %5937 = vmatprep.subr.bf16.mxu0 0
  %5938 = vmatpush2.bf16.msra.mxu0 0
  %5939 = vmatprep.subr.bf16.mxu0 0
  %5940 = vmatpush2.bf16.msra.mxu0 0
  %5941 = vmatprep.subr.bf16.mxu0 0
  %5942 = vmatpush2.bf16.msra.mxu0 0
  %5943 = vmatprep.subr.bf16.mxu0 0
  %5944 = vmatpush2.bf16.msra.mxu0 0
  %5945 = vmatprep.subr.bf16.mxu0 0
  %5946 = vmatpush2.bf16.msra.mxu0 0
  %5947 = vmatprep.subr.bf16.mxu0 0
  %5948 = vmatpush2.bf16.msra.mxu0 0
  %5949 = vmatprep.subr.bf16.mxu0 0
  %5950 = vmatpush2.bf16.msra.mxu0 0
  %5951 = vmatprep.subr.bf16.mxu0 0
  %5952 = vmatpush2.bf16.msra.mxu0 0
  %5953 = vmatprep.mubr.bf16.mxu0 0
  %5954 = vmatmul.mubr.bf16.gmra.mxu0 %v5878
  %v5955 = vpop.f32.mrf.mxu0
  %v5956 = vadd.f32 0.0, %v5955
  %v5957 = vpop.f32.mrf.mxu0
  %v5958 = vadd.f32 0.0, %v5957
  %v5959 = vpop.f32.mrf.mxu0
  %v5960 = vpop.f32.mrf.mxu0
  %5961 = vdwg.mxu0
  %v5962 = vadd.f32 %v5763, %v5915
  %v5963 = vadd.f32 %v5764, %v5917
  %v5964 = vadd.f32 %v5765, %v5956
  %v5965 = vadd.f32 %v5766, %v5958
  %v5966 = vld [vmem:[%s8 + $0x680] sm:$0xff]
  %v5967 = vld [vmem:[%s8 + $0x688] sm:$0xff]
  %v5968 = vld [vmem:[%s8 + $0x690] sm:$0xff]
  %v5969 = vld [vmem:[%s8 + $0x698] sm:$0xff]
  %v5970 = vld [vmem:[%s8 + $0x6a0] sm:$0xff]
  %v5971 = vld [vmem:[%s8 + $0x6a8] sm:$0xff]
  %v5972 = vld [vmem:[%s8 + $0x6b0] sm:$0xff]
  %v5973 = vld [vmem:[%s8 + $0x6b8] sm:$0xff]
  %v5974 = vld [vmem:[%s8 + $0x6c0] sm:$0xff]
  %v5975 = vld [vmem:[%s8 + $0x6c8] sm:$0xff]
  %v5976 = vld [vmem:[%s8 + $0x6d0] sm:$0xff]
  %v5977 = vld [vmem:[%s8 + $0x6d8] sm:$0xff]
  %v5978 = vld [vmem:[%s8 + $0x6e0] sm:$0xff]
  %v5979 = vld [vmem:[%s8 + $0x6e8] sm:$0xff]
  %v5980 = vld [vmem:[%s8 + $0x6f0] sm:$0xff]
  %v5981 = vld [vmem:[%s8 + $0x6f8] sm:$0xff]
  %v5982 = vrot.slane %v5791, 5
  %v5983 = vrot.slane %v5792, 4
  %v5984 = vsel %vm3469, %v5983, %v5982
  %v5985 = vpack.c.b16 %v5984, %v5984
  %v6002 = vunpack.c.l.b16 %v5966
  %v6003 = vunpack.c.h.b16 %v5966
  %v6004 = vunpack.c.l.b16 %v5967
  %v6005 = vunpack.c.h.b16 %v5967
  %v6006 = vunpack.c.l.b16 %v5968
  %v6007 = vunpack.c.h.b16 %v5968
  %v6008 = vunpack.c.l.b16 %v5969
  %v6009 = vunpack.c.h.b16 %v5969
  %v6010 = vunpack.c.l.b16 %v5970
  %v6011 = vunpack.c.h.b16 %v5970
  %v6012 = vunpack.c.l.b16 %v5971
  %v6013 = vunpack.c.h.b16 %v5971
  %v6014 = vunpack.c.l.b16 %v5972
  %v6015 = vunpack.c.h.b16 %v5972
  %v6016 = vunpack.c.l.b16 %v5973
  %v6017 = vunpack.c.h.b16 %v5973
  %v6018 = vunpack.c.l.b16 %v5974
  %v6019 = vunpack.c.h.b16 %v5974
  %v6020 = vunpack.c.l.b16 %v5975
  %v6021 = vunpack.c.h.b16 %v5975
  %v6022 = vunpack.c.l.b16 %v5976
  %v6023 = vunpack.c.h.b16 %v5976
  %v6024 = vunpack.c.l.b16 %v5977
  %v6025 = vunpack.c.h.b16 %v5977
  %v6026 = vunpack.c.l.b16 %v5978
  %v6027 = vunpack.c.h.b16 %v5978
  %v6028 = vunpack.c.l.b16 %v5979
  %v6029 = vunpack.c.h.b16 %v5979
  %v6030 = vunpack.c.l.b16 %v5980
  %v6031 = vunpack.c.h.b16 %v5980
  %v6032 = vunpack.c.l.b16 %v5981
  %v6033 = vunpack.c.h.b16 %v5981
  %v6034 = vpack.c.b16 %v6006, %v6002
  %v6035 = vpack.c.b16 %v6007, %v6003
  %v6036 = vpack.c.b16 %v6008, %v6004
  %v6037 = vpack.c.b16 %v6009, %v6005
  %v6038 = vpack.c.b16 %v6014, %v6010
  %v6039 = vpack.c.b16 %v6015, %v6011
  %v6040 = vpack.c.b16 %v6016, %v6012
  %v6041 = vpack.c.b16 %v6017, %v6013
  %v6042 = vpack.c.b16 %v6022, %v6018
  %v6043 = vpack.c.b16 %v6023, %v6019
  %v6044 = vpack.c.b16 %v6024, %v6020
  %v6045 = vpack.c.b16 %v6025, %v6021
  %v6046 = vpack.c.b16 %v6030, %v6026
  %v6047 = vpack.c.b16 %v6031, %v6027
  %v6048 = vpack.c.b16 %v6032, %v6028
  %v6049 = vpack.c.b16 %v6033, %v6029
  %v6067 = vsel %vm2104, %v5985, 0
  %6069 = vmatprep.subr.bf16.mxu0 0
  %6070 = vmatpush1.bf16.msra.mxu0 0
  %6071 = vmatprep.subr.bf16.mxu0 0
  %6072 = vmatpush1.bf16.msra.mxu0 0
  %6073 = vmatprep.subr.bf16.mxu0 0
  %6074 = vmatpush1.bf16.msra.mxu0 0
  %6075 = vmatprep.subr.bf16.mxu0 0
  %6076 = vmatpush1.bf16.msra.mxu0 0
  %6077 = vmatprep.subr.bf16.mxu0 %v6047
  %6078 = vmatpush1.bf16.msra.mxu0 %v6046
  %6079 = vmatprep.subr.bf16.mxu0 %v6043
  %6080 = vmatpush1.bf16.msra.mxu0 %v6042
  %6081 = vmatprep.subr.bf16.mxu0 %v6039
  %6082 = vmatpush1.bf16.msra.mxu0 %v6038
  %6083 = vmatprep.subr.bf16.mxu0 %v6035
  %6084 = vmatpush1.bf16.msra.mxu0 %v6034
  %6085 = vmatprep.subr.bf16.mxu0 0
  %6086 = vmatpush2.bf16.msra.mxu0 0
  %6087 = vmatprep.subr.bf16.mxu0 0
  %6088 = vmatpush2.bf16.msra.mxu0 0
  %6089 = vmatprep.subr.bf16.mxu0 0
  %6090 = vmatpush2.bf16.msra.mxu0 0
  %6091 = vmatprep.subr.bf16.mxu0 0
  %6092 = vmatpush2.bf16.msra.mxu0 0
  %6093 = vmatprep.subr.bf16.mxu0 0
  %6094 = vmatpush2.bf16.msra.mxu0 0
  %6095 = vmatprep.subr.bf16.mxu0 0
  %6096 = vmatpush2.bf16.msra.mxu0 0
  %6097 = vmatprep.subr.bf16.mxu0 0
  %6098 = vmatpush2.bf16.msra.mxu0 0
  %6099 = vmatprep.subr.bf16.mxu0 0
  %6100 = vmatpush2.bf16.msra.mxu0 0
  %6101 = vmatprep.mubr.bf16.mxu0 0
  %6102 = vmatmul.mubr.bf16.gmra.mxu0 %v6067
  %v6103 = vpop.f32.mrf.mxu0
  %v6104 = vadd.f32 0.0, %v6103
  %v6105 = vpop.f32.mrf.mxu0
  %v6106 = vadd.f32 0.0, %v6105
  %v6107 = vpop.f32.mrf.mxu0
  %v6108 = vpop.f32.mrf.mxu0
  %6109 = vdwg.mxu0
  %6110 = vmatprep.subr.bf16.mxu0 0
  %6111 = vmatpush1.bf16.msra.mxu0 0
  %6112 = vmatprep.subr.bf16.mxu0 0
  %6113 = vmatpush1.bf16.msra.mxu0 0
  %6114 = vmatprep.subr.bf16.mxu0 0
  %6115 = vmatpush1.bf16.msra.mxu0 0
  %6116 = vmatprep.subr.bf16.mxu0 0
  %6117 = vmatpush1.bf16.msra.mxu0 0
  %6118 = vmatprep.subr.bf16.mxu0 %v6049
  %6119 = vmatpush1.bf16.msra.mxu0 %v6048
  %6120 = vmatprep.subr.bf16.mxu0 %v6045
  %6121 = vmatpush1.bf16.msra.mxu0 %v6044
  %6122 = vmatprep.subr.bf16.mxu0 %v6041
  %6123 = vmatpush1.bf16.msra.mxu0 %v6040
  %6124 = vmatprep.subr.bf16.mxu0 %v6037
  %6125 = vmatpush1.bf16.msra.mxu0 %v6036
  %6126 = vmatprep.subr.bf16.mxu0 0
  %6127 = vmatpush2.bf16.msra.mxu0 0
  %6128 = vmatprep.subr.bf16.mxu0 0
  %6129 = vmatpush2.bf16.msra.mxu0 0
  %6130 = vmatprep.subr.bf16.mxu0 0
  %6131 = vmatpush2.bf16.msra.mxu0 0
  %6132 = vmatprep.subr.bf16.mxu0 0
  %6133 = vmatpush2.bf16.msra.mxu0 0
  %6134 = vmatprep.subr.bf16.mxu0 0
  %6135 = vmatpush2.bf16.msra.mxu0 0
  %6136 = vmatprep.subr.bf16.mxu0 0
  %6137 = vmatpush2.bf16.msra.mxu0 0
  %6138 = vmatprep.subr.bf16.mxu0 0
  %6139 = vmatpush2.bf16.msra.mxu0 0
  %6140 = vmatprep.subr.bf16.mxu0 0
  %6141 = vmatpush2.bf16.msra.mxu0 0
  %6142 = vmatprep.mubr.bf16.mxu0 0
  %6143 = vmatmul.mubr.bf16.gmra.mxu0 %v6067
  %v6144 = vpop.f32.mrf.mxu0
  %v6145 = vadd.f32 0.0, %v6144
  %v6146 = vpop.f32.mrf.mxu0
  %v6147 = vadd.f32 0.0, %v6146
  %v6148 = vpop.f32.mrf.mxu0
  %v6149 = vpop.f32.mrf.mxu0
  %6150 = vdwg.mxu0
  %v6151 = vadd.f32 %v5962, %v6104
  %v6152 = vadd.f32 %v5963, %v6106
  %v6153 = vadd.f32 %v5964, %v6145
  %v6154 = vadd.f32 %v5965, %v6147
  %v6155 = vld [vmem:[#allocation6 + $0x4] sm:$0x8]
  %v6156 = vld [vmem:[#allocation6 + $0xc] sm:$0x8]
  %v6157 = vld [vmem:[%s8 + $0x700] sm:$0xff]
  %v6158 = vld [vmem:[%s8 + $0x708] sm:$0xff]
  %v6159 = vld [vmem:[%s8 + $0x710] sm:$0xff]
  %v6160 = vld [vmem:[%s8 + $0x718] sm:$0xff]
  %v6161 = vld [vmem:[%s8 + $0x720] sm:$0xff]
  %v6162 = vld [vmem:[%s8 + $0x728] sm:$0xff]
  %v6163 = vld [vmem:[%s8 + $0x730] sm:$0xff]
  %v6164 = vld [vmem:[%s8 + $0x738] sm:$0xff]
  %v6165 = vld [vmem:[%s8 + $0x740] sm:$0xff]
  %v6166 = vld [vmem:[%s8 + $0x748] sm:$0xff]
  %v6167 = vld [vmem:[%s8 + $0x750] sm:$0xff]
  %v6168 = vld [vmem:[%s8 + $0x758] sm:$0xff]
  %v6169 = vld [vmem:[%s8 + $0x760] sm:$0xff]
  %v6170 = vld [vmem:[%s8 + $0x768] sm:$0xff]
  %v6171 = vld [vmem:[%s8 + $0x770] sm:$0xff]
  %v6172 = vld [vmem:[%s8 + $0x778] sm:$0xff]
  %v6175 = vunpack.c.l.b16 %v6155
  %v6176 = vunpack.c.l.b16 %v6156
  %v6177 = vpack.c.b16 %v6175, %v6175
  %v6178 = vpack.c.b16 %v6176, %v6176
  %v6179 = vunpack.c.l.b16 %v6177
  %v6180 = vunpack.c.l.b16 %v6178
  %v6181 = vrot.slane %v6179, 6
  %v6182 = vrot.slane %v6180, 5
  %v6183 = vsel %vm3469, %v6182, %v6181
  %v6184 = vpack.c.b16 %v6183, %v6183
  %v6201 = vunpack.c.l.b16 %v6157
  %v6202 = vunpack.c.h.b16 %v6157
  %v6203 = vunpack.c.l.b16 %v6158
  %v6204 = vunpack.c.h.b16 %v6158
  %v6205 = vunpack.c.l.b16 %v6159
  %v6206 = vunpack.c.h.b16 %v6159
  %v6207 = vunpack.c.l.b16 %v6160
  %v6208 = vunpack.c.h.b16 %v6160
  %v6209 = vunpack.c.l.b16 %v6161
  %v6210 = vunpack.c.h.b16 %v6161
  %v6211 = vunpack.c.l.b16 %v6162
  %v6212 = vunpack.c.h.b16 %v6162
  %v6213 = vunpack.c.l.b16 %v6163
  %v6214 = vunpack.c.h.b16 %v6163
  %v6215 = vunpack.c.l.b16 %v6164
  %v6216 = vunpack.c.h.b16 %v6164
  %v6217 = vunpack.c.l.b16 %v6165
  %v6218 = vunpack.c.h.b16 %v6165
  %v6219 = vunpack.c.l.b16 %v6166
  %v6220 = vunpack.c.h.b16 %v6166
  %v6221 = vunpack.c.l.b16 %v6167
  %v6222 = vunpack.c.h.b16 %v6167
  %v6223 = vunpack.c.l.b16 %v6168
  %v6224 = vunpack.c.h.b16 %v6168
  %v6225 = vunpack.c.l.b16 %v6169
  %v6226 = vunpack.c.h.b16 %v6169
  %v6227 = vunpack.c.l.b16 %v6170
  %v6228 = vunpack.c.h.b16 %v6170
  %v6229 = vunpack.c.l.b16 %v6171
  %v6230 = vunpack.c.h.b16 %v6171
  %v6231 = vunpack.c.l.b16 %v6172
  %v6232 = vunpack.c.h.b16 %v6172
  %v6233 = vpack.c.b16 %v6205, %v6201
  %v6234 = vpack.c.b16 %v6206, %v6202
  %v6235 = vpack.c.b16 %v6207, %v6203
  %v6236 = vpack.c.b16 %v6208, %v6204
  %v6237 = vpack.c.b16 %v6213, %v6209
  %v6238 = vpack.c.b16 %v6214, %v6210
  %v6239 = vpack.c.b16 %v6215, %v6211
  %v6240 = vpack.c.b16 %v6216, %v6212
  %v6241 = vpack.c.b16 %v6221, %v6217
  %v6242 = vpack.c.b16 %v6222, %v6218
  %v6243 = vpack.c.b16 %v6223, %v6219
  %v6244 = vpack.c.b16 %v6224, %v6220
  %v6245 = vpack.c.b16 %v6229, %v6225
  %v6246 = vpack.c.b16 %v6230, %v6226
  %v6247 = vpack.c.b16 %v6231, %v6227
  %v6248 = vpack.c.b16 %v6232, %v6228
  %v6266 = vsel %vm2104, %v6184, 0
  %6268 = vmatprep.subr.bf16.mxu0 0
  %6269 = vmatpush1.bf16.msra.mxu0 0
  %6270 = vmatprep.subr.bf16.mxu0 0
  %6271 = vmatpush1.bf16.msra.mxu0 0
  %6272 = vmatprep.subr.bf16.mxu0 0
  %6273 = vmatpush1.bf16.msra.mxu0 0
  %6274 = vmatprep.subr.bf16.mxu0 0
  %6275 = vmatpush1.bf16.msra.mxu0 0
  %6276 = vmatprep.subr.bf16.mxu0 %v6246
  %6277 = vmatpush1.bf16.msra.mxu0 %v6245
  %6278 = vmatprep.subr.bf16.mxu0 %v6242
  %6279 = vmatpush1.bf16.msra.mxu0 %v6241
  %6280 = vmatprep.subr.bf16.mxu0 %v6238
  %6281 = vmatpush1.bf16.msra.mxu0 %v6237
  %6282 = vmatprep.subr.bf16.mxu0 %v6234
  %6283 = vmatpush1.bf16.msra.mxu0 %v6233
  %6284 = vmatprep.subr.bf16.mxu0 0
  %6285 = vmatpush2.bf16.msra.mxu0 0
  %6286 = vmatprep.subr.bf16.mxu0 0
  %6287 = vmatpush2.bf16.msra.mxu0 0
  %6288 = vmatprep.subr.bf16.mxu0 0
  %6289 = vmatpush2.bf16.msra.mxu0 0
  %6290 = vmatprep.subr.bf16.mxu0 0
  %6291 = vmatpush2.bf16.msra.mxu0 0
  %6292 = vmatprep.subr.bf16.mxu0 0
  %6293 = vmatpush2.bf16.msra.mxu0 0
  %6294 = vmatprep.subr.bf16.mxu0 0
  %6295 = vmatpush2.bf16.msra.mxu0 0
  %6296 = vmatprep.subr.bf16.mxu0 0
  %6297 = vmatpush2.bf16.msra.mxu0 0
  %6298 = vmatprep.subr.bf16.mxu0 0
  %6299 = vmatpush2.bf16.msra.mxu0 0
  %6300 = vmatprep.mubr.bf16.mxu0 0
  %6301 = vmatmul.mubr.bf16.gmra.mxu0 %v6266
  %v6302 = vpop.f32.mrf.mxu0
  %v6303 = vadd.f32 0.0, %v6302
  %v6304 = vpop.f32.mrf.mxu0
  %v6305 = vadd.f32 0.0, %v6304
  %v6306 = vpop.f32.mrf.mxu0
  %v6307 = vpop.f32.mrf.mxu0
  %6308 = vdwg.mxu0
  %6309 = vmatprep.subr.bf16.mxu0 0
  %6310 = vmatpush1.bf16.msra.mxu0 0
  %6311 = vmatprep.subr.bf16.mxu0 0
  %6312 = vmatpush1.bf16.msra.mxu0 0
  %6313 = vmatprep.subr.bf16.mxu0 0
  %6314 = vmatpush1.bf16.msra.mxu0 0
  %6315 = vmatprep.subr.bf16.mxu0 0
  %6316 = vmatpush1.bf16.msra.mxu0 0
  %6317 = vmatprep.subr.bf16.mxu0 %v6248
  %6318 = vmatpush1.bf16.msra.mxu0 %v6247
  %6319 = vmatprep.subr.bf16.mxu0 %v6244
  %6320 = vmatpush1.bf16.msra.mxu0 %v6243
  %6321 = vmatprep.subr.bf16.mxu0 %v6240
  %6322 = vmatpush1.bf16.msra.mxu0 %v6239
  %6323 = vmatprep.subr.bf16.mxu0 %v6236
  %6324 = vmatpush1.bf16.msra.mxu0 %v6235
  %6325 = vmatprep.subr.bf16.mxu0 0
  %6326 = vmatpush2.bf16.msra.mxu0 0
  %6327 = vmatprep.subr.bf16.mxu0 0
  %6328 = vmatpush2.bf16.msra.mxu0 0
  %6329 = vmatprep.subr.bf16.mxu0 0
  %6330 = vmatpush2.bf16.msra.mxu0 0
  %6331 = vmatprep.subr.bf16.mxu0 0
  %6332 = vmatpush2.bf16.msra.mxu0 0
  %6333 = vmatprep.subr.bf16.mxu0 0
  %6334 = vmatpush2.bf16.msra.mxu0 0
  %6335 = vmatprep.subr.bf16.mxu0 0
  %6336 = vmatpush2.bf16.msra.mxu0 0
  %6337 = vmatprep.subr.bf16.mxu0 0
  %6338 = vmatpush2.bf16.msra.mxu0 0
  %6339 = vmatprep.subr.bf16.mxu0 0
  %6340 = vmatpush2.bf16.msra.mxu0 0
  %6341 = vmatprep.mubr.bf16.mxu0 0
  %6342 = vmatmul.mubr.bf16.gmra.mxu0 %v6266
  %v6343 = vpop.f32.mrf.mxu0
  %v6344 = vadd.f32 0.0, %v6343
  %v6345 = vpop.f32.mrf.mxu0
  %v6346 = vadd.f32 0.0, %v6345
  %v6347 = vpop.f32.mrf.mxu0
  %v6348 = vpop.f32.mrf.mxu0
  %6349 = vdwg.mxu0
  %v6350 = vadd.f32 %v6151, %v6303
  %v6351 = vadd.f32 %v6152, %v6305
  %v6352 = vadd.f32 %v6153, %v6344
  %v6353 = vadd.f32 %v6154, %v6346
  %v6354 = vld [vmem:[%s8 + $0x780] sm:$0xff]
  %v6355 = vld [vmem:[%s8 + $0x788] sm:$0xff]
  %v6356 = vld [vmem:[%s8 + $0x790] sm:$0xff]
  %v6357 = vld [vmem:[%s8 + $0x798] sm:$0xff]
  %v6358 = vld [vmem:[%s8 + $0x7a0] sm:$0xff]
  %v6359 = vld [vmem:[%s8 + $0x7a8] sm:$0xff]
  %v6360 = vld [vmem:[%s8 + $0x7b0] sm:$0xff]
  %v6361 = vld [vmem:[%s8 + $0x7b8] sm:$0xff]
  %v6362 = vld [vmem:[%s8 + $0x7c0] sm:$0xff]
  %v6363 = vld [vmem:[%s8 + $0x7c8] sm:$0xff]
  %v6364 = vld [vmem:[%s8 + $0x7d0] sm:$0xff]
  %v6365 = vld [vmem:[%s8 + $0x7d8] sm:$0xff]
  %v6366 = vld [vmem:[%s8 + $0x7e0] sm:$0xff]
  %v6367 = vld [vmem:[%s8 + $0x7e8] sm:$0xff]
  %v6368 = vld [vmem:[%s8 + $0x7f0] sm:$0xff]
  %v6369 = vld [vmem:[%s8 + $0x7f8] sm:$0xff]
  %v6370 = vrot.slane %v6179, 7
  %v6371 = vrot.slane %v6180, 6
  %v6372 = vsel %vm3469, %v6371, %v6370
  %v6373 = vpack.c.b16 %v6372, %v6372
  %v6390 = vunpack.c.l.b16 %v6354
  %v6391 = vunpack.c.h.b16 %v6354
  %v6392 = vunpack.c.l.b16 %v6355
  %v6393 = vunpack.c.h.b16 %v6355
  %v6394 = vunpack.c.l.b16 %v6356
  %v6395 = vunpack.c.h.b16 %v6356
  %v6396 = vunpack.c.l.b16 %v6357
  %v6397 = vunpack.c.h.b16 %v6357
  %v6398 = vunpack.c.l.b16 %v6358
  %v6399 = vunpack.c.h.b16 %v6358
  %v6400 = vunpack.c.l.b16 %v6359
  %v6401 = vunpack.c.h.b16 %v6359
  %v6402 = vunpack.c.l.b16 %v6360
  %v6403 = vunpack.c.h.b16 %v6360
  %v6404 = vunpack.c.l.b16 %v6361
  %v6405 = vunpack.c.h.b16 %v6361
  %v6406 = vunpack.c.l.b16 %v6362
  %v6407 = vunpack.c.h.b16 %v6362
  %v6408 = vunpack.c.l.b16 %v6363
  %v6409 = vunpack.c.h.b16 %v6363
  %v6410 = vunpack.c.l.b16 %v6364
  %v6411 = vunpack.c.h.b16 %v6364
  %v6412 = vunpack.c.l.b16 %v6365
  %v6413 = vunpack.c.h.b16 %v6365
  %v6414 = vunpack.c.l.b16 %v6366
  %v6415 = vunpack.c.h.b16 %v6366
  %v6416 = vunpack.c.l.b16 %v6367
  %v6417 = vunpack.c.h.b16 %v6367
  %v6418 = vunpack.c.l.b16 %v6368
  %v6419 = vunpack.c.h.b16 %v6368
  %v6420 = vunpack.c.l.b16 %v6369
  %v6421 = vunpack.c.h.b16 %v6369
  %v6422 = vpack.c.b16 %v6394, %v6390
  %v6423 = vpack.c.b16 %v6395, %v6391
  %v6424 = vpack.c.b16 %v6396, %v6392
  %v6425 = vpack.c.b16 %v6397, %v6393
  %v6426 = vpack.c.b16 %v6402, %v6398
  %v6427 = vpack.c.b16 %v6403, %v6399
  %v6428 = vpack.c.b16 %v6404, %v6400
  %v6429 = vpack.c.b16 %v6405, %v6401
  %v6430 = vpack.c.b16 %v6410, %v6406
  %v6431 = vpack.c.b16 %v6411, %v6407
  %v6432 = vpack.c.b16 %v6412, %v6408
  %v6433 = vpack.c.b16 %v6413, %v6409
  %v6434 = vpack.c.b16 %v6418, %v6414
  %v6435 = vpack.c.b16 %v6419, %v6415
  %v6436 = vpack.c.b16 %v6420, %v6416
  %v6437 = vpack.c.b16 %v6421, %v6417
  %v6455 = vsel %vm2104, %v6373, 0
  %6457 = vmatprep.subr.bf16.mxu0 0
  %6458 = vmatpush1.bf16.msra.mxu0 0
  %6459 = vmatprep.subr.bf16.mxu0 0
  %6460 = vmatpush1.bf16.msra.mxu0 0
  %6461 = vmatprep.subr.bf16.mxu0 0
  %6462 = vmatpush1.bf16.msra.mxu0 0
  %6463 = vmatprep.subr.bf16.mxu0 0
  %6464 = vmatpush1.bf16.msra.mxu0 0
  %6465 = vmatprep.subr.bf16.mxu0 %v6435
  %6466 = vmatpush1.bf16.msra.mxu0 %v6434
  %6467 = vmatprep.subr.bf16.mxu0 %v6431
  %6468 = vmatpush1.bf16.msra.mxu0 %v6430
  %6469 = vmatprep.subr.bf16.mxu0 %v6427
  %6470 = vmatpush1.bf16.msra.mxu0 %v6426
  %6471 = vmatprep.subr.bf16.mxu0 %v6423
  %6472 = vmatpush1.bf16.msra.mxu0 %v6422
  %6473 = vmatprep.subr.bf16.mxu0 0
  %6474 = vmatpush2.bf16.msra.mxu0 0
  %6475 = vmatprep.subr.bf16.mxu0 0
  %6476 = vmatpush2.bf16.msra.mxu0 0
  %6477 = vmatprep.subr.bf16.mxu0 0
  %6478 = vmatpush2.bf16.msra.mxu0 0
  %6479 = vmatprep.subr.bf16.mxu0 0
  %6480 = vmatpush2.bf16.msra.mxu0 0
  %6481 = vmatprep.subr.bf16.mxu0 0
  %6482 = vmatpush2.bf16.msra.mxu0 0
  %6483 = vmatprep.subr.bf16.mxu0 0
  %6484 = vmatpush2.bf16.msra.mxu0 0
  %6485 = vmatprep.subr.bf16.mxu0 0
  %6486 = vmatpush2.bf16.msra.mxu0 0
  %6487 = vmatprep.subr.bf16.mxu0 0
  %6488 = vmatpush2.bf16.msra.mxu0 0
  %6489 = vmatprep.mubr.bf16.mxu0 0
  %6490 = vmatmul.mubr.bf16.gmra.mxu0 %v6455
  %v6491 = vpop.f32.mrf.mxu0
  %v6492 = vadd.f32 0.0, %v6491
  %v6493 = vpop.f32.mrf.mxu0
  %v6494 = vadd.f32 0.0, %v6493
  %v6495 = vpop.f32.mrf.mxu0
  %v6496 = vpop.f32.mrf.mxu0
  %6497 = vdwg.mxu0
  %6498 = vmatprep.subr.bf16.mxu0 0
  %6499 = vmatpush1.bf16.msra.mxu0 0
  %6500 = vmatprep.subr.bf16.mxu0 0
  %6501 = vmatpush1.bf16.msra.mxu0 0
  %6502 = vmatprep.subr.bf16.mxu0 0
  %6503 = vmatpush1.bf16.msra.mxu0 0
  %6504 = vmatprep.subr.bf16.mxu0 0
  %6505 = vmatpush1.bf16.msra.mxu0 0
  %6506 = vmatprep.subr.bf16.mxu0 %v6437
  %6507 = vmatpush1.bf16.msra.mxu0 %v6436
  %6508 = vmatprep.subr.bf16.mxu0 %v6433
  %6509 = vmatpush1.bf16.msra.mxu0 %v6432
  %6510 = vmatprep.subr.bf16.mxu0 %v6429
  %6511 = vmatpush1.bf16.msra.mxu0 %v6428
  %6512 = vmatprep.subr.bf16.mxu0 %v6425
  %6513 = vmatpush1.bf16.msra.mxu0 %v6424
  %6514 = vmatprep.subr.bf16.mxu0 0
  %6515 = vmatpush2.bf16.msra.mxu0 0
  %6516 = vmatprep.subr.bf16.mxu0 0
  %6517 = vmatpush2.bf16.msra.mxu0 0
  %6518 = vmatprep.subr.bf16.mxu0 0
  %6519 = vmatpush2.bf16.msra.mxu0 0
  %6520 = vmatprep.subr.bf16.mxu0 0
  %6521 = vmatpush2.bf16.msra.mxu0 0
  %6522 = vmatprep.subr.bf16.mxu0 0
  %6523 = vmatpush2.bf16.msra.mxu0 0
  %6524 = vmatprep.subr.bf16.mxu0 0
  %6525 = vmatpush2.bf16.msra.mxu0 0
  %6526 = vmatprep.subr.bf16.mxu0 0
  %6527 = vmatpush2.bf16.msra.mxu0 0
  %6528 = vmatprep.subr.bf16.mxu0 0
  %6529 = vmatpush2.bf16.msra.mxu0 0
  %6530 = vmatprep.mubr.bf16.mxu0 0
  %6531 = vmatmul.mubr.bf16.gmra.mxu0 %v6455
  %v6532 = vpop.f32.mrf.mxu0
  %v6533 = vadd.f32 0.0, %v6532
  %v6534 = vpop.f32.mrf.mxu0
  %v6535 = vadd.f32 0.0, %v6534
  %v6536 = vpop.f32.mrf.mxu0
  %v6537 = vpop.f32.mrf.mxu0
  %6538 = vdwg.mxu0
  %v6539 = vadd.f32 %v6350, %v6492
  %v6540 = vadd.f32 %v6351, %v6494
  %v6541 = vadd.f32 %v6352, %v6533
  %v6542 = vadd.f32 %v6353, %v6535
  %v6543 = vmax.f32 %v6539, 0.0
  %v6544 = vmax.f32 %v6540, 0.0
  %v6545 = vmax.f32 %v6541, 0.0
  %v6546 = vmax.f32 %v6542, 0.0
  %v6547 = vpack.c.bf16 %v6543, %v6543
  %v6548 = vpack.c.bf16 %v6544, %v6544
  %v6549 = vpack.c.bf16 %v6545, %v6545
  %v6550 = vpack.c.bf16 %v6546, %v6546
  %v6551 = vld [vmem:[%s10] sm:$0xf]
  %v6552 = vld [vmem:[%s10 + $0x4] sm:$0xf]
  %v6553 = vld [vmem:[%s10 + $0x8] sm:$0xf]
  %v6554 = vld [vmem:[%s10 + $0xc] sm:$0xf]
  %v6555 = vld [vmem:[%s10 + $0x10] sm:$0xf]
  %v6556 = vld [vmem:[%s10 + $0x14] sm:$0xf]
  %v6557 = vld [vmem:[%s10 + $0x18] sm:$0xf]
  %v6558 = vld [vmem:[%s10 + $0x1c] sm:$0xf]
  %v6559 = vld [vmem:[%s10 + $0x20] sm:$0xf]
  %v6560 = vld [vmem:[%s10 + $0x24] sm:$0xf]
  %v6561 = vld [vmem:[%s10 + $0x28] sm:$0xf]
  %v6562 = vld [vmem:[%s10 + $0x2c] sm:$0xf]
  %v6563 = vld [vmem:[%s10 + $0x30] sm:$0xf]
  %v6564 = vld [vmem:[%s10 + $0x34] sm:$0xf]
  %v6565 = vld [vmem:[%s10 + $0x38] sm:$0xf]
  %v6566 = vld [vmem:[%s10 + $0x3c] sm:$0xf]
  %v6567 = vld [vmem:[%s10 + $0x40] sm:$0xf]
  %v6568 = vld [vmem:[%s10 + $0x44] sm:$0xf]
  %v6569 = vld [vmem:[%s10 + $0x48] sm:$0xf]
  %v6570 = vld [vmem:[%s10 + $0x4c] sm:$0xf]
  %v6571 = vld [vmem:[%s10 + $0x50] sm:$0xf]
  %v6572 = vld [vmem:[%s10 + $0x54] sm:$0xf]
  %v6573 = vld [vmem:[%s10 + $0x58] sm:$0xf]
  %v6574 = vld [vmem:[%s10 + $0x5c] sm:$0xf]
  %v6575 = vld [vmem:[%s10 + $0x60] sm:$0xf]
  %v6576 = vld [vmem:[%s10 + $0x64] sm:$0xf]
  %v6577 = vld [vmem:[%s10 + $0x68] sm:$0xf]
  %v6578 = vld [vmem:[%s10 + $0x6c] sm:$0xf]
  %v6579 = vld [vmem:[%s10 + $0x70] sm:$0xf]
  %v6580 = vld [vmem:[%s10 + $0x74] sm:$0xf]
  %v6581 = vld [vmem:[%s10 + $0x78] sm:$0xf]
  %v6582 = vld [vmem:[%s10 + $0x7c] sm:$0xf]
  %v6583 = vld [vmem:[%s10 + $0x80] sm:$0xf]
  %v6584 = vld [vmem:[%s10 + $0x84] sm:$0xf]
  %v6585 = vld [vmem:[%s10 + $0x88] sm:$0xf]
  %v6586 = vld [vmem:[%s10 + $0x8c] sm:$0xf]
  %v6587 = vld [vmem:[%s10 + $0x90] sm:$0xf]
  %v6588 = vld [vmem:[%s10 + $0x94] sm:$0xf]
  %v6589 = vld [vmem:[%s10 + $0x98] sm:$0xf]
  %v6590 = vld [vmem:[%s10 + $0x9c] sm:$0xf]
  %v6591 = vld [vmem:[%s10 + $0xa0] sm:$0xf]
  %v6592 = vld [vmem:[%s10 + $0xa4] sm:$0xf]
  %v6593 = vld [vmem:[%s10 + $0xa8] sm:$0xf]
  %v6594 = vld [vmem:[%s10 + $0xac] sm:$0xf]
  %v6595 = vld [vmem:[%s10 + $0xb0] sm:$0xf]
  %v6596 = vld [vmem:[%s10 + $0xb4] sm:$0xf]
  %v6597 = vld [vmem:[%s10 + $0xb8] sm:$0xf]
  %v6598 = vld [vmem:[%s10 + $0xbc] sm:$0xf]
  %v6599 = vld [vmem:[%s10 + $0xc0] sm:$0xf]
  %v6600 = vld [vmem:[%s10 + $0xc4] sm:$0xf]
  %v6601 = vld [vmem:[%s10 + $0xc8] sm:$0xf]
  %v6602 = vld [vmem:[%s10 + $0xcc] sm:$0xf]
  %v6603 = vld [vmem:[%s10 + $0xd0] sm:$0xf]
  %v6604 = vld [vmem:[%s10 + $0xd4] sm:$0xf]
  %v6605 = vld [vmem:[%s10 + $0xd8] sm:$0xf]
  %v6606 = vld [vmem:[%s10 + $0xdc] sm:$0xf]
  %v6607 = vld [vmem:[%s10 + $0xe0] sm:$0xf]
  %v6608 = vld [vmem:[%s10 + $0xe4] sm:$0xf]
  %v6609 = vld [vmem:[%s10 + $0xe8] sm:$0xf]
  %v6610 = vld [vmem:[%s10 + $0xec] sm:$0xf]
  %v6611 = vld [vmem:[%s10 + $0xf0] sm:$0xf]
  %v6612 = vld [vmem:[%s10 + $0xf4] sm:$0xf]
  %v6613 = vld [vmem:[%s10 + $0xf8] sm:$0xf]
  %v6614 = vld [vmem:[%s10 + $0xfc] sm:$0xf]
  %v6615 = vld [vmem:[%s1] sm:$0x1]
  %v6616 = vld [vmem:[%s11] sm:$0x3]
  %vm6617 = vcmask 31744
  %v6619 = vsel %vm6617, %v6615, 0
  %vm6621 = vcmask 1041408
  %v6623 = vsel %vm6621, %v6616, 0
  %6625 = vmatprep.subr.bf16.mxu0 0
  %6626 = vmatpush1.bf16.msra.mxu0 0
  %6627 = vmatprep.subr.bf16.mxu0 0
  %6628 = vmatpush1.bf16.msra.mxu0 0
  %6629 = vmatprep.subr.bf16.mxu0 0
  %6630 = vmatpush1.bf16.msra.mxu0 0
  %6631 = vmatprep.subr.bf16.mxu0 0
  %6632 = vmatpush1.bf16.msra.mxu0 0
  %6633 = vmatprep.subr.bf16.mxu0 0
  %6634 = vmatpush1.bf16.msra.mxu0 0
  %6635 = vmatprep.subr.bf16.mxu0 0
  %6636 = vmatpush1.bf16.msra.mxu0 0
  %6637 = vmatprep.subr.bf16.mxu0 0
  %6638 = vmatpush1.bf16.msra.mxu0 0
  %6639 = vmatprep.subr.bf16.mxu0 0
  %6640 = vmatpush1.bf16.msra.mxu0 %v6623
  %6641 = vmatprep.subr.bf16.mxu0 0
  %6642 = vmatpush2.bf16.msra.mxu0 0
  %6643 = vmatprep.subr.bf16.mxu0 0
  %6644 = vmatpush2.bf16.msra.mxu0 0
  %6645 = vmatprep.subr.bf16.mxu0 0
  %6646 = vmatpush2.bf16.msra.mxu0 0
  %6647 = vmatprep.subr.bf16.mxu0 0
  %6648 = vmatpush2.bf16.msra.mxu0 0
  %6649 = vmatprep.subr.bf16.mxu0 0
  %6650 = vmatpush2.bf16.msra.mxu0 0
  %6651 = vmatprep.subr.bf16.mxu0 0
  %6652 = vmatpush2.bf16.msra.mxu0 0
  %6653 = vmatprep.subr.bf16.mxu0 0
  %6654 = vmatpush2.bf16.msra.mxu0 0
  %6655 = vmatprep.subr.bf16.mxu0 0
  %6656 = vmatpush2.bf16.msra.mxu0 0
  %6657 = vmatprep.mubr.bf16.mxu0 0
  %6658 = vmatmul.mubr.bf16.gmra.mxu0 %v6619
  %v6659 = vpop.f32.mrf.mxu0
  %v6660 = vadd.f32 0.0, %v6659
  %v6661 = vpop.f32.mrf.mxu0
  %v6662 = vpop.f32.mrf.mxu0
  %v6663 = vpop.f32.mrf.mxu0
  %6664 = vdwg.mxu0
  %v6729 = vunpack.c.l.b16 %v6551
  %v6730 = vunpack.c.l.b16 %v6552
  %v6731 = vunpack.c.l.b16 %v6553
  %v6732 = vunpack.c.l.b16 %v6554
  %v6733 = vunpack.c.l.b16 %v6555
  %v6734 = vunpack.c.l.b16 %v6556
  %v6735 = vunpack.c.l.b16 %v6557
  %v6736 = vunpack.c.l.b16 %v6558
  %v6737 = vunpack.c.l.b16 %v6559
  %v6738 = vunpack.c.l.b16 %v6560
  %v6739 = vunpack.c.l.b16 %v6561
  %v6740 = vunpack.c.l.b16 %v6562
  %v6741 = vunpack.c.l.b16 %v6563
  %v6742 = vunpack.c.l.b16 %v6564
  %v6743 = vunpack.c.l.b16 %v6565
  %v6744 = vunpack.c.l.b16 %v6566
  %v6745 = vunpack.c.l.b16 %v6567
  %v6746 = vunpack.c.l.b16 %v6568
  %v6747 = vunpack.c.l.b16 %v6569
  %v6748 = vunpack.c.l.b16 %v6570
  %v6749 = vunpack.c.l.b16 %v6571
  %v6750 = vunpack.c.l.b16 %v6572
  %v6751 = vunpack.c.l.b16 %v6573
  %v6752 = vunpack.c.l.b16 %v6574
  %v6753 = vunpack.c.l.b16 %v6575
  %v6754 = vunpack.c.l.b16 %v6576
  %v6755 = vunpack.c.l.b16 %v6577
  %v6756 = vunpack.c.l.b16 %v6578
  %v6757 = vunpack.c.l.b16 %v6579
  %v6758 = vunpack.c.l.b16 %v6580
  %v6759 = vunpack.c.l.b16 %v6581
  %v6760 = vunpack.c.l.b16 %v6582
  %v6761 = vunpack.c.l.b16 %v6583
  %v6762 = vunpack.c.l.b16 %v6584
  %v6763 = vunpack.c.l.b16 %v6585
  %v6764 = vunpack.c.l.b16 %v6586
  %v6765 = vunpack.c.l.b16 %v6587
  %v6766 = vunpack.c.l.b16 %v6588
  %v6767 = vunpack.c.l.b16 %v6589
  %v6768 = vunpack.c.l.b16 %v6590
  %v6769 = vunpack.c.l.b16 %v6591
  %v6770 = vunpack.c.l.b16 %v6592
  %v6771 = vunpack.c.l.b16 %v6593
  %v6772 = vunpack.c.l.b16 %v6594
  %v6773 = vunpack.c.l.b16 %v6595
  %v6774 = vunpack.c.l.b16 %v6596
  %v6775 = vunpack.c.l.b16 %v6597
  %v6776 = vunpack.c.l.b16 %v6598
  %v6777 = vunpack.c.l.b16 %v6599
  %v6778 = vunpack.c.l.b16 %v6600
  %v6779 = vunpack.c.l.b16 %v6601
  %v6780 = vunpack.c.l.b16 %v6602
  %v6781 = vunpack.c.l.b16 %v6603
  %v6782 = vunpack.c.l.b16 %v6604
  %v6783 = vunpack.c.l.b16 %v6605
  %v6784 = vunpack.c.l.b16 %v6606
  %v6785 = vunpack.c.l.b16 %v6607
  %v6786 = vunpack.c.l.b16 %v6608
  %v6787 = vunpack.c.l.b16 %v6609
  %v6788 = vunpack.c.l.b16 %v6610
  %v6789 = vunpack.c.l.b16 %v6611
  %v6790 = vunpack.c.l.b16 %v6612
  %v6791 = vunpack.c.l.b16 %v6613
  %v6792 = vunpack.c.l.b16 %v6614
  %v6793 = vpack.c.b16 %v6730, %v6729
  %v6794 = vpack.c.b16 %v6732, %v6731
  %v6795 = vpack.c.b16 %v6734, %v6733
  %v6796 = vpack.c.b16 %v6736, %v6735
  %v6797 = vpack.c.b16 %v6738, %v6737
  %v6798 = vpack.c.b16 %v6740, %v6739
  %v6799 = vpack.c.b16 %v6742, %v6741
  %v6800 = vpack.c.b16 %v6744, %v6743
  %v6801 = vpack.c.b16 %v6746, %v6745
  %v6802 = vpack.c.b16 %v6748, %v6747
  %v6803 = vpack.c.b16 %v6750, %v6749
  %v6804 = vpack.c.b16 %v6752, %v6751
  %v6805 = vpack.c.b16 %v6754, %v6753
  %v6806 = vpack.c.b16 %v6756, %v6755
  %v6807 = vpack.c.b16 %v6758, %v6757
  %v6808 = vpack.c.b16 %v6760, %v6759
  %v6809 = vpack.c.b16 %v6762, %v6761
  %v6810 = vpack.c.b16 %v6764, %v6763
  %v6811 = vpack.c.b16 %v6766, %v6765
  %v6812 = vpack.c.b16 %v6768, %v6767
  %v6813 = vpack.c.b16 %v6770, %v6769
  %v6814 = vpack.c.b16 %v6772, %v6771
  %v6815 = vpack.c.b16 %v6774, %v6773
  %v6816 = vpack.c.b16 %v6776, %v6775
  %v6817 = vpack.c.b16 %v6778, %v6777
  %v6818 = vpack.c.b16 %v6780, %v6779
  %v6819 = vpack.c.b16 %v6782, %v6781
  %v6820 = vpack.c.b16 %v6784, %v6783
  %v6821 = vpack.c.b16 %v6786, %v6785
  %v6822 = vpack.c.b16 %v6788, %v6787
  %v6823 = vpack.c.b16 %v6790, %v6789
  %v6824 = vpack.c.b16 %v6792, %v6791
  %6857 = vmatprep.subr.bf16.mxu0 0
  %6858 = vmatpush1.bf16.msra.mxu0 %v6800
  %6859 = vmatprep.subr.bf16.mxu0 0
  %6860 = vmatpush1.bf16.msra.mxu0 %v6799
  %6861 = vmatprep.subr.bf16.mxu0 0
  %6862 = vmatpush1.bf16.msra.mxu0 %v6798
  %6863 = vmatprep.subr.bf16.mxu0 0
  %6864 = vmatpush1.bf16.msra.mxu0 %v6797
  %6865 = vmatprep.subr.bf16.mxu0 0
  %6866 = vmatpush1.bf16.msra.mxu0 %v6796
  %6867 = vmatprep.subr.bf16.mxu0 0
  %6868 = vmatpush1.bf16.msra.mxu0 %v6795
  %6869 = vmatprep.subr.bf16.mxu0 0
  %6870 = vmatpush1.bf16.msra.mxu0 %v6794
  %6871 = vmatprep.subr.bf16.mxu0 0
  %6872 = vmatpush1.bf16.msra.mxu0 %v6793
  %6873 = vmatprep.subr.bf16.mxu0 0
  %6874 = vmatpush2.bf16.msra.mxu0 %v6808
  %6875 = vmatprep.subr.bf16.mxu0 0
  %6876 = vmatpush2.bf16.msra.mxu0 %v6807
  %6877 = vmatprep.subr.bf16.mxu0 0
  %6878 = vmatpush2.bf16.msra.mxu0 %v6806
  %6879 = vmatprep.subr.bf16.mxu0 0
  %6880 = vmatpush2.bf16.msra.mxu0 %v6805
  %6881 = vmatprep.subr.bf16.mxu0 0
  %6882 = vmatpush2.bf16.msra.mxu0 %v6804
  %6883 = vmatprep.subr.bf16.mxu0 0
  %6884 = vmatpush2.bf16.msra.mxu0 %v6803
  %6885 = vmatprep.subr.bf16.mxu0 0
  %6886 = vmatpush2.bf16.msra.mxu0 %v6802
  %6887 = vmatprep.subr.bf16.mxu0 0
  %6888 = vmatpush2.bf16.msra.mxu0 %v6801
  %6889 = vmatprep.mubr.bf16.mxu0 %v6548
  %6890 = vmatmul.mubr.bf16.gmra.mxu0 %v6547
  %v6891 = vpop.f32.mrf.mxu0
  %v6892 = vadd.f32 %v6660, %v6891
  %v6893 = vpop.f32.mrf.mxu0
  %v6894 = vpop.f32.mrf.mxu0
  %v6895 = vpop.f32.mrf.mxu0
  %6896 = vdwg.mxu0
  %6897 = vmatprep.subr.bf16.mxu0 0
  %6898 = vmatpush1.bf16.msra.mxu0 %v6816
  %6899 = vmatprep.subr.bf16.mxu0 0
  %6900 = vmatpush1.bf16.msra.mxu0 %v6815
  %6901 = vmatprep.subr.bf16.mxu0 0
  %6902 = vmatpush1.bf16.msra.mxu0 %v6814
  %6903 = vmatprep.subr.bf16.mxu0 0
  %6904 = vmatpush1.bf16.msra.mxu0 %v6813
  %6905 = vmatprep.subr.bf16.mxu0 0
  %6906 = vmatpush1.bf16.msra.mxu0 %v6812
  %6907 = vmatprep.subr.bf16.mxu0 0
  %6908 = vmatpush1.bf16.msra.mxu0 %v6811
  %6909 = vmatprep.subr.bf16.mxu0 0
  %6910 = vmatpush1.bf16.msra.mxu0 %v6810
  %6911 = vmatprep.subr.bf16.mxu0 0
  %6912 = vmatpush1.bf16.msra.mxu0 %v6809
  %6913 = vmatprep.subr.bf16.mxu0 0
  %6914 = vmatpush2.bf16.msra.mxu0 %v6824
  %6915 = vmatprep.subr.bf16.mxu0 0
  %6916 = vmatpush2.bf16.msra.mxu0 %v6823
  %6917 = vmatprep.subr.bf16.mxu0 0
  %6918 = vmatpush2.bf16.msra.mxu0 %v6822
  %6919 = vmatprep.subr.bf16.mxu0 0
  %6920 = vmatpush2.bf16.msra.mxu0 %v6821
  %6921 = vmatprep.subr.bf16.mxu0 0
  %6922 = vmatpush2.bf16.msra.mxu0 %v6820
  %6923 = vmatprep.subr.bf16.mxu0 0
  %6924 = vmatpush2.bf16.msra.mxu0 %v6819
  %6925 = vmatprep.subr.bf16.mxu0 0
  %6926 = vmatpush2.bf16.msra.mxu0 %v6818
  %6927 = vmatprep.subr.bf16.mxu0 0
  %6928 = vmatpush2.bf16.msra.mxu0 %v6817
  %6929 = vmatprep.mubr.bf16.mxu0 %v6550
  %6930 = vmatmul.mubr.bf16.gmra.mxu0 %v6549
  %v6931 = vpop.f32.mrf.mxu0
  %v6932 = vadd.f32 %v6892, %v6931
  %v6933 = vpop.f32.mrf.mxu0
  %v6934 = vpop.f32.mrf.mxu0
  %v6935 = vpop.f32.mrf.mxu0
  %6936 = vdwg.mxu0
  %v6937 = vld [vmem:[%s12] sm:$0x1]
  %v6939 = vlaneseq
  %v6940 = vshrl.u32 %v6939, 7
  %v6941 = vsub.s32 0, %v6940
  %v6942 = vrot.slane %v6937, %v6941
  %v6944 = vadd.f32 %v6932, %v6942
  %6945 = vst [vmem:[%s13] sm:$0x3] %v6944
  // Predicated region
  $region54: #{critic_forward.1} parent=0 // pred_check
    _
  $region55: #{critic_forward.1} parent=0 // pred_check_branch
    %6947 = sbr.rel (0) target = $region57
  $region56: #{critic_forward.1} parent=0 // pred_region
    _
  $region57: #{critic_forward.1} parent=0 // pred_fallthru
    _
  // Predicated region
  $region58: #{critic_forward.1} parent=0 // pred_check
    _
  $region59: #{critic_forward.1} parent=0 // pred_check_branch
    %6949 = sbr.rel (0) target = $region61
  $region60: #{critic_forward.1} parent=0 // pred_region
    _
  $region61: #{critic_forward.1} parent=0 // pred_fallthru
    _

</llo_original>
